<compile_context>
chip_gen: v7x
topology: tpu7x:2x2x1
jax: 0.10.0
libtpu: 0.0.40
codegen_flags: <defaults>
</compile_context>

<pallas_src>
import functools

import numpy as np
import jax
import jax.numpy as jnp
from jax import lax
from jax.experimental import pallas as pl
from jax.experimental.pallas import tpu as pltpu


# ----------------------------------------------------------------------------
# Tiling helper
# ----------------------------------------------------------------------------

def _pick_group_tile(n_groups, nsample, c_sum, budget_bytes=2 << 20):
    """Largest group tile that (a) divides n_groups, (b) is sublane-aligned
    (multiple of 8) or the full extent, (c) keeps the in-kernel f32 MLP
    intermediates (tile_g * nsample * (C0+C1+C2) * 4B) near `budget_bytes`,
    preferring >=2 grid steps (v7x megacore / 2-TC sharding)."""
    max_tile = max(1, budget_bytes // (nsample * c_sum * 4))
    cands = [t for t in range(n_groups, 0, -1)
             if n_groups % t == 0 and (t % 8 == 0 or t == n_groups)]
    for t in cands:
        if t <= max_tile and n_groups // t >= 2:
            return t
    for t in cands:
        if t <= max_tile:
            return t
    return cands[-1] if cands else n_groups


# ----------------------------------------------------------------------------
# Pallas kernels (fused MLP chains; BN folded; bf16 MXU operands, f32 accum)
# ----------------------------------------------------------------------------

def _sa_mlp_pool_kernel(*refs, nsample, has_feat):
    """Fused SurfaceAbstractionCD MLP + max-pool over nsample.

    Inputs (bf16 rows, channels-last):
      xg:  [tile_g*K, 10]   geometry rows (rel. center 3 | repsurf normal 7)
      xf:  [tile_g*K, Cf]   prior-stage feature rows (lane-dense), only if has_feat
    Weights (bf16, BN scale folded), biases (f32, [1, C]).
    Output: [tile_g, Cout] bf16 per-group max-pooled feature.
    """
    if has_feat:
        (xg_ref, xf_ref, w0g_ref, w0f_ref, b0_ref,
         w1_ref, b1_ref, w2_ref, b2_ref, o_ref) = refs
        h = jnp.dot(xg_ref[...], w0g_ref[...], preferred_element_type=jnp.float32)
        h = h + jnp.dot(xf_ref[...], w0f_ref[...], preferred_element_type=jnp.float32)
    else:
        (xg_ref, w0g_ref, b0_ref,
         w1_ref, b1_ref, w2_ref, b2_ref, o_ref) = refs
        h = jnp.dot(xg_ref[...], w0g_ref[...], preferred_element_type=jnp.float32)
    h = jnp.maximum(h + b0_ref[...], 0.0)
    h = jnp.dot(h.astype(w1_ref.dtype), w1_ref[...], preferred_element_type=jnp.float32)
    h = jnp.maximum(h + b1_ref[...], 0.0)
    h = jnp.dot(h.astype(w2_ref.dtype), w2_ref[...], preferred_element_type=jnp.float32)
    h = jnp.maximum(h + b2_ref[...], 0.0)
    rows, cout = h.shape
    # nsample is a multiple of 8 at these configs, so the sublane-axis split is
    # tile-aligned (no relayout) and the max is a cheap VPU reduce.
    pooled = jnp.max(h.reshape(rows // nsample, nsample, cout), axis=1)
    o_ref[...] = pooled.astype(o_ref.dtype)


def fused_sa_mlp(geom_rows, feat_rows, prm, *, n_groups, nsample):
    """geom_rows: [G*K, 10] bf16; feat_rows: [G*K, Cf] bf16 or None.
    Returns [G, Cout] bf16 pooled features (G = B*S groups)."""
    Cg = geom_rows.shape[-1]
    w0g, b0 = prm["0g"]["w"], prm["0g"]["b"]
    w1, b1 = prm["1"]["w"], prm["1"]["b"]
    w2, b2 = prm["2"]["w"], prm["2"]["b"]
    C0, C1, C2 = w0g.shape[1], w1.shape[1], w2.shape[1]
    tile_g = _pick_group_tile(n_groups, nsample, C0 + C1 + C2)
    grid = (n_groups // tile_g,)
    rows_spec = lambda c: pl.BlockSpec((tile_g * nsample, c), lambda i: (i, 0))
    w_spec = lambda a, b: pl.BlockSpec((a, b), lambda i: (0, 0))

    if feat_rows is None:
        kernel = functools.partial(_sa_mlp_pool_kernel, nsample=nsample, has_feat=False)
        in_specs = [rows_spec(Cg), w_spec(Cg, C0), w_spec(1, C0),
                    w_spec(C0, C1), w_spec(1, C1), w_spec(C1, C2), w_spec(1, C2)]
        args = (geom_rows, w0g, b0, w1, b1, w2, b2)
    else:
        Cf = feat_rows.shape[-1]
        w0f = prm["0f"]["w"]
        kernel = functools.partial(_sa_mlp_pool_kernel, nsample=nsample, has_feat=True)
        in_specs = [rows_spec(Cg), rows_spec(Cf),
                    w_spec(Cg, C0), w_spec(Cf, C0), w_spec(1, C0),
                    w_spec(C0, C1), w_spec(1, C1), w_spec(C1, C2), w_spec(1, C2)]
        args = (geom_rows, feat_rows, w0g, w0f, b0, w1, b1, w2, b2)

    return pl.pallas_call(
        kernel,
        out_shape=jax.ShapeDtypeStruct((n_groups, C2), jnp.bfloat16),
        grid=grid,
        in_specs=in_specs,
        out_specs=pl.BlockSpec((tile_g, C2), lambda i: (i, 0)),
        compiler_params=pltpu.CompilerParams(dimension_semantics=("parallel",)),
    )(*args)


def _classifier_kernel(x_ref, w1_ref, b1_ref, w2_ref, b2_ref, w3_ref, b3_ref, o_ref):
    """Fused classifier head: Linear+BN+ReLU, Linear+BN+ReLU, Linear (lane-padded),
    log_softmax.  Padded logits carry a -1e30 bias so they vanish in the softmax."""
    x = x_ref[...]
    h = jnp.dot(x, w1_ref[...], preferred_element_type=jnp.float32)
    h = jnp.maximum(h + b1_ref[...], 0.0)
    h = jnp.dot(h.astype(w2_ref.dtype), w2_ref[...], preferred_element_type=jnp.float32)
    h = jnp.maximum(h + b2_ref[...], 0.0)
    h = jnp.dot(h.astype(w3_ref.dtype), w3_ref[...], preferred_element_type=jnp.float32)
    h = h + b3_ref[...]
    m = jnp.max(h, axis=-1, keepdims=True)
    lse = jnp.log(jnp.sum(jnp.exp(h - m), axis=-1, keepdims=True)) + m
    o_ref[...] = h - lse


def fused_classifier(x, p1, p2, p3, *, num_class):
    """x: [B, 1024] (bf16) -> log-probs [B, num_class].  One kernel; output is a
    lane-dense [B, 128-padded] slab, sliced in the wrapper."""
    B = x.shape[0]
    padded = p3["w"].shape[1]
    out = pl.pallas_call(
        _classifier_kernel,
        out_shape=jax.ShapeDtypeStruct((B, padded), jnp.float32),
    )(x.astype(jnp.bfloat16), p1["w"], p1["b"], p2["w"], p2["b"], p3["w"], p3["b"])
    return out[:, :num_class]


# ----------------------------------------------------------------------------
# Point-cloud glue (plain JAX): sampling / neighbor search / geometry
# ----------------------------------------------------------------------------

def square_distance(src, dst):
    return jnp.sum((src[:, :, None, :] - dst[:, None, :, :]) ** 2, axis=-1)


def index_points(points, idx):
    return jax.vmap(lambda p, i: p[i])(points, idx)


def farthest_point_sample(xyz, npoint):
    B, N, _ = xyz.shape

    def step(carry, _):
        dist, farthest = carry
        centroid = jax.vmap(lambda x, f: x[f])(xyz, farthest)          # [B, 3]
        d = jnp.sum((xyz - centroid[:, None, :]) ** 2, axis=-1)
        dist = jnp.minimum(dist, d)
        nxt = jnp.argmax(dist, axis=-1).astype(jnp.int32)
        return (dist, nxt), farthest

    init = (jnp.full((B, N), 1e10, jnp.float32), jnp.zeros((B,), jnp.int32))
    _, idxs = lax.scan(step, init, None, length=npoint)
    return jnp.transpose(idxs, (1, 0))                                  # [B, npoint]


def query_ball_point(radius, nsample, xyz, new_xyz):
    B, N, _ = xyz.shape
    S = new_xyz.shape[1]
    sqrdists = square_distance(new_xyz, xyz)                            # [B, S, N]
    group_idx = jnp.broadcast_to(jnp.arange(N, dtype=jnp.int32), (B, S, N))
    group_idx = jnp.where(sqrdists > radius ** 2, N, group_idx)
    group_idx = jnp.sort(group_idx, axis=-1)[:, :, :nsample]
    group_first = jnp.broadcast_to(group_idx[:, :, :1], group_idx.shape)
    group_idx = jnp.where(group_idx == N, group_first, group_idx)
    return group_idx


def knn_point(k, xyz, new_xyz):
    d = square_distance(new_xyz, xyz)
    return jnp.argsort(d, axis=-1)[:, :, :k]


def xyz2sphere(xyz, normalize=True):
    rho = jnp.sqrt(jnp.sum(xyz ** 2, axis=-1, keepdims=True))
    theta = jnp.arccos(jnp.clip(xyz[..., 2:3] / jnp.maximum(rho, 1e-10), -1.0, 1.0))
    phi = jnp.arctan2(xyz[..., 1:2], xyz[..., 0:1])
    if normalize:
        theta = theta / np.pi
        phi = phi / (2.0 * np.pi) + 0.5
    return jnp.concatenate([rho, theta, phi], axis=-1)


def cal_normal(tri):
    # tri: [..., 3 vertices, 3 coords]
    e1 = tri[..., 1, :] - tri[..., 0, :]
    e2 = tri[..., 2, :] - tri[..., 0, :]
    nor = jnp.cross(e1, e2)
    unit = nor / jnp.maximum(jnp.linalg.norm(nor, axis=-1, keepdims=True), 1e-10)
    # deterministic group orientation: flip the whole fan by the first triangle's x sign
    first_x = unit[..., 0:1, 0]
    mask = jnp.where(first_x > 0, 1.0, -1.0)[..., None]
    return unit * mask


# ----------------------------------------------------------------------------
# Model blocks (channels-last throughout)
# ----------------------------------------------------------------------------

def triangle_surface_constructor(xyz, params, *, k):
    """xyz: [B, N, 3] -> repsurf feature ('normal') [B, N, 7] (channels-last)."""
    B, N, _ = xyz.shape
    idx = knn_point(k, xyz, xyz)                                        # [B, N, k] (self incl.)
    neigh = index_points(xyz, idx)[:, :, 1:, :] - xyz[:, :, None, :]    # [B, N, k-1, 3]
    # order neighbors by azimuth so consecutive ones form an umbrella of triangles
    phi = xyz2sphere(neigh)[..., 2]                                     # [B, N, k-1]
    order = jnp.broadcast_to(jnp.argsort(phi, axis=-1)[..., None], neigh.shape)
    sorted_n = jnp.take_along_axis(neigh, order, axis=2)
    rolled = jnp.roll(sorted_n, -1, axis=2)
    zeros = jnp.zeros_like(sorted_n)
    tri = jnp.stack([zeros, sorted_n, rolled], axis=-2)                 # [B, N, k-1, 3, 3]

    normal = cal_normal(tri)                                            # [B, N, k-1, 3]
    centroid = jnp.mean(tri, axis=-2)                                   # [B, N, k-1, 3]
    pos = -jnp.sum(normal * centroid, axis=-1, keepdims=True)           # plane offset
    feat = jnp.nan_to_num(jnp.concatenate([centroid, normal, pos], axis=-1))  # [B,N,k-1,7]

    # Tiny 7->7 (+BN+ReLU) -> 7->7 MLP + sum-pool over the umbrella triangles:
    # left to XLA (VPU-sized); running it as 7-lane MXU matmuls in a Pallas kernel
    # wasted >90% of each vreg / MXU pass and produced masked partial stores.
    w1, b1 = params["sc1"]["w"], params["sc1"]["b"]
    w2, b2 = params["sc2"]["w"], params["sc2"]["b"]
    h = jnp.maximum(jnp.einsum("bntc,cd->bntd", feat, w1) + b1, 0.0)
    h = jnp.einsum("bntc,cd->bntd", h, w2) + b2
    return jnp.sum(h, axis=2)                                           # umb_pool='sum'


def surface_abstraction_cd(xyz, nor, feat, prm, *, npoint, radius, nsample, group_all):
    """Surface abstraction with channel de-differentiation.  The l0/f0 pair is
    merged algebraically; the wide prior-feature block keeps its own lane-dense
    matmul inside the fused kernel."""
    B, N, _ = xyz.shape
    if group_all:
        new_xyz = jnp.zeros((B, 1, 3), jnp.float32)
        new_nor = jnp.zeros((B, 1, nor.shape[-1]), jnp.float32)
        g_geom = jnp.concatenate([xyz, nor], axis=-1)[:, None]          # [B, 1, N, 10]
        g_feat = None if feat is None else feat[:, None]                # [B, 1, N, Cf]
        S, K = 1, N
    else:
        fps_idx = farthest_point_sample(xyz, npoint)
        new_xyz = index_points(xyz, fps_idx)
        new_nor = index_points(nor, fps_idx)
        idx = query_ball_point(radius, nsample, xyz, new_xyz)
        g_center = index_points(xyz, idx) - new_xyz[:, :, None, :]
        g_normal = index_points(nor, idx)
        g_geom = jnp.concatenate([g_center, g_normal], axis=-1)         # [B, S, K, 10]
        g_feat = None if feat is None else index_points(feat, idx)      # [B, S, K, Cf]
        S, K = npoint, nsample

    G = B * S
    geom_rows = g_geom.reshape(G * K, g_geom.shape[-1]).astype(jnp.bfloat16)
    feat_rows = (None if g_feat is None
                 else g_feat.reshape(G * K, g_feat.shape[-1]).astype(jnp.bfloat16))
    pooled = fused_sa_mlp(geom_rows, feat_rows, prm, n_groups=G, nsample=K)  # [G, Cout] bf16
    new_feat = pooled.reshape(B, S, -1)
    return new_xyz, new_nor, new_feat


def model_forward(points, params, cfg):
    """points: [B, C>=3, N] (PyTorch layout); only the first 3 channels are used."""
    xyz = jnp.transpose(points[:, :3, :], (0, 2, 1))                    # one-time to [B, N, 3]
    normal = triangle_surface_constructor(xyz, params, k=cfg["group_size"] + 1)
    xyz, nor, feat = surface_abstraction_cd(
        xyz, normal, None, params["sa1"],
        npoint=cfg["sa1_npoint"], radius=0.2, nsample=cfg["sa1_nsample"], group_all=False)
    xyz, nor, feat = surface_abstraction_cd(
        xyz, nor, feat, params["sa2"],
        npoint=cfg["sa2_npoint"], radius=0.4, nsample=cfg["sa2_nsample"], group_all=False)
    xyz, nor, feat = surface_abstraction_cd(
        xyz, nor, feat, params["sa3"],
        npoint=None, radius=None, nsample=None, group_all=True)

    flat = feat.reshape(-1, 1024)
    # fc1+BN+ReLU, Dropout(eval=id), fc2+BN+ReLU, Dropout(eval=id), fc3, log_softmax
    return fused_classifier(flat, params["fc1"], params["fc2"], params["fc3"],
                            num_class=cfg["num_class"])


# ----------------------------------------------------------------------------
# Deterministic parameter init (BN folded into weight/bias, eval mode; bf16 weights)
# ----------------------------------------------------------------------------

def _linear_bn(key, cin, cout, with_bn=True, eps=1e-5):
    k1, k2, k3, k4 = jax.random.split(key, 4)
    w = jax.random.normal(k1, (cin, cout), jnp.float32) / np.sqrt(cin)
    b = 0.01 * jax.random.normal(k2, (cout,), jnp.float32)
    if with_bn:
        gamma = 1.0 + 0.1 * jax.random.normal(k3, (cout,), jnp.float32)
        beta = 0.1 * jax.random.normal(k4, (cout,), jnp.float32)
        mean = jnp.zeros((cout,), jnp.float32)
        var = jnp.ones((cout,), jnp.float32)
        scale = gamma / jnp.sqrt(var + eps)
        w = w * scale[None, :]                 # fold BN scale into the weight
        b = scale * (b - mean) + beta
    return w, b


def _pack(w, b):
    return {"w": w.astype(jnp.bfloat16), "b": b.reshape(1, -1).astype(jnp.float32)}


def init_params(key, num_class):
    ks = iter(jax.random.split(key, 24))
    nk = lambda: next(ks)
    p = {}
    # TriangleSurfaceConstructor MLP: Conv2d(7,7,1)+BN+ReLU, Conv2d(7,7,1); f32,
    # evaluated by XLA (not a Pallas kernel — see triangle_surface_constructor).
    w, b = _linear_bn(nk(), 7, 7, True)
    p["sc1"] = {"w": w, "b": b.reshape(1, -1)}
    w, b = _linear_bn(nk(), 7, 7, False)
    p["sc2"] = {"w": w, "b": b.reshape(1, -1)}

    def sa(feat_prev, c0, c1, c2):
        # l0: pos(3)->c0, f0: (7 + feat_prev)->c0.
        # relu((x_pos@Wl+bl)+(x_fea@Wf+bf)) == relu(x_geom@[Wl;Wf[:7]] + x_feat@Wf[7:] + (bl+bf))
        wl, bl = _linear_bn(nk(), 3, c0, True)
        wf, bf = _linear_bn(nk(), 7 + feat_prev, c0, True)
        w1, b1 = _linear_bn(nk(), c0, c1, True)
        w2, b2 = _linear_bn(nk(), c1, c2, True)
        d = {"0g": _pack(jnp.concatenate([wl, wf[:7]], axis=0), bl + bf),
             "1": _pack(w1, b1),
             "2": _pack(w2, b2)}
        if feat_prev > 0:
            d["0f"] = {"w": wf[7:].astype(jnp.bfloat16)}   # bias already in "0g"
        return d

    p["sa1"] = sa(0, 64, 64, 128)      # mlp=[64,64,128],   feat=7
    p["sa2"] = sa(128, 128, 128, 256)  # mlp=[128,128,256], feat=128+7
    p["sa3"] = sa(256, 256, 512, 1024) # mlp=[256,512,1024], feat=256+7 (group_all)

    # classifier: 1024->512 (+BN+ReLU), 512->256 (+BN+ReLU), 256->num_class
    p["fc1"] = _pack(*_linear_bn(nk(), 1024, 512, True))
    p["fc2"] = _pack(*_linear_bn(nk(), 512, 256, True))
    w3, b3 = _linear_bn(nk(), 256, num_class, False)
    # pad fc3 to a lane-dense 128-multiple; padded logits get a -1e30 bias so the
    # log_softmax over real classes is unchanged and the store is unmasked.
    padded = max(128, ((num_class + 127) // 128) * 128)
    w3p = jnp.pad(w3, ((0, 0), (0, padded - num_class)))
    b3p = jnp.concatenate([b3, jnp.full((padded - num_class,), -1e30, jnp.float32)])
    p["fc3"] = _pack(w3p, b3p)
    return p


# ----------------------------------------------------------------------------

if __name__ == "__main__":
    cfg = {
        "num_point": 128,     # scaled-down args.num_point
        "group_size": 8,      # args.group_size  (k = group_size + 1)
        "num_class": 10,      # args.num_class
        "sa1_npoint": 32, "sa1_nsample": 16,   # scaled-down from 512/32
        "sa2_npoint": 16, "sa2_nsample": 16,   # scaled-down from 128/64
    }
    key = jax.random.PRNGKey(0)
    kp, kx = jax.random.split(key)
    params = init_params(kp, cfg["num_class"])
    points = jax.random.normal(kx, (2, 3, cfg["num_point"]), jnp.float32)

    fwd = jax.jit(lambda pts: model_forward(pts, params, cfg))
    out = jax.block_until_ready(fwd(points))

    assert out.shape == (2, cfg["num_class"])
    assert bool(jnp.all(jnp.isfinite(out)))
    # rows of log_softmax must normalize to 1 in prob space
    assert bool(jnp.allclose(jnp.sum(jnp.exp(out), axis=-1), 1.0, atol=1e-3))
    print("KERNEL_OK")
</pallas_src>

<mosaic_0001>
module attributes {stable_mosaic.version = 11 : i64} {
  func.func private @main(%arg0: i32) attributes {dimension_semantics = [#tpu.dimension_semantics<core_parallel>], iteration_bounds = array<i64: 2>, tpu.core_type = #tpu.core_type<sc_scalar_subcore>, window_params = []} {
    return
  }
}

module attributes {stable_mosaic.version = 11 : i64} {
  func.func private @main(%arg0: i32) attributes {dimension_semantics = [#tpu.dimension_semantics<core_parallel>], iteration_bounds = array<i64: 2>, tpu.core_type = #tpu.core_type<sc_scalar_subcore>, window_params = []} {
    return
  }
}

module attributes {stable_mosaic.version = 11 : i64} {
  func.func @_sa_mlp_pool_kernel(%arg0: i32, %arg1: memref<512x10xbf16, #tpu.memory_space<vmem>>, %arg2: memref<10x64xbf16, #tpu.memory_space<vmem>>, %arg3: memref<1x64xf32, #tpu.memory_space<vmem>>, %arg4: memref<64x64xbf16, #tpu.memory_space<vmem>>, %arg5: memref<1x64xf32, #tpu.memory_space<vmem>>, %arg6: memref<64x128xbf16, #tpu.memory_space<vmem>>, %arg7: memref<1x128xf32, #tpu.memory_space<vmem>>, %arg8: memref<32x128xbf16, #tpu.memory_space<vmem>>) attributes {dimension_semantics = [#tpu.dimension_semantics<parallel>], iteration_bounds = array<i64: 2>, scalar_prefetch = 0 : i64, scratch_operands = 0 : i64, tpu.core_type = #tpu.core_type<tc>, window_params = [{transform_indices = @transform_0, window_bounds = array<i64: 512, 10>}, {pipeline_mode = #tpu.pipeline_mode<synchronous>, transform_indices = @transform_1, window_bounds = array<i64: 10, 64>}, {pipeline_mode = #tpu.pipeline_mode<synchronous>, transform_indices = @transform_2, window_bounds = array<i64: 1, 64>}, {pipeline_mode = #tpu.pipeline_mode<synchronous>, transform_indices = @transform_3, window_bounds = array<i64: 64, 64>}, {pipeline_mode = #tpu.pipeline_mode<synchronous>, transform_indices = @transform_4, window_bounds = array<i64: 1, 64>}, {pipeline_mode = #tpu.pipeline_mode<synchronous>, transform_indices = @transform_5, window_bounds = array<i64: 64, 128>}, {pipeline_mode = #tpu.pipeline_mode<synchronous>, transform_indices = @transform_6, window_bounds = array<i64: 1, 128>}, {transform_indices = @transform_7, window_bounds = array<i64: 32, 128>}]} {
    %c0 = arith.constant 0 : index
    %c0_0 = arith.constant 0 : index
    %0 = vector.load %arg1[%c0, %c0_0] : memref<512x10xbf16, #tpu.memory_space<vmem>>, vector<512x10xbf16>
    %c0_1 = arith.constant 0 : index
    %c0_2 = arith.constant 0 : index
    %1 = vector.load %arg2[%c0_1, %c0_2] : memref<10x64xbf16, #tpu.memory_space<vmem>>, vector<10x64xbf16>
    %cst = arith.constant dense<0.000000e+00> : vector<512x64xf32>
    %2 = tpu.matmul %0, %1, %cst {dimension_numbers = #tpu.dot_dimension_numbers<[1], [0], [0], [1], [0, 0, 1, 1], [], []>} : vector<512x10xbf16>, vector<10x64xbf16>, vector<512x64xf32> -> vector<512x64xf32>
    %c0_3 = arith.constant 0 : index
    %c0_4 = arith.constant 0 : index
    %3 = vector.load %arg3[%c0_3, %c0_4] : memref<1x64xf32, #tpu.memory_space<vmem>>, vector<1x64xf32>
    %4 = vector.broadcast %3 : vector<1x64xf32> to vector<512x64xf32>
    %5 = arith.addf %2, %4 : vector<512x64xf32>
    %cst_5 = arith.constant 0.000000e+00 : f32
    %6 = vector.broadcast %cst_5 : f32 to vector<512x64xf32>
    %7 = arith.maximumf %5, %6 : vector<512x64xf32>
    %8 = arith.truncf %7 : vector<512x64xf32> to vector<512x64xbf16>
    %c0_6 = arith.constant 0 : index
    %c0_7 = arith.constant 0 : index
    %9 = vector.load %arg4[%c0_6, %c0_7] : memref<64x64xbf16, #tpu.memory_space<vmem>>, vector<64x64xbf16>
    %cst_8 = arith.constant dense<0.000000e+00> : vector<512x64xf32>
    %10 = tpu.matmul %8, %9, %cst_8 {dimension_numbers = #tpu.dot_dimension_numbers<[1], [0], [0], [1], [0, 0, 1, 1], [], []>} : vector<512x64xbf16>, vector<64x64xbf16>, vector<512x64xf32> -> vector<512x64xf32>
    %c0_9 = arith.constant 0 : index
    %c0_10 = arith.constant 0 : index
    %11 = vector.load %arg5[%c0_9, %c0_10] : memref<1x64xf32, #tpu.memory_space<vmem>>, vector<1x64xf32>
    %12 = vector.broadcast %11 : vector<1x64xf32> to vector<512x64xf32>
    %13 = arith.addf %10, %12 : vector<512x64xf32>
    %cst_11 = arith.constant 0.000000e+00 : f32
    %14 = vector.broadcast %cst_11 : f32 to vector<512x64xf32>
    %15 = arith.maximumf %13, %14 : vector<512x64xf32>
    %16 = arith.truncf %15 : vector<512x64xf32> to vector<512x64xbf16>
    %c0_12 = arith.constant 0 : index
    %c0_13 = arith.constant 0 : index
    %17 = vector.load %arg6[%c0_12, %c0_13] : memref<64x128xbf16, #tpu.memory_space<vmem>>, vector<64x128xbf16>
    %cst_14 = arith.constant dense<0.000000e+00> : vector<512x128xf32>
    %18 = tpu.matmul %16, %17, %cst_14 {dimension_numbers = #tpu.dot_dimension_numbers<[1], [0], [0], [1], [0, 0, 1, 1], [], []>} : vector<512x64xbf16>, vector<64x128xbf16>, vector<512x128xf32> -> vector<512x128xf32>
    %c0_15 = arith.constant 0 : index
    %c0_16 = arith.constant 0 : index
    %19 = vector.load %arg7[%c0_15, %c0_16] : memref<1x128xf32, #tpu.memory_space<vmem>>, vector<1x128xf32>
    %20 = vector.broadcast %19 : vector<1x128xf32> to vector<512x128xf32>
    %21 = arith.addf %18, %20 : vector<512x128xf32>
    %cst_17 = arith.constant 0.000000e+00 : f32
    %22 = vector.broadcast %cst_17 : f32 to vector<512x128xf32>
    %23 = arith.maximumf %21, %22 : vector<512x128xf32>
    %24 = vector.shape_cast %23 : vector<512x128xf32> to vector<32x16x128xf32>
    %cst_18 = arith.constant dense<0xFF800000> : vector<32x128xf32>
    %25 = vector.multi_reduction <maximumf>, %24, %cst_18 [1] : vector<32x16x128xf32> to vector<32x128xf32>
    %26 = arith.truncf %25 : vector<32x128xf32> to vector<32x128xbf16>
    %c0_19 = arith.constant 0 : index
    %c0_20 = arith.constant 0 : index
    %27 = vector.load %arg8[%c0_19, %c0_20] : memref<32x128xbf16, #tpu.memory_space<vmem>>, vector<32x128xbf16>
    tpu.vector_store %arg8[%c0_19, %c0_20], %26 {strides = array<i32>} : memref<32x128xbf16, #tpu.memory_space<vmem>>, vector<32x128xbf16>,
    return
  }
  func.func @transform_0(%arg0: i32) -> (i32, i32) {
    %c0_i32 = arith.constant 0 : i32
    %c0_i32_0 = arith.constant 0 : i32
    return %arg0, %c0_i32 : i32, i32
  }
  func.func @transform_1(%arg0: i32) -> (i32, i32) {
    %c0_i32 = arith.constant 0 : i32
    %c0_i32_0 = arith.constant 0 : i32
    %c0_i32_1 = arith.constant 0 : i32
    return %c0_i32, %c0_i32_0 : i32, i32
  }
  func.func @transform_2(%arg0: i32) -> (i32, i32) {
    %c0_i32 = arith.constant 0 : i32
    %c0_i32_0 = arith.constant 0 : i32
    %c0_i32_1 = arith.constant 0 : i32
    return %c0_i32, %c0_i32_0 : i32, i32
  }
  func.func @transform_3(%arg0: i32) -> (i32, i32) {
    %c0_i32 = arith.constant 0 : i32
    %c0_i32_0 = arith.constant 0 : i32
    %c0_i32_1 = arith.constant 0 : i32
    return %c0_i32, %c0_i32_0 : i32, i32
  }
  func.func @transform_4(%arg0: i32) -> (i32, i32) {
    %c0_i32 = arith.constant 0 : i32
    %c0_i32_0 = arith.constant 0 : i32
    %c0_i32_1 = arith.constant 0 : i32
    return %c0_i32, %c0_i32_0 : i32, i32
  }
  func.func @transform_5(%arg0: i32) -> (i32, i32) {
    %c0_i32 = arith.constant 0 : i32
    %c0_i32_0 = arith.constant 0 : i32
    %c0_i32_1 = arith.constant 0 : i32
    return %c0_i32, %c0_i32_0 : i32, i32
  }
  func.func @transform_6(%arg0: i32) -> (i32, i32) {
    %c0_i32 = arith.constant 0 : i32
    %c0_i32_0 = arith.constant 0 : i32
    %c0_i32_1 = arith.constant 0 : i32
    return %c0_i32, %c0_i32_0 : i32, i32
  }
  func.func @transform_7(%arg0: i32) -> (i32, i32) {
    %c0_i32 = arith.constant 0 : i32
    %c0_i32_0 = arith.constant 0 : i32
    return %arg0, %c0_i32 : i32, i32
  }
}

module attributes {stable_mosaic.version = 11 : i64} {
  func.func @_sa_mlp_pool_kernel(%arg0: i32, %arg1: memref<256x10xbf16, #tpu.memory_space<vmem>>, %arg2: memref<256x128xbf16, #tpu.memory_space<vmem>>, %arg3: memref<10x128xbf16, #tpu.memory_space<vmem>>, %arg4: memref<128x128xbf16, #tpu.memory_space<vmem>>, %arg5: memref<1x128xf32, #tpu.memory_space<vmem>>, %arg6: memref<128x128xbf16, #tpu.memory_space<vmem>>, %arg7: memref<1x128xf32, #tpu.memory_space<vmem>>, %arg8: memref<128x256xbf16, #tpu.memory_space<vmem>>, %arg9: memref<1x256xf32, #tpu.memory_space<vmem>>, %arg10: memref<16x256xbf16, #tpu.memory_space<vmem>>) attributes {dimension_semantics = [#tpu.dimension_semantics<parallel>], iteration_bounds = array<i64: 2>, scalar_prefetch = 0 : i64, scratch_operands = 0 : i64, tpu.core_type = #tpu.core_type<tc>, window_params = [{transform_indices = @transform_0, window_bounds = array<i64: 256, 10>}, {transform_indices = @transform_1, window_bounds = array<i64: 256, 128>}, {pipeline_mode = #tpu.pipeline_mode<synchronous>, transform_indices = @transform_2, window_bounds = array<i64: 10, 128>}, {pipeline_mode = #tpu.pipeline_mode<synchronous>, transform_indices = @transform_3, window_bounds = array<i64: 128, 128>}, {pipeline_mode = #tpu.pipeline_mode<synchronous>, transform_indices = @transform_4, window_bounds = array<i64: 1, 128>}, {pipeline_mode = #tpu.pipeline_mode<synchronous>, transform_indices = @transform_5, window_bounds = array<i64: 128, 128>}, {pipeline_mode = #tpu.pipeline_mode<synchronous>, transform_indices = @transform_6, window_bounds = array<i64: 1, 128>}, {pipeline_mode = #tpu.pipeline_mode<synchronous>, transform_indices = @transform_7, window_bounds = array<i64: 128, 256>}, {pipeline_mode = #tpu.pipeline_mode<synchronous>, transform_indices = @transform_8, window_bounds = array<i64: 1, 256>}, {transform_indices = @transform_9, window_bounds = array<i64: 16, 256>}]} {
    %c0 = arith.constant 0 : index
    %c0_0 = arith.constant 0 : index
    %0 = vector.load %arg1[%c0, %c0_0] : memref<256x10xbf16, #tpu.memory_space<vmem>>, vector<256x10xbf16>
    %c0_1 = arith.constant 0 : index
    %c0_2 = arith.constant 0 : index
    %1 = vector.load %arg3[%c0_1, %c0_2] : memref<10x128xbf16, #tpu.memory_space<vmem>>, vector<10x128xbf16>
    %cst = arith.constant dense<0.000000e+00> : vector<256x128xf32>
    %2 = tpu.matmul %0, %1, %cst {dimension_numbers = #tpu.dot_dimension_numbers<[1], [0], [0], [1], [0, 0, 1, 1], [], []>} : vector<256x10xbf16>, vector<10x128xbf16>, vector<256x128xf32> -> vector<256x128xf32>
    %c0_3 = arith.constant 0 : index
    %c0_4 = arith.constant 0 : index
    %3 = vector.load %arg2[%c0_3, %c0_4] : memref<256x128xbf16, #tpu.memory_space<vmem>>, vector<256x128xbf16>
    %c0_5 = arith.constant 0 : index
    %c0_6 = arith.constant 0 : index
    %4 = vector.load %arg4[%c0_5, %c0_6] : memref<128x128xbf16, #tpu.memory_space<vmem>>, vector<128x128xbf16>
    %cst_7 = arith.constant dense<0.000000e+00> : vector<256x128xf32>
    %5 = tpu.matmul %3, %4, %cst_7 {dimension_numbers = #tpu.dot_dimension_numbers<[1], [0], [0], [1], [0, 0, 1, 1], [], []>} : vector<256x128xbf16>, vector<128x128xbf16>, vector<256x128xf32> -> vector<256x128xf32>
    %6 = arith.addf %2, %5 : vector<256x128xf32>
    %c0_8 = arith.constant 0 : index
    %c0_9 = arith.constant 0 : index
    %7 = vector.load %arg5[%c0_8, %c0_9] : memref<1x128xf32, #tpu.memory_space<vmem>>, vector<1x128xf32>
    %8 = vector.broadcast %7 : vector<1x128xf32> to vector<256x128xf32>
    %9 = arith.addf %6, %8 : vector<256x128xf32>
    %cst_10 = arith.constant 0.000000e+00 : f32
    %10 = vector.broadcast %cst_10 : f32 to vector<256x128xf32>
    %11 = arith.maximumf %9, %10 : vector<256x128xf32>
    %12 = arith.truncf %11 : vector<256x128xf32> to vector<256x128xbf16>
    %c0_11 = arith.constant 0 : index
    %c0_12 = arith.constant 0 : index
    %13 = vector.load %arg6[%c0_11, %c0_12] : memref<128x128xbf16, #tpu.memory_space<vmem>>, vector<128x128xbf16>
    %cst_13 = arith.constant dense<0.000000e+00> : vector<256x128xf32>
    %14 = tpu.matmul %12, %13, %cst_13 {dimension_numbers = #tpu.dot_dimension_numbers<[1], [0], [0], [1], [0, 0, 1, 1], [], []>} : vector<256x128xbf16>, vector<128x128xbf16>, vector<256x128xf32> -> vector<256x128xf32>
    %c0_14 = arith.constant 0 : index
    %c0_15 = arith.constant 0 : index
    %15 = vector.load %arg7[%c0_14, %c0_15] : memref<1x128xf32, #tpu.memory_space<vmem>>, vector<1x128xf32>
    %16 = vector.broadcast %15 : vector<1x128xf32> to vector<256x128xf32>
    %17 = arith.addf %14, %16 : vector<256x128xf32>
    %cst_16 = arith.constant 0.000000e+00 : f32
    %18 = vector.broadcast %cst_16 : f32 to vector<256x128xf32>
    %19 = arith.maximumf %17, %18 : vector<256x128xf32>
    %20 = arith.truncf %19 : vector<256x128xf32> to vector<256x128xbf16>
    %c0_17 = arith.constant 0 : index
    %c0_18 = arith.constant 0 : index
    %21 = vector.load %arg8[%c0_17, %c0_18] : memref<128x256xbf16, #tpu.memory_space<vmem>>, vector<128x256xbf16>
    %cst_19 = arith.constant dense<0.000000e+00> : vector<256x256xf32>
    %22 = tpu.matmul %20, %21, %cst_19 {dimension_numbers = #tpu.dot_dimension_numbers<[1], [0], [0], [1], [0, 0, 1, 1], [], []>} : vector<256x128xbf16>, vector<128x256xbf16>, vector<256x256xf32> -> vector<256x256xf32>
    %c0_20 = arith.constant 0 : index
    %c0_21 = arith.constant 0 : index
    %23 = vector.load %arg9[%c0_20, %c0_21] : memref<1x256xf32, #tpu.memory_space<vmem>>, vector<1x256xf32>
    %24 = vector.broadcast %23 : vector<1x256xf32> to vector<256x256xf32>
    %25 = arith.addf %22, %24 : vector<256x256xf32>
    %cst_22 = arith.constant 0.000000e+00 : f32
    %26 = vector.broadcast %cst_22 : f32 to vector<256x256xf32>
    %27 = arith.maximumf %25, %26 : vector<256x256xf32>
    %28 = vector.shape_cast %27 : vector<256x256xf32> to vector<16x16x256xf32>
    %cst_23 = arith.constant dense<0xFF800000> : vector<16x256xf32>
    %29 = vector.multi_reduction <maximumf>, %28, %cst_23 [1] : vector<16x16x256xf32> to vector<16x256xf32>
    %30 = arith.truncf %29 : vector<16x256xf32> to vector<16x256xbf16>
    %c0_24 = arith.constant 0 : index
    %c0_25 = arith.constant 0 : index
    %31 = vector.load %arg10[%c0_24, %c0_25] : memref<16x256xbf16, #tpu.memory_space<vmem>>, vector<16x256xbf16>
    tpu.vector_store %arg10[%c0_24, %c0_25], %30 {strides = array<i32>} : memref<16x256xbf16, #tpu.memory_space<vmem>>, vector<16x256xbf16>,
    return
  }
  func.func @transform_0(%arg0: i32) -> (i32, i32) {
    %c0_i32 = arith.constant 0 : i32
    %c0_i32_0 = arith.constant 0 : i32
    return %arg0, %c0_i32 : i32, i32
  }
  func.func @transform_1(%arg0: i32) -> (i32, i32) {
    %c0_i32 = arith.constant 0 : i32
    %c0_i32_0 = arith.constant 0 : i32
    return %arg0, %c0_i32 : i32, i32
  }
  func.func @transform_2(%arg0: i32) -> (i32, i32) {
    %c0_i32 = arith.constant 0 : i32
    %c0_i32_0 = arith.constant 0 : i32
    %c0_i32_1 = arith.constant 0 : i32
    return %c0_i32, %c0_i32_0 : i32, i32
  }
  func.func @transform_3(%arg0: i32) -> (i32, i32) {
    %c0_i32 = arith.constant 0 : i32
    %c0_i32_0 = arith.constant 0 : i32
    %c0_i32_1 = arith.constant 0 : i32
    return %c0_i32, %c0_i32_0 : i32, i32
  }
  func.func @transform_4(%arg0: i32) -> (i32, i32) {
    %c0_i32 = arith.constant 0 : i32
    %c0_i32_0 = arith.constant 0 : i32
    %c0_i32_1 = arith.constant 0 : i32
    return %c0_i32, %c0_i32_0 : i32, i32
  }
  func.func @transform_5(%arg0: i32) -> (i32, i32) {
    %c0_i32 = arith.constant 0 : i32
    %c0_i32_0 = arith.constant 0 : i32
    %c0_i32_1 = arith.constant 0 : i32
    return %c0_i32, %c0_i32_0 : i32, i32
  }
  func.func @transform_6(%arg0: i32) -> (i32, i32) {
    %c0_i32 = arith.constant 0 : i32
    %c0_i32_0 = arith.constant 0 : i32
    %c0_i32_1 = arith.constant 0 : i32
    return %c0_i32, %c0_i32_0 : i32, i32
  }
  func.func @transform_7(%arg0: i32) -> (i32, i32) {
    %c0_i32 = arith.constant 0 : i32
    %c0_i32_0 = arith.constant 0 : i32
    %c0_i32_1 = arith.constant 0 : i32
    return %c0_i32, %c0_i32_0 : i32, i32
  }
  func.func @transform_8(%arg0: i32) -> (i32, i32) {
    %c0_i32 = arith.constant 0 : i32
    %c0_i32_0 = arith.constant 0 : i32
    %c0_i32_1 = arith.constant 0 : i32
    return %c0_i32, %c0_i32_0 : i32, i32
  }
  func.func @transform_9(%arg0: i32) -> (i32, i32) {
    %c0_i32 = arith.constant 0 : i32
    %c0_i32_0 = arith.constant 0 : i32
    return %arg0, %c0_i32 : i32, i32
  }
}

module attributes {stable_mosaic.version = 11 : i64} {
  func.func @_sa_mlp_pool_kernel(%arg0: i32, %arg1: memref<32x10xbf16, #tpu.memory_space<vmem>>, %arg2: memref<32x256xbf16, #tpu.memory_space<vmem>>, %arg3: memref<10x256xbf16, #tpu.memory_space<vmem>>, %arg4: memref<256x256xbf16, #tpu.memory_space<vmem>>, %arg5: memref<1x256xf32, #tpu.memory_space<vmem>>, %arg6: memref<256x512xbf16, #tpu.memory_space<vmem>>, %arg7: memref<1x512xf32, #tpu.memory_space<vmem>>, %arg8: memref<512x1024xbf16, #tpu.memory_space<vmem>>, %arg9: memref<1x1024xf32, #tpu.memory_space<vmem>>, %arg10: memref<2x1024xbf16, #tpu.memory_space<vmem>>) attributes {dimension_semantics = [#tpu.dimension_semantics<parallel>], iteration_bounds = array<i64: 1>, scalar_prefetch = 0 : i64, scratch_operands = 0 : i64, tpu.core_type = #tpu.core_type<tc>, window_params = [{transform_indices = @transform_0, window_bounds = array<i64: 32, 10>}, {transform_indices = @transform_1, window_bounds = array<i64: 32, 256>}, {pipeline_mode = #tpu.pipeline_mode<synchronous>, transform_indices = @transform_2, window_bounds = array<i64: 10, 256>}, {pipeline_mode = #tpu.pipeline_mode<synchronous>, transform_indices = @transform_3, window_bounds = array<i64: 256, 256>}, {pipeline_mode = #tpu.pipeline_mode<synchronous>, transform_indices = @transform_4, window_bounds = array<i64: 1, 256>}, {pipeline_mode = #tpu.pipeline_mode<synchronous>, transform_indices = @transform_5, window_bounds = array<i64: 256, 512>}, {pipeline_mode = #tpu.pipeline_mode<synchronous>, transform_indices = @transform_6, window_bounds = array<i64: 1, 512>}, {pipeline_mode = #tpu.pipeline_mode<synchronous>, transform_indices = @transform_7, window_bounds = array<i64: 512, 1024>}, {pipeline_mode = #tpu.pipeline_mode<synchronous>, transform_indices = @transform_8, window_bounds = array<i64: 1, 1024>}, {transform_indices = @transform_9, window_bounds = array<i64: 2, 1024>}]} {
    %c0 = arith.constant 0 : index
    %c0_0 = arith.constant 0 : index
    %0 = vector.load %arg1[%c0, %c0_0] : memref<32x10xbf16, #tpu.memory_space<vmem>>, vector<32x10xbf16>
    %c0_1 = arith.constant 0 : index
    %c0_2 = arith.constant 0 : index
    %1 = vector.load %arg3[%c0_1, %c0_2] : memref<10x256xbf16, #tpu.memory_space<vmem>>, vector<10x256xbf16>
    %cst = arith.constant dense<0.000000e+00> : vector<32x256xf32>
    %2 = tpu.matmul %0, %1, %cst {dimension_numbers = #tpu.dot_dimension_numbers<[1], [0], [0], [1], [0, 0, 1, 1], [], []>} : vector<32x10xbf16>, vector<10x256xbf16>, vector<32x256xf32> -> vector<32x256xf32>
    %c0_3 = arith.constant 0 : index
    %c0_4 = arith.constant 0 : index
    %3 = vector.load %arg2[%c0_3, %c0_4] : memref<32x256xbf16, #tpu.memory_space<vmem>>, vector<32x256xbf16>
    %c0_5 = arith.constant 0 : index
    %c0_6 = arith.constant 0 : index
    %4 = vector.load %arg4[%c0_5, %c0_6] : memref<256x256xbf16, #tpu.memory_space<vmem>>, vector<256x256xbf16>
    %cst_7 = arith.constant dense<0.000000e+00> : vector<32x256xf32>
    %5 = tpu.matmul %3, %4, %cst_7 {dimension_numbers = #tpu.dot_dimension_numbers<[1], [0], [0], [1], [0, 0, 1, 1], [], []>} : vector<32x256xbf16>, vector<256x256xbf16>, vector<32x256xf32> -> vector<32x256xf32>
    %6 = arith.addf %2, %5 : vector<32x256xf32>
    %c0_8 = arith.constant 0 : index
    %c0_9 = arith.constant 0 : index
    %7 = vector.load %arg5[%c0_8, %c0_9] : memref<1x256xf32, #tpu.memory_space<vmem>>, vector<1x256xf32>
    %8 = vector.broadcast %7 : vector<1x256xf32> to vector<32x256xf32>
    %9 = arith.addf %6, %8 : vector<32x256xf32>
    %cst_10 = arith.constant 0.000000e+00 : f32
    %10 = vector.broadcast %cst_10 : f32 to vector<32x256xf32>
    %11 = arith.maximumf %9, %10 : vector<32x256xf32>
    %12 = arith.truncf %11 : vector<32x256xf32> to vector<32x256xbf16>
    %c0_11 = arith.constant 0 : index
    %c0_12 = arith.constant 0 : index
    %13 = vector.load %arg6[%c0_11, %c0_12] : memref<256x512xbf16, #tpu.memory_space<vmem>>, vector<256x512xbf16>
    %cst_13 = arith.constant dense<0.000000e+00> : vector<32x512xf32>
    %14 = tpu.matmul %12, %13, %cst_13 {dimension_numbers = #tpu.dot_dimension_numbers<[1], [0], [0], [1], [0, 0, 1, 1], [], []>} : vector<32x256xbf16>, vector<256x512xbf16>, vector<32x512xf32> -> vector<32x512xf32>
    %c0_14 = arith.constant 0 : index
    %c0_15 = arith.constant 0 : index
    %15 = vector.load %arg7[%c0_14, %c0_15] : memref<1x512xf32, #tpu.memory_space<vmem>>, vector<1x512xf32>
    %16 = vector.broadcast %15 : vector<1x512xf32> to vector<32x512xf32>
    %17 = arith.addf %14, %16 : vector<32x512xf32>
    %cst_16 = arith.constant 0.000000e+00 : f32
    %18 = vector.broadcast %cst_16 : f32 to vector<32x512xf32>
    %19 = arith.maximumf %17, %18 : vector<32x512xf32>
    %20 = arith.truncf %19 : vector<32x512xf32> to vector<32x512xbf16>
    %c0_17 = arith.constant 0 : index
    %c0_18 = arith.constant 0 : index
    %21 = vector.load %arg8[%c0_17, %c0_18] : memref<512x1024xbf16, #tpu.memory_space<vmem>>, vector<512x1024xbf16>
    %cst_19 = arith.constant dense<0.000000e+00> : vector<32x1024xf32>
    %22 = tpu.matmul %20, %21, %cst_19 {dimension_numbers = #tpu.dot_dimension_numbers<[1], [0], [0], [1], [0, 0, 1, 1], [], []>} : vector<32x512xbf16>, vector<512x1024xbf16>, vector<32x1024xf32> -> vector<32x1024xf32>
    %c0_20 = arith.constant 0 : index
    %c0_21 = arith.constant 0 : index
    %23 = vector.load %arg9[%c0_20, %c0_21] : memref<1x1024xf32, #tpu.memory_space<vmem>>, vector<1x1024xf32>
    %24 = vector.broadcast %23 : vector<1x1024xf32> to vector<32x1024xf32>
    %25 = arith.addf %22, %24 : vector<32x1024xf32>
    %cst_22 = arith.constant 0.000000e+00 : f32
    %26 = vector.broadcast %cst_22 : f32 to vector<32x1024xf32>
    %27 = arith.maximumf %25, %26 : vector<32x1024xf32>
    %28 = vector.shape_cast %27 : vector<32x1024xf32> to vector<2x16x1024xf32>
    %cst_23 = arith.constant dense<0xFF800000> : vector<2x1024xf32>
    %29 = vector.multi_reduction <maximumf>, %28, %cst_23 [1] : vector<2x16x1024xf32> to vector<2x1024xf32>
    %30 = arith.truncf %29 : vector<2x1024xf32> to vector<2x1024xbf16>
    %c0_24 = arith.constant 0 : index
    %c0_25 = arith.constant 0 : index
    %31 = vector.load %arg10[%c0_24, %c0_25] : memref<2x1024xbf16, #tpu.memory_space<vmem>>, vector<2x1024xbf16>
    tpu.vector_store %arg10[%c0_24, %c0_25], %30 {strides = array<i32>} : memref<2x1024xbf16, #tpu.memory_space<vmem>>, vector<2x1024xbf16>,
    return
  }
  func.func @transform_0(%arg0: i32) -> (i32, i32) {
    %c0_i32 = arith.constant 0 : i32
    %c0_i32_0 = arith.constant 0 : i32
    return %arg0, %c0_i32 : i32, i32
  }
  func.func @transform_1(%arg0: i32) -> (i32, i32) {
    %c0_i32 = arith.constant 0 : i32
    %c0_i32_0 = arith.constant 0 : i32
    return %arg0, %c0_i32 : i32, i32
  }
  func.func @transform_2(%arg0: i32) -> (i32, i32) {
    %c0_i32 = arith.constant 0 : i32
    %c0_i32_0 = arith.constant 0 : i32
    %c0_i32_1 = arith.constant 0 : i32
    return %c0_i32, %c0_i32_0 : i32, i32
  }
  func.func @transform_3(%arg0: i32) -> (i32, i32) {
    %c0_i32 = arith.constant 0 : i32
    %c0_i32_0 = arith.constant 0 : i32
    %c0_i32_1 = arith.constant 0 : i32
    return %c0_i32, %c0_i32_0 : i32, i32
  }
  func.func @transform_4(%arg0: i32) -> (i32, i32) {
    %c0_i32 = arith.constant 0 : i32
    %c0_i32_0 = arith.constant 0 : i32
    %c0_i32_1 = arith.constant 0 : i32
    return %c0_i32, %c0_i32_0 : i32, i32
  }
  func.func @transform_5(%arg0: i32) -> (i32, i32) {
    %c0_i32 = arith.constant 0 : i32
    %c0_i32_0 = arith.constant 0 : i32
    %c0_i32_1 = arith.constant 0 : i32
    return %c0_i32, %c0_i32_0 : i32, i32
  }
  func.func @transform_6(%arg0: i32) -> (i32, i32) {
    %c0_i32 = arith.constant 0 : i32
    %c0_i32_0 = arith.constant 0 : i32
    %c0_i32_1 = arith.constant 0 : i32
    return %c0_i32, %c0_i32_0 : i32, i32
  }
  func.func @transform_7(%arg0: i32) -> (i32, i32) {
    %c0_i32 = arith.constant 0 : i32
    %c0_i32_0 = arith.constant 0 : i32
    %c0_i32_1 = arith.constant 0 : i32
    return %c0_i32, %c0_i32_0 : i32, i32
  }
  func.func @transform_8(%arg0: i32) -> (i32, i32) {
    %c0_i32 = arith.constant 0 : i32
    %c0_i32_0 = arith.constant 0 : i32
    %c0_i32_1 = arith.constant 0 : i32
    return %c0_i32, %c0_i32_0 : i32, i32
  }
  func.func @transform_9(%arg0: i32) -> (i32, i32) {
    %c0_i32 = arith.constant 0 : i32
    %c0_i32_0 = arith.constant 0 : i32
    return %arg0, %c0_i32 : i32, i32
  }
}

module attributes {stable_mosaic.version = 11 : i64} {
  func.func @_classifier_kernel(%arg0: memref<2x1024xbf16, #tpu.memory_space<vmem>>, %arg1: memref<1024x512xbf16, #tpu.memory_space<vmem>>, %arg2: memref<1x512xf32, #tpu.memory_space<vmem>>, %arg3: memref<512x256xbf16, #tpu.memory_space<vmem>>, %arg4: memref<1x256xf32, #tpu.memory_space<vmem>>, %arg5: memref<256x128xbf16, #tpu.memory_space<vmem>>, %arg6: memref<1x128xf32, #tpu.memory_space<vmem>>, %arg7: memref<2x128xf32, #tpu.memory_space<vmem>>) attributes {dimension_semantics = [], scalar_prefetch = 0 : i64, scratch_operands = 0 : i64, tpu.core_type = #tpu.core_type<tc>} {
    %c0 = arith.constant 0 : index
    %c0_0 = arith.constant 0 : index
    %0 = vector.load %arg0[%c0, %c0_0] : memref<2x1024xbf16, #tpu.memory_space<vmem>>, vector<2x1024xbf16>
    %c0_1 = arith.constant 0 : index
    %c0_2 = arith.constant 0 : index
    %1 = vector.load %arg1[%c0_1, %c0_2] : memref<1024x512xbf16, #tpu.memory_space<vmem>>, vector<1024x512xbf16>
    %cst = arith.constant dense<0.000000e+00> : vector<2x512xf32>
    %2 = tpu.matmul %0, %1, %cst {dimension_numbers = #tpu.dot_dimension_numbers<[1], [0], [0], [1], [0, 0, 1, 1], [], []>} : vector<2x1024xbf16>, vector<1024x512xbf16>, vector<2x512xf32> -> vector<2x512xf32>
    %c0_3 = arith.constant 0 : index
    %c0_4 = arith.constant 0 : index
    %3 = vector.load %arg2[%c0_3, %c0_4] : memref<1x512xf32, #tpu.memory_space<vmem>>, vector<1x512xf32>
    %4 = vector.broadcast %3 : vector<1x512xf32> to vector<2x512xf32>
    %5 = arith.addf %2, %4 : vector<2x512xf32>
    %cst_5 = arith.constant 0.000000e+00 : f32
    %6 = vector.broadcast %cst_5 : f32 to vector<2x512xf32>
    %7 = arith.maximumf %5, %6 : vector<2x512xf32>
    %8 = arith.truncf %7 : vector<2x512xf32> to vector<2x512xbf16>
    %c0_6 = arith.constant 0 : index
    %c0_7 = arith.constant 0 : index
    %9 = vector.load %arg3[%c0_6, %c0_7] : memref<512x256xbf16, #tpu.memory_space<vmem>>, vector<512x256xbf16>
    %cst_8 = arith.constant dense<0.000000e+00> : vector<2x256xf32>
    %10 = tpu.matmul %8, %9, %cst_8 {dimension_numbers = #tpu.dot_dimension_numbers<[1], [0], [0], [1], [0, 0, 1, 1], [], []>} : vector<2x512xbf16>, vector<512x256xbf16>, vector<2x256xf32> -> vector<2x256xf32>
    %c0_9 = arith.constant 0 : index
    %c0_10 = arith.constant 0 : index
    %11 = vector.load %arg4[%c0_9, %c0_10] : memref<1x256xf32, #tpu.memory_space<vmem>>, vector<1x256xf32>
    %12 = vector.broadcast %11 : vector<1x256xf32> to vector<2x256xf32>
    %13 = arith.addf %10, %12 : vector<2x256xf32>
    %cst_11 = arith.constant 0.000000e+00 : f32
    %14 = vector.broadcast %cst_11 : f32 to vector<2x256xf32>
    %15 = arith.maximumf %13, %14 : vector<2x256xf32>
    %16 = arith.truncf %15 : vector<2x256xf32> to vector<2x256xbf16>
    %c0_12 = arith.constant 0 : index
    %c0_13 = arith.constant 0 : index
    %17 = vector.load %arg5[%c0_12, %c0_13] : memref<256x128xbf16, #tpu.memory_space<vmem>>, vector<256x128xbf16>
    %cst_14 = arith.constant dense<0.000000e+00> : vector<2x128xf32>
    %18 = tpu.matmul %16, %17, %cst_14 {dimension_numbers = #tpu.dot_dimension_numbers<[1], [0], [0], [1], [0, 0, 1, 1], [], []>} : vector<2x256xbf16>, vector<256x128xbf16>, vector<2x128xf32> -> vector<2x128xf32>
    %c0_15 = arith.constant 0 : index
    %c0_16 = arith.constant 0 : index
    %19 = vector.load %arg6[%c0_15, %c0_16] : memref<1x128xf32, #tpu.memory_space<vmem>>, vector<1x128xf32>
    %20 = vector.broadcast %19 : vector<1x128xf32> to vector<2x128xf32>
    %21 = arith.addf %18, %20 : vector<2x128xf32>
    %cst_17 = arith.constant dense<0xFF800000> : vector<2xf32>
    %22 = vector.multi_reduction <maximumf>, %21, %cst_17 [1] : vector<2x128xf32> to vector<2xf32>
    %23 = vector.shape_cast %22 : vector<2xf32> to vector<2x1xf32>
    %24 = vector.broadcast %23 : vector<2x1xf32> to vector<2x128xf32>
    %25 = arith.subf %21, %24 : vector<2x128xf32>
    %26 = math.exp %25 : vector<2x128xf32>
    %cst_18 = arith.constant dense<0.000000e+00> : vector<2xf32>
    %27 = vector.multi_reduction <add>, %26, %cst_18 [1] : vector<2x128xf32> to vector<2xf32>
    %28 = vector.shape_cast %27 : vector<2xf32> to vector<2x1xf32>
    %29 = math.log %28 : vector<2x1xf32>
    %30 = arith.addf %29, %23 : vector<2x1xf32>
    %31 = vector.broadcast %30 : vector<2x1xf32> to vector<2x128xf32>
    %32 = arith.subf %21, %31 : vector<2x128xf32>
    %c0_19 = arith.constant 0 : index
    %c0_20 = arith.constant 0 : index
    %33 = vector.load %arg7[%c0_19, %c0_20] : memref<2x128xf32, #tpu.memory_space<vmem>>, vector<2x128xf32>
    tpu.vector_store %arg7[%c0_19, %c0_20], %32 {strides = array<i32>} : memref<2x128xf32, #tpu.memory_space<vmem>>, vector<2x128xf32>,
    return
  }
}

</mosaic_0001>

<llo_original>
// kernel: custom-call.30
$region0: #{custom-call.30}
  %s0 = inlined_call_operand.vmem [shape: s32[32,2], index: 0, kind: output, shape index: {}]

// kernel: custom-call.26
$region0: #{custom-call.26}
  %s0 = inlined_call_operand.vmem [shape: f32[2,128], index: 0, kind: output, shape index: {}]

// kernel: custom-call.31
$region0: #{custom-call.31}
  %s0 = inlined_call_operand.vmem [shape: s32[16,2], index: 0, kind: output, shape index: {}]

// kernel: custom-call.27
$region0: #{custom-call.27}
  %s0 = inlined_call_operand.vmem [shape: f32[2,32], index: 0, kind: output, shape index: {}]

// kernel: _lambda_.4
$region0: #{_lambda_.4}
  #allocation0 [shape = 'u32[]', space=smem, size = 0x4, offset = 0x4, fixed_abs, tag = 'smem constant byte address 0x4 - core index']
  #allocation1 [shape = 'u32[144,128]{1,0:T(1,128)}', space=vmem, size = 0x12000, scoped, tag = 'internal scratch']
  %s0 = inlined_call_operand.vmem [shape: bf16[1024,10], index: 0, kind: input, shape index: {}]
  %s1 = inlined_call_operand.vmem [shape: bf16[10,64], index: 1, kind: input, shape index: {}]
  %s2 = inlined_call_operand.vmem [shape: f32[1,64], index: 2, kind: input, shape index: {}]
  %s3 = inlined_call_operand.vmem [shape: bf16[64,64], index: 3, kind: input, shape index: {}]
  %s4 = inlined_call_operand.vmem [shape: f32[1,64], index: 4, kind: input, shape index: {}]
  %s5 = inlined_call_operand.vmem [shape: bf16[64,128], index: 5, kind: input, shape index: {}]
  %s6 = inlined_call_operand.vmem [shape: f32[1,128], index: 6, kind: input, shape index: {}]
  %s7 = inlined_call_operand.vmem [shape: bf16[64,128], index: 7, kind: output, shape index: {}]
  %s8 = sld [smem:[#allocation0]]
  $region61: #{_lambda_.4} parent=0
    _
  %s10 = ssub.s32 1, %s8
  %s11 = scalar_select 0, %s10, %s8
  loop: start=0, step=1, limit=4
  $region2: #{_lambda_.4} parent=0 // loop_pre_header
    _
  $region3: #{_lambda_.4} parent=0 // loop_header
    %s13 = sphi 0, %s17
    %p14 = scmp.ge.s32.totalorder %s13, 4
    %s23 = sphi 0, %s25
    %s26 = sphi 0, %s23
    %s27 = sphi 0, %s26
    %s43 = sphi 0, %s27
    %s47 = sphi 0, %s47
    %s49 = sphi 0, %s47
    %s50 = sphi 0, %s49
    %s64 = sphi 0, %s50
    %s68 = sphi 0, %s68
    %s70 = sphi 0, %s68
    %s71 = sphi 0, %s70
    %s85 = sphi 0, %s71
    %s89 = sphi 0, %s89
    %s91 = sphi 0, %s89
    %s92 = sphi 0, %s91
    %s106 = sphi 0, %s92
    %s110 = sphi 0, %s110
    %s112 = sphi 0, %s110
    %s113 = sphi 0, %s112
    %s127 = sphi 0, %s113
    %s131 = sphi 0, %s131
    %s133 = sphi 0, %s131
    %s134 = sphi 0, %s133
    %s148 = sphi 0, %s134
    %s152 = sphi 0, %s152
    %s154 = sphi 0, %s152
    %s155 = sphi 0, %s154
    %s169 = sphi 0, %s155
    %s175 = sphi 0, %s177
    %s178 = sphi 0, %s175
    %s179 = sphi 0, %s178
    %s195 = sphi 0, %s179
  $region4: #{_lambda_.4} parent=0 // loop_header_branch
    %16 = sbr.rel (%p14) target = $region8
  $region5: #{_lambda_.4} parent=0 // loop_body
    %s18 = ssub.s32 %s13, 1
    %s19 = ssub.s32 %s13, 2
    %s20 = sadd.s32 %s13, 1
    %s21 = ssub.s32 %s13, %s20
    %p22 = scmp.eq.s32.totalorder %s21, 0
    %s24 = sadd.s32 %s23, 1
    %s25 = scalar_select %p22, %s23, %s24
    %p28 = pneg %p22
    %p29 = scmp.eq.s32.totalorder %s13, 1
    %p30 = por %p28, %p29
    %p31 = scmp.ne.s32.totalorder %s23, %s26
    %p32 = scmp.eq.s32.totalorder %s13, 0
    %p33 = por %p31, %p32
    %p34 = scmp.ne.s32.totalorder %s23, %s26
    %p35 = scmp.eq.s32.totalorder %s18, 1
    %p36 = por %p34, %p35
    %p37 = scmp.ne.s32.totalorder %s26, %s27
    %p38 = scmp.eq.s32.totalorder %s18, 0
    %p39 = por %p37, %p38
    %p40 = scmp.ne.s32.totalorder %s26, %s27
    %p41 = scmp.eq.s32.totalorder %s19, 1
    %p42 = por %p40, %p41
    %p44 = scmp.ne.s32.totalorder %s27, %s43
    %p45 = scmp.eq.s32.totalorder %s19, 0
    %p46 = por %p44, %p45
    %s48 = sadd.s32 %s47, 1
    %p51 = scmp.eq.s32.totalorder %s13, 1
    %p52 = scmp.ne.s32.totalorder %s47, %s49
    %p53 = scmp.eq.s32.totalorder %s13, 0
    %p54 = por %p52, %p53
    %p55 = scmp.ne.s32.totalorder %s47, %s49
    %p56 = scmp.eq.s32.totalorder %s18, 1
    %p57 = por %p55, %p56
    %p58 = scmp.ne.s32.totalorder %s49, %s50
    %p59 = scmp.eq.s32.totalorder %s18, 0
    %p60 = por %p58, %p59
    %p61 = scmp.ne.s32.totalorder %s49, %s50
    %p62 = scmp.eq.s32.totalorder %s19, 1
    %p63 = por %p61, %p62
    %p65 = scmp.ne.s32.totalorder %s50, %s64
    %p66 = scmp.eq.s32.totalorder %s19, 0
    %p67 = por %p65, %p66
    %s69 = sadd.s32 %s68, 1
    %p72 = scmp.eq.s32.totalorder %s13, 1
    %p73 = scmp.ne.s32.totalorder %s68, %s70
    %p74 = scmp.eq.s32.totalorder %s13, 0
    %p75 = por %p73, %p74
    %p76 = scmp.ne.s32.totalorder %s68, %s70
    %p77 = scmp.eq.s32.totalorder %s18, 1
    %p78 = por %p76, %p77
    %p79 = scmp.ne.s32.totalorder %s70, %s71
    %p80 = scmp.eq.s32.totalorder %s18, 0
    %p81 = por %p79, %p80
    %p82 = scmp.ne.s32.totalorder %s70, %s71
    %p83 = scmp.eq.s32.totalorder %s19, 1
    %p84 = por %p82, %p83
    %p86 = scmp.ne.s32.totalorder %s71, %s85
    %p87 = scmp.eq.s32.totalorder %s19, 0
    %p88 = por %p86, %p87
    %s90 = sadd.s32 %s89, 1
    %p93 = scmp.eq.s32.totalorder %s13, 1
    %p94 = scmp.ne.s32.totalorder %s89, %s91
    %p95 = scmp.eq.s32.totalorder %s13, 0
    %p96 = por %p94, %p95
    %p97 = scmp.ne.s32.totalorder %s89, %s91
    %p98 = scmp.eq.s32.totalorder %s18, 1
    %p99 = por %p97, %p98
    %p100 = scmp.ne.s32.totalorder %s91, %s92
    %p101 = scmp.eq.s32.totalorder %s18, 0
    %p102 = por %p100, %p101
    %p103 = scmp.ne.s32.totalorder %s91, %s92
    %p104 = scmp.eq.s32.totalorder %s19, 1
    %p105 = por %p103, %p104
    %p107 = scmp.ne.s32.totalorder %s92, %s106
    %p108 = scmp.eq.s32.totalorder %s19, 0
    %p109 = por %p107, %p108
    %s111 = sadd.s32 %s110, 1
    %p114 = scmp.eq.s32.totalorder %s13, 1
    %p115 = scmp.ne.s32.totalorder %s110, %s112
    %p116 = scmp.eq.s32.totalorder %s13, 0
    %p117 = por %p115, %p116
    %p118 = scmp.ne.s32.totalorder %s110, %s112
    %p119 = scmp.eq.s32.totalorder %s18, 1
    %p120 = por %p118, %p119
    %p121 = scmp.ne.s32.totalorder %s112, %s113
    %p122 = scmp.eq.s32.totalorder %s18, 0
    %p123 = por %p121, %p122
    %p124 = scmp.ne.s32.totalorder %s112, %s113
    %p125 = scmp.eq.s32.totalorder %s19, 1
    %p126 = por %p124, %p125
    %p128 = scmp.ne.s32.totalorder %s113, %s127
    %p129 = scmp.eq.s32.totalorder %s19, 0
    %p130 = por %p128, %p129
    %s132 = sadd.s32 %s131, 1
    %p135 = scmp.eq.s32.totalorder %s13, 1
    %p136 = scmp.ne.s32.totalorder %s131, %s133
    %p137 = scmp.eq.s32.totalorder %s13, 0
    %p138 = por %p136, %p137
    %p139 = scmp.ne.s32.totalorder %s131, %s133
    %p140 = scmp.eq.s32.totalorder %s18, 1
    %p141 = por %p139, %p140
    %p142 = scmp.ne.s32.totalorder %s133, %s134
    %p143 = scmp.eq.s32.totalorder %s18, 0
    %p144 = por %p142, %p143
    %p145 = scmp.ne.s32.totalorder %s133, %s134
    %p146 = scmp.eq.s32.totalorder %s19, 1
    %p147 = por %p145, %p146
    %p149 = scmp.ne.s32.totalorder %s134, %s148
    %p150 = scmp.eq.s32.totalorder %s19, 0
    %p151 = por %p149, %p150
    %s153 = sadd.s32 %s152, 1
    %p156 = scmp.eq.s32.totalorder %s13, 1
    %p157 = scmp.ne.s32.totalorder %s152, %s154
    %p158 = scmp.eq.s32.totalorder %s13, 0
    %p159 = por %p157, %p158
    %p160 = scmp.ne.s32.totalorder %s152, %s154
    %p161 = scmp.eq.s32.totalorder %s18, 1
    %p162 = por %p160, %p161
    %p163 = scmp.ne.s32.totalorder %s154, %s155
    %p164 = scmp.eq.s32.totalorder %s18, 0
    %p165 = por %p163, %p164
    %p166 = scmp.ne.s32.totalorder %s154, %s155
    %p167 = scmp.eq.s32.totalorder %s19, 1
    %p168 = por %p166, %p167
    %p170 = scmp.ne.s32.totalorder %s155, %s169
    %p171 = scmp.eq.s32.totalorder %s19, 0
    %p172 = por %p170, %p171
    %s173 = ssub.s32 %s13, %s20
    %p174 = scmp.eq.s32.totalorder %s173, 0
    %s176 = sadd.s32 %s175, 1
    %s177 = scalar_select %p174, %s175, %s176
    %p180 = pneg %p174
    %p181 = scmp.eq.s32.totalorder %s13, 1
    %p182 = por %p180, %p181
    %p183 = scmp.ne.s32.totalorder %s175, %s178
    %p184 = scmp.eq.s32.totalorder %s13, 0
    %p185 = por %p183, %p184
    %p186 = scmp.ne.s32.totalorder %s175, %s178
    %p187 = scmp.eq.s32.totalorder %s18, 1
    %p188 = por %p186, %p187
    %p189 = scmp.ne.s32.totalorder %s178, %s179
    %p190 = scmp.eq.s32.totalorder %s18, 0
    %p191 = por %p189, %p190
    %p192 = scmp.ne.s32.totalorder %s178, %s179
    %p193 = scmp.eq.s32.totalorder %s19, 1
    %p194 = por %p192, %p193
    %p196 = scmp.ne.s32.totalorder %s179, %s195
    %p197 = scmp.eq.s32.totalorder %s19, 0
    %p198 = por %p196, %p197
    %p199 = scmp.le.s32.totalorder 1, %s13
    %p200 = scmp.lt.s32.totalorder %s13, 3
    %p201 = pnand %p199, %p200
    %p202 = pneg %p201
    // Predicated region
    $region9: #{_lambda_.4} parent=5 // pred_check
      _
    $region10: #{_lambda_.4} parent=5 // pred_check_branch
      %204 = sbr.rel (%p201) target = $region12
    $region11: #{_lambda_.4} parent=5 // pred_region
      %s205 = ssub.s32 %s13, 1
      // Predicated region
      $region13: #{_lambda_.4} parent=11 // pred_check
        %p206 = pneg %p60
      $region14: #{_lambda_.4} parent=11 // pred_check_branch
        %208 = sbr.rel (%p206) target = $region16
      $region15: #{_lambda_.4} parent=11 // pred_region
        _
      $region16: #{_lambda_.4} parent=11 // pred_fallthru
        _
      // Predicated region
      $region17: #{_lambda_.4} parent=11 // pred_check
        %p209 = pneg %p81
      $region18: #{_lambda_.4} parent=11 // pred_check_branch
        %211 = sbr.rel (%p209) target = $region20
      $region19: #{_lambda_.4} parent=11 // pred_region
        _
      $region20: #{_lambda_.4} parent=11 // pred_fallthru
        _
      // Predicated region
      $region21: #{_lambda_.4} parent=11 // pred_check
        %p212 = pneg %p102
      $region22: #{_lambda_.4} parent=11 // pred_check_branch
        %214 = sbr.rel (%p212) target = $region24
      $region23: #{_lambda_.4} parent=11 // pred_region
        _
      $region24: #{_lambda_.4} parent=11 // pred_fallthru
        _
      // Predicated region
      $region25: #{_lambda_.4} parent=11 // pred_check
        %p215 = pneg %p123
      $region26: #{_lambda_.4} parent=11 // pred_check_branch
        %217 = sbr.rel (%p215) target = $region28
      $region27: #{_lambda_.4} parent=11 // pred_region
        _
      $region28: #{_lambda_.4} parent=11 // pred_fallthru
        _
      // Predicated region
      $region29: #{_lambda_.4} parent=11 // pred_check
        %p218 = pneg %p144
      $region30: #{_lambda_.4} parent=11 // pred_check_branch
        %220 = sbr.rel (%p218) target = $region32
      $region31: #{_lambda_.4} parent=11 // pred_region
        _
      $region32: #{_lambda_.4} parent=11 // pred_fallthru
        _
      // Predicated region
      $region33: #{_lambda_.4} parent=11 // pred_check
        %p221 = pneg %p165
      $region34: #{_lambda_.4} parent=11 // pred_check_branch
        %223 = sbr.rel (%p221) target = $region36
      $region35: #{_lambda_.4} parent=11 // pred_region
        _
      $region36: #{_lambda_.4} parent=11 // pred_fallthru
        _
    $region12: #{_lambda_.4} parent=5 // pred_fallthru
      _
    %p224 = scmp.lt.s32.totalorder %s13, 2
    // Predicated region
    $region37: #{_lambda_.4} parent=5 // pred_check
      %p225 = pneg %p224
    $region38: #{_lambda_.4} parent=5 // pred_check_branch
      %227 = sbr.rel (%p225) target = $region40
    $region39: #{_lambda_.4} parent=5 // pred_region
      // Predicated region
      $region41: #{_lambda_.4} parent=39 // pred_check
        %p228 = pneg %p33
      $region42: #{_lambda_.4} parent=39 // pred_check_branch
        %230 = sbr.rel (%p228) target = $region44
      $region43: #{_lambda_.4} parent=39 // pred_region
        %s231 = smul.u32 64, %s13
        %p232 = scmp.lt.s32.totalorder %s231, 127
        %s233 = scalar_select %p232, %s231, 127
        %s234 = smul.addr %s233, 4
        %s235 = scalar_lea.vmem %s0, %s234
        %s236 = smul.u32 64, %s13
      $region44: #{_lambda_.4} parent=39 // pred_fallthru
        _
    $region40: #{_lambda_.4} parent=5 // pred_fallthru
      _
    %p237 = scmp.le.s32.totalorder 1, %s13
    %p238 = scmp.lt.s32.totalorder %s13, 3
    %p239 = pnand %p237, %p238
    %p240 = pneg %p239
    // Predicated region
    $region45: #{_lambda_.4} parent=5 // pred_check
      _
    $region46: #{_lambda_.4} parent=5 // pred_check_branch
      %242 = sbr.rel (%p239) target = $region48
    $region47: #{_lambda_.4} parent=5 // pred_region
      %s243 = ssub.s32 %s13, 1
      %s244 = smul.u32 64, %s18
      %p245 = scmp.lt.s32.totalorder %s244, 127
      %s246 = scalar_select %p245, %s244, 127
      %s247 = smul.addr %s246, 4
      %s248 = scalar_lea.vmem %s0, %s247
      %p249 = pneg %p39
      %p250 = pneg %p36
      %p251 = pneg %p60
      %p252 = pneg %p57
      %p253 = pneg %p81
      %p254 = pneg %p78
      %p255 = pneg %p102
      %p256 = pneg %p99
      %p257 = pneg %p123
      %p258 = pneg %p120
      %p259 = pneg %p144
      %p260 = pneg %p141
      %p261 = pneg %p165
      %p262 = pneg %p162
      %p263 = pneg %p191
      %p264 = pneg %p188
      %s265 = smul.u32 4, %s18
      %p266 = scmp.lt.s32.totalorder %s265, 7
      %s267 = scalar_select %p266, %s265, 7
      %s268 = smul.addr %s267, 4
      %s269 = scalar_lea.vmem %s7, %s268
      %s270 = smul.u32 64, %s18
      %p271 = scmp.lt.s32.totalorder %s270, 127
      %s272 = scalar_select %p271, %s270, 127
      %s273 = smul.addr %s272, 4
      %s274 = scalar_lea.vmem %s0, %s273
      %s275 = smul.u32 64, %s18
      %s276 = smul.u32 4, %s18
      %p277 = scmp.lt.s32.totalorder %s276, 7
      %s278 = scalar_select %p277, %s276, 7
      %s279 = smul.addr %s278, 4
      %s280 = scalar_lea.vmem %s7, %s279
      %s281 = smul.u32 4, %s18
      %v283 = vld [vmem:[%s274] sm:$0xf]
      %v284 = vld [vmem:[%s274 + $0x4] sm:$0xf]
      %v285 = vld [vmem:[%s274 + $0x8] sm:$0xf]
      %v286 = vld [vmem:[%s274 + $0xc] sm:$0xf]
      %v287 = vld [vmem:[%s274 + $0x10] sm:$0xf]
      %v288 = vld [vmem:[%s274 + $0x14] sm:$0xf]
      %v289 = vld [vmem:[%s274 + $0x18] sm:$0xf]
      %v290 = vld [vmem:[%s274 + $0x1c] sm:$0xf]
      %v291 = vld [vmem:[%s274 + $0x20] sm:$0xf]
      %v292 = vld [vmem:[%s274 + $0x24] sm:$0xf]
      %v293 = vld [vmem:[%s274 + $0x28] sm:$0xf]
      %v294 = vld [vmem:[%s274 + $0x2c] sm:$0xf]
      %v295 = vld [vmem:[%s274 + $0x30] sm:$0xf]
      %v296 = vld [vmem:[%s274 + $0x34] sm:$0xf]
      %v297 = vld [vmem:[%s274 + $0x38] sm:$0xf]
      %v298 = vld [vmem:[%s274 + $0x3c] sm:$0xf]
      %v299 = vld [vmem:[%s274 + $0x40] sm:$0xf]
      %v300 = vld [vmem:[%s274 + $0x44] sm:$0xf]
      %v301 = vld [vmem:[%s274 + $0x48] sm:$0xf]
      %v302 = vld [vmem:[%s274 + $0x4c] sm:$0xf]
      %v303 = vld [vmem:[%s274 + $0x50] sm:$0xf]
      %v304 = vld [vmem:[%s274 + $0x54] sm:$0xf]
      %v305 = vld [vmem:[%s274 + $0x58] sm:$0xf]
      %v306 = vld [vmem:[%s274 + $0x5c] sm:$0xf]
      %v307 = vld [vmem:[%s274 + $0x60] sm:$0xf]
      %v308 = vld [vmem:[%s274 + $0x64] sm:$0xf]
      %v309 = vld [vmem:[%s274 + $0x68] sm:$0xf]
      %v310 = vld [vmem:[%s274 + $0x6c] sm:$0xf]
      %v311 = vld [vmem:[%s274 + $0x70] sm:$0xf]
      %v312 = vld [vmem:[%s274 + $0x74] sm:$0xf]
      %v313 = vld [vmem:[%s274 + $0x78] sm:$0xf]
      %v314 = vld [vmem:[%s274 + $0x7c] sm:$0xf]
      %v315 = vld [vmem:[%s274 + $0x80] sm:$0xf]
      %v316 = vld [vmem:[%s274 + $0x84] sm:$0xf]
      %v317 = vld [vmem:[%s274 + $0x88] sm:$0xf]
      %v318 = vld [vmem:[%s274 + $0x8c] sm:$0xf]
      %v319 = vld [vmem:[%s274 + $0x90] sm:$0xf]
      %v320 = vld [vmem:[%s274 + $0x94] sm:$0xf]
      %v321 = vld [vmem:[%s274 + $0x98] sm:$0xf]
      %v322 = vld [vmem:[%s274 + $0x9c] sm:$0xf]
      %v323 = vld [vmem:[%s274 + $0xa0] sm:$0xf]
      %v324 = vld [vmem:[%s274 + $0xa4] sm:$0xf]
      %v325 = vld [vmem:[%s274 + $0xa8] sm:$0xf]
      %v326 = vld [vmem:[%s274 + $0xac] sm:$0xf]
      %v327 = vld [vmem:[%s274 + $0xb0] sm:$0xf]
      %v328 = vld [vmem:[%s274 + $0xb4] sm:$0xf]
      %v329 = vld [vmem:[%s274 + $0xb8] sm:$0xf]
      %v330 = vld [vmem:[%s274 + $0xbc] sm:$0xf]
      %v331 = vld [vmem:[%s274 + $0xc0] sm:$0xf]
      %v332 = vld [vmem:[%s274 + $0xc4] sm:$0xf]
      %v333 = vld [vmem:[%s274 + $0xc8] sm:$0xf]
      %v334 = vld [vmem:[%s274 + $0xcc] sm:$0xf]
      %v335 = vld [vmem:[%s274 + $0xd0] sm:$0xf]
      %v336 = vld [vmem:[%s274 + $0xd4] sm:$0xf]
      %v337 = vld [vmem:[%s274 + $0xd8] sm:$0xf]
      %v338 = vld [vmem:[%s274 + $0xdc] sm:$0xf]
      %v339 = vld [vmem:[%s274 + $0xe0] sm:$0xf]
      %v340 = vld [vmem:[%s274 + $0xe4] sm:$0xf]
      %v341 = vld [vmem:[%s274 + $0xe8] sm:$0xf]
      %v342 = vld [vmem:[%s274 + $0xec] sm:$0xf]
      %v343 = vld [vmem:[%s274 + $0xf0] sm:$0xf]
      %v344 = vld [vmem:[%s274 + $0xf4] sm:$0xf]
      %v345 = vld [vmem:[%s274 + $0xf8] sm:$0xf]
      %v346 = vld [vmem:[%s274 + $0xfc] sm:$0xf]
      %v347 = vld [vmem:[%s1] sm:$0xf]
      %v348 = vld [vmem:[%s1 + $0x4] sm:$0x1]
      %v349 = vld [vmem:[%s2] sm:$0x1]
      %v351 = vlaneseq
      %v352 = vshrl.u32 %v351, 7
      %v353 = vsub.s32 0, %v352
      %v354 = vrot.slane %v349, %v353
      %v420 = vunpack.c.l.b16 %v283
      %v421 = vunpack.c.l.b16 %v284
      %v422 = vunpack.c.l.b16 %v285
      %v423 = vunpack.c.l.b16 %v286
      %v424 = vunpack.c.l.b16 %v287
      %v425 = vunpack.c.l.b16 %v288
      %v426 = vunpack.c.l.b16 %v289
      %v427 = vunpack.c.l.b16 %v290
      %v428 = vunpack.c.l.b16 %v291
      %v429 = vunpack.c.l.b16 %v292
      %v430 = vunpack.c.l.b16 %v293
      %v431 = vunpack.c.l.b16 %v294
      %v432 = vunpack.c.l.b16 %v295
      %v433 = vunpack.c.l.b16 %v296
      %v434 = vunpack.c.l.b16 %v297
      %v435 = vunpack.c.l.b16 %v298
      %v436 = vunpack.c.l.b16 %v299
      %v437 = vunpack.c.l.b16 %v300
      %v438 = vunpack.c.l.b16 %v301
      %v439 = vunpack.c.l.b16 %v302
      %v440 = vunpack.c.l.b16 %v303
      %v441 = vunpack.c.l.b16 %v304
      %v442 = vunpack.c.l.b16 %v305
      %v443 = vunpack.c.l.b16 %v306
      %v444 = vunpack.c.l.b16 %v307
      %v445 = vunpack.c.l.b16 %v308
      %v446 = vunpack.c.l.b16 %v309
      %v447 = vunpack.c.l.b16 %v310
      %v448 = vunpack.c.l.b16 %v311
      %v449 = vunpack.c.l.b16 %v312
      %v450 = vunpack.c.l.b16 %v313
      %v451 = vunpack.c.l.b16 %v314
      %v452 = vunpack.c.l.b16 %v315
      %v453 = vunpack.c.l.b16 %v316
      %v454 = vunpack.c.l.b16 %v317
      %v455 = vunpack.c.l.b16 %v318
      %v456 = vunpack.c.l.b16 %v319
      %v457 = vunpack.c.l.b16 %v320
      %v458 = vunpack.c.l.b16 %v321
      %v459 = vunpack.c.l.b16 %v322
      %v460 = vunpack.c.l.b16 %v323
      %v461 = vunpack.c.l.b16 %v324
      %v462 = vunpack.c.l.b16 %v325
      %v463 = vunpack.c.l.b16 %v326
      %v464 = vunpack.c.l.b16 %v327
      %v465 = vunpack.c.l.b16 %v328
      %v466 = vunpack.c.l.b16 %v329
      %v467 = vunpack.c.l.b16 %v330
      %v468 = vunpack.c.l.b16 %v331
      %v469 = vunpack.c.l.b16 %v332
      %v470 = vunpack.c.l.b16 %v333
      %v471 = vunpack.c.l.b16 %v334
      %v472 = vunpack.c.l.b16 %v335
      %v473 = vunpack.c.l.b16 %v336
      %v474 = vunpack.c.l.b16 %v337
      %v475 = vunpack.c.l.b16 %v338
      %v476 = vunpack.c.l.b16 %v339
      %v477 = vunpack.c.l.b16 %v340
      %v478 = vunpack.c.l.b16 %v341
      %v479 = vunpack.c.l.b16 %v342
      %v480 = vunpack.c.l.b16 %v343
      %v481 = vunpack.c.l.b16 %v344
      %v482 = vunpack.c.l.b16 %v345
      %v483 = vunpack.c.l.b16 %v346
      %v484 = vpack.c.b16 %v421, %v420
      %v485 = vpack.c.b16 %v423, %v422
      %v486 = vpack.c.b16 %v425, %v424
      %v487 = vpack.c.b16 %v427, %v426
      %v488 = vpack.c.b16 %v429, %v428
      %v489 = vpack.c.b16 %v431, %v430
      %v490 = vpack.c.b16 %v433, %v432
      %v491 = vpack.c.b16 %v435, %v434
      %v492 = vpack.c.b16 %v437, %v436
      %v493 = vpack.c.b16 %v439, %v438
      %v494 = vpack.c.b16 %v441, %v440
      %v495 = vpack.c.b16 %v443, %v442
      %v496 = vpack.c.b16 %v445, %v444
      %v497 = vpack.c.b16 %v447, %v446
      %v498 = vpack.c.b16 %v449, %v448
      %v499 = vpack.c.b16 %v451, %v450
      %v500 = vpack.c.b16 %v453, %v452
      %v501 = vpack.c.b16 %v455, %v454
      %v502 = vpack.c.b16 %v457, %v456
      %v503 = vpack.c.b16 %v459, %v458
      %v504 = vpack.c.b16 %v461, %v460
      %v505 = vpack.c.b16 %v463, %v462
      %v506 = vpack.c.b16 %v465, %v464
      %v507 = vpack.c.b16 %v467, %v466
      %v508 = vpack.c.b16 %v469, %v468
      %v509 = vpack.c.b16 %v471, %v470
      %v510 = vpack.c.b16 %v473, %v472
      %v511 = vpack.c.b16 %v475, %v474
      %v512 = vpack.c.b16 %v477, %v476
      %v513 = vpack.c.b16 %v479, %v478
      %v514 = vpack.c.b16 %v481, %v480
      %v515 = vpack.c.b16 %v483, %v482
      %v518 = vunpack.c.l.b16 %v347
      %v519 = vunpack.c.l.b16 %v348
      %v520 = vpack.c.b16 %v519, %v518
      %vm521 = vcmask 80896
      %v523 = vsel %vm521, %v484, 0
      %v526 = vsel %vm521, %v485, 0
      %v529 = vsel %vm521, %v486, 0
      %v532 = vsel %vm521, %v487, 0
      %v535 = vsel %vm521, %v488, 0
      %v538 = vsel %vm521, %v489, 0
      %v541 = vsel %vm521, %v490, 0
      %v544 = vsel %vm521, %v491, 0
      %v547 = vsel %vm521, %v492, 0
      %v550 = vsel %vm521, %v493, 0
      %v553 = vsel %vm521, %v494, 0
      %v556 = vsel %vm521, %v495, 0
      %v559 = vsel %vm521, %v496, 0
      %v562 = vsel %vm521, %v497, 0
      %v565 = vsel %vm521, %v498, 0
      %v568 = vsel %vm521, %v499, 0
      %v571 = vsel %vm521, %v500, 0
      %v574 = vsel %vm521, %v501, 0
      %v577 = vsel %vm521, %v502, 0
      %v580 = vsel %vm521, %v503, 0
      %v583 = vsel %vm521, %v504, 0
      %v586 = vsel %vm521, %v505, 0
      %v589 = vsel %vm521, %v506, 0
      %v592 = vsel %vm521, %v507, 0
      %v595 = vsel %vm521, %v508, 0
      %v598 = vsel %vm521, %v509, 0
      %v601 = vsel %vm521, %v510, 0
      %v604 = vsel %vm521, %v511, 0
      %v607 = vsel %vm521, %v512, 0
      %v610 = vsel %vm521, %v513, 0
      %v613 = vsel %vm521, %v514, 0
      %v616 = vsel %vm521, %v515, 0
      %vm618 = vcmask 1044480
      %v620 = vsel %vm618, %v520, 0
      %622 = vmatprep.subr.bf16.mxu0 0
      %623 = vmatpush1.bf16.msra.mxu0 %v620
      %624 = vmatprep.subr.bf16.mxu0 0
      %625 = vmatpush1.bf16.msra.mxu0 0
      %626 = vmatprep.subr.bf16.mxu0 0
      %627 = vmatpush1.bf16.msra.mxu0 0
      %628 = vmatprep.subr.bf16.mxu0 0
      %629 = vmatpush1.bf16.msra.mxu0 0
      %630 = vmatprep.subr.bf16.mxu0 0
      %631 = vmatpush1.bf16.msra.mxu0 0
      %632 = vmatprep.subr.bf16.mxu0 0
      %633 = vmatpush1.bf16.msra.mxu0 0
      %634 = vmatprep.subr.bf16.mxu0 0
      %635 = vmatpush1.bf16.msra.mxu0 0
      %636 = vmatprep.subr.bf16.mxu0 0
      %637 = vmatpush1.bf16.msra.mxu0 0
      %638 = vmatprep.subr.bf16.mxu0 0
      %639 = vmatpush1.bf16.msra.mxu0 0
      %640 = vmatprep.subr.bf16.mxu0 0
      %641 = vmatpush1.bf16.msra.mxu0 0
      %642 = vmatprep.subr.bf16.mxu0 0
      %643 = vmatpush1.bf16.msra.mxu0 0
      %644 = vmatprep.subr.bf16.mxu0 0
      %645 = vmatpush1.bf16.msra.mxu0 0
      %646 = vmatprep.subr.bf16.mxu0 0
      %647 = vmatpush1.bf16.msra.mxu0 0
      %648 = vmatprep.subr.bf16.mxu0 0
      %649 = vmatpush1.bf16.msra.mxu0 0
      %650 = vmatprep.subr.bf16.mxu0 0
      %651 = vmatpush1.bf16.msra.mxu0 0
      %652 = vmatprep.subr.bf16.mxu0 0
      %653 = vmatpush1.bf16.msra.mxu0 0
      %654 = vmatprep.mubr.bf16.mxu0 0
      %655 = vmatmul.mubr.bf16.gmra.mrb[0].mxu0 %v523
      %v656 = vpop.f32.mrb[0].mxu0
      %v657 = vadd.f32 %v354, %v656
      %v658 = vpop.f32.mrb[0].mxu0
      %v659 = vpop.f32.mrb[0].mxu0
      %v660 = vadd.f32 %v354, %v659
      %v661 = vpop.f32.mrb[0].mxu0
      %662 = vmatprep.mubr.bf16.mxu0 0
      %663 = vmatmul.mubr.bf16.gmra.mrb[0].mxu0 %v526
      %v664 = vpop.f32.mrb[0].mxu0
      %v665 = vadd.f32 %v354, %v664
      %v666 = vpop.f32.mrb[0].mxu0
      %v667 = vpop.f32.mrb[0].mxu0
      %v668 = vadd.f32 %v354, %v667
      %v669 = vpop.f32.mrb[0].mxu0
      %670 = vmatprep.mubr.bf16.mxu0 0
      %671 = vmatmul.mubr.bf16.gmra.mrb[0].mxu0 %v529
      %v672 = vpop.f32.mrb[0].mxu0
      %v673 = vadd.f32 %v354, %v672
      %v674 = vpop.f32.mrb[0].mxu0
      %v675 = vpop.f32.mrb[0].mxu0
      %v676 = vadd.f32 %v354, %v675
      %v677 = vpop.f32.mrb[0].mxu0
      %678 = vmatprep.mubr.bf16.mxu0 0
      %679 = vmatmul.mubr.bf16.gmra.mrb[0].mxu0 %v532
      %v680 = vpop.f32.mrb[0].mxu0
      %v681 = vadd.f32 %v354, %v680
      %v682 = vpop.f32.mrb[0].mxu0
      %v683 = vpop.f32.mrb[0].mxu0
      %v684 = vadd.f32 %v354, %v683
      %v685 = vpop.f32.mrb[0].mxu0
      %686 = vmatprep.mubr.bf16.mxu0 0
      %687 = vmatmul.mubr.bf16.gmra.mrb[0].mxu0 %v535
      %v688 = vpop.f32.mrb[0].mxu0
      %v689 = vadd.f32 %v354, %v688
      %v690 = vpop.f32.mrb[0].mxu0
      %v691 = vpop.f32.mrb[0].mxu0
      %v692 = vadd.f32 %v354, %v691
      %v693 = vpop.f32.mrb[0].mxu0
      %694 = vmatprep.mubr.bf16.mxu0 0
      %695 = vmatmul.mubr.bf16.gmra.mrb[0].mxu0 %v538
      %v696 = vpop.f32.mrb[0].mxu0
      %v697 = vadd.f32 %v354, %v696
      %v698 = vpop.f32.mrb[0].mxu0
      %v699 = vpop.f32.mrb[0].mxu0
      %v700 = vadd.f32 %v354, %v699
      %v701 = vpop.f32.mrb[0].mxu0
      %702 = vmatprep.mubr.bf16.mxu0 0
      %703 = vmatmul.mubr.bf16.gmra.mrb[0].mxu0 %v541
      %v704 = vpop.f32.mrb[0].mxu0
      %v705 = vadd.f32 %v354, %v704
      %v706 = vpop.f32.mrb[0].mxu0
      %v707 = vpop.f32.mrb[0].mxu0
      %v708 = vadd.f32 %v354, %v707
      %v709 = vpop.f32.mrb[0].mxu0
      %710 = vmatprep.mubr.bf16.mxu0 0
      %711 = vmatmul.mubr.bf16.gmra.mrb[0].mxu0 %v544
      %v712 = vpop.f32.mrb[0].mxu0
      %v713 = vadd.f32 %v354, %v712
      %v714 = vpop.f32.mrb[0].mxu0
      %v715 = vpop.f32.mrb[0].mxu0
      %v716 = vadd.f32 %v354, %v715
      %v717 = vpop.f32.mrb[0].mxu0
      %718 = vmatprep.mubr.bf16.mxu0 0
      %719 = vmatmul.mubr.bf16.gmra.mrb[0].mxu0 %v547
      %v720 = vpop.f32.mrb[0].mxu0
      %v721 = vadd.f32 %v354, %v720
      %v722 = vpop.f32.mrb[0].mxu0
      %v723 = vpop.f32.mrb[0].mxu0
      %v724 = vadd.f32 %v354, %v723
      %v725 = vpop.f32.mrb[0].mxu0
      %726 = vmatprep.mubr.bf16.mxu0 0
      %727 = vmatmul.mubr.bf16.gmra.mrb[0].mxu0 %v550
      %v728 = vpop.f32.mrb[0].mxu0
      %v729 = vadd.f32 %v354, %v728
      %v730 = vpop.f32.mrb[0].mxu0
      %v731 = vpop.f32.mrb[0].mxu0
      %v732 = vadd.f32 %v354, %v731
      %v733 = vpop.f32.mrb[0].mxu0
      %734 = vmatprep.mubr.bf16.mxu0 0
      %735 = vmatmul.mubr.bf16.gmra.mrb[0].mxu0 %v553
      %v736 = vpop.f32.mrb[0].mxu0
      %v737 = vadd.f32 %v354, %v736
      %v738 = vpop.f32.mrb[0].mxu0
      %v739 = vpop.f32.mrb[0].mxu0
      %v740 = vadd.f32 %v354, %v739
      %v741 = vpop.f32.mrb[0].mxu0
      %742 = vmatprep.mubr.bf16.mxu0 0
      %743 = vmatmul.mubr.bf16.gmra.mrb[0].mxu0 %v556
      %v744 = vpop.f32.mrb[0].mxu0
      %v745 = vadd.f32 %v354, %v744
      %v746 = vpop.f32.mrb[0].mxu0
      %v747 = vpop.f32.mrb[0].mxu0
      %v748 = vadd.f32 %v354, %v747
      %v749 = vpop.f32.mrb[0].mxu0
      %750 = vmatprep.mubr.bf16.mxu0 0
      %751 = vmatmul.mubr.bf16.gmra.mrb[0].mxu0 %v559
      %v752 = vpop.f32.mrb[0].mxu0
      %v753 = vadd.f32 %v354, %v752
      %v754 = vpop.f32.mrb[0].mxu0
      %v755 = vpop.f32.mrb[0].mxu0
      %v756 = vadd.f32 %v354, %v755
      %v757 = vpop.f32.mrb[0].mxu0
      %758 = vmatprep.mubr.bf16.mxu0 0
      %759 = vmatmul.mubr.bf16.gmra.mrb[0].mxu0 %v562
      %v760 = vpop.f32.mrb[0].mxu0
      %v761 = vadd.f32 %v354, %v760
      %v762 = vpop.f32.mrb[0].mxu0
      %v763 = vpop.f32.mrb[0].mxu0
      %v764 = vadd.f32 %v354, %v763
      %v765 = vpop.f32.mrb[0].mxu0
      %766 = vmatprep.mubr.bf16.mxu0 0
      %767 = vmatmul.mubr.bf16.gmra.mrb[0].mxu0 %v565
      %v768 = vpop.f32.mrb[0].mxu0
      %v769 = vadd.f32 %v354, %v768
      %v770 = vpop.f32.mrb[0].mxu0
      %v771 = vpop.f32.mrb[0].mxu0
      %v772 = vadd.f32 %v354, %v771
      %v773 = vpop.f32.mrb[0].mxu0
      %774 = vmatprep.mubr.bf16.mxu0 0
      %775 = vmatmul.mubr.bf16.gmra.mrb[0].mxu0 %v568
      %v776 = vpop.f32.mrb[0].mxu0
      %v777 = vadd.f32 %v354, %v776
      %v778 = vpop.f32.mrb[0].mxu0
      %v779 = vpop.f32.mrb[0].mxu0
      %v780 = vadd.f32 %v354, %v779
      %v781 = vpop.f32.mrb[0].mxu0
      %782 = vmatprep.mubr.bf16.mxu0 0
      %783 = vmatmul.mubr.bf16.gmra.mrb[0].mxu0 %v571
      %v784 = vpop.f32.mrb[0].mxu0
      %v785 = vadd.f32 %v354, %v784
      %v786 = vpop.f32.mrb[0].mxu0
      %v787 = vpop.f32.mrb[0].mxu0
      %v788 = vadd.f32 %v354, %v787
      %v789 = vpop.f32.mrb[0].mxu0
      %790 = vmatprep.mubr.bf16.mxu0 0
      %791 = vmatmul.mubr.bf16.gmra.mrb[0].mxu0 %v574
      %v792 = vpop.f32.mrb[0].mxu0
      %v793 = vadd.f32 %v354, %v792
      %v794 = vpop.f32.mrb[0].mxu0
      %v795 = vpop.f32.mrb[0].mxu0
      %v796 = vadd.f32 %v354, %v795
      %v797 = vpop.f32.mrb[0].mxu0
      %798 = vmatprep.mubr.bf16.mxu0 0
      %799 = vmatmul.mubr.bf16.gmra.mrb[0].mxu0 %v577
      %v800 = vpop.f32.mrb[0].mxu0
      %v801 = vadd.f32 %v354, %v800
      %v802 = vpop.f32.mrb[0].mxu0
      %v803 = vpop.f32.mrb[0].mxu0
      %v804 = vadd.f32 %v354, %v803
      %v805 = vpop.f32.mrb[0].mxu0
      %806 = vmatprep.mubr.bf16.mxu0 0
      %807 = vmatmul.mubr.bf16.gmra.mrb[0].mxu0 %v580
      %v808 = vpop.f32.mrb[0].mxu0
      %v809 = vadd.f32 %v354, %v808
      %v810 = vpop.f32.mrb[0].mxu0
      %v811 = vpop.f32.mrb[0].mxu0
      %v812 = vadd.f32 %v354, %v811
      %v813 = vpop.f32.mrb[0].mxu0
      %814 = vmatprep.mubr.bf16.mxu0 0
      %815 = vmatmul.mubr.bf16.gmra.mrb[0].mxu0 %v583
      %v816 = vpop.f32.mrb[0].mxu0
      %v817 = vadd.f32 %v354, %v816
      %v818 = vpop.f32.mrb[0].mxu0
      %v819 = vpop.f32.mrb[0].mxu0
      %v820 = vadd.f32 %v354, %v819
      %v821 = vpop.f32.mrb[0].mxu0
      %822 = vmatprep.mubr.bf16.mxu0 0
      %823 = vmatmul.mubr.bf16.gmra.mrb[0].mxu0 %v586
      %v824 = vpop.f32.mrb[0].mxu0
      %v825 = vadd.f32 %v354, %v824
      %v826 = vpop.f32.mrb[0].mxu0
      %v827 = vpop.f32.mrb[0].mxu0
      %v828 = vadd.f32 %v354, %v827
      %v829 = vpop.f32.mrb[0].mxu0
      %830 = vmatprep.mubr.bf16.mxu0 0
      %831 = vmatmul.mubr.bf16.gmra.mrb[0].mxu0 %v589
      %v832 = vpop.f32.mrb[0].mxu0
      %v833 = vadd.f32 %v354, %v832
      %v834 = vpop.f32.mrb[0].mxu0
      %v835 = vpop.f32.mrb[0].mxu0
      %v836 = vadd.f32 %v354, %v835
      %v837 = vpop.f32.mrb[0].mxu0
      %838 = vmatprep.mubr.bf16.mxu0 0
      %839 = vmatmul.mubr.bf16.gmra.mrb[0].mxu0 %v592
      %v840 = vpop.f32.mrb[0].mxu0
      %v841 = vadd.f32 %v354, %v840
      %v842 = vpop.f32.mrb[0].mxu0
      %v843 = vpop.f32.mrb[0].mxu0
      %v844 = vadd.f32 %v354, %v843
      %v845 = vpop.f32.mrb[0].mxu0
      %846 = vmatprep.mubr.bf16.mxu0 0
      %847 = vmatmul.mubr.bf16.gmra.mrb[0].mxu0 %v595
      %v848 = vpop.f32.mrb[0].mxu0
      %v849 = vadd.f32 %v354, %v848
      %v850 = vpop.f32.mrb[0].mxu0
      %v851 = vpop.f32.mrb[0].mxu0
      %v852 = vadd.f32 %v354, %v851
      %v853 = vpop.f32.mrb[0].mxu0
      %854 = vmatprep.mubr.bf16.mxu0 0
      %855 = vmatmul.mubr.bf16.gmra.mrb[0].mxu0 %v598
      %v856 = vpop.f32.mrb[0].mxu0
      %v857 = vadd.f32 %v354, %v856
      %v858 = vpop.f32.mrb[0].mxu0
      %v859 = vpop.f32.mrb[0].mxu0
      %v860 = vadd.f32 %v354, %v859
      %v861 = vpop.f32.mrb[0].mxu0
      %862 = vmatprep.mubr.bf16.mxu0 0
      %863 = vmatmul.mubr.bf16.gmra.mrb[0].mxu0 %v601
      %v864 = vpop.f32.mrb[0].mxu0
      %v865 = vadd.f32 %v354, %v864
      %v866 = vpop.f32.mrb[0].mxu0
      %v867 = vpop.f32.mrb[0].mxu0
      %v868 = vadd.f32 %v354, %v867
      %v869 = vpop.f32.mrb[0].mxu0
      %870 = vmatprep.mubr.bf16.mxu0 0
      %871 = vmatmul.mubr.bf16.gmra.mrb[0].mxu0 %v604
      %v872 = vpop.f32.mrb[0].mxu0
      %v873 = vadd.f32 %v354, %v872
      %v874 = vpop.f32.mrb[0].mxu0
      %v875 = vpop.f32.mrb[0].mxu0
      %v876 = vadd.f32 %v354, %v875
      %v877 = vpop.f32.mrb[0].mxu0
      %878 = vmatprep.mubr.bf16.mxu0 0
      %879 = vmatmul.mubr.bf16.gmra.mrb[0].mxu0 %v607
      %v880 = vpop.f32.mrb[0].mxu0
      %v881 = vadd.f32 %v354, %v880
      %v882 = vpop.f32.mrb[0].mxu0
      %v883 = vpop.f32.mrb[0].mxu0
      %v884 = vadd.f32 %v354, %v883
      %v885 = vpop.f32.mrb[0].mxu0
      %886 = vmatprep.mubr.bf16.mxu0 0
      %887 = vmatmul.mubr.bf16.gmra.mrb[0].mxu0 %v610
      %v888 = vpop.f32.mrb[0].mxu0
      %v889 = vadd.f32 %v354, %v888
      %v890 = vpop.f32.mrb[0].mxu0
      %v891 = vpop.f32.mrb[0].mxu0
      %v892 = vadd.f32 %v354, %v891
      %v893 = vpop.f32.mrb[0].mxu0
      %894 = vmatprep.mubr.bf16.mxu0 0
      %895 = vmatmul.mubr.bf16.gmra.mrb[0].mxu0 %v613
      %v896 = vpop.f32.mrb[0].mxu0
      %v897 = vadd.f32 %v354, %v896
      %v898 = vpop.f32.mrb[0].mxu0
      %v899 = vpop.f32.mrb[0].mxu0
      %v900 = vadd.f32 %v354, %v899
      %v901 = vpop.f32.mrb[0].mxu0
      %902 = vmatprep.mubr.bf16.mxu0 0
      %903 = vmatmul.mubr.bf16.gmra.mrb[0].mxu0 %v616
      %v904 = vpop.f32.mrb[0].mxu0
      %v905 = vadd.f32 %v354, %v904
      %v906 = vpop.f32.mrb[0].mxu0
      %v907 = vpop.f32.mrb[0].mxu0
      %v908 = vadd.f32 %v354, %v907
      %v909 = vpop.f32.mrb[0].mxu0
      %910 = vdwg.mxu0
      %v911 = vmax.f32 %v657, 0.0
      %v912 = vmax.f32 %v660, 0.0
      %v913 = vmax.f32 %v665, 0.0
      %v914 = vmax.f32 %v668, 0.0
      %v915 = vmax.f32 %v673, 0.0
      %v916 = vmax.f32 %v676, 0.0
      %v917 = vmax.f32 %v681, 0.0
      %v918 = vmax.f32 %v684, 0.0
      %v919 = vmax.f32 %v689, 0.0
      %v920 = vmax.f32 %v692, 0.0
      %v921 = vmax.f32 %v697, 0.0
      %v922 = vmax.f32 %v700, 0.0
      %v923 = vmax.f32 %v705, 0.0
      %v924 = vmax.f32 %v708, 0.0
      %v925 = vmax.f32 %v713, 0.0
      %v926 = vmax.f32 %v716, 0.0
      %v927 = vmax.f32 %v721, 0.0
      %v928 = vmax.f32 %v724, 0.0
      %v929 = vmax.f32 %v729, 0.0
      %v930 = vmax.f32 %v732, 0.0
      %v931 = vmax.f32 %v737, 0.0
      %v932 = vmax.f32 %v740, 0.0
      %v933 = vmax.f32 %v745, 0.0
      %v934 = vmax.f32 %v748, 0.0
      %v935 = vmax.f32 %v753, 0.0
      %v936 = vmax.f32 %v756, 0.0
      %v937 = vmax.f32 %v761, 0.0
      %v938 = vmax.f32 %v764, 0.0
      %v939 = vmax.f32 %v769, 0.0
      %v940 = vmax.f32 %v772, 0.0
      %v941 = vmax.f32 %v777, 0.0
      %v942 = vmax.f32 %v780, 0.0
      %v943 = vmax.f32 %v785, 0.0
      %v944 = vmax.f32 %v788, 0.0
      %v945 = vmax.f32 %v793, 0.0
      %v946 = vmax.f32 %v796, 0.0
      %v947 = vmax.f32 %v801, 0.0
      %v948 = vmax.f32 %v804, 0.0
      %v949 = vmax.f32 %v809, 0.0
      %v950 = vmax.f32 %v812, 0.0
      %v951 = vmax.f32 %v817, 0.0
      %v952 = vmax.f32 %v820, 0.0
      %v953 = vmax.f32 %v825, 0.0
      %v954 = vmax.f32 %v828, 0.0
      %v955 = vmax.f32 %v833, 0.0
      %v956 = vmax.f32 %v836, 0.0
      %v957 = vmax.f32 %v841, 0.0
      %v958 = vmax.f32 %v844, 0.0
      %v959 = vmax.f32 %v849, 0.0
      %v960 = vmax.f32 %v852, 0.0
      %v961 = vmax.f32 %v857, 0.0
      %v962 = vmax.f32 %v860, 0.0
      %v963 = vmax.f32 %v865, 0.0
      %v964 = vmax.f32 %v868, 0.0
      %v965 = vmax.f32 %v873, 0.0
      %v966 = vmax.f32 %v876, 0.0
      %v967 = vmax.f32 %v881, 0.0
      %v968 = vmax.f32 %v884, 0.0
      %v969 = vmax.f32 %v889, 0.0
      %v970 = vmax.f32 %v892, 0.0
      %v971 = vmax.f32 %v897, 0.0
      %v972 = vmax.f32 %v900, 0.0
      %v973 = vmax.f32 %v905, 0.0
      %v974 = vmax.f32 %v908, 0.0
      %v975 = vpack.c.bf16 %v912, %v911
      %v976 = vpack.c.bf16 %v914, %v913
      %v977 = vpack.c.bf16 %v916, %v915
      %v978 = vpack.c.bf16 %v918, %v917
      %v979 = vpack.c.bf16 %v920, %v919
      %v980 = vpack.c.bf16 %v922, %v921
      %v981 = vpack.c.bf16 %v924, %v923
      %v982 = vpack.c.bf16 %v926, %v925
      %v983 = vpack.c.bf16 %v928, %v927
      %v984 = vpack.c.bf16 %v930, %v929
      %v985 = vpack.c.bf16 %v932, %v931
      %v986 = vpack.c.bf16 %v934, %v933
      %v987 = vpack.c.bf16 %v936, %v935
      %v988 = vpack.c.bf16 %v938, %v937
      %v989 = vpack.c.bf16 %v940, %v939
      %v990 = vpack.c.bf16 %v942, %v941
      %v991 = vpack.c.bf16 %v944, %v943
      %v992 = vpack.c.bf16 %v946, %v945
      %v993 = vpack.c.bf16 %v948, %v947
      %v994 = vpack.c.bf16 %v950, %v949
      %v995 = vpack.c.bf16 %v952, %v951
      %v996 = vpack.c.bf16 %v954, %v953
      %v997 = vpack.c.bf16 %v956, %v955
      %v998 = vpack.c.bf16 %v958, %v957
      %v999 = vpack.c.bf16 %v960, %v959
      %v1000 = vpack.c.bf16 %v962, %v961
      %v1001 = vpack.c.bf16 %v964, %v963
      %v1002 = vpack.c.bf16 %v966, %v965
      %v1003 = vpack.c.bf16 %v968, %v967
      %v1004 = vpack.c.bf16 %v970, %v969
      %v1005 = vpack.c.bf16 %v972, %v971
      %v1006 = vpack.c.bf16 %v974, %v973
      %v1007 = vld [vmem:[%s3] sm:$0xf]
      %v1008 = vld [vmem:[%s3 + $0x4] sm:$0xf]
      %v1009 = vld [vmem:[%s3 + $0x8] sm:$0xf]
      %v1010 = vld [vmem:[%s3 + $0xc] sm:$0xf]
      %v1011 = vld [vmem:[%s3 + $0x10] sm:$0xf]
      %v1012 = vld [vmem:[%s3 + $0x14] sm:$0xf]
      %v1013 = vld [vmem:[%s3 + $0x18] sm:$0xf]
      %v1014 = vld [vmem:[%s3 + $0x1c] sm:$0xf]
      %v1015 = vld [vmem:[%s4] sm:$0x1]
      %v1017 = vlaneseq
      %v1018 = vshrl.u32 %v1017, 7
      %v1019 = vsub.s32 0, %v1018
      %v1020 = vrot.slane %v1015, %v1019
      %v1030 = vunpack.c.l.b16 %v1007
      %v1031 = vunpack.c.l.b16 %v1008
      %v1032 = vunpack.c.l.b16 %v1009
      %v1033 = vunpack.c.l.b16 %v1010
      %v1034 = vunpack.c.l.b16 %v1011
      %v1035 = vunpack.c.l.b16 %v1012
      %v1036 = vunpack.c.l.b16 %v1013
      %v1037 = vunpack.c.l.b16 %v1014
      %v1038 = vpack.c.b16 %v1031, %v1030
      %v1039 = vpack.c.b16 %v1033, %v1032
      %v1040 = vpack.c.b16 %v1035, %v1034
      %v1041 = vpack.c.b16 %v1037, %v1036
      %vm1046 = vcmask 523264
      %v1048 = vsel %vm1046, %v975, 0
      %v1051 = vsel %vm1046, %v976, 0
      %v1054 = vsel %vm1046, %v977, 0
      %v1057 = vsel %vm1046, %v978, 0
      %v1060 = vsel %vm1046, %v979, 0
      %v1063 = vsel %vm1046, %v980, 0
      %v1066 = vsel %vm1046, %v981, 0
      %v1069 = vsel %vm1046, %v982, 0
      %v1072 = vsel %vm1046, %v983, 0
      %v1075 = vsel %vm1046, %v984, 0
      %v1078 = vsel %vm1046, %v985, 0
      %v1081 = vsel %vm1046, %v986, 0
      %v1084 = vsel %vm1046, %v987, 0
      %v1087 = vsel %vm1046, %v988, 0
      %v1090 = vsel %vm1046, %v989, 0
      %v1093 = vsel %vm1046, %v990, 0
      %v1096 = vsel %vm1046, %v991, 0
      %v1099 = vsel %vm1046, %v992, 0
      %v1102 = vsel %vm1046, %v993, 0
      %v1105 = vsel %vm1046, %v994, 0
      %v1108 = vsel %vm1046, %v995, 0
      %v1111 = vsel %vm1046, %v996, 0
      %v1114 = vsel %vm1046, %v997, 0
      %v1117 = vsel %vm1046, %v998, 0
      %v1120 = vsel %vm1046, %v999, 0
      %v1123 = vsel %vm1046, %v1000, 0
      %v1126 = vsel %vm1046, %v1001, 0
      %v1129 = vsel %vm1046, %v1002, 0
      %v1132 = vsel %vm1046, %v1003, 0
      %v1135 = vsel %vm1046, %v1004, 0
      %v1138 = vsel %vm1046, %v1005, 0
      %v1141 = vsel %vm1046, %v1006, 0
      %1143 = vmatprep.subr.bf16.mxu0 0
      %1144 = vmatpush1.bf16.msra.mxu0 %v1038
      %1145 = vmatprep.subr.bf16.mxu0 0
      %1146 = vmatpush1.bf16.msra.mxu0 %v1039
      %1147 = vmatprep.subr.bf16.mxu0 0
      %1148 = vmatpush1.bf16.msra.mxu0 %v1040
      %1149 = vmatprep.subr.bf16.mxu0 0
      %1150 = vmatpush1.bf16.msra.mxu0 %v1041
      %1151 = vmatprep.subr.bf16.mxu0 0
      %1152 = vmatpush1.bf16.msra.mxu0 0
      %1153 = vmatprep.subr.bf16.mxu0 0
      %1154 = vmatpush1.bf16.msra.mxu0 0
      %1155 = vmatprep.subr.bf16.mxu0 0
      %1156 = vmatpush1.bf16.msra.mxu0 0
      %1157 = vmatprep.subr.bf16.mxu0 0
      %1158 = vmatpush1.bf16.msra.mxu0 0
      %1159 = vmatprep.subr.bf16.mxu0 0
      %1160 = vmatpush1.bf16.msra.mxu0 0
      %1161 = vmatprep.subr.bf16.mxu0 0
      %1162 = vmatpush1.bf16.msra.mxu0 0
      %1163 = vmatprep.subr.bf16.mxu0 0
      %1164 = vmatpush1.bf16.msra.mxu0 0
      %1165 = vmatprep.subr.bf16.mxu0 0
      %1166 = vmatpush1.bf16.msra.mxu0 0
      %1167 = vmatprep.subr.bf16.mxu0 0
      %1168 = vmatpush1.bf16.msra.mxu0 0
      %1169 = vmatprep.subr.bf16.mxu0 0
      %1170 = vmatpush1.bf16.msra.mxu0 0
      %1171 = vmatprep.subr.bf16.mxu0 0
      %1172 = vmatpush1.bf16.msra.mxu0 0
      %1173 = vmatprep.subr.bf16.mxu0 0
      %1174 = vmatpush1.bf16.msra.mxu0 0
      %1175 = vmatprep.mubr.bf16.mxu0 0
      %1176 = vmatmul.mubr.bf16.gmra.mrb[0].mxu0 %v1048
      %v1177 = vpop.f32.mrb[0].mxu0
      %v1178 = vadd.f32 %v1020, %v1177
      %v1179 = vpop.f32.mrb[0].mxu0
      %v1180 = vpop.f32.mrb[0].mxu0
      %v1181 = vadd.f32 %v1020, %v1180
      %v1182 = vpop.f32.mrb[0].mxu0
      %1183 = vmatprep.mubr.bf16.mxu0 0
      %1184 = vmatmul.mubr.bf16.gmra.mrb[0].mxu0 %v1051
      %v1185 = vpop.f32.mrb[0].mxu0
      %v1186 = vadd.f32 %v1020, %v1185
      %v1187 = vpop.f32.mrb[0].mxu0
      %v1188 = vpop.f32.mrb[0].mxu0
      %v1189 = vadd.f32 %v1020, %v1188
      %v1190 = vpop.f32.mrb[0].mxu0
      %1191 = vmatprep.mubr.bf16.mxu0 0
      %1192 = vmatmul.mubr.bf16.gmra.mrb[0].mxu0 %v1054
      %v1193 = vpop.f32.mrb[0].mxu0
      %v1194 = vadd.f32 %v1020, %v1193
      %v1195 = vpop.f32.mrb[0].mxu0
      %v1196 = vpop.f32.mrb[0].mxu0
      %v1197 = vadd.f32 %v1020, %v1196
      %v1198 = vpop.f32.mrb[0].mxu0
      %1199 = vmatprep.mubr.bf16.mxu0 0
      %1200 = vmatmul.mubr.bf16.gmra.mrb[0].mxu0 %v1057
      %v1201 = vpop.f32.mrb[0].mxu0
      %v1202 = vadd.f32 %v1020, %v1201
      %v1203 = vpop.f32.mrb[0].mxu0
      %v1204 = vpop.f32.mrb[0].mxu0
      %v1205 = vadd.f32 %v1020, %v1204
      %v1206 = vpop.f32.mrb[0].mxu0
      %1207 = vmatprep.mubr.bf16.mxu0 0
      %1208 = vmatmul.mubr.bf16.gmra.mrb[0].mxu0 %v1060
      %v1209 = vpop.f32.mrb[0].mxu0
      %v1210 = vadd.f32 %v1020, %v1209
      %v1211 = vpop.f32.mrb[0].mxu0
      %v1212 = vpop.f32.mrb[0].mxu0
      %v1213 = vadd.f32 %v1020, %v1212
      %v1214 = vpop.f32.mrb[0].mxu0
      %1215 = vmatprep.mubr.bf16.mxu0 0
      %1216 = vmatmul.mubr.bf16.gmra.mrb[0].mxu0 %v1063
      %v1217 = vpop.f32.mrb[0].mxu0
      %v1218 = vadd.f32 %v1020, %v1217
      %v1219 = vpop.f32.mrb[0].mxu0
      %v1220 = vpop.f32.mrb[0].mxu0
      %v1221 = vadd.f32 %v1020, %v1220
      %v1222 = vpop.f32.mrb[0].mxu0
      %1223 = vmatprep.mubr.bf16.mxu0 0
      %1224 = vmatmul.mubr.bf16.gmra.mrb[0].mxu0 %v1066
      %v1225 = vpop.f32.mrb[0].mxu0
      %v1226 = vadd.f32 %v1020, %v1225
      %v1227 = vpop.f32.mrb[0].mxu0
      %v1228 = vpop.f32.mrb[0].mxu0
      %v1229 = vadd.f32 %v1020, %v1228
      %v1230 = vpop.f32.mrb[0].mxu0
      %1231 = vmatprep.mubr.bf16.mxu0 0
      %1232 = vmatmul.mubr.bf16.gmra.mrb[0].mxu0 %v1069
      %v1233 = vpop.f32.mrb[0].mxu0
      %v1234 = vadd.f32 %v1020, %v1233
      %v1235 = vpop.f32.mrb[0].mxu0
      %v1236 = vpop.f32.mrb[0].mxu0
      %v1237 = vadd.f32 %v1020, %v1236
      %v1238 = vpop.f32.mrb[0].mxu0
      %1239 = vmatprep.mubr.bf16.mxu0 0
      %1240 = vmatmul.mubr.bf16.gmra.mrb[0].mxu0 %v1072
      %v1241 = vpop.f32.mrb[0].mxu0
      %v1242 = vadd.f32 %v1020, %v1241
      %v1243 = vpop.f32.mrb[0].mxu0
      %v1244 = vpop.f32.mrb[0].mxu0
      %v1245 = vadd.f32 %v1020, %v1244
      %v1246 = vpop.f32.mrb[0].mxu0
      %1247 = vmatprep.mubr.bf16.mxu0 0
      %1248 = vmatmul.mubr.bf16.gmra.mrb[0].mxu0 %v1075
      %v1249 = vpop.f32.mrb[0].mxu0
      %v1250 = vadd.f32 %v1020, %v1249
      %v1251 = vpop.f32.mrb[0].mxu0
      %v1252 = vpop.f32.mrb[0].mxu0
      %v1253 = vadd.f32 %v1020, %v1252
      %v1254 = vpop.f32.mrb[0].mxu0
      %1255 = vmatprep.mubr.bf16.mxu0 0
      %1256 = vmatmul.mubr.bf16.gmra.mrb[0].mxu0 %v1078
      %v1257 = vpop.f32.mrb[0].mxu0
      %v1258 = vadd.f32 %v1020, %v1257
      %v1259 = vpop.f32.mrb[0].mxu0
      %v1260 = vpop.f32.mrb[0].mxu0
      %v1261 = vadd.f32 %v1020, %v1260
      %v1262 = vpop.f32.mrb[0].mxu0
      %1263 = vmatprep.mubr.bf16.mxu0 0
      %1264 = vmatmul.mubr.bf16.gmra.mrb[0].mxu0 %v1081
      %v1265 = vpop.f32.mrb[0].mxu0
      %v1266 = vadd.f32 %v1020, %v1265
      %v1267 = vpop.f32.mrb[0].mxu0
      %v1268 = vpop.f32.mrb[0].mxu0
      %v1269 = vadd.f32 %v1020, %v1268
      %v1270 = vpop.f32.mrb[0].mxu0
      %1271 = vmatprep.mubr.bf16.mxu0 0
      %1272 = vmatmul.mubr.bf16.gmra.mrb[0].mxu0 %v1084
      %v1273 = vpop.f32.mrb[0].mxu0
      %v1274 = vadd.f32 %v1020, %v1273
      %v1275 = vpop.f32.mrb[0].mxu0
      %v1276 = vpop.f32.mrb[0].mxu0
      %v1277 = vadd.f32 %v1020, %v1276
      %v1278 = vpop.f32.mrb[0].mxu0
      %1279 = vmatprep.mubr.bf16.mxu0 0
      %1280 = vmatmul.mubr.bf16.gmra.mrb[0].mxu0 %v1087
      %v1281 = vpop.f32.mrb[0].mxu0
      %v1282 = vadd.f32 %v1020, %v1281
      %v1283 = vpop.f32.mrb[0].mxu0
      %v1284 = vpop.f32.mrb[0].mxu0
      %v1285 = vadd.f32 %v1020, %v1284
      %v1286 = vpop.f32.mrb[0].mxu0
      %1287 = vmatprep.mubr.bf16.mxu0 0
      %1288 = vmatmul.mubr.bf16.gmra.mrb[0].mxu0 %v1090
      %v1289 = vpop.f32.mrb[0].mxu0
      %v1290 = vadd.f32 %v1020, %v1289
      %v1291 = vpop.f32.mrb[0].mxu0
      %v1292 = vpop.f32.mrb[0].mxu0
      %v1293 = vadd.f32 %v1020, %v1292
      %v1294 = vpop.f32.mrb[0].mxu0
      %1295 = vmatprep.mubr.bf16.mxu0 0
      %1296 = vmatmul.mubr.bf16.gmra.mrb[0].mxu0 %v1093
      %v1297 = vpop.f32.mrb[0].mxu0
      %v1298 = vadd.f32 %v1020, %v1297
      %v1299 = vpop.f32.mrb[0].mxu0
      %v1300 = vpop.f32.mrb[0].mxu0
      %v1301 = vadd.f32 %v1020, %v1300
      %v1302 = vpop.f32.mrb[0].mxu0
      %1303 = vmatprep.mubr.bf16.mxu0 0
      %1304 = vmatmul.mubr.bf16.gmra.mrb[0].mxu0 %v1096
      %v1305 = vpop.f32.mrb[0].mxu0
      %v1306 = vadd.f32 %v1020, %v1305
      %v1307 = vpop.f32.mrb[0].mxu0
      %v1308 = vpop.f32.mrb[0].mxu0
      %v1309 = vadd.f32 %v1020, %v1308
      %v1310 = vpop.f32.mrb[0].mxu0
      %1311 = vmatprep.mubr.bf16.mxu0 0
      %1312 = vmatmul.mubr.bf16.gmra.mrb[0].mxu0 %v1099
      %v1313 = vpop.f32.mrb[0].mxu0
      %v1314 = vadd.f32 %v1020, %v1313
      %v1315 = vpop.f32.mrb[0].mxu0
      %v1316 = vpop.f32.mrb[0].mxu0
      %v1317 = vadd.f32 %v1020, %v1316
      %v1318 = vpop.f32.mrb[0].mxu0
      %1319 = vmatprep.mubr.bf16.mxu0 0
      %1320 = vmatmul.mubr.bf16.gmra.mrb[0].mxu0 %v1102
      %v1321 = vpop.f32.mrb[0].mxu0
      %v1322 = vadd.f32 %v1020, %v1321
      %v1323 = vpop.f32.mrb[0].mxu0
      %v1324 = vpop.f32.mrb[0].mxu0
      %v1325 = vadd.f32 %v1020, %v1324
      %v1326 = vpop.f32.mrb[0].mxu0
      %1327 = vmatprep.mubr.bf16.mxu0 0
      %1328 = vmatmul.mubr.bf16.gmra.mrb[0].mxu0 %v1105
      %v1329 = vpop.f32.mrb[0].mxu0
      %v1330 = vadd.f32 %v1020, %v1329
      %v1331 = vpop.f32.mrb[0].mxu0
      %v1332 = vpop.f32.mrb[0].mxu0
      %v1333 = vadd.f32 %v1020, %v1332
      %v1334 = vpop.f32.mrb[0].mxu0
      %1335 = vmatprep.mubr.bf16.mxu0 0
      %1336 = vmatmul.mubr.bf16.gmra.mrb[0].mxu0 %v1108
      %v1337 = vpop.f32.mrb[0].mxu0
      %v1338 = vadd.f32 %v1020, %v1337
      %v1339 = vpop.f32.mrb[0].mxu0
      %v1340 = vpop.f32.mrb[0].mxu0
      %v1341 = vadd.f32 %v1020, %v1340
      %v1342 = vpop.f32.mrb[0].mxu0
      %1343 = vmatprep.mubr.bf16.mxu0 0
      %1344 = vmatmul.mubr.bf16.gmra.mrb[0].mxu0 %v1111
      %v1345 = vpop.f32.mrb[0].mxu0
      %v1346 = vadd.f32 %v1020, %v1345
      %v1347 = vpop.f32.mrb[0].mxu0
      %v1348 = vpop.f32.mrb[0].mxu0
      %v1349 = vadd.f32 %v1020, %v1348
      %v1350 = vpop.f32.mrb[0].mxu0
      %1351 = vmatprep.mubr.bf16.mxu0 0
      %1352 = vmatmul.mubr.bf16.gmra.mrb[0].mxu0 %v1114
      %v1353 = vpop.f32.mrb[0].mxu0
      %v1354 = vadd.f32 %v1020, %v1353
      %v1355 = vpop.f32.mrb[0].mxu0
      %v1356 = vpop.f32.mrb[0].mxu0
      %v1357 = vadd.f32 %v1020, %v1356
      %v1358 = vpop.f32.mrb[0].mxu0
      %1359 = vmatprep.mubr.bf16.mxu0 0
      %1360 = vmatmul.mubr.bf16.gmra.mrb[0].mxu0 %v1117
      %v1361 = vpop.f32.mrb[0].mxu0
      %v1362 = vadd.f32 %v1020, %v1361
      %v1363 = vpop.f32.mrb[0].mxu0
      %v1364 = vpop.f32.mrb[0].mxu0
      %v1365 = vadd.f32 %v1020, %v1364
      %v1366 = vpop.f32.mrb[0].mxu0
      %1367 = vmatprep.mubr.bf16.mxu0 0
      %1368 = vmatmul.mubr.bf16.gmra.mrb[0].mxu0 %v1120
      %v1369 = vpop.f32.mrb[0].mxu0
      %v1370 = vadd.f32 %v1020, %v1369
      %v1371 = vpop.f32.mrb[0].mxu0
      %v1372 = vpop.f32.mrb[0].mxu0
      %v1373 = vadd.f32 %v1020, %v1372
      %v1374 = vpop.f32.mrb[0].mxu0
      %1375 = vmatprep.mubr.bf16.mxu0 0
      %1376 = vmatmul.mubr.bf16.gmra.mrb[0].mxu0 %v1123
      %v1377 = vpop.f32.mrb[0].mxu0
      %v1378 = vadd.f32 %v1020, %v1377
      %v1379 = vpop.f32.mrb[0].mxu0
      %v1380 = vpop.f32.mrb[0].mxu0
      %v1381 = vadd.f32 %v1020, %v1380
      %v1382 = vpop.f32.mrb[0].mxu0
      %1383 = vmatprep.mubr.bf16.mxu0 0
      %1384 = vmatmul.mubr.bf16.gmra.mrb[0].mxu0 %v1126
      %v1385 = vpop.f32.mrb[0].mxu0
      %v1386 = vadd.f32 %v1020, %v1385
      %v1387 = vpop.f32.mrb[0].mxu0
      %v1388 = vpop.f32.mrb[0].mxu0
      %v1389 = vadd.f32 %v1020, %v1388
      %v1390 = vpop.f32.mrb[0].mxu0
      %1391 = vmatprep.mubr.bf16.mxu0 0
      %1392 = vmatmul.mubr.bf16.gmra.mrb[0].mxu0 %v1129
      %v1393 = vpop.f32.mrb[0].mxu0
      %v1394 = vadd.f32 %v1020, %v1393
      %v1395 = vpop.f32.mrb[0].mxu0
      %v1396 = vpop.f32.mrb[0].mxu0
      %v1397 = vadd.f32 %v1020, %v1396
      %v1398 = vpop.f32.mrb[0].mxu0
      %1399 = vmatprep.mubr.bf16.mxu0 0
      %1400 = vmatmul.mubr.bf16.gmra.mrb[0].mxu0 %v1132
      %v1401 = vpop.f32.mrb[0].mxu0
      %v1402 = vadd.f32 %v1020, %v1401
      %v1403 = vpop.f32.mrb[0].mxu0
      %v1404 = vpop.f32.mrb[0].mxu0
      %v1405 = vadd.f32 %v1020, %v1404
      %v1406 = vpop.f32.mrb[0].mxu0
      %1407 = vmatprep.mubr.bf16.mxu0 0
      %1408 = vmatmul.mubr.bf16.gmra.mrb[0].mxu0 %v1135
      %v1409 = vpop.f32.mrb[0].mxu0
      %v1410 = vadd.f32 %v1020, %v1409
      %v1411 = vpop.f32.mrb[0].mxu0
      %v1412 = vpop.f32.mrb[0].mxu0
      %v1413 = vadd.f32 %v1020, %v1412
      %v1414 = vpop.f32.mrb[0].mxu0
      %1415 = vmatprep.mubr.bf16.mxu0 0
      %1416 = vmatmul.mubr.bf16.gmra.mrb[0].mxu0 %v1138
      %v1417 = vpop.f32.mrb[0].mxu0
      %v1418 = vadd.f32 %v1020, %v1417
      %v1419 = vpop.f32.mrb[0].mxu0
      %v1420 = vpop.f32.mrb[0].mxu0
      %v1421 = vadd.f32 %v1020, %v1420
      %v1422 = vpop.f32.mrb[0].mxu0
      %1423 = vmatprep.mubr.bf16.mxu0 0
      %1424 = vmatmul.mubr.bf16.gmra.mrb[0].mxu0 %v1141
      %v1425 = vpop.f32.mrb[0].mxu0
      %v1426 = vadd.f32 %v1020, %v1425
      %v1427 = vpop.f32.mrb[0].mxu0
      %v1428 = vpop.f32.mrb[0].mxu0
      %v1429 = vadd.f32 %v1020, %v1428
      %v1430 = vpop.f32.mrb[0].mxu0
      %1431 = vdwg.mxu0
      %v1432 = vmax.f32 %v1178, 0.0
      %v1433 = vmax.f32 %v1181, 0.0
      %v1434 = vmax.f32 %v1186, 0.0
      %v1435 = vmax.f32 %v1189, 0.0
      %v1436 = vmax.f32 %v1194, 0.0
      %v1437 = vmax.f32 %v1197, 0.0
      %v1438 = vmax.f32 %v1202, 0.0
      %v1439 = vmax.f32 %v1205, 0.0
      %v1440 = vmax.f32 %v1210, 0.0
      %v1441 = vmax.f32 %v1213, 0.0
      %v1442 = vmax.f32 %v1218, 0.0
      %v1443 = vmax.f32 %v1221, 0.0
      %v1444 = vmax.f32 %v1226, 0.0
      %v1445 = vmax.f32 %v1229, 0.0
      %v1446 = vmax.f32 %v1234, 0.0
      %v1447 = vmax.f32 %v1237, 0.0
      %v1448 = vmax.f32 %v1242, 0.0
      %v1449 = vmax.f32 %v1245, 0.0
      %v1450 = vmax.f32 %v1250, 0.0
      %v1451 = vmax.f32 %v1253, 0.0
      %v1452 = vmax.f32 %v1258, 0.0
      %v1453 = vmax.f32 %v1261, 0.0
      %v1454 = vmax.f32 %v1266, 0.0
      %v1455 = vmax.f32 %v1269, 0.0
      %v1456 = vmax.f32 %v1274, 0.0
      %v1457 = vmax.f32 %v1277, 0.0
      %v1458 = vmax.f32 %v1282, 0.0
      %v1459 = vmax.f32 %v1285, 0.0
      %v1460 = vmax.f32 %v1290, 0.0
      %v1461 = vmax.f32 %v1293, 0.0
      %v1462 = vmax.f32 %v1298, 0.0
      %v1463 = vmax.f32 %v1301, 0.0
      %v1464 = vmax.f32 %v1306, 0.0
      %v1465 = vmax.f32 %v1309, 0.0
      %v1466 = vmax.f32 %v1314, 0.0
      %v1467 = vmax.f32 %v1317, 0.0
      %v1468 = vmax.f32 %v1322, 0.0
      %v1469 = vmax.f32 %v1325, 0.0
      %v1470 = vmax.f32 %v1330, 0.0
      %v1471 = vmax.f32 %v1333, 0.0
      %v1472 = vmax.f32 %v1338, 0.0
      %v1473 = vmax.f32 %v1341, 0.0
      %v1474 = vmax.f32 %v1346, 0.0
      %v1475 = vmax.f32 %v1349, 0.0
      %v1476 = vmax.f32 %v1354, 0.0
      %v1477 = vmax.f32 %v1357, 0.0
      %v1478 = vmax.f32 %v1362, 0.0
      %v1479 = vmax.f32 %v1365, 0.0
      %v1480 = vmax.f32 %v1370, 0.0
      %v1481 = vmax.f32 %v1373, 0.0
      %v1482 = vmax.f32 %v1378, 0.0
      %v1483 = vmax.f32 %v1381, 0.0
      %v1484 = vmax.f32 %v1386, 0.0
      %v1485 = vmax.f32 %v1389, 0.0
      %v1486 = vmax.f32 %v1394, 0.0
      %v1487 = vmax.f32 %v1397, 0.0
      %v1488 = vmax.f32 %v1402, 0.0
      %v1489 = vmax.f32 %v1405, 0.0
      %v1490 = vmax.f32 %v1410, 0.0
      %v1491 = vmax.f32 %v1413, 0.0
      %v1492 = vmax.f32 %v1418, 0.0
      %v1493 = vmax.f32 %v1421, 0.0
      %v1494 = vmax.f32 %v1426, 0.0
      %v1495 = vmax.f32 %v1429, 0.0
      %v1496 = vpack.c.bf16 %v1433, %v1432
      %v1497 = vpack.c.bf16 %v1435, %v1434
      %v1498 = vpack.c.bf16 %v1437, %v1436
      %v1499 = vpack.c.bf16 %v1439, %v1438
      %v1500 = vpack.c.bf16 %v1441, %v1440
      %v1501 = vpack.c.bf16 %v1443, %v1442
      %v1502 = vpack.c.bf16 %v1445, %v1444
      %v1503 = vpack.c.bf16 %v1447, %v1446
      %v1504 = vpack.c.bf16 %v1449, %v1448
      %v1505 = vpack.c.bf16 %v1451, %v1450
      %v1506 = vpack.c.bf16 %v1453, %v1452
      %v1507 = vpack.c.bf16 %v1455, %v1454
      %v1508 = vpack.c.bf16 %v1457, %v1456
      %v1509 = vpack.c.bf16 %v1459, %v1458
      %v1510 = vpack.c.bf16 %v1461, %v1460
      %v1511 = vpack.c.bf16 %v1463, %v1462
      %v1512 = vpack.c.bf16 %v1465, %v1464
      %v1513 = vpack.c.bf16 %v1467, %v1466
      %v1514 = vpack.c.bf16 %v1469, %v1468
      %v1515 = vpack.c.bf16 %v1471, %v1470
      %v1516 = vpack.c.bf16 %v1473, %v1472
      %v1517 = vpack.c.bf16 %v1475, %v1474
      %v1518 = vpack.c.bf16 %v1477, %v1476
      %v1519 = vpack.c.bf16 %v1479, %v1478
      %v1520 = vpack.c.bf16 %v1481, %v1480
      %v1521 = vpack.c.bf16 %v1483, %v1482
      %v1522 = vpack.c.bf16 %v1485, %v1484
      %v1523 = vpack.c.bf16 %v1487, %v1486
      %v1524 = vpack.c.bf16 %v1489, %v1488
      %v1525 = vpack.c.bf16 %v1491, %v1490
      %v1526 = vpack.c.bf16 %v1493, %v1492
      %v1527 = vpack.c.bf16 %v1495, %v1494
      %v1528 = vld [vmem:[%s5] sm:$0xf]
      %v1529 = vld [vmem:[%s5 + $0x4] sm:$0xf]
      %v1530 = vld [vmem:[%s5 + $0x8] sm:$0xf]
      %v1531 = vld [vmem:[%s5 + $0xc] sm:$0xf]
      %v1532 = vld [vmem:[%s5 + $0x10] sm:$0xf]
      %v1533 = vld [vmem:[%s5 + $0x14] sm:$0xf]
      %v1534 = vld [vmem:[%s5 + $0x18] sm:$0xf]
      %v1535 = vld [vmem:[%s5 + $0x1c] sm:$0xf]
      %v1536 = vld [vmem:[%s6] sm:$0x1]
      %v1538 = vlaneseq
      %v1539 = vshrl.u32 %v1538, 7
      %v1540 = vsub.s32 0, %v1539
      %v1541 = vrot.slane %v1536, %v1540
      %v1551 = vunpack.c.l.b16 %v1528
      %v1552 = vunpack.c.l.b16 %v1529
      %v1553 = vunpack.c.l.b16 %v1530
      %v1554 = vunpack.c.l.b16 %v1531
      %v1555 = vunpack.c.l.b16 %v1532
      %v1556 = vunpack.c.l.b16 %v1533
      %v1557 = vunpack.c.l.b16 %v1534
      %v1558 = vunpack.c.l.b16 %v1535
      %v1559 = vpack.c.b16 %v1552, %v1551
      %v1560 = vpack.c.b16 %v1554, %v1553
      %v1561 = vpack.c.b16 %v1556, %v1555
      %v1562 = vpack.c.b16 %v1558, %v1557
      %v1568 = vsel %vm1046, %v1496, 0
      %v1571 = vsel %vm1046, %v1497, 0
      %v1574 = vsel %vm1046, %v1498, 0
      %v1577 = vsel %vm1046, %v1499, 0
      %v1580 = vsel %vm1046, %v1500, 0
      %v1583 = vsel %vm1046, %v1501, 0
      %v1586 = vsel %vm1046, %v1502, 0
      %v1589 = vsel %vm1046, %v1503, 0
      %v1592 = vsel %vm1046, %v1504, 0
      %v1595 = vsel %vm1046, %v1505, 0
      %v1598 = vsel %vm1046, %v1506, 0
      %v1601 = vsel %vm1046, %v1507, 0
      %v1604 = vsel %vm1046, %v1508, 0
      %v1607 = vsel %vm1046, %v1509, 0
      %v1610 = vsel %vm1046, %v1510, 0
      %v1613 = vsel %vm1046, %v1511, 0
      %v1616 = vsel %vm1046, %v1512, 0
      %v1619 = vsel %vm1046, %v1513, 0
      %v1622 = vsel %vm1046, %v1514, 0
      %v1625 = vsel %vm1046, %v1515, 0
      %v1628 = vsel %vm1046, %v1516, 0
      %v1631 = vsel %vm1046, %v1517, 0
      %v1634 = vsel %vm1046, %v1518, 0
      %v1637 = vsel %vm1046, %v1519, 0
      %v1640 = vsel %vm1046, %v1520, 0
      %v1643 = vsel %vm1046, %v1521, 0
      %v1646 = vsel %vm1046, %v1522, 0
      %v1649 = vsel %vm1046, %v1523, 0
      %v1652 = vsel %vm1046, %v1524, 0
      %v1655 = vsel %vm1046, %v1525, 0
      %v1658 = vsel %vm1046, %v1526, 0
      %v1661 = vsel %vm1046, %v1527, 0
      %1663 = vmatprep.subr.bf16.mxu0 0
      %1664 = vmatpush1.bf16.msra.mxu0 %v1559
      %1665 = vmatprep.subr.bf16.mxu0 0
      %1666 = vmatpush1.bf16.msra.mxu0 %v1560
      %1667 = vmatprep.subr.bf16.mxu0 0
      %1668 = vmatpush1.bf16.msra.mxu0 %v1561
      %1669 = vmatprep.subr.bf16.mxu0 0
      %1670 = vmatpush1.bf16.msra.mxu0 %v1562
      %1671 = vmatprep.subr.bf16.mxu0 0
      %1672 = vmatpush1.bf16.msra.mxu0 0
      %1673 = vmatprep.subr.bf16.mxu0 0
      %1674 = vmatpush1.bf16.msra.mxu0 0
      %1675 = vmatprep.subr.bf16.mxu0 0
      %1676 = vmatpush1.bf16.msra.mxu0 0
      %1677 = vmatprep.subr.bf16.mxu0 0
      %1678 = vmatpush1.bf16.msra.mxu0 0
      %1679 = vmatprep.subr.bf16.mxu0 0
      %1680 = vmatpush1.bf16.msra.mxu0 0
      %1681 = vmatprep.subr.bf16.mxu0 0
      %1682 = vmatpush1.bf16.msra.mxu0 0
      %1683 = vmatprep.subr.bf16.mxu0 0
      %1684 = vmatpush1.bf16.msra.mxu0 0
      %1685 = vmatprep.subr.bf16.mxu0 0
      %1686 = vmatpush1.bf16.msra.mxu0 0
      %1687 = vmatprep.subr.bf16.mxu0 0
      %1688 = vmatpush1.bf16.msra.mxu0 0
      %1689 = vmatprep.subr.bf16.mxu0 0
      %1690 = vmatpush1.bf16.msra.mxu0 0
      %1691 = vmatprep.subr.bf16.mxu0 0
      %1692 = vmatpush1.bf16.msra.mxu0 0
      %1693 = vmatprep.subr.bf16.mxu0 0
      %1694 = vmatpush1.bf16.msra.mxu0 0
      %1695 = vmatprep.mubr.bf16.mxu0 0
      %1696 = vmatmul.mubr.bf16.gmra.mrb[0].mxu0 %v1568
      %v1697 = vpop.f32.mrb[0].mxu0
      %v1698 = vadd.f32 %v1541, %v1697
      %v1699 = vpop.f32.mrb[0].mxu0
      %v1700 = vpop.f32.mrb[0].mxu0
      %v1701 = vadd.f32 %v1541, %v1700
      %v1702 = vpop.f32.mrb[0].mxu0
      %1703 = vmatprep.mubr.bf16.mxu0 0
      %1704 = vmatmul.mubr.bf16.gmra.mrb[0].mxu0 %v1571
      %v1705 = vpop.f32.mrb[0].mxu0
      %v1706 = vadd.f32 %v1541, %v1705
      %v1707 = vpop.f32.mrb[0].mxu0
      %v1708 = vpop.f32.mrb[0].mxu0
      %v1709 = vadd.f32 %v1541, %v1708
      %v1710 = vpop.f32.mrb[0].mxu0
      %1711 = vmatprep.mubr.bf16.mxu0 0
      %1712 = vmatmul.mubr.bf16.gmra.mrb[0].mxu0 %v1574
      %v1713 = vpop.f32.mrb[0].mxu0
      %v1714 = vadd.f32 %v1541, %v1713
      %v1715 = vpop.f32.mrb[0].mxu0
      %v1716 = vpop.f32.mrb[0].mxu0
      %v1717 = vadd.f32 %v1541, %v1716
      %v1718 = vpop.f32.mrb[0].mxu0
      %1719 = vmatprep.mubr.bf16.mxu0 0
      %1720 = vmatmul.mubr.bf16.gmra.mrb[0].mxu0 %v1577
      %v1721 = vpop.f32.mrb[0].mxu0
      %v1722 = vadd.f32 %v1541, %v1721
      %v1723 = vpop.f32.mrb[0].mxu0
      %v1724 = vpop.f32.mrb[0].mxu0
      %v1725 = vadd.f32 %v1541, %v1724
      %v1726 = vpop.f32.mrb[0].mxu0
      %1727 = vmatprep.mubr.bf16.mxu0 0
      %1728 = vmatmul.mubr.bf16.gmra.mrb[0].mxu0 %v1580
      %v1729 = vpop.f32.mrb[0].mxu0
      %v1730 = vadd.f32 %v1541, %v1729
      %v1731 = vpop.f32.mrb[0].mxu0
      %v1732 = vpop.f32.mrb[0].mxu0
      %v1733 = vadd.f32 %v1541, %v1732
      %v1734 = vpop.f32.mrb[0].mxu0
      %1735 = vmatprep.mubr.bf16.mxu0 0
      %1736 = vmatmul.mubr.bf16.gmra.mrb[0].mxu0 %v1583
      %v1737 = vpop.f32.mrb[0].mxu0
      %v1738 = vadd.f32 %v1541, %v1737
      %v1739 = vpop.f32.mrb[0].mxu0
      %v1740 = vpop.f32.mrb[0].mxu0
      %v1741 = vadd.f32 %v1541, %v1740
      %v1742 = vpop.f32.mrb[0].mxu0
      %1743 = vmatprep.mubr.bf16.mxu0 0
      %1744 = vmatmul.mubr.bf16.gmra.mrb[0].mxu0 %v1586
      %v1745 = vpop.f32.mrb[0].mxu0
      %v1746 = vadd.f32 %v1541, %v1745
      %v1747 = vpop.f32.mrb[0].mxu0
      %v1748 = vpop.f32.mrb[0].mxu0
      %v1749 = vadd.f32 %v1541, %v1748
      %v1750 = vpop.f32.mrb[0].mxu0
      %1751 = vmatprep.mubr.bf16.mxu0 0
      %1752 = vmatmul.mubr.bf16.gmra.mrb[0].mxu0 %v1589
      %v1753 = vpop.f32.mrb[0].mxu0
      %v1754 = vadd.f32 %v1541, %v1753
      %v1755 = vpop.f32.mrb[0].mxu0
      %v1756 = vpop.f32.mrb[0].mxu0
      %v1757 = vadd.f32 %v1541, %v1756
      %v1758 = vpop.f32.mrb[0].mxu0
      %1759 = vmatprep.mubr.bf16.mxu0 0
      %1760 = vmatmul.mubr.bf16.gmra.mrb[0].mxu0 %v1592
      %v1761 = vpop.f32.mrb[0].mxu0
      %v1762 = vadd.f32 %v1541, %v1761
      %v1763 = vpop.f32.mrb[0].mxu0
      %v1764 = vpop.f32.mrb[0].mxu0
      %v1765 = vadd.f32 %v1541, %v1764
      %v1766 = vpop.f32.mrb[0].mxu0
      %1767 = vmatprep.mubr.bf16.mxu0 0
      %1768 = vmatmul.mubr.bf16.gmra.mrb[0].mxu0 %v1595
      %v1769 = vpop.f32.mrb[0].mxu0
      %v1770 = vadd.f32 %v1541, %v1769
      %v1771 = vpop.f32.mrb[0].mxu0
      %v1772 = vpop.f32.mrb[0].mxu0
      %v1773 = vadd.f32 %v1541, %v1772
      %v1774 = vpop.f32.mrb[0].mxu0
      %1775 = vmatprep.mubr.bf16.mxu0 0
      %1776 = vmatmul.mubr.bf16.gmra.mrb[0].mxu0 %v1598
      %v1777 = vpop.f32.mrb[0].mxu0
      %v1778 = vadd.f32 %v1541, %v1777
      %v1779 = vpop.f32.mrb[0].mxu0
      %v1780 = vpop.f32.mrb[0].mxu0
      %v1781 = vadd.f32 %v1541, %v1780
      %v1782 = vpop.f32.mrb[0].mxu0
      %1783 = vmatprep.mubr.bf16.mxu0 0
      %1784 = vmatmul.mubr.bf16.gmra.mrb[0].mxu0 %v1601
      %v1785 = vpop.f32.mrb[0].mxu0
      %v1786 = vadd.f32 %v1541, %v1785
      %v1787 = vpop.f32.mrb[0].mxu0
      %v1788 = vpop.f32.mrb[0].mxu0
      %v1789 = vadd.f32 %v1541, %v1788
      %v1790 = vpop.f32.mrb[0].mxu0
      %1791 = vmatprep.mubr.bf16.mxu0 0
      %1792 = vmatmul.mubr.bf16.gmra.mrb[0].mxu0 %v1604
      %v1793 = vpop.f32.mrb[0].mxu0
      %v1794 = vadd.f32 %v1541, %v1793
      %v1795 = vpop.f32.mrb[0].mxu0
      %v1796 = vpop.f32.mrb[0].mxu0
      %v1797 = vadd.f32 %v1541, %v1796
      %v1798 = vpop.f32.mrb[0].mxu0
      %1799 = vmatprep.mubr.bf16.mxu0 0
      %1800 = vmatmul.mubr.bf16.gmra.mrb[0].mxu0 %v1607
      %v1801 = vpop.f32.mrb[0].mxu0
      %v1802 = vadd.f32 %v1541, %v1801
      %v1803 = vpop.f32.mrb[0].mxu0
      %v1804 = vpop.f32.mrb[0].mxu0
      %v1805 = vadd.f32 %v1541, %v1804
      %v1806 = vpop.f32.mrb[0].mxu0
      %1807 = vmatprep.mubr.bf16.mxu0 0
      %1808 = vmatmul.mubr.bf16.gmra.mrb[0].mxu0 %v1610
      %v1809 = vpop.f32.mrb[0].mxu0
      %v1810 = vadd.f32 %v1541, %v1809
      %v1811 = vpop.f32.mrb[0].mxu0
      %v1812 = vpop.f32.mrb[0].mxu0
      %v1813 = vadd.f32 %v1541, %v1812
      %v1814 = vpop.f32.mrb[0].mxu0
      %1815 = vmatprep.mubr.bf16.mxu0 0
      %1816 = vmatmul.mubr.bf16.gmra.mrb[0].mxu0 %v1613
      %v1817 = vpop.f32.mrb[0].mxu0
      %v1818 = vadd.f32 %v1541, %v1817
      %v1819 = vpop.f32.mrb[0].mxu0
      %v1820 = vpop.f32.mrb[0].mxu0
      %v1821 = vadd.f32 %v1541, %v1820
      %v1822 = vpop.f32.mrb[0].mxu0
      %1823 = vmatprep.mubr.bf16.mxu0 0
      %1824 = vmatmul.mubr.bf16.gmra.mrb[0].mxu0 %v1616
      %v1825 = vpop.f32.mrb[0].mxu0
      %v1826 = vadd.f32 %v1541, %v1825
      %v1827 = vpop.f32.mrb[0].mxu0
      %v1828 = vpop.f32.mrb[0].mxu0
      %v1829 = vadd.f32 %v1541, %v1828
      %v1830 = vpop.f32.mrb[0].mxu0
      %1831 = vmatprep.mubr.bf16.mxu0 0
      %1832 = vmatmul.mubr.bf16.gmra.mrb[0].mxu0 %v1619
      %v1833 = vpop.f32.mrb[0].mxu0
      %v1834 = vadd.f32 %v1541, %v1833
      %v1835 = vpop.f32.mrb[0].mxu0
      %v1836 = vpop.f32.mrb[0].mxu0
      %v1837 = vadd.f32 %v1541, %v1836
      %v1838 = vpop.f32.mrb[0].mxu0
      %1839 = vmatprep.mubr.bf16.mxu0 0
      %1840 = vmatmul.mubr.bf16.gmra.mrb[0].mxu0 %v1622
      %v1841 = vpop.f32.mrb[0].mxu0
      %v1842 = vadd.f32 %v1541, %v1841
      %v1843 = vpop.f32.mrb[0].mxu0
      %v1844 = vpop.f32.mrb[0].mxu0
      %v1845 = vadd.f32 %v1541, %v1844
      %v1846 = vpop.f32.mrb[0].mxu0
      %1847 = vmatprep.mubr.bf16.mxu0 0
      %1848 = vmatmul.mubr.bf16.gmra.mrb[0].mxu0 %v1625
      %v1849 = vpop.f32.mrb[0].mxu0
      %v1850 = vadd.f32 %v1541, %v1849
      %v1851 = vpop.f32.mrb[0].mxu0
      %v1852 = vpop.f32.mrb[0].mxu0
      %v1853 = vadd.f32 %v1541, %v1852
      %v1854 = vpop.f32.mrb[0].mxu0
      %1855 = vmatprep.mubr.bf16.mxu0 0
      %1856 = vmatmul.mubr.bf16.gmra.mrb[0].mxu0 %v1628
      %v1857 = vpop.f32.mrb[0].mxu0
      %v1858 = vadd.f32 %v1541, %v1857
      %v1859 = vpop.f32.mrb[0].mxu0
      %v1860 = vpop.f32.mrb[0].mxu0
      %v1861 = vadd.f32 %v1541, %v1860
      %v1862 = vpop.f32.mrb[0].mxu0
      %1863 = vmatprep.mubr.bf16.mxu0 0
      %1864 = vmatmul.mubr.bf16.gmra.mrb[0].mxu0 %v1631
      %v1865 = vpop.f32.mrb[0].mxu0
      %v1866 = vadd.f32 %v1541, %v1865
      %v1867 = vpop.f32.mrb[0].mxu0
      %v1868 = vpop.f32.mrb[0].mxu0
      %v1869 = vadd.f32 %v1541, %v1868
      %v1870 = vpop.f32.mrb[0].mxu0
      %1871 = vmatprep.mubr.bf16.mxu0 0
      %1872 = vmatmul.mubr.bf16.gmra.mrb[0].mxu0 %v1634
      %v1873 = vpop.f32.mrb[0].mxu0
      %v1874 = vadd.f32 %v1541, %v1873
      %v1875 = vpop.f32.mrb[0].mxu0
      %v1876 = vpop.f32.mrb[0].mxu0
      %v1877 = vadd.f32 %v1541, %v1876
      %v1878 = vpop.f32.mrb[0].mxu0
      %1879 = vmatprep.mubr.bf16.mxu0 0
      %1880 = vmatmul.mubr.bf16.gmra.mrb[0].mxu0 %v1637
      %v1881 = vpop.f32.mrb[0].mxu0
      %v1882 = vadd.f32 %v1541, %v1881
      %v1883 = vpop.f32.mrb[0].mxu0
      %v1884 = vpop.f32.mrb[0].mxu0
      %v1885 = vadd.f32 %v1541, %v1884
      %v1886 = vpop.f32.mrb[0].mxu0
      %1887 = vmatprep.mubr.bf16.mxu0 0
      %1888 = vmatmul.mubr.bf16.gmra.mrb[0].mxu0 %v1640
      %v1889 = vpop.f32.mrb[0].mxu0
      %v1890 = vadd.f32 %v1541, %v1889
      %v1891 = vpop.f32.mrb[0].mxu0
      %v1892 = vpop.f32.mrb[0].mxu0
      %v1893 = vadd.f32 %v1541, %v1892
      %v1894 = vpop.f32.mrb[0].mxu0
      %1895 = vmatprep.mubr.bf16.mxu0 0
      %1896 = vmatmul.mubr.bf16.gmra.mrb[0].mxu0 %v1643
      %v1897 = vpop.f32.mrb[0].mxu0
      %v1898 = vadd.f32 %v1541, %v1897
      %v1899 = vpop.f32.mrb[0].mxu0
      %v1900 = vpop.f32.mrb[0].mxu0
      %v1901 = vadd.f32 %v1541, %v1900
      %v1902 = vpop.f32.mrb[0].mxu0
      %1903 = vmatprep.mubr.bf16.mxu0 0
      %1904 = vmatmul.mubr.bf16.gmra.mrb[0].mxu0 %v1646
      %v1905 = vpop.f32.mrb[0].mxu0
      %v1906 = vadd.f32 %v1541, %v1905
      %v1907 = vpop.f32.mrb[0].mxu0
      %v1908 = vpop.f32.mrb[0].mxu0
      %v1909 = vadd.f32 %v1541, %v1908
      %v1910 = vpop.f32.mrb[0].mxu0
      %1911 = vmatprep.mubr.bf16.mxu0 0
      %1912 = vmatmul.mubr.bf16.gmra.mrb[0].mxu0 %v1649
      %v1913 = vpop.f32.mrb[0].mxu0
      %v1914 = vadd.f32 %v1541, %v1913
      %v1915 = vpop.f32.mrb[0].mxu0
      %v1916 = vpop.f32.mrb[0].mxu0
      %v1917 = vadd.f32 %v1541, %v1916
      %v1918 = vpop.f32.mrb[0].mxu0
      %1919 = vmatprep.mubr.bf16.mxu0 0
      %1920 = vmatmul.mubr.bf16.gmra.mrb[0].mxu0 %v1652
      %v1921 = vpop.f32.mrb[0].mxu0
      %v1922 = vadd.f32 %v1541, %v1921
      %v1923 = vpop.f32.mrb[0].mxu0
      %v1924 = vpop.f32.mrb[0].mxu0
      %v1925 = vadd.f32 %v1541, %v1924
      %v1926 = vpop.f32.mrb[0].mxu0
      %1927 = vmatprep.mubr.bf16.mxu0 0
      %1928 = vmatmul.mubr.bf16.gmra.mrb[0].mxu0 %v1655
      %v1929 = vpop.f32.mrb[0].mxu0
      %v1930 = vadd.f32 %v1541, %v1929
      %v1931 = vpop.f32.mrb[0].mxu0
      %v1932 = vpop.f32.mrb[0].mxu0
      %v1933 = vadd.f32 %v1541, %v1932
      %v1934 = vpop.f32.mrb[0].mxu0
      %1935 = vmatprep.mubr.bf16.mxu0 0
      %1936 = vmatmul.mubr.bf16.gmra.mrb[0].mxu0 %v1658
      %v1937 = vpop.f32.mrb[0].mxu0
      %v1938 = vadd.f32 %v1541, %v1937
      %v1939 = vpop.f32.mrb[0].mxu0
      %v1940 = vpop.f32.mrb[0].mxu0
      %v1941 = vadd.f32 %v1541, %v1940
      %v1942 = vpop.f32.mrb[0].mxu0
      %1943 = vmatprep.mubr.bf16.mxu0 0
      %1944 = vmatmul.mubr.bf16.gmra.mrb[0].mxu0 %v1661
      %v1945 = vpop.f32.mrb[0].mxu0
      %v1946 = vadd.f32 %v1541, %v1945
      %v1947 = vpop.f32.mrb[0].mxu0
      %v1948 = vpop.f32.mrb[0].mxu0
      %v1949 = vadd.f32 %v1541, %v1948
      %v1950 = vpop.f32.mrb[0].mxu0
      %1951 = vdwg.mxu0
      %v1952 = vmax.f32 %v1698, 0.0
      %v1953 = vmax.f32 %v1701, 0.0
      %v1954 = vmax.f32 %v1706, 0.0
      %v1955 = vmax.f32 %v1709, 0.0
      %v1956 = vmax.f32 %v1714, 0.0
      %v1957 = vmax.f32 %v1717, 0.0
      %v1958 = vmax.f32 %v1722, 0.0
      %v1959 = vmax.f32 %v1725, 0.0
      %v1960 = vmax.f32 %v1730, 0.0
      %v1961 = vmax.f32 %v1733, 0.0
      %v1962 = vmax.f32 %v1738, 0.0
      %v1963 = vmax.f32 %v1741, 0.0
      %v1964 = vmax.f32 %v1746, 0.0
      %v1965 = vmax.f32 %v1749, 0.0
      %v1966 = vmax.f32 %v1754, 0.0
      %v1967 = vmax.f32 %v1757, 0.0
      %v1968 = vmax.f32 %v1762, 0.0
      %v1969 = vmax.f32 %v1765, 0.0
      %v1970 = vmax.f32 %v1770, 0.0
      %v1971 = vmax.f32 %v1773, 0.0
      %v1972 = vmax.f32 %v1778, 0.0
      %v1973 = vmax.f32 %v1781, 0.0
      %v1974 = vmax.f32 %v1786, 0.0
      %v1975 = vmax.f32 %v1789, 0.0
      %v1976 = vmax.f32 %v1794, 0.0
      %v1977 = vmax.f32 %v1797, 0.0
      %v1978 = vmax.f32 %v1802, 0.0
      %v1979 = vmax.f32 %v1805, 0.0
      %v1980 = vmax.f32 %v1810, 0.0
      %v1981 = vmax.f32 %v1813, 0.0
      %v1982 = vmax.f32 %v1818, 0.0
      %v1983 = vmax.f32 %v1821, 0.0
      %v1984 = vmax.f32 %v1826, 0.0
      %v1985 = vmax.f32 %v1829, 0.0
      %v1986 = vmax.f32 %v1834, 0.0
      %v1987 = vmax.f32 %v1837, 0.0
      %v1988 = vmax.f32 %v1842, 0.0
      %v1989 = vmax.f32 %v1845, 0.0
      %v1990 = vmax.f32 %v1850, 0.0
      %v1991 = vmax.f32 %v1853, 0.0
      %v1992 = vmax.f32 %v1858, 0.0
      %v1993 = vmax.f32 %v1861, 0.0
      %v1994 = vmax.f32 %v1866, 0.0
      %v1995 = vmax.f32 %v1869, 0.0
      %v1996 = vmax.f32 %v1874, 0.0
      %v1997 = vmax.f32 %v1877, 0.0
      %v1998 = vmax.f32 %v1882, 0.0
      %v1999 = vmax.f32 %v1885, 0.0
      %v2000 = vmax.f32 %v1890, 0.0
      %v2001 = vmax.f32 %v1893, 0.0
      %v2002 = vmax.f32 %v1898, 0.0
      %v2003 = vmax.f32 %v1901, 0.0
      %v2004 = vmax.f32 %v1906, 0.0
      %v2005 = vmax.f32 %v1909, 0.0
      %v2006 = vmax.f32 %v1914, 0.0
      %v2007 = vmax.f32 %v1917, 0.0
      %v2008 = vmax.f32 %v1922, 0.0
      %v2009 = vmax.f32 %v1925, 0.0
      %v2010 = vmax.f32 %v1930, 0.0
      %v2011 = vmax.f32 %v1933, 0.0
      %v2012 = vmax.f32 %v1938, 0.0
      %v2013 = vmax.f32 %v1941, 0.0
      %v2014 = vmax.f32 %v1946, 0.0
      %v2015 = vmax.f32 %v1949, 0.0
      %v2016 = vmax.f32 %v1952, %v1953
      %v2017 = vrot.slane %v2016, 4
      %v2018 = vmax.f32 %v2016, %v2017
      %v2019 = vrot.slane %v2018, 2
      %v2020 = vmax.f32 %v2018, %v2019
      %v2021 = vrot.slane %v2020, 1
      %v2022 = vmax.f32 %v2020, %v2021
      %v2023 = vmax.f32 %v1954, %v1955
      %v2024 = vrot.slane %v2023, 4
      %v2025 = vmax.f32 %v2023, %v2024
      %v2026 = vrot.slane %v2025, 2
      %v2027 = vmax.f32 %v2025, %v2026
      %v2028 = vrot.slane %v2027, 1
      %v2029 = vmax.f32 %v2027, %v2028
      %v2030 = vmax.f32 %v1956, %v1957
      %v2031 = vrot.slane %v2030, 4
      %v2032 = vmax.f32 %v2030, %v2031
      %v2033 = vrot.slane %v2032, 2
      %v2034 = vmax.f32 %v2032, %v2033
      %v2035 = vrot.slane %v2034, 1
      %v2036 = vmax.f32 %v2034, %v2035
      %v2037 = vmax.f32 %v1958, %v1959
      %v2038 = vrot.slane %v2037, 4
      %v2039 = vmax.f32 %v2037, %v2038
      %v2040 = vrot.slane %v2039, 2
      %v2041 = vmax.f32 %v2039, %v2040
      %v2042 = vrot.slane %v2041, 1
      %v2043 = vmax.f32 %v2041, %v2042
      %v2044 = vmax.f32 %v1960, %v1961
      %v2045 = vrot.slane %v2044, 4
      %v2046 = vmax.f32 %v2044, %v2045
      %v2047 = vrot.slane %v2046, 2
      %v2048 = vmax.f32 %v2046, %v2047
      %v2049 = vrot.slane %v2048, 1
      %v2050 = vmax.f32 %v2048, %v2049
      %v2051 = vmax.f32 %v1962, %v1963
      %v2052 = vrot.slane %v2051, 4
      %v2053 = vmax.f32 %v2051, %v2052
      %v2054 = vrot.slane %v2053, 2
      %v2055 = vmax.f32 %v2053, %v2054
      %v2056 = vrot.slane %v2055, 1
      %v2057 = vmax.f32 %v2055, %v2056
      %v2058 = vmax.f32 %v1964, %v1965
      %v2059 = vrot.slane %v2058, 4
      %v2060 = vmax.f32 %v2058, %v2059
      %v2061 = vrot.slane %v2060, 2
      %v2062 = vmax.f32 %v2060, %v2061
      %v2063 = vrot.slane %v2062, 1
      %v2064 = vmax.f32 %v2062, %v2063
      %v2065 = vmax.f32 %v1966, %v1967
      %v2066 = vrot.slane %v2065, 4
      %v2067 = vmax.f32 %v2065, %v2066
      %v2068 = vrot.slane %v2067, 2
      %v2069 = vmax.f32 %v2067, %v2068
      %v2070 = vrot.slane %v2069, 1
      %v2071 = vmax.f32 %v2069, %v2070
      %v2072 = vmax.f32 %v1968, %v1969
      %v2073 = vrot.slane %v2072, 4
      %v2074 = vmax.f32 %v2072, %v2073
      %v2075 = vrot.slane %v2074, 2
      %v2076 = vmax.f32 %v2074, %v2075
      %v2077 = vrot.slane %v2076, 1
      %v2078 = vmax.f32 %v2076, %v2077
      %v2079 = vmax.f32 %v1970, %v1971
      %v2080 = vrot.slane %v2079, 4
      %v2081 = vmax.f32 %v2079, %v2080
      %v2082 = vrot.slane %v2081, 2
      %v2083 = vmax.f32 %v2081, %v2082
      %v2084 = vrot.slane %v2083, 1
      %v2085 = vmax.f32 %v2083, %v2084
      %v2086 = vmax.f32 %v1972, %v1973
      %v2087 = vrot.slane %v2086, 4
      %v2088 = vmax.f32 %v2086, %v2087
      %v2089 = vrot.slane %v2088, 2
      %v2090 = vmax.f32 %v2088, %v2089
      %v2091 = vrot.slane %v2090, 1
      %v2092 = vmax.f32 %v2090, %v2091
      %v2093 = vmax.f32 %v1974, %v1975
      %v2094 = vrot.slane %v2093, 4
      %v2095 = vmax.f32 %v2093, %v2094
      %v2096 = vrot.slane %v2095, 2
      %v2097 = vmax.f32 %v2095, %v2096
      %v2098 = vrot.slane %v2097, 1
      %v2099 = vmax.f32 %v2097, %v2098
      %v2100 = vmax.f32 %v1976, %v1977
      %v2101 = vrot.slane %v2100, 4
      %v2102 = vmax.f32 %v2100, %v2101
      %v2103 = vrot.slane %v2102, 2
      %v2104 = vmax.f32 %v2102, %v2103
      %v2105 = vrot.slane %v2104, 1
      %v2106 = vmax.f32 %v2104, %v2105
      %v2107 = vmax.f32 %v1978, %v1979
      %v2108 = vrot.slane %v2107, 4
      %v2109 = vmax.f32 %v2107, %v2108
      %v2110 = vrot.slane %v2109, 2
      %v2111 = vmax.f32 %v2109, %v2110
      %v2112 = vrot.slane %v2111, 1
      %v2113 = vmax.f32 %v2111, %v2112
      %v2114 = vmax.f32 %v1980, %v1981
      %v2115 = vrot.slane %v2114, 4
      %v2116 = vmax.f32 %v2114, %v2115
      %v2117 = vrot.slane %v2116, 2
      %v2118 = vmax.f32 %v2116, %v2117
      %v2119 = vrot.slane %v2118, 1
      %v2120 = vmax.f32 %v2118, %v2119
      %v2121 = vmax.f32 %v1982, %v1983
      %v2122 = vrot.slane %v2121, 4
      %v2123 = vmax.f32 %v2121, %v2122
      %v2124 = vrot.slane %v2123, 2
      %v2125 = vmax.f32 %v2123, %v2124
      %v2126 = vrot.slane %v2125, 1
      %v2127 = vmax.f32 %v2125, %v2126
      %v2128 = vmax.f32 %v1984, %v1985
      %v2129 = vrot.slane %v2128, 4
      %v2130 = vmax.f32 %v2128, %v2129
      %v2131 = vrot.slane %v2130, 2
      %v2132 = vmax.f32 %v2130, %v2131
      %v2133 = vrot.slane %v2132, 1
      %v2134 = vmax.f32 %v2132, %v2133
      %v2135 = vmax.f32 %v1986, %v1987
      %v2136 = vrot.slane %v2135, 4
      %v2137 = vmax.f32 %v2135, %v2136
      %v2138 = vrot.slane %v2137, 2
      %v2139 = vmax.f32 %v2137, %v2138
      %v2140 = vrot.slane %v2139, 1
      %v2141 = vmax.f32 %v2139, %v2140
      %v2142 = vmax.f32 %v1988, %v1989
      %v2143 = vrot.slane %v2142, 4
      %v2144 = vmax.f32 %v2142, %v2143
      %v2145 = vrot.slane %v2144, 2
      %v2146 = vmax.f32 %v2144, %v2145
      %v2147 = vrot.slane %v2146, 1
      %v2148 = vmax.f32 %v2146, %v2147
      %v2149 = vmax.f32 %v1990, %v1991
      %v2150 = vrot.slane %v2149, 4
      %v2151 = vmax.f32 %v2149, %v2150
      %v2152 = vrot.slane %v2151, 2
      %v2153 = vmax.f32 %v2151, %v2152
      %v2154 = vrot.slane %v2153, 1
      %v2155 = vmax.f32 %v2153, %v2154
      %v2156 = vmax.f32 %v1992, %v1993
      %v2157 = vrot.slane %v2156, 4
      %v2158 = vmax.f32 %v2156, %v2157
      %v2159 = vrot.slane %v2158, 2
      %v2160 = vmax.f32 %v2158, %v2159
      %v2161 = vrot.slane %v2160, 1
      %v2162 = vmax.f32 %v2160, %v2161
      %v2163 = vmax.f32 %v1994, %v1995
      %v2164 = vrot.slane %v2163, 4
      %v2165 = vmax.f32 %v2163, %v2164
      %v2166 = vrot.slane %v2165, 2
      %v2167 = vmax.f32 %v2165, %v2166
      %v2168 = vrot.slane %v2167, 1
      %v2169 = vmax.f32 %v2167, %v2168
      %v2170 = vmax.f32 %v1996, %v1997
      %v2171 = vrot.slane %v2170, 4
      %v2172 = vmax.f32 %v2170, %v2171
      %v2173 = vrot.slane %v2172, 2
      %v2174 = vmax.f32 %v2172, %v2173
      %v2175 = vrot.slane %v2174, 1
      %v2176 = vmax.f32 %v2174, %v2175
      %v2177 = vmax.f32 %v1998, %v1999
      %v2178 = vrot.slane %v2177, 4
      %v2179 = vmax.f32 %v2177, %v2178
      %v2180 = vrot.slane %v2179, 2
      %v2181 = vmax.f32 %v2179, %v2180
      %v2182 = vrot.slane %v2181, 1
      %v2183 = vmax.f32 %v2181, %v2182
      %v2184 = vmax.f32 %v2000, %v2001
      %v2185 = vrot.slane %v2184, 4
      %v2186 = vmax.f32 %v2184, %v2185
      %v2187 = vrot.slane %v2186, 2
      %v2188 = vmax.f32 %v2186, %v2187
      %v2189 = vrot.slane %v2188, 1
      %v2190 = vmax.f32 %v2188, %v2189
      %v2191 = vmax.f32 %v2002, %v2003
      %v2192 = vrot.slane %v2191, 4
      %v2193 = vmax.f32 %v2191, %v2192
      %v2194 = vrot.slane %v2193, 2
      %v2195 = vmax.f32 %v2193, %v2194
      %v2196 = vrot.slane %v2195, 1
      %v2197 = vmax.f32 %v2195, %v2196
      %v2198 = vmax.f32 %v2004, %v2005
      %v2199 = vrot.slane %v2198, 4
      %v2200 = vmax.f32 %v2198, %v2199
      %v2201 = vrot.slane %v2200, 2
      %v2202 = vmax.f32 %v2200, %v2201
      %v2203 = vrot.slane %v2202, 1
      %v2204 = vmax.f32 %v2202, %v2203
      %v2205 = vmax.f32 %v2006, %v2007
      %v2206 = vrot.slane %v2205, 4
      %v2207 = vmax.f32 %v2205, %v2206
      %v2208 = vrot.slane %v2207, 2
      %v2209 = vmax.f32 %v2207, %v2208
      %v2210 = vrot.slane %v2209, 1
      %v2211 = vmax.f32 %v2209, %v2210
      %v2212 = vmax.f32 %v2008, %v2009
      %v2213 = vrot.slane %v2212, 4
      %v2214 = vmax.f32 %v2212, %v2213
      %v2215 = vrot.slane %v2214, 2
      %v2216 = vmax.f32 %v2214, %v2215
      %v2217 = vrot.slane %v2216, 1
      %v2218 = vmax.f32 %v2216, %v2217
      %v2219 = vmax.f32 %v2010, %v2011
      %v2220 = vrot.slane %v2219, 4
      %v2221 = vmax.f32 %v2219, %v2220
      %v2222 = vrot.slane %v2221, 2
      %v2223 = vmax.f32 %v2221, %v2222
      %v2224 = vrot.slane %v2223, 1
      %v2225 = vmax.f32 %v2223, %v2224
      %v2226 = vmax.f32 %v2012, %v2013
      %v2227 = vrot.slane %v2226, 4
      %v2228 = vmax.f32 %v2226, %v2227
      %v2229 = vrot.slane %v2228, 2
      %v2230 = vmax.f32 %v2228, %v2229
      %v2231 = vrot.slane %v2230, 1
      %v2232 = vmax.f32 %v2230, %v2231
      %v2233 = vmax.f32 %v2014, %v2015
      %v2234 = vrot.slane %v2233, 4
      %v2235 = vmax.f32 %v2233, %v2234
      %v2236 = vrot.slane %v2235, 2
      %v2237 = vmax.f32 %v2235, %v2236
      %v2238 = vrot.slane %v2237, 1
      %v2239 = vmax.f32 %v2237, %v2238
      %v2240 = vpack.c.bf16 %v2022, %v2022
      %v2241 = vpack.c.bf16 %v2029, %v2029
      %v2242 = vpack.c.bf16 %v2036, %v2036
      %v2243 = vpack.c.bf16 %v2043, %v2043
      %v2244 = vpack.c.bf16 %v2050, %v2050
      %v2245 = vpack.c.bf16 %v2057, %v2057
      %v2246 = vpack.c.bf16 %v2064, %v2064
      %v2247 = vpack.c.bf16 %v2071, %v2071
      %v2248 = vpack.c.bf16 %v2078, %v2078
      %v2249 = vpack.c.bf16 %v2085, %v2085
      %v2250 = vpack.c.bf16 %v2092, %v2092
      %v2251 = vpack.c.bf16 %v2099, %v2099
      %v2252 = vpack.c.bf16 %v2106, %v2106
      %v2253 = vpack.c.bf16 %v2113, %v2113
      %v2254 = vpack.c.bf16 %v2120, %v2120
      %v2255 = vpack.c.bf16 %v2127, %v2127
      %v2256 = vpack.c.bf16 %v2134, %v2134
      %v2257 = vpack.c.bf16 %v2141, %v2141
      %v2258 = vpack.c.bf16 %v2148, %v2148
      %v2259 = vpack.c.bf16 %v2155, %v2155
      %v2260 = vpack.c.bf16 %v2162, %v2162
      %v2261 = vpack.c.bf16 %v2169, %v2169
      %v2262 = vpack.c.bf16 %v2176, %v2176
      %v2263 = vpack.c.bf16 %v2183, %v2183
      %v2264 = vpack.c.bf16 %v2190, %v2190
      %v2265 = vpack.c.bf16 %v2197, %v2197
      %v2266 = vpack.c.bf16 %v2204, %v2204
      %v2267 = vpack.c.bf16 %v2211, %v2211
      %v2268 = vpack.c.bf16 %v2218, %v2218
      %v2269 = vpack.c.bf16 %v2225, %v2225
      %v2270 = vpack.c.bf16 %v2232, %v2232
      %v2271 = vpack.c.bf16 %v2239, %v2239
      %v2304 = vunpack.c.l.b16 %v2240
      %v2305 = vunpack.c.l.b16 %v2241
      %v2306 = vunpack.c.l.b16 %v2242
      %v2307 = vunpack.c.l.b16 %v2243
      %v2308 = vunpack.c.l.b16 %v2244
      %v2309 = vunpack.c.l.b16 %v2245
      %v2310 = vunpack.c.l.b16 %v2246
      %v2311 = vunpack.c.l.b16 %v2247
      %v2312 = vunpack.c.l.b16 %v2248
      %v2313 = vunpack.c.l.b16 %v2249
      %v2314 = vunpack.c.l.b16 %v2250
      %v2315 = vunpack.c.l.b16 %v2251
      %v2316 = vunpack.c.l.b16 %v2252
      %v2317 = vunpack.c.l.b16 %v2253
      %v2318 = vunpack.c.l.b16 %v2254
      %v2319 = vunpack.c.l.b16 %v2255
      %v2320 = vunpack.c.l.b16 %v2256
      %v2321 = vunpack.c.l.b16 %v2257
      %v2322 = vunpack.c.l.b16 %v2258
      %v2323 = vunpack.c.l.b16 %v2259
      %v2324 = vunpack.c.l.b16 %v2260
      %v2325 = vunpack.c.l.b16 %v2261
      %v2326 = vunpack.c.l.b16 %v2262
      %v2327 = vunpack.c.l.b16 %v2263
      %v2328 = vunpack.c.l.b16 %v2264
      %v2329 = vunpack.c.l.b16 %v2265
      %v2330 = vunpack.c.l.b16 %v2266
      %v2331 = vunpack.c.l.b16 %v2267
      %v2332 = vunpack.c.l.b16 %v2268
      %v2333 = vunpack.c.l.b16 %v2269
      %v2334 = vunpack.c.l.b16 %v2270
      %v2335 = vunpack.c.l.b16 %v2271
      %v2336 = vpack.c.b16 %v2304, %v2304
      %v2337 = vpack.c.b16 %v2305, %v2305
      %v2338 = vpack.c.b16 %v2306, %v2306
      %v2339 = vpack.c.b16 %v2307, %v2307
      %v2340 = vpack.c.b16 %v2308, %v2308
      %v2341 = vpack.c.b16 %v2309, %v2309
      %v2342 = vpack.c.b16 %v2310, %v2310
      %v2343 = vpack.c.b16 %v2311, %v2311
      %v2344 = vpack.c.b16 %v2312, %v2312
      %v2345 = vpack.c.b16 %v2313, %v2313
      %v2346 = vpack.c.b16 %v2314, %v2314
      %v2347 = vpack.c.b16 %v2315, %v2315
      %v2348 = vpack.c.b16 %v2316, %v2316
      %v2349 = vpack.c.b16 %v2317, %v2317
      %v2350 = vpack.c.b16 %v2318, %v2318
      %v2351 = vpack.c.b16 %v2319, %v2319
      %v2352 = vpack.c.b16 %v2320, %v2320
      %v2353 = vpack.c.b16 %v2321, %v2321
      %v2354 = vpack.c.b16 %v2322, %v2322
      %v2355 = vpack.c.b16 %v2323, %v2323
      %v2356 = vpack.c.b16 %v2324, %v2324
      %v2357 = vpack.c.b16 %v2325, %v2325
      %v2358 = vpack.c.b16 %v2326, %v2326
      %v2359 = vpack.c.b16 %v2327, %v2327
      %v2360 = vpack.c.b16 %v2328, %v2328
      %v2361 = vpack.c.b16 %v2329, %v2329
      %v2362 = vpack.c.b16 %v2330, %v2330
      %v2363 = vpack.c.b16 %v2331, %v2331
      %v2364 = vpack.c.b16 %v2332, %v2332
      %v2365 = vpack.c.b16 %v2333, %v2333
      %v2366 = vpack.c.b16 %v2334, %v2334
      %v2367 = vpack.c.b16 %v2335, %v2335
      %v2368 = vunpack.c.l.b16 %v2336
      %v2369 = vunpack.c.l.b16 %v2337
      %v2370 = vunpack.c.l.b16 %v2338
      %v2371 = vunpack.c.l.b16 %v2339
      %v2372 = vunpack.c.l.b16 %v2340
      %v2373 = vunpack.c.l.b16 %v2341
      %v2374 = vunpack.c.l.b16 %v2342
      %v2375 = vunpack.c.l.b16 %v2343
      %v2376 = vunpack.c.l.b16 %v2344
      %v2377 = vunpack.c.l.b16 %v2345
      %v2378 = vunpack.c.l.b16 %v2346
      %v2379 = vunpack.c.l.b16 %v2347
      %v2380 = vunpack.c.l.b16 %v2348
      %v2381 = vunpack.c.l.b16 %v2349
      %v2382 = vunpack.c.l.b16 %v2350
      %v2383 = vunpack.c.l.b16 %v2351
      %v2384 = vunpack.c.l.b16 %v2352
      %v2385 = vunpack.c.l.b16 %v2353
      %v2386 = vunpack.c.l.b16 %v2354
      %v2387 = vunpack.c.l.b16 %v2355
      %v2388 = vunpack.c.l.b16 %v2356
      %v2389 = vunpack.c.l.b16 %v2357
      %v2390 = vunpack.c.l.b16 %v2358
      %v2391 = vunpack.c.l.b16 %v2359
      %v2392 = vunpack.c.l.b16 %v2360
      %v2393 = vunpack.c.l.b16 %v2361
      %v2394 = vunpack.c.l.b16 %v2362
      %v2395 = vunpack.c.l.b16 %v2363
      %v2396 = vunpack.c.l.b16 %v2364
      %v2397 = vunpack.c.l.b16 %v2365
      %v2398 = vunpack.c.l.b16 %v2366
      %v2399 = vunpack.c.l.b16 %v2367
      %vm2400 = vcmask 1041409
      %v2401 = vsel %vm2400, %v2369, %v2368
      %vm2402 = vcmask 1042434
      %v2403 = vsel %vm2402, %v2370, %v2401
      %vm2404 = vcmask 1043459
      %v2405 = vsel %vm2404, %v2371, %v2403
      %vm2406 = vcmask 1044484
      %v2407 = vsel %vm2406, %v2372, %v2405
      %vm2408 = vcmask 1045509
      %v2409 = vsel %vm2408, %v2373, %v2407
      %vm2410 = vcmask 1046534
      %v2411 = vsel %vm2410, %v2374, %v2409
      %vm2412 = vcmask 1047559
      %v2413 = vsel %vm2412, %v2375, %v2411
      %v2414 = vsel %vm2400, %v2377, %v2376
      %v2415 = vsel %vm2402, %v2378, %v2414
      %v2416 = vsel %vm2404, %v2379, %v2415
      %v2417 = vsel %vm2406, %v2380, %v2416
      %v2418 = vsel %vm2408, %v2381, %v2417
      %v2419 = vsel %vm2410, %v2382, %v2418
      %v2420 = vsel %vm2412, %v2383, %v2419
      %v2421 = vsel %vm2400, %v2385, %v2384
      %v2422 = vsel %vm2402, %v2386, %v2421
      %v2423 = vsel %vm2404, %v2387, %v2422
      %v2424 = vsel %vm2406, %v2388, %v2423
      %v2425 = vsel %vm2408, %v2389, %v2424
      %v2426 = vsel %vm2410, %v2390, %v2425
      %v2427 = vsel %vm2412, %v2391, %v2426
      %v2428 = vsel %vm2400, %v2393, %v2392
      %v2429 = vsel %vm2402, %v2394, %v2428
      %v2430 = vsel %vm2404, %v2395, %v2429
      %v2431 = vsel %vm2406, %v2396, %v2430
      %v2432 = vsel %vm2408, %v2397, %v2431
      %v2433 = vsel %vm2410, %v2398, %v2432
      %v2434 = vsel %vm2412, %v2399, %v2433
      %v2435 = vpack.c.b16 %v2413, %v2413
      %v2436 = vpack.c.b16 %v2420, %v2420
      %v2437 = vpack.c.b16 %v2427, %v2427
      %v2438 = vpack.c.b16 %v2434, %v2434
      %2443 = vst [vmem:[%s280] sm:$0xf] %v2435
      %2444 = vst [vmem:[%s280 + $0x4] sm:$0xf] %v2436
      %2445 = vst [vmem:[%s280 + $0x8] sm:$0xf] %v2437
      %2446 = vst [vmem:[%s280 + $0xc] sm:$0xf] %v2438
      %s2447 = smul.u32 4, %s18
      %p2448 = scmp.lt.s32.totalorder %s2447, 7
      %s2449 = scalar_select %p2448, %s2447, 7
      %s2450 = smul.addr %s2449, 4
      %s2451 = scalar_lea.vmem %s7, %s2450
      // Predicated region
      $region49: #{_lambda_.4} parent=47 // pred_check
        %p2452 = pneg %p188
      $region50: #{_lambda_.4} parent=47 // pred_check_branch
        %2454 = sbr.rel (%p2452) target = $region52
      $region51: #{_lambda_.4} parent=47 // pred_region
        %s2455 = smul.u32 4, %s18
      $region52: #{_lambda_.4} parent=47 // pred_fallthru
        _
    $region48: #{_lambda_.4} parent=5 // pred_fallthru
      _
    %p2456 = scmp.le.s32.totalorder 2, %s13
    // Predicated region
    $region53: #{_lambda_.4} parent=5 // pred_check
      %p2457 = pneg %p2456
    $region54: #{_lambda_.4} parent=5 // pred_check_branch
      %2459 = sbr.rel (%p2457) target = $region56
    $region55: #{_lambda_.4} parent=5 // pred_region
      %s2460 = ssub.s32 %s13, 2
      // Predicated region
      $region57: #{_lambda_.4} parent=55 // pred_check
        %p2461 = pneg %p194
      $region58: #{_lambda_.4} parent=55 // pred_check_branch
        %2463 = sbr.rel (%p2461) target = $region60
      $region59: #{_lambda_.4} parent=55 // pred_region
        %s2464 = smul.u32 4, %s19
        %p2465 = scmp.lt.s32.totalorder %s2464, 7
        %s2466 = scalar_select %p2465, %s2464, 7
        %s2467 = smul.addr %s2466, 4
        %s2468 = scalar_lea.vmem %s7, %s2467
      $region60: #{_lambda_.4} parent=55 // pred_fallthru
        _
    $region56: #{_lambda_.4} parent=5 // pred_fallthru
      _
  $region6: #{_lambda_.4} parent=0 // loop_footer
    %s17 = sadd.s32 1, %s13
  $region7: #{_lambda_.4} parent=0 // loop_footer_branch
    %12 = sbr.rel target = $region3
  $region8: #{_lambda_.4} parent=0 // loop_exit
    _

// kernel: _lambda_.5
$region0: #{_lambda_.5}
  #allocation0 [shape = 'u32[]', space=smem, size = 0x4, offset = 0x4, fixed_abs, tag = 'smem constant byte address 0x4 - core index']
  #allocation1 [shape = 'u32[144,128]{1,0:T(1,128)}', space=vmem, size = 0x12000, scoped, tag = 'internal scratch']
  %s0 = inlined_call_operand.vmem [shape: bf16[512,10], index: 0, kind: input, shape index: {}]
  %s1 = inlined_call_operand.vmem [shape: bf16[512,128], index: 1, kind: input, shape index: {}]
  %s2 = inlined_call_operand.vmem [shape: bf16[10,128], index: 2, kind: input, shape index: {}]
  %s3 = inlined_call_operand.vmem [shape: bf16[128,128], index: 3, kind: input, shape index: {}]
  %s4 = inlined_call_operand.vmem [shape: f32[1,128], index: 4, kind: input, shape index: {}]
  %s5 = inlined_call_operand.vmem [shape: bf16[128,128], index: 5, kind: input, shape index: {}]
  %s6 = inlined_call_operand.vmem [shape: f32[1,128], index: 6, kind: input, shape index: {}]
  %s7 = inlined_call_operand.vmem [shape: bf16[128,256], index: 7, kind: input, shape index: {}]
  %s8 = inlined_call_operand.vmem [shape: f32[1,256], index: 8, kind: input, shape index: {}]
  %s9 = inlined_call_operand.vmem [shape: bf16[32,256], index: 9, kind: output, shape index: {}]
  %s10 = sld [smem:[#allocation0]]
  $region69: #{_lambda_.5} parent=0
    _
  %s12 = ssub.s32 1, %s10
  %s13 = scalar_select 0, %s12, %s10
  loop: start=0, step=1, limit=4
  $region2: #{_lambda_.5} parent=0 // loop_pre_header
    _
  $region3: #{_lambda_.5} parent=0 // loop_header
    %s15 = sphi 0, %s19
    %p16 = scmp.ge.s32.totalorder %s15, 4
    %s25 = sphi 0, %s27
    %s28 = sphi 0, %s25
    %s29 = sphi 0, %s28
    %s45 = sphi 0, %s29
    %s51 = sphi 0, %s53
    %s54 = sphi 0, %s51
    %s55 = sphi 0, %s54
    %s71 = sphi 0, %s55
    %s75 = sphi 0, %s75
    %s77 = sphi 0, %s75
    %s78 = sphi 0, %s77
    %s92 = sphi 0, %s78
    %s96 = sphi 0, %s96
    %s98 = sphi 0, %s96
    %s99 = sphi 0, %s98
    %s113 = sphi 0, %s99
    %s117 = sphi 0, %s117
    %s119 = sphi 0, %s117
    %s120 = sphi 0, %s119
    %s134 = sphi 0, %s120
    %s138 = sphi 0, %s138
    %s140 = sphi 0, %s138
    %s141 = sphi 0, %s140
    %s155 = sphi 0, %s141
    %s159 = sphi 0, %s159
    %s161 = sphi 0, %s159
    %s162 = sphi 0, %s161
    %s176 = sphi 0, %s162
    %s180 = sphi 0, %s180
    %s182 = sphi 0, %s180
    %s183 = sphi 0, %s182
    %s197 = sphi 0, %s183
    %s201 = sphi 0, %s201
    %s203 = sphi 0, %s201
    %s204 = sphi 0, %s203
    %s218 = sphi 0, %s204
    %s224 = sphi 0, %s226
    %s227 = sphi 0, %s224
    %s228 = sphi 0, %s227
    %s244 = sphi 0, %s228
  $region4: #{_lambda_.5} parent=0 // loop_header_branch
    %18 = sbr.rel (%p16) target = $region8
  $region5: #{_lambda_.5} parent=0 // loop_body
    %s20 = ssub.s32 %s15, 1
    %s21 = ssub.s32 %s15, 2
    %s22 = sadd.s32 %s15, 1
    %s23 = ssub.s32 %s15, %s22
    %p24 = scmp.eq.s32.totalorder %s23, 0
    %s26 = sadd.s32 %s25, 1
    %s27 = scalar_select %p24, %s25, %s26
    %p30 = pneg %p24
    %p31 = scmp.eq.s32.totalorder %s15, 1
    %p32 = por %p30, %p31
    %p33 = scmp.ne.s32.totalorder %s25, %s28
    %p34 = scmp.eq.s32.totalorder %s15, 0
    %p35 = por %p33, %p34
    %p36 = scmp.ne.s32.totalorder %s25, %s28
    %p37 = scmp.eq.s32.totalorder %s20, 1
    %p38 = por %p36, %p37
    %p39 = scmp.ne.s32.totalorder %s28, %s29
    %p40 = scmp.eq.s32.totalorder %s20, 0
    %p41 = por %p39, %p40
    %p42 = scmp.ne.s32.totalorder %s28, %s29
    %p43 = scmp.eq.s32.totalorder %s21, 1
    %p44 = por %p42, %p43
    %p46 = scmp.ne.s32.totalorder %s29, %s45
    %p47 = scmp.eq.s32.totalorder %s21, 0
    %p48 = por %p46, %p47
    %s49 = ssub.s32 %s15, %s22
    %p50 = scmp.eq.s32.totalorder %s49, 0
    %s52 = sadd.s32 %s51, 1
    %s53 = scalar_select %p50, %s51, %s52
    %p56 = pneg %p50
    %p57 = scmp.eq.s32.totalorder %s15, 1
    %p58 = por %p56, %p57
    %p59 = scmp.ne.s32.totalorder %s51, %s54
    %p60 = scmp.eq.s32.totalorder %s15, 0
    %p61 = por %p59, %p60
    %p62 = scmp.ne.s32.totalorder %s51, %s54
    %p63 = scmp.eq.s32.totalorder %s20, 1
    %p64 = por %p62, %p63
    %p65 = scmp.ne.s32.totalorder %s54, %s55
    %p66 = scmp.eq.s32.totalorder %s20, 0
    %p67 = por %p65, %p66
    %p68 = scmp.ne.s32.totalorder %s54, %s55
    %p69 = scmp.eq.s32.totalorder %s21, 1
    %p70 = por %p68, %p69
    %p72 = scmp.ne.s32.totalorder %s55, %s71
    %p73 = scmp.eq.s32.totalorder %s21, 0
    %p74 = por %p72, %p73
    %s76 = sadd.s32 %s75, 1
    %p79 = scmp.eq.s32.totalorder %s15, 1
    %p80 = scmp.ne.s32.totalorder %s75, %s77
    %p81 = scmp.eq.s32.totalorder %s15, 0
    %p82 = por %p80, %p81
    %p83 = scmp.ne.s32.totalorder %s75, %s77
    %p84 = scmp.eq.s32.totalorder %s20, 1
    %p85 = por %p83, %p84
    %p86 = scmp.ne.s32.totalorder %s77, %s78
    %p87 = scmp.eq.s32.totalorder %s20, 0
    %p88 = por %p86, %p87
    %p89 = scmp.ne.s32.totalorder %s77, %s78
    %p90 = scmp.eq.s32.totalorder %s21, 1
    %p91 = por %p89, %p90
    %p93 = scmp.ne.s32.totalorder %s78, %s92
    %p94 = scmp.eq.s32.totalorder %s21, 0
    %p95 = por %p93, %p94
    %s97 = sadd.s32 %s96, 1
    %p100 = scmp.eq.s32.totalorder %s15, 1
    %p101 = scmp.ne.s32.totalorder %s96, %s98
    %p102 = scmp.eq.s32.totalorder %s15, 0
    %p103 = por %p101, %p102
    %p104 = scmp.ne.s32.totalorder %s96, %s98
    %p105 = scmp.eq.s32.totalorder %s20, 1
    %p106 = por %p104, %p105
    %p107 = scmp.ne.s32.totalorder %s98, %s99
    %p108 = scmp.eq.s32.totalorder %s20, 0
    %p109 = por %p107, %p108
    %p110 = scmp.ne.s32.totalorder %s98, %s99
    %p111 = scmp.eq.s32.totalorder %s21, 1
    %p112 = por %p110, %p111
    %p114 = scmp.ne.s32.totalorder %s99, %s113
    %p115 = scmp.eq.s32.totalorder %s21, 0
    %p116 = por %p114, %p115
    %s118 = sadd.s32 %s117, 1
    %p121 = scmp.eq.s32.totalorder %s15, 1
    %p122 = scmp.ne.s32.totalorder %s117, %s119
    %p123 = scmp.eq.s32.totalorder %s15, 0
    %p124 = por %p122, %p123
    %p125 = scmp.ne.s32.totalorder %s117, %s119
    %p126 = scmp.eq.s32.totalorder %s20, 1
    %p127 = por %p125, %p126
    %p128 = scmp.ne.s32.totalorder %s119, %s120
    %p129 = scmp.eq.s32.totalorder %s20, 0
    %p130 = por %p128, %p129
    %p131 = scmp.ne.s32.totalorder %s119, %s120
    %p132 = scmp.eq.s32.totalorder %s21, 1
    %p133 = por %p131, %p132
    %p135 = scmp.ne.s32.totalorder %s120, %s134
    %p136 = scmp.eq.s32.totalorder %s21, 0
    %p137 = por %p135, %p136
    %s139 = sadd.s32 %s138, 1
    %p142 = scmp.eq.s32.totalorder %s15, 1
    %p143 = scmp.ne.s32.totalorder %s138, %s140
    %p144 = scmp.eq.s32.totalorder %s15, 0
    %p145 = por %p143, %p144
    %p146 = scmp.ne.s32.totalorder %s138, %s140
    %p147 = scmp.eq.s32.totalorder %s20, 1
    %p148 = por %p146, %p147
    %p149 = scmp.ne.s32.totalorder %s140, %s141
    %p150 = scmp.eq.s32.totalorder %s20, 0
    %p151 = por %p149, %p150
    %p152 = scmp.ne.s32.totalorder %s140, %s141
    %p153 = scmp.eq.s32.totalorder %s21, 1
    %p154 = por %p152, %p153
    %p156 = scmp.ne.s32.totalorder %s141, %s155
    %p157 = scmp.eq.s32.totalorder %s21, 0
    %p158 = por %p156, %p157
    %s160 = sadd.s32 %s159, 1
    %p163 = scmp.eq.s32.totalorder %s15, 1
    %p164 = scmp.ne.s32.totalorder %s159, %s161
    %p165 = scmp.eq.s32.totalorder %s15, 0
    %p166 = por %p164, %p165
    %p167 = scmp.ne.s32.totalorder %s159, %s161
    %p168 = scmp.eq.s32.totalorder %s20, 1
    %p169 = por %p167, %p168
    %p170 = scmp.ne.s32.totalorder %s161, %s162
    %p171 = scmp.eq.s32.totalorder %s20, 0
    %p172 = por %p170, %p171
    %p173 = scmp.ne.s32.totalorder %s161, %s162
    %p174 = scmp.eq.s32.totalorder %s21, 1
    %p175 = por %p173, %p174
    %p177 = scmp.ne.s32.totalorder %s162, %s176
    %p178 = scmp.eq.s32.totalorder %s21, 0
    %p179 = por %p177, %p178
    %s181 = sadd.s32 %s180, 1
    %p184 = scmp.eq.s32.totalorder %s15, 1
    %p185 = scmp.ne.s32.totalorder %s180, %s182
    %p186 = scmp.eq.s32.totalorder %s15, 0
    %p187 = por %p185, %p186
    %p188 = scmp.ne.s32.totalorder %s180, %s182
    %p189 = scmp.eq.s32.totalorder %s20, 1
    %p190 = por %p188, %p189
    %p191 = scmp.ne.s32.totalorder %s182, %s183
    %p192 = scmp.eq.s32.totalorder %s20, 0
    %p193 = por %p191, %p192
    %p194 = scmp.ne.s32.totalorder %s182, %s183
    %p195 = scmp.eq.s32.totalorder %s21, 1
    %p196 = por %p194, %p195
    %p198 = scmp.ne.s32.totalorder %s183, %s197
    %p199 = scmp.eq.s32.totalorder %s21, 0
    %p200 = por %p198, %p199
    %s202 = sadd.s32 %s201, 1
    %p205 = scmp.eq.s32.totalorder %s15, 1
    %p206 = scmp.ne.s32.totalorder %s201, %s203
    %p207 = scmp.eq.s32.totalorder %s15, 0
    %p208 = por %p206, %p207
    %p209 = scmp.ne.s32.totalorder %s201, %s203
    %p210 = scmp.eq.s32.totalorder %s20, 1
    %p211 = por %p209, %p210
    %p212 = scmp.ne.s32.totalorder %s203, %s204
    %p213 = scmp.eq.s32.totalorder %s20, 0
    %p214 = por %p212, %p213
    %p215 = scmp.ne.s32.totalorder %s203, %s204
    %p216 = scmp.eq.s32.totalorder %s21, 1
    %p217 = por %p215, %p216
    %p219 = scmp.ne.s32.totalorder %s204, %s218
    %p220 = scmp.eq.s32.totalorder %s21, 0
    %p221 = por %p219, %p220
    %s222 = ssub.s32 %s15, %s22
    %p223 = scmp.eq.s32.totalorder %s222, 0
    %s225 = sadd.s32 %s224, 1
    %s226 = scalar_select %p223, %s224, %s225
    %p229 = pneg %p223
    %p230 = scmp.eq.s32.totalorder %s15, 1
    %p231 = por %p229, %p230
    %p232 = scmp.ne.s32.totalorder %s224, %s227
    %p233 = scmp.eq.s32.totalorder %s15, 0
    %p234 = por %p232, %p233
    %p235 = scmp.ne.s32.totalorder %s224, %s227
    %p236 = scmp.eq.s32.totalorder %s20, 1
    %p237 = por %p235, %p236
    %p238 = scmp.ne.s32.totalorder %s227, %s228
    %p239 = scmp.eq.s32.totalorder %s20, 0
    %p240 = por %p238, %p239
    %p241 = scmp.ne.s32.totalorder %s227, %s228
    %p242 = scmp.eq.s32.totalorder %s21, 1
    %p243 = por %p241, %p242
    %p245 = scmp.ne.s32.totalorder %s228, %s244
    %p246 = scmp.eq.s32.totalorder %s21, 0
    %p247 = por %p245, %p246
    %p248 = scmp.le.s32.totalorder 1, %s15
    %p249 = scmp.lt.s32.totalorder %s15, 3
    %p250 = pnand %p248, %p249
    %p251 = pneg %p250
    // Predicated region
    $region9: #{_lambda_.5} parent=5 // pred_check
      _
    $region10: #{_lambda_.5} parent=5 // pred_check_branch
      %253 = sbr.rel (%p250) target = $region12
    $region11: #{_lambda_.5} parent=5 // pred_region
      %s254 = ssub.s32 %s15, 1
      // Predicated region
      $region13: #{_lambda_.5} parent=11 // pred_check
        %p255 = pneg %p88
      $region14: #{_lambda_.5} parent=11 // pred_check_branch
        %257 = sbr.rel (%p255) target = $region16
      $region15: #{_lambda_.5} parent=11 // pred_region
        _
      $region16: #{_lambda_.5} parent=11 // pred_fallthru
        _
      // Predicated region
      $region17: #{_lambda_.5} parent=11 // pred_check
        %p258 = pneg %p109
      $region18: #{_lambda_.5} parent=11 // pred_check_branch
        %260 = sbr.rel (%p258) target = $region20
      $region19: #{_lambda_.5} parent=11 // pred_region
        _
      $region20: #{_lambda_.5} parent=11 // pred_fallthru
        _
      // Predicated region
      $region21: #{_lambda_.5} parent=11 // pred_check
        %p261 = pneg %p130
      $region22: #{_lambda_.5} parent=11 // pred_check_branch
        %263 = sbr.rel (%p261) target = $region24
      $region23: #{_lambda_.5} parent=11 // pred_region
        _
      $region24: #{_lambda_.5} parent=11 // pred_fallthru
        _
      // Predicated region
      $region25: #{_lambda_.5} parent=11 // pred_check
        %p264 = pneg %p151
      $region26: #{_lambda_.5} parent=11 // pred_check_branch
        %266 = sbr.rel (%p264) target = $region28
      $region27: #{_lambda_.5} parent=11 // pred_region
        _
      $region28: #{_lambda_.5} parent=11 // pred_fallthru
        _
      // Predicated region
      $region29: #{_lambda_.5} parent=11 // pred_check
        %p267 = pneg %p172
      $region30: #{_lambda_.5} parent=11 // pred_check_branch
        %269 = sbr.rel (%p267) target = $region32
      $region31: #{_lambda_.5} parent=11 // pred_region
        _
      $region32: #{_lambda_.5} parent=11 // pred_fallthru
        _
      // Predicated region
      $region33: #{_lambda_.5} parent=11 // pred_check
        %p270 = pneg %p193
      $region34: #{_lambda_.5} parent=11 // pred_check_branch
        %272 = sbr.rel (%p270) target = $region36
      $region35: #{_lambda_.5} parent=11 // pred_region
        _
      $region36: #{_lambda_.5} parent=11 // pred_fallthru
        _
      // Predicated region
      $region37: #{_lambda_.5} parent=11 // pred_check
        %p273 = pneg %p214
      $region38: #{_lambda_.5} parent=11 // pred_check_branch
        %275 = sbr.rel (%p273) target = $region40
      $region39: #{_lambda_.5} parent=11 // pred_region
        _
      $region40: #{_lambda_.5} parent=11 // pred_fallthru
        _
    $region12: #{_lambda_.5} parent=5 // pred_fallthru
      _
    %p276 = scmp.lt.s32.totalorder %s15, 2
    // Predicated region
    $region41: #{_lambda_.5} parent=5 // pred_check
      %p277 = pneg %p276
    $region42: #{_lambda_.5} parent=5 // pred_check_branch
      %279 = sbr.rel (%p277) target = $region44
    $region43: #{_lambda_.5} parent=5 // pred_region
      // Predicated region
      $region45: #{_lambda_.5} parent=43 // pred_check
        %p280 = pneg %p35
      $region46: #{_lambda_.5} parent=43 // pred_check_branch
        %282 = sbr.rel (%p280) target = $region48
      $region47: #{_lambda_.5} parent=43 // pred_region
        %s283 = smul.u32 32, %s15
        %p284 = scmp.lt.s32.totalorder %s283, 63
        %s285 = scalar_select %p284, %s283, 63
        %s286 = smul.addr %s285, 4
        %s287 = scalar_lea.vmem %s0, %s286
        %s288 = smul.u32 32, %s15
      $region48: #{_lambda_.5} parent=43 // pred_fallthru
        _
      // Predicated region
      $region49: #{_lambda_.5} parent=43 // pred_check
        %p289 = pneg %p61
      $region50: #{_lambda_.5} parent=43 // pred_check_branch
        %291 = sbr.rel (%p289) target = $region52
      $region51: #{_lambda_.5} parent=43 // pred_region
        %s292 = smul.u32 32, %s15
        %p293 = scmp.lt.s32.totalorder %s292, 63
        %s294 = scalar_select %p293, %s292, 63
        %s295 = smul.addr %s294, 4
        %s296 = scalar_lea.vmem %s1, %s295
        %s297 = smul.u32 32, %s15
      $region52: #{_lambda_.5} parent=43 // pred_fallthru
        _
    $region44: #{_lambda_.5} parent=5 // pred_fallthru
      _
    %p298 = scmp.le.s32.totalorder 1, %s15
    %p299 = scmp.lt.s32.totalorder %s15, 3
    %p300 = pnand %p298, %p299
    %p301 = pneg %p300
    // Predicated region
    $region53: #{_lambda_.5} parent=5 // pred_check
      _
    $region54: #{_lambda_.5} parent=5 // pred_check_branch
      %303 = sbr.rel (%p300) target = $region56
    $region55: #{_lambda_.5} parent=5 // pred_region
      %s304 = ssub.s32 %s15, 1
      %s305 = smul.u32 32, %s20
      %p306 = scmp.lt.s32.totalorder %s305, 63
      %s307 = scalar_select %p306, %s305, 63
      %s308 = smul.addr %s307, 4
      %s309 = scalar_lea.vmem %s0, %s308
      %p310 = pneg %p41
      %p311 = pneg %p38
      %s312 = smul.u32 32, %s20
      %p313 = scmp.lt.s32.totalorder %s312, 63
      %s314 = scalar_select %p313, %s312, 63
      %s315 = smul.addr %s314, 4
      %s316 = scalar_lea.vmem %s1, %s315
      %p317 = pneg %p67
      %p318 = pneg %p64
      %p319 = pneg %p88
      %p320 = pneg %p85
      %p321 = pneg %p109
      %p322 = pneg %p106
      %p323 = pneg %p130
      %p324 = pneg %p127
      %p325 = pneg %p151
      %p326 = pneg %p148
      %p327 = pneg %p172
      %p328 = pneg %p169
      %p329 = pneg %p193
      %p330 = pneg %p190
      %p331 = pneg %p214
      %p332 = pneg %p211
      %p333 = pneg %p240
      %p334 = pneg %p237
      %s335 = smul.u32 2, %s20
      %p336 = scmp.lt.s32.totalorder %s335, 3
      %s337 = scalar_select %p336, %s335, 3
      %s338 = smul.addr %s337, 2
      %s339 = smul.addr %s338, 4
      %s340 = scalar_lea.vmem %s9, %s339
      %s341 = smul.u32 32, %s20
      %p342 = scmp.lt.s32.totalorder %s341, 63
      %s343 = scalar_select %p342, %s341, 63
      %s344 = smul.addr %s343, 4
      %s345 = scalar_lea.vmem %s0, %s344
      %s346 = smul.u32 32, %s20
      %s347 = smul.u32 32, %s20
      %p348 = scmp.lt.s32.totalorder %s347, 63
      %s349 = scalar_select %p348, %s347, 63
      %s350 = smul.addr %s349, 4
      %s351 = scalar_lea.vmem %s1, %s350
      %s352 = smul.u32 32, %s20
      %s353 = smul.u32 2, %s20
      %p354 = scmp.lt.s32.totalorder %s353, 3
      %s355 = scalar_select %p354, %s353, 3
      %s356 = smul.addr %s355, 2
      %s357 = smul.addr %s356, 4
      %s358 = scalar_lea.vmem %s9, %s357
      %s359 = smul.u32 2, %s20
      %v361 = vld [vmem:[%s345] sm:$0xf]
      %v362 = vld [vmem:[%s345 + $0x4] sm:$0xf]
      %v363 = vld [vmem:[%s345 + $0x8] sm:$0xf]
      %v364 = vld [vmem:[%s345 + $0xc] sm:$0xf]
      %v365 = vld [vmem:[%s345 + $0x10] sm:$0xf]
      %v366 = vld [vmem:[%s345 + $0x14] sm:$0xf]
      %v367 = vld [vmem:[%s345 + $0x18] sm:$0xf]
      %v368 = vld [vmem:[%s345 + $0x1c] sm:$0xf]
      %v369 = vld [vmem:[%s345 + $0x20] sm:$0xf]
      %v370 = vld [vmem:[%s345 + $0x24] sm:$0xf]
      %v371 = vld [vmem:[%s345 + $0x28] sm:$0xf]
      %v372 = vld [vmem:[%s345 + $0x2c] sm:$0xf]
      %v373 = vld [vmem:[%s345 + $0x30] sm:$0xf]
      %v374 = vld [vmem:[%s345 + $0x34] sm:$0xf]
      %v375 = vld [vmem:[%s345 + $0x38] sm:$0xf]
      %v376 = vld [vmem:[%s345 + $0x3c] sm:$0xf]
      %v377 = vld [vmem:[%s345 + $0x40] sm:$0xf]
      %v378 = vld [vmem:[%s345 + $0x44] sm:$0xf]
      %v379 = vld [vmem:[%s345 + $0x48] sm:$0xf]
      %v380 = vld [vmem:[%s345 + $0x4c] sm:$0xf]
      %v381 = vld [vmem:[%s345 + $0x50] sm:$0xf]
      %v382 = vld [vmem:[%s345 + $0x54] sm:$0xf]
      %v383 = vld [vmem:[%s345 + $0x58] sm:$0xf]
      %v384 = vld [vmem:[%s345 + $0x5c] sm:$0xf]
      %v385 = vld [vmem:[%s345 + $0x60] sm:$0xf]
      %v386 = vld [vmem:[%s345 + $0x64] sm:$0xf]
      %v387 = vld [vmem:[%s345 + $0x68] sm:$0xf]
      %v388 = vld [vmem:[%s345 + $0x6c] sm:$0xf]
      %v389 = vld [vmem:[%s345 + $0x70] sm:$0xf]
      %v390 = vld [vmem:[%s345 + $0x74] sm:$0xf]
      %v391 = vld [vmem:[%s345 + $0x78] sm:$0xf]
      %v392 = vld [vmem:[%s345 + $0x7c] sm:$0xf]
      %v393 = vld [vmem:[%s2] sm:$0xf]
      %v394 = vld [vmem:[%s2 + $0x4] sm:$0x1]
      %v395 = vld [vmem:[%s351] sm:$0xf]
      %v396 = vld [vmem:[%s351 + $0x4] sm:$0xf]
      %v397 = vld [vmem:[%s351 + $0x8] sm:$0xf]
      %v398 = vld [vmem:[%s351 + $0xc] sm:$0xf]
      %v399 = vld [vmem:[%s351 + $0x10] sm:$0xf]
      %v400 = vld [vmem:[%s351 + $0x14] sm:$0xf]
      %v401 = vld [vmem:[%s351 + $0x18] sm:$0xf]
      %v402 = vld [vmem:[%s351 + $0x1c] sm:$0xf]
      %v403 = vld [vmem:[%s351 + $0x20] sm:$0xf]
      %v404 = vld [vmem:[%s351 + $0x24] sm:$0xf]
      %v405 = vld [vmem:[%s351 + $0x28] sm:$0xf]
      %v406 = vld [vmem:[%s351 + $0x2c] sm:$0xf]
      %v407 = vld [vmem:[%s351 + $0x30] sm:$0xf]
      %v408 = vld [vmem:[%s351 + $0x34] sm:$0xf]
      %v409 = vld [vmem:[%s351 + $0x38] sm:$0xf]
      %v410 = vld [vmem:[%s351 + $0x3c] sm:$0xf]
      %v411 = vld [vmem:[%s351 + $0x40] sm:$0xf]
      %v412 = vld [vmem:[%s351 + $0x44] sm:$0xf]
      %v413 = vld [vmem:[%s351 + $0x48] sm:$0xf]
      %v414 = vld [vmem:[%s351 + $0x4c] sm:$0xf]
      %v415 = vld [vmem:[%s351 + $0x50] sm:$0xf]
      %v416 = vld [vmem:[%s351 + $0x54] sm:$0xf]
      %v417 = vld [vmem:[%s351 + $0x58] sm:$0xf]
      %v418 = vld [vmem:[%s351 + $0x5c] sm:$0xf]
      %v419 = vld [vmem:[%s351 + $0x60] sm:$0xf]
      %v420 = vld [vmem:[%s351 + $0x64] sm:$0xf]
      %v421 = vld [vmem:[%s351 + $0x68] sm:$0xf]
      %v422 = vld [vmem:[%s351 + $0x6c] sm:$0xf]
      %v423 = vld [vmem:[%s351 + $0x70] sm:$0xf]
      %v424 = vld [vmem:[%s351 + $0x74] sm:$0xf]
      %v425 = vld [vmem:[%s351 + $0x78] sm:$0xf]
      %v426 = vld [vmem:[%s351 + $0x7c] sm:$0xf]
      %v427 = vld [vmem:[%s3] sm:$0xf]
      %v428 = vld [vmem:[%s3 + $0x4] sm:$0xf]
      %v429 = vld [vmem:[%s3 + $0x8] sm:$0xf]
      %v430 = vld [vmem:[%s3 + $0xc] sm:$0xf]
      %v431 = vld [vmem:[%s3 + $0x10] sm:$0xf]
      %v432 = vld [vmem:[%s3 + $0x14] sm:$0xf]
      %v433 = vld [vmem:[%s3 + $0x18] sm:$0xf]
      %v434 = vld [vmem:[%s3 + $0x1c] sm:$0xf]
      %v435 = vld [vmem:[%s3 + $0x20] sm:$0xf]
      %v436 = vld [vmem:[%s3 + $0x24] sm:$0xf]
      %v437 = vld [vmem:[%s3 + $0x28] sm:$0xf]
      %v438 = vld [vmem:[%s3 + $0x2c] sm:$0xf]
      %v439 = vld [vmem:[%s3 + $0x30] sm:$0xf]
      %v440 = vld [vmem:[%s3 + $0x34] sm:$0xf]
      %v441 = vld [vmem:[%s3 + $0x38] sm:$0xf]
      %v442 = vld [vmem:[%s3 + $0x3c] sm:$0xf]
      %v475 = vunpack.c.l.b16 %v395
      %v476 = vunpack.c.l.b16 %v396
      %v477 = vunpack.c.l.b16 %v397
      %v478 = vunpack.c.l.b16 %v398
      %v479 = vunpack.c.l.b16 %v399
      %v480 = vunpack.c.l.b16 %v400
      %v481 = vunpack.c.l.b16 %v401
      %v482 = vunpack.c.l.b16 %v402
      %v483 = vunpack.c.l.b16 %v403
      %v484 = vunpack.c.l.b16 %v404
      %v485 = vunpack.c.l.b16 %v405
      %v486 = vunpack.c.l.b16 %v406
      %v487 = vunpack.c.l.b16 %v407
      %v488 = vunpack.c.l.b16 %v408
      %v489 = vunpack.c.l.b16 %v409
      %v490 = vunpack.c.l.b16 %v410
      %v491 = vunpack.c.l.b16 %v411
      %v492 = vunpack.c.l.b16 %v412
      %v493 = vunpack.c.l.b16 %v413
      %v494 = vunpack.c.l.b16 %v414
      %v495 = vunpack.c.l.b16 %v415
      %v496 = vunpack.c.l.b16 %v416
      %v497 = vunpack.c.l.b16 %v417
      %v498 = vunpack.c.l.b16 %v418
      %v499 = vunpack.c.l.b16 %v419
      %v500 = vunpack.c.l.b16 %v420
      %v501 = vunpack.c.l.b16 %v421
      %v502 = vunpack.c.l.b16 %v422
      %v503 = vunpack.c.l.b16 %v423
      %v504 = vunpack.c.l.b16 %v424
      %v505 = vunpack.c.l.b16 %v425
      %v506 = vunpack.c.l.b16 %v426
      %v507 = vpack.c.b16 %v476, %v475
      %v508 = vpack.c.b16 %v478, %v477
      %v509 = vpack.c.b16 %v480, %v479
      %v510 = vpack.c.b16 %v482, %v481
      %v511 = vpack.c.b16 %v484, %v483
      %v512 = vpack.c.b16 %v486, %v485
      %v513 = vpack.c.b16 %v488, %v487
      %v514 = vpack.c.b16 %v490, %v489
      %v515 = vpack.c.b16 %v492, %v491
      %v516 = vpack.c.b16 %v494, %v493
      %v517 = vpack.c.b16 %v496, %v495
      %v518 = vpack.c.b16 %v498, %v497
      %v519 = vpack.c.b16 %v500, %v499
      %v520 = vpack.c.b16 %v502, %v501
      %v521 = vpack.c.b16 %v504, %v503
      %v522 = vpack.c.b16 %v506, %v505
      %v555 = vunpack.c.l.b16 %v427
      %v556 = vunpack.c.l.b16 %v428
      %v557 = vunpack.c.l.b16 %v429
      %v558 = vunpack.c.l.b16 %v430
      %v559 = vunpack.c.l.b16 %v431
      %v560 = vunpack.c.l.b16 %v432
      %v561 = vunpack.c.l.b16 %v433
      %v562 = vunpack.c.l.b16 %v434
      %v563 = vunpack.c.l.b16 %v435
      %v564 = vunpack.c.l.b16 %v436
      %v565 = vunpack.c.l.b16 %v437
      %v566 = vunpack.c.l.b16 %v438
      %v567 = vunpack.c.l.b16 %v439
      %v568 = vunpack.c.l.b16 %v440
      %v569 = vunpack.c.l.b16 %v441
      %v570 = vunpack.c.l.b16 %v442
      %v571 = vpack.c.b16 %v556, %v555
      %v572 = vpack.c.b16 %v558, %v557
      %v573 = vpack.c.b16 %v560, %v559
      %v574 = vpack.c.b16 %v562, %v561
      %v575 = vpack.c.b16 %v564, %v563
      %v576 = vpack.c.b16 %v566, %v565
      %v577 = vpack.c.b16 %v568, %v567
      %v578 = vpack.c.b16 %v570, %v569
      %587 = vmatprep.subr.bf16.mxu0 0
      %588 = vmatpush1.bf16.msra.mxu0 %v571
      %589 = vmatprep.subr.bf16.mxu0 0
      %590 = vmatpush1.bf16.msra.mxu0 %v572
      %591 = vmatprep.subr.bf16.mxu0 0
      %592 = vmatpush1.bf16.msra.mxu0 %v573
      %593 = vmatprep.subr.bf16.mxu0 0
      %594 = vmatpush1.bf16.msra.mxu0 %v574
      %595 = vmatprep.subr.bf16.mxu0 0
      %596 = vmatpush1.bf16.msra.mxu0 %v575
      %597 = vmatprep.subr.bf16.mxu0 0
      %598 = vmatpush1.bf16.msra.mxu0 %v576
      %599 = vmatprep.subr.bf16.mxu0 0
      %600 = vmatpush1.bf16.msra.mxu0 %v577
      %601 = vmatprep.subr.bf16.mxu0 0
      %602 = vmatpush1.bf16.msra.mxu0 %v578
      %603 = vmatprep.subr.bf16.mxu0 0
      %604 = vmatpush1.bf16.msra.mxu0 0
      %605 = vmatprep.subr.bf16.mxu0 0
      %606 = vmatpush1.bf16.msra.mxu0 0
      %607 = vmatprep.subr.bf16.mxu0 0
      %608 = vmatpush1.bf16.msra.mxu0 0
      %609 = vmatprep.subr.bf16.mxu0 0
      %610 = vmatpush1.bf16.msra.mxu0 0
      %611 = vmatprep.subr.bf16.mxu0 0
      %612 = vmatpush1.bf16.msra.mxu0 0
      %613 = vmatprep.subr.bf16.mxu0 0
      %614 = vmatpush1.bf16.msra.mxu0 0
      %615 = vmatprep.subr.bf16.mxu0 0
      %616 = vmatpush1.bf16.msra.mxu0 0
      %617 = vmatprep.subr.bf16.mxu0 0
      %618 = vmatpush1.bf16.msra.mxu0 0
      %619 = vmatprep.mubr.bf16.mxu0 0
      %620 = vmatmul.mubr.bf16.gmra.mrb[0].mxu0 %v507
      %v621 = vpop.f32.mrb[0].mxu0
      %v622 = vadd.f32 0.0, %v621
      %v623 = vpop.f32.mrb[0].mxu0
      %v624 = vpop.f32.mrb[0].mxu0
      %v625 = vadd.f32 0.0, %v624
      %v626 = vpop.f32.mrb[0].mxu0
      %627 = vmatprep.mubr.bf16.mxu0 0
      %628 = vmatmul.mubr.bf16.gmra.mrb[0].mxu0 %v508
      %v629 = vpop.f32.mrb[0].mxu0
      %v630 = vadd.f32 0.0, %v629
      %v631 = vpop.f32.mrb[0].mxu0
      %v632 = vpop.f32.mrb[0].mxu0
      %v633 = vadd.f32 0.0, %v632
      %v634 = vpop.f32.mrb[0].mxu0
      %635 = vmatprep.mubr.bf16.mxu0 0
      %636 = vmatmul.mubr.bf16.gmra.mrb[0].mxu0 %v509
      %v637 = vpop.f32.mrb[0].mxu0
      %v638 = vadd.f32 0.0, %v637
      %v639 = vpop.f32.mrb[0].mxu0
      %v640 = vpop.f32.mrb[0].mxu0
      %v641 = vadd.f32 0.0, %v640
      %v642 = vpop.f32.mrb[0].mxu0
      %643 = vmatprep.mubr.bf16.mxu0 0
      %644 = vmatmul.mubr.bf16.gmra.mrb[0].mxu0 %v510
      %v645 = vpop.f32.mrb[0].mxu0
      %v646 = vadd.f32 0.0, %v645
      %v647 = vpop.f32.mrb[0].mxu0
      %v648 = vpop.f32.mrb[0].mxu0
      %v649 = vadd.f32 0.0, %v648
      %v650 = vpop.f32.mrb[0].mxu0
      %651 = vmatprep.mubr.bf16.mxu0 0
      %652 = vmatmul.mubr.bf16.gmra.mrb[0].mxu0 %v511
      %v653 = vpop.f32.mrb[0].mxu0
      %v654 = vadd.f32 0.0, %v653
      %v655 = vpop.f32.mrb[0].mxu0
      %v656 = vpop.f32.mrb[0].mxu0
      %v657 = vadd.f32 0.0, %v656
      %v658 = vpop.f32.mrb[0].mxu0
      %659 = vmatprep.mubr.bf16.mxu0 0
      %660 = vmatmul.mubr.bf16.gmra.mrb[0].mxu0 %v512
      %v661 = vpop.f32.mrb[0].mxu0
      %v662 = vadd.f32 0.0, %v661
      %v663 = vpop.f32.mrb[0].mxu0
      %v664 = vpop.f32.mrb[0].mxu0
      %v665 = vadd.f32 0.0, %v664
      %v666 = vpop.f32.mrb[0].mxu0
      %667 = vmatprep.mubr.bf16.mxu0 0
      %668 = vmatmul.mubr.bf16.gmra.mrb[0].mxu0 %v513
      %v669 = vpop.f32.mrb[0].mxu0
      %v670 = vadd.f32 0.0, %v669
      %v671 = vpop.f32.mrb[0].mxu0
      %v672 = vpop.f32.mrb[0].mxu0
      %v673 = vadd.f32 0.0, %v672
      %v674 = vpop.f32.mrb[0].mxu0
      %675 = vmatprep.mubr.bf16.mxu0 0
      %676 = vmatmul.mubr.bf16.gmra.mrb[0].mxu0 %v514
      %v677 = vpop.f32.mrb[0].mxu0
      %v678 = vadd.f32 0.0, %v677
      %v679 = vpop.f32.mrb[0].mxu0
      %v680 = vpop.f32.mrb[0].mxu0
      %v681 = vadd.f32 0.0, %v680
      %v682 = vpop.f32.mrb[0].mxu0
      %683 = vmatprep.mubr.bf16.mxu0 0
      %684 = vmatmul.mubr.bf16.gmra.mrb[0].mxu0 %v515
      %v685 = vpop.f32.mrb[0].mxu0
      %v686 = vadd.f32 0.0, %v685
      %v687 = vpop.f32.mrb[0].mxu0
      %v688 = vpop.f32.mrb[0].mxu0
      %v689 = vadd.f32 0.0, %v688
      %v690 = vpop.f32.mrb[0].mxu0
      %691 = vmatprep.mubr.bf16.mxu0 0
      %692 = vmatmul.mubr.bf16.gmra.mrb[0].mxu0 %v516
      %v693 = vpop.f32.mrb[0].mxu0
      %v694 = vadd.f32 0.0, %v693
      %v695 = vpop.f32.mrb[0].mxu0
      %v696 = vpop.f32.mrb[0].mxu0
      %v697 = vadd.f32 0.0, %v696
      %v698 = vpop.f32.mrb[0].mxu0
      %699 = vmatprep.mubr.bf16.mxu0 0
      %700 = vmatmul.mubr.bf16.gmra.mrb[0].mxu0 %v517
      %v701 = vpop.f32.mrb[0].mxu0
      %v702 = vadd.f32 0.0, %v701
      %v703 = vpop.f32.mrb[0].mxu0
      %v704 = vpop.f32.mrb[0].mxu0
      %v705 = vadd.f32 0.0, %v704
      %v706 = vpop.f32.mrb[0].mxu0
      %707 = vmatprep.mubr.bf16.mxu0 0
      %708 = vmatmul.mubr.bf16.gmra.mrb[0].mxu0 %v518
      %v709 = vpop.f32.mrb[0].mxu0
      %v710 = vadd.f32 0.0, %v709
      %v711 = vpop.f32.mrb[0].mxu0
      %v712 = vpop.f32.mrb[0].mxu0
      %v713 = vadd.f32 0.0, %v712
      %v714 = vpop.f32.mrb[0].mxu0
      %715 = vmatprep.mubr.bf16.mxu0 0
      %716 = vmatmul.mubr.bf16.gmra.mrb[0].mxu0 %v519
      %v717 = vpop.f32.mrb[0].mxu0
      %v718 = vadd.f32 0.0, %v717
      %v719 = vpop.f32.mrb[0].mxu0
      %v720 = vpop.f32.mrb[0].mxu0
      %v721 = vadd.f32 0.0, %v720
      %v722 = vpop.f32.mrb[0].mxu0
      %723 = vmatprep.mubr.bf16.mxu0 0
      %724 = vmatmul.mubr.bf16.gmra.mrb[0].mxu0 %v520
      %v725 = vpop.f32.mrb[0].mxu0
      %v726 = vadd.f32 0.0, %v725
      %v727 = vpop.f32.mrb[0].mxu0
      %v728 = vpop.f32.mrb[0].mxu0
      %v729 = vadd.f32 0.0, %v728
      %v730 = vpop.f32.mrb[0].mxu0
      %731 = vmatprep.mubr.bf16.mxu0 0
      %732 = vmatmul.mubr.bf16.gmra.mrb[0].mxu0 %v521
      %v733 = vpop.f32.mrb[0].mxu0
      %v734 = vadd.f32 0.0, %v733
      %v735 = vpop.f32.mrb[0].mxu0
      %v736 = vpop.f32.mrb[0].mxu0
      %v737 = vadd.f32 0.0, %v736
      %v738 = vpop.f32.mrb[0].mxu0
      %739 = vmatprep.mubr.bf16.mxu0 0
      %740 = vmatmul.mubr.bf16.gmra.mrb[0].mxu0 %v522
      %v741 = vpop.f32.mrb[0].mxu0
      %v742 = vadd.f32 0.0, %v741
      %v743 = vpop.f32.mrb[0].mxu0
      %v744 = vpop.f32.mrb[0].mxu0
      %v745 = vadd.f32 0.0, %v744
      %v746 = vpop.f32.mrb[0].mxu0
      %747 = vdwg.mxu0
      %v780 = vunpack.c.l.b16 %v361
      %v781 = vunpack.c.l.b16 %v362
      %v782 = vunpack.c.l.b16 %v363
      %v783 = vunpack.c.l.b16 %v364
      %v784 = vunpack.c.l.b16 %v365
      %v785 = vunpack.c.l.b16 %v366
      %v786 = vunpack.c.l.b16 %v367
      %v787 = vunpack.c.l.b16 %v368
      %v788 = vunpack.c.l.b16 %v369
      %v789 = vunpack.c.l.b16 %v370
      %v790 = vunpack.c.l.b16 %v371
      %v791 = vunpack.c.l.b16 %v372
      %v792 = vunpack.c.l.b16 %v373
      %v793 = vunpack.c.l.b16 %v374
      %v794 = vunpack.c.l.b16 %v375
      %v795 = vunpack.c.l.b16 %v376
      %v796 = vunpack.c.l.b16 %v377
      %v797 = vunpack.c.l.b16 %v378
      %v798 = vunpack.c.l.b16 %v379
      %v799 = vunpack.c.l.b16 %v380
      %v800 = vunpack.c.l.b16 %v381
      %v801 = vunpack.c.l.b16 %v382
      %v802 = vunpack.c.l.b16 %v383
      %v803 = vunpack.c.l.b16 %v384
      %v804 = vunpack.c.l.b16 %v385
      %v805 = vunpack.c.l.b16 %v386
      %v806 = vunpack.c.l.b16 %v387
      %v807 = vunpack.c.l.b16 %v388
      %v808 = vunpack.c.l.b16 %v389
      %v809 = vunpack.c.l.b16 %v390
      %v810 = vunpack.c.l.b16 %v391
      %v811 = vunpack.c.l.b16 %v392
      %v812 = vpack.c.b16 %v781, %v780
      %v813 = vpack.c.b16 %v783, %v782
      %v814 = vpack.c.b16 %v785, %v784
      %v815 = vpack.c.b16 %v787, %v786
      %v816 = vpack.c.b16 %v789, %v788
      %v817 = vpack.c.b16 %v791, %v790
      %v818 = vpack.c.b16 %v793, %v792
      %v819 = vpack.c.b16 %v795, %v794
      %v820 = vpack.c.b16 %v797, %v796
      %v821 = vpack.c.b16 %v799, %v798
      %v822 = vpack.c.b16 %v801, %v800
      %v823 = vpack.c.b16 %v803, %v802
      %v824 = vpack.c.b16 %v805, %v804
      %v825 = vpack.c.b16 %v807, %v806
      %v826 = vpack.c.b16 %v809, %v808
      %v827 = vpack.c.b16 %v811, %v810
      %v830 = vunpack.c.l.b16 %v393
      %v831 = vunpack.c.l.b16 %v394
      %v832 = vpack.c.b16 %v831, %v830
      %vm833 = vcmask 80896
      %v835 = vsel %vm833, %v812, 0
      %v838 = vsel %vm833, %v813, 0
      %v841 = vsel %vm833, %v814, 0
      %v844 = vsel %vm833, %v815, 0
      %v847 = vsel %vm833, %v816, 0
      %v850 = vsel %vm833, %v817, 0
      %v853 = vsel %vm833, %v818, 0
      %v856 = vsel %vm833, %v819, 0
      %v859 = vsel %vm833, %v820, 0
      %v862 = vsel %vm833, %v821, 0
      %v865 = vsel %vm833, %v822, 0
      %v868 = vsel %vm833, %v823, 0
      %v871 = vsel %vm833, %v824, 0
      %v874 = vsel %vm833, %v825, 0
      %v877 = vsel %vm833, %v826, 0
      %v880 = vsel %vm833, %v827, 0
      %vm882 = vcmask 1044480
      %v884 = vsel %vm882, %v832, 0
      %886 = vmatprep.subr.bf16.mxu0 0
      %887 = vmatpush1.bf16.msra.mxu0 %v884
      %888 = vmatprep.subr.bf16.mxu0 0
      %889 = vmatpush1.bf16.msra.mxu0 0
      %890 = vmatprep.subr.bf16.mxu0 0
      %891 = vmatpush1.bf16.msra.mxu0 0
      %892 = vmatprep.subr.bf16.mxu0 0
      %893 = vmatpush1.bf16.msra.mxu0 0
      %894 = vmatprep.subr.bf16.mxu0 0
      %895 = vmatpush1.bf16.msra.mxu0 0
      %896 = vmatprep.subr.bf16.mxu0 0
      %897 = vmatpush1.bf16.msra.mxu0 0
      %898 = vmatprep.subr.bf16.mxu0 0
      %899 = vmatpush1.bf16.msra.mxu0 0
      %900 = vmatprep.subr.bf16.mxu0 0
      %901 = vmatpush1.bf16.msra.mxu0 0
      %902 = vmatprep.subr.bf16.mxu0 0
      %903 = vmatpush1.bf16.msra.mxu0 0
      %904 = vmatprep.subr.bf16.mxu0 0
      %905 = vmatpush1.bf16.msra.mxu0 0
      %906 = vmatprep.subr.bf16.mxu0 0
      %907 = vmatpush1.bf16.msra.mxu0 0
      %908 = vmatprep.subr.bf16.mxu0 0
      %909 = vmatpush1.bf16.msra.mxu0 0
      %910 = vmatprep.subr.bf16.mxu0 0
      %911 = vmatpush1.bf16.msra.mxu0 0
      %912 = vmatprep.subr.bf16.mxu0 0
      %913 = vmatpush1.bf16.msra.mxu0 0
      %914 = vmatprep.subr.bf16.mxu0 0
      %915 = vmatpush1.bf16.msra.mxu0 0
      %916 = vmatprep.subr.bf16.mxu0 0
      %917 = vmatpush1.bf16.msra.mxu0 0
      %918 = vmatprep.mubr.bf16.mxu0 0
      %919 = vmatmul.mubr.bf16.gmra.mrb[0].mxu0 %v835
      %v920 = vpop.f32.mrb[0].mxu0
      %v921 = vadd.f32 %v622, %v920
      %v922 = vpop.f32.mrb[0].mxu0
      %v923 = vpop.f32.mrb[0].mxu0
      %v924 = vadd.f32 %v625, %v923
      %v925 = vpop.f32.mrb[0].mxu0
      %926 = vmatprep.mubr.bf16.mxu0 0
      %927 = vmatmul.mubr.bf16.gmra.mrb[0].mxu0 %v838
      %v928 = vpop.f32.mrb[0].mxu0
      %v929 = vadd.f32 %v630, %v928
      %v930 = vpop.f32.mrb[0].mxu0
      %v931 = vpop.f32.mrb[0].mxu0
      %v932 = vadd.f32 %v633, %v931
      %v933 = vpop.f32.mrb[0].mxu0
      %934 = vmatprep.mubr.bf16.mxu0 0
      %935 = vmatmul.mubr.bf16.gmra.mrb[0].mxu0 %v841
      %v936 = vpop.f32.mrb[0].mxu0
      %v937 = vadd.f32 %v638, %v936
      %v938 = vpop.f32.mrb[0].mxu0
      %v939 = vpop.f32.mrb[0].mxu0
      %v940 = vadd.f32 %v641, %v939
      %v941 = vpop.f32.mrb[0].mxu0
      %942 = vmatprep.mubr.bf16.mxu0 0
      %943 = vmatmul.mubr.bf16.gmra.mrb[0].mxu0 %v844
      %v944 = vpop.f32.mrb[0].mxu0
      %v945 = vadd.f32 %v646, %v944
      %v946 = vpop.f32.mrb[0].mxu0
      %v947 = vpop.f32.mrb[0].mxu0
      %v948 = vadd.f32 %v649, %v947
      %v949 = vpop.f32.mrb[0].mxu0
      %950 = vmatprep.mubr.bf16.mxu0 0
      %951 = vmatmul.mubr.bf16.gmra.mrb[0].mxu0 %v847
      %v952 = vpop.f32.mrb[0].mxu0
      %v953 = vadd.f32 %v654, %v952
      %v954 = vpop.f32.mrb[0].mxu0
      %v955 = vpop.f32.mrb[0].mxu0
      %v956 = vadd.f32 %v657, %v955
      %v957 = vpop.f32.mrb[0].mxu0
      %958 = vmatprep.mubr.bf16.mxu0 0
      %959 = vmatmul.mubr.bf16.gmra.mrb[0].mxu0 %v850
      %v960 = vpop.f32.mrb[0].mxu0
      %v961 = vadd.f32 %v662, %v960
      %v962 = vpop.f32.mrb[0].mxu0
      %v963 = vpop.f32.mrb[0].mxu0
      %v964 = vadd.f32 %v665, %v963
      %v965 = vpop.f32.mrb[0].mxu0
      %966 = vmatprep.mubr.bf16.mxu0 0
      %967 = vmatmul.mubr.bf16.gmra.mrb[0].mxu0 %v853
      %v968 = vpop.f32.mrb[0].mxu0
      %v969 = vadd.f32 %v670, %v968
      %v970 = vpop.f32.mrb[0].mxu0
      %v971 = vpop.f32.mrb[0].mxu0
      %v972 = vadd.f32 %v673, %v971
      %v973 = vpop.f32.mrb[0].mxu0
      %974 = vmatprep.mubr.bf16.mxu0 0
      %975 = vmatmul.mubr.bf16.gmra.mrb[0].mxu0 %v856
      %v976 = vpop.f32.mrb[0].mxu0
      %v977 = vadd.f32 %v678, %v976
      %v978 = vpop.f32.mrb[0].mxu0
      %v979 = vpop.f32.mrb[0].mxu0
      %v980 = vadd.f32 %v681, %v979
      %v981 = vpop.f32.mrb[0].mxu0
      %982 = vmatprep.mubr.bf16.mxu0 0
      %983 = vmatmul.mubr.bf16.gmra.mrb[0].mxu0 %v859
      %v984 = vpop.f32.mrb[0].mxu0
      %v985 = vadd.f32 %v686, %v984
      %v986 = vpop.f32.mrb[0].mxu0
      %v987 = vpop.f32.mrb[0].mxu0
      %v988 = vadd.f32 %v689, %v987
      %v989 = vpop.f32.mrb[0].mxu0
      %990 = vmatprep.mubr.bf16.mxu0 0
      %991 = vmatmul.mubr.bf16.gmra.mrb[0].mxu0 %v862
      %v992 = vpop.f32.mrb[0].mxu0
      %v993 = vadd.f32 %v694, %v992
      %v994 = vpop.f32.mrb[0].mxu0
      %v995 = vpop.f32.mrb[0].mxu0
      %v996 = vadd.f32 %v697, %v995
      %v997 = vpop.f32.mrb[0].mxu0
      %998 = vmatprep.mubr.bf16.mxu0 0
      %999 = vmatmul.mubr.bf16.gmra.mrb[0].mxu0 %v865
      %v1000 = vpop.f32.mrb[0].mxu0
      %v1001 = vadd.f32 %v702, %v1000
      %v1002 = vpop.f32.mrb[0].mxu0
      %v1003 = vpop.f32.mrb[0].mxu0
      %v1004 = vadd.f32 %v705, %v1003
      %v1005 = vpop.f32.mrb[0].mxu0
      %1006 = vmatprep.mubr.bf16.mxu0 0
      %1007 = vmatmul.mubr.bf16.gmra.mrb[0].mxu0 %v868
      %v1008 = vpop.f32.mrb[0].mxu0
      %v1009 = vadd.f32 %v710, %v1008
      %v1010 = vpop.f32.mrb[0].mxu0
      %v1011 = vpop.f32.mrb[0].mxu0
      %v1012 = vadd.f32 %v713, %v1011
      %v1013 = vpop.f32.mrb[0].mxu0
      %1014 = vmatprep.mubr.bf16.mxu0 0
      %1015 = vmatmul.mubr.bf16.gmra.mrb[0].mxu0 %v871
      %v1016 = vpop.f32.mrb[0].mxu0
      %v1017 = vadd.f32 %v718, %v1016
      %v1018 = vpop.f32.mrb[0].mxu0
      %v1019 = vpop.f32.mrb[0].mxu0
      %v1020 = vadd.f32 %v721, %v1019
      %v1021 = vpop.f32.mrb[0].mxu0
      %1022 = vmatprep.mubr.bf16.mxu0 0
      %1023 = vmatmul.mubr.bf16.gmra.mrb[0].mxu0 %v874
      %v1024 = vpop.f32.mrb[0].mxu0
      %v1025 = vadd.f32 %v726, %v1024
      %v1026 = vpop.f32.mrb[0].mxu0
      %v1027 = vpop.f32.mrb[0].mxu0
      %v1028 = vadd.f32 %v729, %v1027
      %v1029 = vpop.f32.mrb[0].mxu0
      %1030 = vmatprep.mubr.bf16.mxu0 0
      %1031 = vmatmul.mubr.bf16.gmra.mrb[0].mxu0 %v877
      %v1032 = vpop.f32.mrb[0].mxu0
      %v1033 = vadd.f32 %v734, %v1032
      %v1034 = vpop.f32.mrb[0].mxu0
      %v1035 = vpop.f32.mrb[0].mxu0
      %v1036 = vadd.f32 %v737, %v1035
      %v1037 = vpop.f32.mrb[0].mxu0
      %1038 = vmatprep.mubr.bf16.mxu0 0
      %1039 = vmatmul.mubr.bf16.gmra.mrb[0].mxu0 %v880
      %v1040 = vpop.f32.mrb[0].mxu0
      %v1041 = vadd.f32 %v742, %v1040
      %v1042 = vpop.f32.mrb[0].mxu0
      %v1043 = vpop.f32.mrb[0].mxu0
      %v1044 = vadd.f32 %v745, %v1043
      %v1045 = vpop.f32.mrb[0].mxu0
      %1046 = vdwg.mxu0
      %v1047 = vld [vmem:[%s4] sm:$0x1]
      %v1049 = vlaneseq
      %v1050 = vshrl.u32 %v1049, 7
      %v1051 = vsub.s32 0, %v1050
      %v1052 = vrot.slane %v1047, %v1051
      %v1054 = vadd.f32 %v921, %v1052
      %v1055 = vadd.f32 %v924, %v1052
      %v1056 = vadd.f32 %v929, %v1052
      %v1057 = vadd.f32 %v932, %v1052
      %v1058 = vadd.f32 %v937, %v1052
      %v1059 = vadd.f32 %v940, %v1052
      %v1060 = vadd.f32 %v945, %v1052
      %v1061 = vadd.f32 %v948, %v1052
      %v1062 = vadd.f32 %v953, %v1052
      %v1063 = vadd.f32 %v956, %v1052
      %v1064 = vadd.f32 %v961, %v1052
      %v1065 = vadd.f32 %v964, %v1052
      %v1066 = vadd.f32 %v969, %v1052
      %v1067 = vadd.f32 %v972, %v1052
      %v1068 = vadd.f32 %v977, %v1052
      %v1069 = vadd.f32 %v980, %v1052
      %v1070 = vadd.f32 %v985, %v1052
      %v1071 = vadd.f32 %v988, %v1052
      %v1072 = vadd.f32 %v993, %v1052
      %v1073 = vadd.f32 %v996, %v1052
      %v1074 = vadd.f32 %v1001, %v1052
      %v1075 = vadd.f32 %v1004, %v1052
      %v1076 = vadd.f32 %v1009, %v1052
      %v1077 = vadd.f32 %v1012, %v1052
      %v1078 = vadd.f32 %v1017, %v1052
      %v1079 = vadd.f32 %v1020, %v1052
      %v1080 = vadd.f32 %v1025, %v1052
      %v1081 = vadd.f32 %v1028, %v1052
      %v1082 = vadd.f32 %v1033, %v1052
      %v1083 = vadd.f32 %v1036, %v1052
      %v1084 = vadd.f32 %v1041, %v1052
      %v1085 = vadd.f32 %v1044, %v1052
      %v1086 = vmax.f32 %v1054, 0.0
      %v1087 = vmax.f32 %v1055, 0.0
      %v1088 = vmax.f32 %v1056, 0.0
      %v1089 = vmax.f32 %v1057, 0.0
      %v1090 = vmax.f32 %v1058, 0.0
      %v1091 = vmax.f32 %v1059, 0.0
      %v1092 = vmax.f32 %v1060, 0.0
      %v1093 = vmax.f32 %v1061, 0.0
      %v1094 = vmax.f32 %v1062, 0.0
      %v1095 = vmax.f32 %v1063, 0.0
      %v1096 = vmax.f32 %v1064, 0.0
      %v1097 = vmax.f32 %v1065, 0.0
      %v1098 = vmax.f32 %v1066, 0.0
      %v1099 = vmax.f32 %v1067, 0.0
      %v1100 = vmax.f32 %v1068, 0.0
      %v1101 = vmax.f32 %v1069, 0.0
      %v1102 = vmax.f32 %v1070, 0.0
      %v1103 = vmax.f32 %v1071, 0.0
      %v1104 = vmax.f32 %v1072, 0.0
      %v1105 = vmax.f32 %v1073, 0.0
      %v1106 = vmax.f32 %v1074, 0.0
      %v1107 = vmax.f32 %v1075, 0.0
      %v1108 = vmax.f32 %v1076, 0.0
      %v1109 = vmax.f32 %v1077, 0.0
      %v1110 = vmax.f32 %v1078, 0.0
      %v1111 = vmax.f32 %v1079, 0.0
      %v1112 = vmax.f32 %v1080, 0.0
      %v1113 = vmax.f32 %v1081, 0.0
      %v1114 = vmax.f32 %v1082, 0.0
      %v1115 = vmax.f32 %v1083, 0.0
      %v1116 = vmax.f32 %v1084, 0.0
      %v1117 = vmax.f32 %v1085, 0.0
      %v1118 = vpack.c.bf16 %v1087, %v1086
      %v1119 = vpack.c.bf16 %v1089, %v1088
      %v1120 = vpack.c.bf16 %v1091, %v1090
      %v1121 = vpack.c.bf16 %v1093, %v1092
      %v1122 = vpack.c.bf16 %v1095, %v1094
      %v1123 = vpack.c.bf16 %v1097, %v1096
      %v1124 = vpack.c.bf16 %v1099, %v1098
      %v1125 = vpack.c.bf16 %v1101, %v1100
      %v1126 = vpack.c.bf16 %v1103, %v1102
      %v1127 = vpack.c.bf16 %v1105, %v1104
      %v1128 = vpack.c.bf16 %v1107, %v1106
      %v1129 = vpack.c.bf16 %v1109, %v1108
      %v1130 = vpack.c.bf16 %v1111, %v1110
      %v1131 = vpack.c.bf16 %v1113, %v1112
      %v1132 = vpack.c.bf16 %v1115, %v1114
      %v1133 = vpack.c.bf16 %v1117, %v1116
      %v1134 = vld [vmem:[%s5] sm:$0xf]
      %v1135 = vld [vmem:[%s5 + $0x4] sm:$0xf]
      %v1136 = vld [vmem:[%s5 + $0x8] sm:$0xf]
      %v1137 = vld [vmem:[%s5 + $0xc] sm:$0xf]
      %v1138 = vld [vmem:[%s5 + $0x10] sm:$0xf]
      %v1139 = vld [vmem:[%s5 + $0x14] sm:$0xf]
      %v1140 = vld [vmem:[%s5 + $0x18] sm:$0xf]
      %v1141 = vld [vmem:[%s5 + $0x1c] sm:$0xf]
      %v1142 = vld [vmem:[%s5 + $0x20] sm:$0xf]
      %v1143 = vld [vmem:[%s5 + $0x24] sm:$0xf]
      %v1144 = vld [vmem:[%s5 + $0x28] sm:$0xf]
      %v1145 = vld [vmem:[%s5 + $0x2c] sm:$0xf]
      %v1146 = vld [vmem:[%s5 + $0x30] sm:$0xf]
      %v1147 = vld [vmem:[%s5 + $0x34] sm:$0xf]
      %v1148 = vld [vmem:[%s5 + $0x38] sm:$0xf]
      %v1149 = vld [vmem:[%s5 + $0x3c] sm:$0xf]
      %v1150 = vld [vmem:[%s6] sm:$0x1]
      %v1152 = vlaneseq
      %v1153 = vshrl.u32 %v1152, 7
      %v1154 = vsub.s32 0, %v1153
      %v1155 = vrot.slane %v1150, %v1154
      %v1173 = vunpack.c.l.b16 %v1134
      %v1174 = vunpack.c.l.b16 %v1135
      %v1175 = vunpack.c.l.b16 %v1136
      %v1176 = vunpack.c.l.b16 %v1137
      %v1177 = vunpack.c.l.b16 %v1138
      %v1178 = vunpack.c.l.b16 %v1139
      %v1179 = vunpack.c.l.b16 %v1140
      %v1180 = vunpack.c.l.b16 %v1141
      %v1181 = vunpack.c.l.b16 %v1142
      %v1182 = vunpack.c.l.b16 %v1143
      %v1183 = vunpack.c.l.b16 %v1144
      %v1184 = vunpack.c.l.b16 %v1145
      %v1185 = vunpack.c.l.b16 %v1146
      %v1186 = vunpack.c.l.b16 %v1147
      %v1187 = vunpack.c.l.b16 %v1148
      %v1188 = vunpack.c.l.b16 %v1149
      %v1189 = vpack.c.b16 %v1174, %v1173
      %v1190 = vpack.c.b16 %v1176, %v1175
      %v1191 = vpack.c.b16 %v1178, %v1177
      %v1192 = vpack.c.b16 %v1180, %v1179
      %v1193 = vpack.c.b16 %v1182, %v1181
      %v1194 = vpack.c.b16 %v1184, %v1183
      %v1195 = vpack.c.b16 %v1186, %v1185
      %v1196 = vpack.c.b16 %v1188, %v1187
      %1205 = vmatprep.subr.bf16.mxu0 0
      %1206 = vmatpush1.bf16.msra.mxu0 %v1189
      %1207 = vmatprep.subr.bf16.mxu0 0
      %1208 = vmatpush1.bf16.msra.mxu0 %v1190
      %1209 = vmatprep.subr.bf16.mxu0 0
      %1210 = vmatpush1.bf16.msra.mxu0 %v1191
      %1211 = vmatprep.subr.bf16.mxu0 0
      %1212 = vmatpush1.bf16.msra.mxu0 %v1192
      %1213 = vmatprep.subr.bf16.mxu0 0
      %1214 = vmatpush1.bf16.msra.mxu0 %v1193
      %1215 = vmatprep.subr.bf16.mxu0 0
      %1216 = vmatpush1.bf16.msra.mxu0 %v1194
      %1217 = vmatprep.subr.bf16.mxu0 0
      %1218 = vmatpush1.bf16.msra.mxu0 %v1195
      %1219 = vmatprep.subr.bf16.mxu0 0
      %1220 = vmatpush1.bf16.msra.mxu0 %v1196
      %1221 = vmatprep.subr.bf16.mxu0 0
      %1222 = vmatpush1.bf16.msra.mxu0 0
      %1223 = vmatprep.subr.bf16.mxu0 0
      %1224 = vmatpush1.bf16.msra.mxu0 0
      %1225 = vmatprep.subr.bf16.mxu0 0
      %1226 = vmatpush1.bf16.msra.mxu0 0
      %1227 = vmatprep.subr.bf16.mxu0 0
      %1228 = vmatpush1.bf16.msra.mxu0 0
      %1229 = vmatprep.subr.bf16.mxu0 0
      %1230 = vmatpush1.bf16.msra.mxu0 0
      %1231 = vmatprep.subr.bf16.mxu0 0
      %1232 = vmatpush1.bf16.msra.mxu0 0
      %1233 = vmatprep.subr.bf16.mxu0 0
      %1234 = vmatpush1.bf16.msra.mxu0 0
      %1235 = vmatprep.subr.bf16.mxu0 0
      %1236 = vmatpush1.bf16.msra.mxu0 0
      %1237 = vmatprep.mubr.bf16.mxu0 0
      %1238 = vmatmul.mubr.bf16.gmra.mrb[0].mxu0 %v1118
      %v1239 = vpop.f32.mrb[0].mxu0
      %v1240 = vadd.f32 %v1155, %v1239
      %v1241 = vpop.f32.mrb[0].mxu0
      %v1242 = vpop.f32.mrb[0].mxu0
      %v1243 = vadd.f32 %v1155, %v1242
      %v1244 = vpop.f32.mrb[0].mxu0
      %1245 = vmatprep.mubr.bf16.mxu0 0
      %1246 = vmatmul.mubr.bf16.gmra.mrb[0].mxu0 %v1119
      %v1247 = vpop.f32.mrb[0].mxu0
      %v1248 = vadd.f32 %v1155, %v1247
      %v1249 = vpop.f32.mrb[0].mxu0
      %v1250 = vpop.f32.mrb[0].mxu0
      %v1251 = vadd.f32 %v1155, %v1250
      %v1252 = vpop.f32.mrb[0].mxu0
      %1253 = vmatprep.mubr.bf16.mxu0 0
      %1254 = vmatmul.mubr.bf16.gmra.mrb[0].mxu0 %v1120
      %v1255 = vpop.f32.mrb[0].mxu0
      %v1256 = vadd.f32 %v1155, %v1255
      %v1257 = vpop.f32.mrb[0].mxu0
      %v1258 = vpop.f32.mrb[0].mxu0
      %v1259 = vadd.f32 %v1155, %v1258
      %v1260 = vpop.f32.mrb[0].mxu0
      %1261 = vmatprep.mubr.bf16.mxu0 0
      %1262 = vmatmul.mubr.bf16.gmra.mrb[0].mxu0 %v1121
      %v1263 = vpop.f32.mrb[0].mxu0
      %v1264 = vadd.f32 %v1155, %v1263
      %v1265 = vpop.f32.mrb[0].mxu0
      %v1266 = vpop.f32.mrb[0].mxu0
      %v1267 = vadd.f32 %v1155, %v1266
      %v1268 = vpop.f32.mrb[0].mxu0
      %1269 = vmatprep.mubr.bf16.mxu0 0
      %1270 = vmatmul.mubr.bf16.gmra.mrb[0].mxu0 %v1122
      %v1271 = vpop.f32.mrb[0].mxu0
      %v1272 = vadd.f32 %v1155, %v1271
      %v1273 = vpop.f32.mrb[0].mxu0
      %v1274 = vpop.f32.mrb[0].mxu0
      %v1275 = vadd.f32 %v1155, %v1274
      %v1276 = vpop.f32.mrb[0].mxu0
      %1277 = vmatprep.mubr.bf16.mxu0 0
      %1278 = vmatmul.mubr.bf16.gmra.mrb[0].mxu0 %v1123
      %v1279 = vpop.f32.mrb[0].mxu0
      %v1280 = vadd.f32 %v1155, %v1279
      %v1281 = vpop.f32.mrb[0].mxu0
      %v1282 = vpop.f32.mrb[0].mxu0
      %v1283 = vadd.f32 %v1155, %v1282
      %v1284 = vpop.f32.mrb[0].mxu0
      %1285 = vmatprep.mubr.bf16.mxu0 0
      %1286 = vmatmul.mubr.bf16.gmra.mrb[0].mxu0 %v1124
      %v1287 = vpop.f32.mrb[0].mxu0
      %v1288 = vadd.f32 %v1155, %v1287
      %v1289 = vpop.f32.mrb[0].mxu0
      %v1290 = vpop.f32.mrb[0].mxu0
      %v1291 = vadd.f32 %v1155, %v1290
      %v1292 = vpop.f32.mrb[0].mxu0
      %1293 = vmatprep.mubr.bf16.mxu0 0
      %1294 = vmatmul.mubr.bf16.gmra.mrb[0].mxu0 %v1125
      %v1295 = vpop.f32.mrb[0].mxu0
      %v1296 = vadd.f32 %v1155, %v1295
      %v1297 = vpop.f32.mrb[0].mxu0
      %v1298 = vpop.f32.mrb[0].mxu0
      %v1299 = vadd.f32 %v1155, %v1298
      %v1300 = vpop.f32.mrb[0].mxu0
      %1301 = vmatprep.mubr.bf16.mxu0 0
      %1302 = vmatmul.mubr.bf16.gmra.mrb[0].mxu0 %v1126
      %v1303 = vpop.f32.mrb[0].mxu0
      %v1304 = vadd.f32 %v1155, %v1303
      %v1305 = vpop.f32.mrb[0].mxu0
      %v1306 = vpop.f32.mrb[0].mxu0
      %v1307 = vadd.f32 %v1155, %v1306
      %v1308 = vpop.f32.mrb[0].mxu0
      %1309 = vmatprep.mubr.bf16.mxu0 0
      %1310 = vmatmul.mubr.bf16.gmra.mrb[0].mxu0 %v1127
      %v1311 = vpop.f32.mrb[0].mxu0
      %v1312 = vadd.f32 %v1155, %v1311
      %v1313 = vpop.f32.mrb[0].mxu0
      %v1314 = vpop.f32.mrb[0].mxu0
      %v1315 = vadd.f32 %v1155, %v1314
      %v1316 = vpop.f32.mrb[0].mxu0
      %1317 = vmatprep.mubr.bf16.mxu0 0
      %1318 = vmatmul.mubr.bf16.gmra.mrb[0].mxu0 %v1128
      %v1319 = vpop.f32.mrb[0].mxu0
      %v1320 = vadd.f32 %v1155, %v1319
      %v1321 = vpop.f32.mrb[0].mxu0
      %v1322 = vpop.f32.mrb[0].mxu0
      %v1323 = vadd.f32 %v1155, %v1322
      %v1324 = vpop.f32.mrb[0].mxu0
      %1325 = vmatprep.mubr.bf16.mxu0 0
      %1326 = vmatmul.mubr.bf16.gmra.mrb[0].mxu0 %v1129
      %v1327 = vpop.f32.mrb[0].mxu0
      %v1328 = vadd.f32 %v1155, %v1327
      %v1329 = vpop.f32.mrb[0].mxu0
      %v1330 = vpop.f32.mrb[0].mxu0
      %v1331 = vadd.f32 %v1155, %v1330
      %v1332 = vpop.f32.mrb[0].mxu0
      %1333 = vmatprep.mubr.bf16.mxu0 0
      %1334 = vmatmul.mubr.bf16.gmra.mrb[0].mxu0 %v1130
      %v1335 = vpop.f32.mrb[0].mxu0
      %v1336 = vadd.f32 %v1155, %v1335
      %v1337 = vpop.f32.mrb[0].mxu0
      %v1338 = vpop.f32.mrb[0].mxu0
      %v1339 = vadd.f32 %v1155, %v1338
      %v1340 = vpop.f32.mrb[0].mxu0
      %1341 = vmatprep.mubr.bf16.mxu0 0
      %1342 = vmatmul.mubr.bf16.gmra.mrb[0].mxu0 %v1131
      %v1343 = vpop.f32.mrb[0].mxu0
      %v1344 = vadd.f32 %v1155, %v1343
      %v1345 = vpop.f32.mrb[0].mxu0
      %v1346 = vpop.f32.mrb[0].mxu0
      %v1347 = vadd.f32 %v1155, %v1346
      %v1348 = vpop.f32.mrb[0].mxu0
      %1349 = vmatprep.mubr.bf16.mxu0 0
      %1350 = vmatmul.mubr.bf16.gmra.mrb[0].mxu0 %v1132
      %v1351 = vpop.f32.mrb[0].mxu0
      %v1352 = vadd.f32 %v1155, %v1351
      %v1353 = vpop.f32.mrb[0].mxu0
      %v1354 = vpop.f32.mrb[0].mxu0
      %v1355 = vadd.f32 %v1155, %v1354
      %v1356 = vpop.f32.mrb[0].mxu0
      %1357 = vmatprep.mubr.bf16.mxu0 0
      %1358 = vmatmul.mubr.bf16.gmra.mrb[0].mxu0 %v1133
      %v1359 = vpop.f32.mrb[0].mxu0
      %v1360 = vadd.f32 %v1155, %v1359
      %v1361 = vpop.f32.mrb[0].mxu0
      %v1362 = vpop.f32.mrb[0].mxu0
      %v1363 = vadd.f32 %v1155, %v1362
      %v1364 = vpop.f32.mrb[0].mxu0
      %1365 = vdwg.mxu0
      %v1366 = vmax.f32 %v1240, 0.0
      %v1367 = vmax.f32 %v1243, 0.0
      %v1368 = vmax.f32 %v1248, 0.0
      %v1369 = vmax.f32 %v1251, 0.0
      %v1370 = vmax.f32 %v1256, 0.0
      %v1371 = vmax.f32 %v1259, 0.0
      %v1372 = vmax.f32 %v1264, 0.0
      %v1373 = vmax.f32 %v1267, 0.0
      %v1374 = vmax.f32 %v1272, 0.0
      %v1375 = vmax.f32 %v1275, 0.0
      %v1376 = vmax.f32 %v1280, 0.0
      %v1377 = vmax.f32 %v1283, 0.0
      %v1378 = vmax.f32 %v1288, 0.0
      %v1379 = vmax.f32 %v1291, 0.0
      %v1380 = vmax.f32 %v1296, 0.0
      %v1381 = vmax.f32 %v1299, 0.0
      %v1382 = vmax.f32 %v1304, 0.0
      %v1383 = vmax.f32 %v1307, 0.0
      %v1384 = vmax.f32 %v1312, 0.0
      %v1385 = vmax.f32 %v1315, 0.0
      %v1386 = vmax.f32 %v1320, 0.0
      %v1387 = vmax.f32 %v1323, 0.0
      %v1388 = vmax.f32 %v1328, 0.0
      %v1389 = vmax.f32 %v1331, 0.0
      %v1390 = vmax.f32 %v1336, 0.0
      %v1391 = vmax.f32 %v1339, 0.0
      %v1392 = vmax.f32 %v1344, 0.0
      %v1393 = vmax.f32 %v1347, 0.0
      %v1394 = vmax.f32 %v1352, 0.0
      %v1395 = vmax.f32 %v1355, 0.0
      %v1396 = vmax.f32 %v1360, 0.0
      %v1397 = vmax.f32 %v1363, 0.0
      %v1398 = vpack.c.bf16 %v1367, %v1366
      %v1399 = vpack.c.bf16 %v1369, %v1368
      %v1400 = vpack.c.bf16 %v1371, %v1370
      %v1401 = vpack.c.bf16 %v1373, %v1372
      %v1402 = vpack.c.bf16 %v1375, %v1374
      %v1403 = vpack.c.bf16 %v1377, %v1376
      %v1404 = vpack.c.bf16 %v1379, %v1378
      %v1405 = vpack.c.bf16 %v1381, %v1380
      %v1406 = vpack.c.bf16 %v1383, %v1382
      %v1407 = vpack.c.bf16 %v1385, %v1384
      %v1408 = vpack.c.bf16 %v1387, %v1386
      %v1409 = vpack.c.bf16 %v1389, %v1388
      %v1410 = vpack.c.bf16 %v1391, %v1390
      %v1411 = vpack.c.bf16 %v1393, %v1392
      %v1412 = vpack.c.bf16 %v1395, %v1394
      %v1413 = vpack.c.bf16 %v1397, %v1396
      %v1414 = vld [vmem:[%s7] sm:$0xff]
      %v1415 = vld [vmem:[%s7 + $0x8] sm:$0xff]
      %v1416 = vld [vmem:[%s7 + $0x10] sm:$0xff]
      %v1417 = vld [vmem:[%s7 + $0x18] sm:$0xff]
      %v1418 = vld [vmem:[%s7 + $0x20] sm:$0xff]
      %v1419 = vld [vmem:[%s7 + $0x28] sm:$0xff]
      %v1420 = vld [vmem:[%s7 + $0x30] sm:$0xff]
      %v1421 = vld [vmem:[%s7 + $0x38] sm:$0xff]
      %v1422 = vld [vmem:[%s7 + $0x40] sm:$0xff]
      %v1423 = vld [vmem:[%s7 + $0x48] sm:$0xff]
      %v1424 = vld [vmem:[%s7 + $0x50] sm:$0xff]
      %v1425 = vld [vmem:[%s7 + $0x58] sm:$0xff]
      %v1426 = vld [vmem:[%s7 + $0x60] sm:$0xff]
      %v1427 = vld [vmem:[%s7 + $0x68] sm:$0xff]
      %v1428 = vld [vmem:[%s7 + $0x70] sm:$0xff]
      %v1429 = vld [vmem:[%s7 + $0x78] sm:$0xff]
      %v1430 = vld [vmem:[%s8] sm:$0x3]
      %v1432 = vlaneseq
      %v1433 = vshrl.u32 %v1432, 7
      %v1434 = vsub.s32 0, %v1433
      %v1435 = vrot.slane %v1430, %v1434
      %v1436 = vlaneseq
      %v1437 = vshrl.u32 %v1436, 7
      %v1438 = vsub.s32 1, %v1437
      %v1439 = vrot.slane %v1430, %v1438
      %v1458 = vunpack.c.l.b16 %v1414
      %v1459 = vunpack.c.h.b16 %v1414
      %v1460 = vunpack.c.l.b16 %v1415
      %v1461 = vunpack.c.h.b16 %v1415
      %v1462 = vunpack.c.l.b16 %v1416
      %v1463 = vunpack.c.h.b16 %v1416
      %v1464 = vunpack.c.l.b16 %v1417
      %v1465 = vunpack.c.h.b16 %v1417
      %v1466 = vunpack.c.l.b16 %v1418
      %v1467 = vunpack.c.h.b16 %v1418
      %v1468 = vunpack.c.l.b16 %v1419
      %v1469 = vunpack.c.h.b16 %v1419
      %v1470 = vunpack.c.l.b16 %v1420
      %v1471 = vunpack.c.h.b16 %v1420
      %v1472 = vunpack.c.l.b16 %v1421
      %v1473 = vunpack.c.h.b16 %v1421
      %v1474 = vunpack.c.l.b16 %v1422
      %v1475 = vunpack.c.h.b16 %v1422
      %v1476 = vunpack.c.l.b16 %v1423
      %v1477 = vunpack.c.h.b16 %v1423
      %v1478 = vunpack.c.l.b16 %v1424
      %v1479 = vunpack.c.h.b16 %v1424
      %v1480 = vunpack.c.l.b16 %v1425
      %v1481 = vunpack.c.h.b16 %v1425
      %v1482 = vunpack.c.l.b16 %v1426
      %v1483 = vunpack.c.h.b16 %v1426
      %v1484 = vunpack.c.l.b16 %v1427
      %v1485 = vunpack.c.h.b16 %v1427
      %v1486 = vunpack.c.l.b16 %v1428
      %v1487 = vunpack.c.h.b16 %v1428
      %v1488 = vunpack.c.l.b16 %v1429
      %v1489 = vunpack.c.h.b16 %v1429
      %v1490 = vpack.c.b16 %v1460, %v1458
      %v1491 = vpack.c.b16 %v1461, %v1459
      %v1492 = vpack.c.b16 %v1464, %v1462
      %v1493 = vpack.c.b16 %v1465, %v1463
      %v1494 = vpack.c.b16 %v1468, %v1466
      %v1495 = vpack.c.b16 %v1469, %v1467
      %v1496 = vpack.c.b16 %v1472, %v1470
      %v1497 = vpack.c.b16 %v1473, %v1471
      %v1498 = vpack.c.b16 %v1476, %v1474
      %v1499 = vpack.c.b16 %v1477, %v1475
      %v1500 = vpack.c.b16 %v1480, %v1478
      %v1501 = vpack.c.b16 %v1481, %v1479
      %v1502 = vpack.c.b16 %v1484, %v1482
      %v1503 = vpack.c.b16 %v1485, %v1483
      %v1504 = vpack.c.b16 %v1488, %v1486
      %v1505 = vpack.c.b16 %v1489, %v1487
      %1522 = vmatprep.subr.bf16.mxu0 %v1491
      %1523 = vmatpush1.bf16.msra.mxu0 %v1490
      %1524 = vmatprep.subr.bf16.mxu0 %v1493
      %1525 = vmatpush1.bf16.msra.mxu0 %v1492
      %1526 = vmatprep.subr.bf16.mxu0 %v1495
      %1527 = vmatpush1.bf16.msra.mxu0 %v1494
      %1528 = vmatprep.subr.bf16.mxu0 %v1497
      %1529 = vmatpush1.bf16.msra.mxu0 %v1496
      %1530 = vmatprep.subr.bf16.mxu0 %v1499
      %1531 = vmatpush1.bf16.msra.mxu0 %v1498
      %1532 = vmatprep.subr.bf16.mxu0 %v1501
      %1533 = vmatpush1.bf16.msra.mxu0 %v1500
      %1534 = vmatprep.subr.bf16.mxu0 %v1503
      %1535 = vmatpush1.bf16.msra.mxu0 %v1502
      %1536 = vmatprep.subr.bf16.mxu0 %v1505
      %1537 = vmatpush1.bf16.msra.mxu0 %v1504
      %1538 = vmatprep.subr.bf16.mxu0 0
      %1539 = vmatpush1.bf16.msra.mxu0 0
      %1540 = vmatprep.subr.bf16.mxu0 0
      %1541 = vmatpush1.bf16.msra.mxu0 0
      %1542 = vmatprep.subr.bf16.mxu0 0
      %1543 = vmatpush1.bf16.msra.mxu0 0
      %1544 = vmatprep.subr.bf16.mxu0 0
      %1545 = vmatpush1.bf16.msra.mxu0 0
      %1546 = vmatprep.subr.bf16.mxu0 0
      %1547 = vmatpush1.bf16.msra.mxu0 0
      %1548 = vmatprep.subr.bf16.mxu0 0
      %1549 = vmatpush1.bf16.msra.mxu0 0
      %1550 = vmatprep.subr.bf16.mxu0 0
      %1551 = vmatpush1.bf16.msra.mxu0 0
      %1552 = vmatprep.subr.bf16.mxu0 0
      %1553 = vmatpush1.bf16.msra.mxu0 0
      %1554 = vmatprep.mubr.bf16.mxu0 0
      %1555 = vmatmul.mubr.bf16.gmra.mrb[0].mxu0 %v1398
      %v1556 = vpop.f32.mrb[0].mxu0
      %v1557 = vadd.f32 %v1435, %v1556
      %v1558 = vpop.f32.mrb[0].mxu0
      %v1559 = vadd.f32 %v1439, %v1558
      %v1560 = vpop.f32.mrb[0].mxu0
      %v1561 = vadd.f32 %v1435, %v1560
      %v1562 = vpop.f32.mrb[0].mxu0
      %v1563 = vadd.f32 %v1439, %v1562
      %1564 = vmatprep.mubr.bf16.mxu0 0
      %1565 = vmatmul.mubr.bf16.gmra.mrb[0].mxu0 %v1399
      %v1566 = vpop.f32.mrb[0].mxu0
      %v1567 = vadd.f32 %v1435, %v1566
      %v1568 = vpop.f32.mrb[0].mxu0
      %v1569 = vadd.f32 %v1439, %v1568
      %v1570 = vpop.f32.mrb[0].mxu0
      %v1571 = vadd.f32 %v1435, %v1570
      %v1572 = vpop.f32.mrb[0].mxu0
      %v1573 = vadd.f32 %v1439, %v1572
      %1574 = vmatprep.mubr.bf16.mxu0 0
      %1575 = vmatmul.mubr.bf16.gmra.mrb[0].mxu0 %v1400
      %v1576 = vpop.f32.mrb[0].mxu0
      %v1577 = vadd.f32 %v1435, %v1576
      %v1578 = vpop.f32.mrb[0].mxu0
      %v1579 = vadd.f32 %v1439, %v1578
      %v1580 = vpop.f32.mrb[0].mxu0
      %v1581 = vadd.f32 %v1435, %v1580
      %v1582 = vpop.f32.mrb[0].mxu0
      %v1583 = vadd.f32 %v1439, %v1582
      %1584 = vmatprep.mubr.bf16.mxu0 0
      %1585 = vmatmul.mubr.bf16.gmra.mrb[0].mxu0 %v1401
      %v1586 = vpop.f32.mrb[0].mxu0
      %v1587 = vadd.f32 %v1435, %v1586
      %v1588 = vpop.f32.mrb[0].mxu0
      %v1589 = vadd.f32 %v1439, %v1588
      %v1590 = vpop.f32.mrb[0].mxu0
      %v1591 = vadd.f32 %v1435, %v1590
      %v1592 = vpop.f32.mrb[0].mxu0
      %v1593 = vadd.f32 %v1439, %v1592
      %1594 = vmatprep.mubr.bf16.mxu0 0
      %1595 = vmatmul.mubr.bf16.gmra.mrb[0].mxu0 %v1402
      %v1596 = vpop.f32.mrb[0].mxu0
      %v1597 = vadd.f32 %v1435, %v1596
      %v1598 = vpop.f32.mrb[0].mxu0
      %v1599 = vadd.f32 %v1439, %v1598
      %v1600 = vpop.f32.mrb[0].mxu0
      %v1601 = vadd.f32 %v1435, %v1600
      %v1602 = vpop.f32.mrb[0].mxu0
      %v1603 = vadd.f32 %v1439, %v1602
      %1604 = vmatprep.mubr.bf16.mxu0 0
      %1605 = vmatmul.mubr.bf16.gmra.mrb[0].mxu0 %v1403
      %v1606 = vpop.f32.mrb[0].mxu0
      %v1607 = vadd.f32 %v1435, %v1606
      %v1608 = vpop.f32.mrb[0].mxu0
      %v1609 = vadd.f32 %v1439, %v1608
      %v1610 = vpop.f32.mrb[0].mxu0
      %v1611 = vadd.f32 %v1435, %v1610
      %v1612 = vpop.f32.mrb[0].mxu0
      %v1613 = vadd.f32 %v1439, %v1612
      %1614 = vmatprep.mubr.bf16.mxu0 0
      %1615 = vmatmul.mubr.bf16.gmra.mrb[0].mxu0 %v1404
      %v1616 = vpop.f32.mrb[0].mxu0
      %v1617 = vadd.f32 %v1435, %v1616
      %v1618 = vpop.f32.mrb[0].mxu0
      %v1619 = vadd.f32 %v1439, %v1618
      %v1620 = vpop.f32.mrb[0].mxu0
      %v1621 = vadd.f32 %v1435, %v1620
      %v1622 = vpop.f32.mrb[0].mxu0
      %v1623 = vadd.f32 %v1439, %v1622
      %1624 = vmatprep.mubr.bf16.mxu0 0
      %1625 = vmatmul.mubr.bf16.gmra.mrb[0].mxu0 %v1405
      %v1626 = vpop.f32.mrb[0].mxu0
      %v1627 = vadd.f32 %v1435, %v1626
      %v1628 = vpop.f32.mrb[0].mxu0
      %v1629 = vadd.f32 %v1439, %v1628
      %v1630 = vpop.f32.mrb[0].mxu0
      %v1631 = vadd.f32 %v1435, %v1630
      %v1632 = vpop.f32.mrb[0].mxu0
      %v1633 = vadd.f32 %v1439, %v1632
      %1634 = vmatprep.mubr.bf16.mxu0 0
      %1635 = vmatmul.mubr.bf16.gmra.mrb[0].mxu0 %v1406
      %v1636 = vpop.f32.mrb[0].mxu0
      %v1637 = vadd.f32 %v1435, %v1636
      %v1638 = vpop.f32.mrb[0].mxu0
      %v1639 = vadd.f32 %v1439, %v1638
      %v1640 = vpop.f32.mrb[0].mxu0
      %v1641 = vadd.f32 %v1435, %v1640
      %v1642 = vpop.f32.mrb[0].mxu0
      %v1643 = vadd.f32 %v1439, %v1642
      %1644 = vmatprep.mubr.bf16.mxu0 0
      %1645 = vmatmul.mubr.bf16.gmra.mrb[0].mxu0 %v1407
      %v1646 = vpop.f32.mrb[0].mxu0
      %v1647 = vadd.f32 %v1435, %v1646
      %v1648 = vpop.f32.mrb[0].mxu0
      %v1649 = vadd.f32 %v1439, %v1648
      %v1650 = vpop.f32.mrb[0].mxu0
      %v1651 = vadd.f32 %v1435, %v1650
      %v1652 = vpop.f32.mrb[0].mxu0
      %v1653 = vadd.f32 %v1439, %v1652
      %1654 = vmatprep.mubr.bf16.mxu0 0
      %1655 = vmatmul.mubr.bf16.gmra.mrb[0].mxu0 %v1408
      %v1656 = vpop.f32.mrb[0].mxu0
      %v1657 = vadd.f32 %v1435, %v1656
      %v1658 = vpop.f32.mrb[0].mxu0
      %v1659 = vadd.f32 %v1439, %v1658
      %v1660 = vpop.f32.mrb[0].mxu0
      %v1661 = vadd.f32 %v1435, %v1660
      %v1662 = vpop.f32.mrb[0].mxu0
      %v1663 = vadd.f32 %v1439, %v1662
      %1664 = vmatprep.mubr.bf16.mxu0 0
      %1665 = vmatmul.mubr.bf16.gmra.mrb[0].mxu0 %v1409
      %v1666 = vpop.f32.mrb[0].mxu0
      %v1667 = vadd.f32 %v1435, %v1666
      %v1668 = vpop.f32.mrb[0].mxu0
      %v1669 = vadd.f32 %v1439, %v1668
      %v1670 = vpop.f32.mrb[0].mxu0
      %v1671 = vadd.f32 %v1435, %v1670
      %v1672 = vpop.f32.mrb[0].mxu0
      %v1673 = vadd.f32 %v1439, %v1672
      %1674 = vmatprep.mubr.bf16.mxu0 0
      %1675 = vmatmul.mubr.bf16.gmra.mrb[0].mxu0 %v1410
      %v1676 = vpop.f32.mrb[0].mxu0
      %v1677 = vadd.f32 %v1435, %v1676
      %v1678 = vpop.f32.mrb[0].mxu0
      %v1679 = vadd.f32 %v1439, %v1678
      %v1680 = vpop.f32.mrb[0].mxu0
      %v1681 = vadd.f32 %v1435, %v1680
      %v1682 = vpop.f32.mrb[0].mxu0
      %v1683 = vadd.f32 %v1439, %v1682
      %1684 = vmatprep.mubr.bf16.mxu0 0
      %1685 = vmatmul.mubr.bf16.gmra.mrb[0].mxu0 %v1411
      %v1686 = vpop.f32.mrb[0].mxu0
      %v1687 = vadd.f32 %v1435, %v1686
      %v1688 = vpop.f32.mrb[0].mxu0
      %v1689 = vadd.f32 %v1439, %v1688
      %v1690 = vpop.f32.mrb[0].mxu0
      %v1691 = vadd.f32 %v1435, %v1690
      %v1692 = vpop.f32.mrb[0].mxu0
      %v1693 = vadd.f32 %v1439, %v1692
      %1694 = vmatprep.mubr.bf16.mxu0 0
      %1695 = vmatmul.mubr.bf16.gmra.mrb[0].mxu0 %v1412
      %v1696 = vpop.f32.mrb[0].mxu0
      %v1697 = vadd.f32 %v1435, %v1696
      %v1698 = vpop.f32.mrb[0].mxu0
      %v1699 = vadd.f32 %v1439, %v1698
      %v1700 = vpop.f32.mrb[0].mxu0
      %v1701 = vadd.f32 %v1435, %v1700
      %v1702 = vpop.f32.mrb[0].mxu0
      %v1703 = vadd.f32 %v1439, %v1702
      %1704 = vmatprep.mubr.bf16.mxu0 0
      %1705 = vmatmul.mubr.bf16.gmra.mrb[0].mxu0 %v1413
      %v1706 = vpop.f32.mrb[0].mxu0
      %v1707 = vadd.f32 %v1435, %v1706
      %v1708 = vpop.f32.mrb[0].mxu0
      %v1709 = vadd.f32 %v1439, %v1708
      %v1710 = vpop.f32.mrb[0].mxu0
      %v1711 = vadd.f32 %v1435, %v1710
      %v1712 = vpop.f32.mrb[0].mxu0
      %v1713 = vadd.f32 %v1439, %v1712
      %1714 = vdwg.mxu0
      %v1715 = vmax.f32 %v1557, 0.0
      %v1716 = vmax.f32 %v1559, 0.0
      %v1717 = vmax.f32 %v1561, 0.0
      %v1718 = vmax.f32 %v1563, 0.0
      %v1719 = vmax.f32 %v1567, 0.0
      %v1720 = vmax.f32 %v1569, 0.0
      %v1721 = vmax.f32 %v1571, 0.0
      %v1722 = vmax.f32 %v1573, 0.0
      %v1723 = vmax.f32 %v1577, 0.0
      %v1724 = vmax.f32 %v1579, 0.0
      %v1725 = vmax.f32 %v1581, 0.0
      %v1726 = vmax.f32 %v1583, 0.0
      %v1727 = vmax.f32 %v1587, 0.0
      %v1728 = vmax.f32 %v1589, 0.0
      %v1729 = vmax.f32 %v1591, 0.0
      %v1730 = vmax.f32 %v1593, 0.0
      %v1731 = vmax.f32 %v1597, 0.0
      %v1732 = vmax.f32 %v1599, 0.0
      %v1733 = vmax.f32 %v1601, 0.0
      %v1734 = vmax.f32 %v1603, 0.0
      %v1735 = vmax.f32 %v1607, 0.0
      %v1736 = vmax.f32 %v1609, 0.0
      %v1737 = vmax.f32 %v1611, 0.0
      %v1738 = vmax.f32 %v1613, 0.0
      %v1739 = vmax.f32 %v1617, 0.0
      %v1740 = vmax.f32 %v1619, 0.0
      %v1741 = vmax.f32 %v1621, 0.0
      %v1742 = vmax.f32 %v1623, 0.0
      %v1743 = vmax.f32 %v1627, 0.0
      %v1744 = vmax.f32 %v1629, 0.0
      %v1745 = vmax.f32 %v1631, 0.0
      %v1746 = vmax.f32 %v1633, 0.0
      %v1747 = vmax.f32 %v1637, 0.0
      %v1748 = vmax.f32 %v1639, 0.0
      %v1749 = vmax.f32 %v1641, 0.0
      %v1750 = vmax.f32 %v1643, 0.0
      %v1751 = vmax.f32 %v1647, 0.0
      %v1752 = vmax.f32 %v1649, 0.0
      %v1753 = vmax.f32 %v1651, 0.0
      %v1754 = vmax.f32 %v1653, 0.0
      %v1755 = vmax.f32 %v1657, 0.0
      %v1756 = vmax.f32 %v1659, 0.0
      %v1757 = vmax.f32 %v1661, 0.0
      %v1758 = vmax.f32 %v1663, 0.0
      %v1759 = vmax.f32 %v1667, 0.0
      %v1760 = vmax.f32 %v1669, 0.0
      %v1761 = vmax.f32 %v1671, 0.0
      %v1762 = vmax.f32 %v1673, 0.0
      %v1763 = vmax.f32 %v1677, 0.0
      %v1764 = vmax.f32 %v1679, 0.0
      %v1765 = vmax.f32 %v1681, 0.0
      %v1766 = vmax.f32 %v1683, 0.0
      %v1767 = vmax.f32 %v1687, 0.0
      %v1768 = vmax.f32 %v1689, 0.0
      %v1769 = vmax.f32 %v1691, 0.0
      %v1770 = vmax.f32 %v1693, 0.0
      %v1771 = vmax.f32 %v1697, 0.0
      %v1772 = vmax.f32 %v1699, 0.0
      %v1773 = vmax.f32 %v1701, 0.0
      %v1774 = vmax.f32 %v1703, 0.0
      %v1775 = vmax.f32 %v1707, 0.0
      %v1776 = vmax.f32 %v1709, 0.0
      %v1777 = vmax.f32 %v1711, 0.0
      %v1778 = vmax.f32 %v1713, 0.0
      %v1779 = vmax.f32 %v1715, %v1717
      %v1780 = vrot.slane %v1779, 4
      %v1781 = vmax.f32 %v1779, %v1780
      %v1782 = vrot.slane %v1781, 2
      %v1783 = vmax.f32 %v1781, %v1782
      %v1784 = vrot.slane %v1783, 1
      %v1785 = vmax.f32 %v1783, %v1784
      %v1786 = vmax.f32 %v1716, %v1718
      %v1787 = vrot.slane %v1786, 4
      %v1788 = vmax.f32 %v1786, %v1787
      %v1789 = vrot.slane %v1788, 2
      %v1790 = vmax.f32 %v1788, %v1789
      %v1791 = vrot.slane %v1790, 1
      %v1792 = vmax.f32 %v1790, %v1791
      %v1793 = vmax.f32 %v1719, %v1721
      %v1794 = vrot.slane %v1793, 4
      %v1795 = vmax.f32 %v1793, %v1794
      %v1796 = vrot.slane %v1795, 2
      %v1797 = vmax.f32 %v1795, %v1796
      %v1798 = vrot.slane %v1797, 1
      %v1799 = vmax.f32 %v1797, %v1798
      %v1800 = vmax.f32 %v1720, %v1722
      %v1801 = vrot.slane %v1800, 4
      %v1802 = vmax.f32 %v1800, %v1801
      %v1803 = vrot.slane %v1802, 2
      %v1804 = vmax.f32 %v1802, %v1803
      %v1805 = vrot.slane %v1804, 1
      %v1806 = vmax.f32 %v1804, %v1805
      %v1807 = vmax.f32 %v1723, %v1725
      %v1808 = vrot.slane %v1807, 4
      %v1809 = vmax.f32 %v1807, %v1808
      %v1810 = vrot.slane %v1809, 2
      %v1811 = vmax.f32 %v1809, %v1810
      %v1812 = vrot.slane %v1811, 1
      %v1813 = vmax.f32 %v1811, %v1812
      %v1814 = vmax.f32 %v1724, %v1726
      %v1815 = vrot.slane %v1814, 4
      %v1816 = vmax.f32 %v1814, %v1815
      %v1817 = vrot.slane %v1816, 2
      %v1818 = vmax.f32 %v1816, %v1817
      %v1819 = vrot.slane %v1818, 1
      %v1820 = vmax.f32 %v1818, %v1819
      %v1821 = vmax.f32 %v1727, %v1729
      %v1822 = vrot.slane %v1821, 4
      %v1823 = vmax.f32 %v1821, %v1822
      %v1824 = vrot.slane %v1823, 2
      %v1825 = vmax.f32 %v1823, %v1824
      %v1826 = vrot.slane %v1825, 1
      %v1827 = vmax.f32 %v1825, %v1826
      %v1828 = vmax.f32 %v1728, %v1730
      %v1829 = vrot.slane %v1828, 4
      %v1830 = vmax.f32 %v1828, %v1829
      %v1831 = vrot.slane %v1830, 2
      %v1832 = vmax.f32 %v1830, %v1831
      %v1833 = vrot.slane %v1832, 1
      %v1834 = vmax.f32 %v1832, %v1833
      %v1835 = vmax.f32 %v1731, %v1733
      %v1836 = vrot.slane %v1835, 4
      %v1837 = vmax.f32 %v1835, %v1836
      %v1838 = vrot.slane %v1837, 2
      %v1839 = vmax.f32 %v1837, %v1838
      %v1840 = vrot.slane %v1839, 1
      %v1841 = vmax.f32 %v1839, %v1840
      %v1842 = vmax.f32 %v1732, %v1734
      %v1843 = vrot.slane %v1842, 4
      %v1844 = vmax.f32 %v1842, %v1843
      %v1845 = vrot.slane %v1844, 2
      %v1846 = vmax.f32 %v1844, %v1845
      %v1847 = vrot.slane %v1846, 1
      %v1848 = vmax.f32 %v1846, %v1847
      %v1849 = vmax.f32 %v1735, %v1737
      %v1850 = vrot.slane %v1849, 4
      %v1851 = vmax.f32 %v1849, %v1850
      %v1852 = vrot.slane %v1851, 2
      %v1853 = vmax.f32 %v1851, %v1852
      %v1854 = vrot.slane %v1853, 1
      %v1855 = vmax.f32 %v1853, %v1854
      %v1856 = vmax.f32 %v1736, %v1738
      %v1857 = vrot.slane %v1856, 4
      %v1858 = vmax.f32 %v1856, %v1857
      %v1859 = vrot.slane %v1858, 2
      %v1860 = vmax.f32 %v1858, %v1859
      %v1861 = vrot.slane %v1860, 1
      %v1862 = vmax.f32 %v1860, %v1861
      %v1863 = vmax.f32 %v1739, %v1741
      %v1864 = vrot.slane %v1863, 4
      %v1865 = vmax.f32 %v1863, %v1864
      %v1866 = vrot.slane %v1865, 2
      %v1867 = vmax.f32 %v1865, %v1866
      %v1868 = vrot.slane %v1867, 1
      %v1869 = vmax.f32 %v1867, %v1868
      %v1870 = vmax.f32 %v1740, %v1742
      %v1871 = vrot.slane %v1870, 4
      %v1872 = vmax.f32 %v1870, %v1871
      %v1873 = vrot.slane %v1872, 2
      %v1874 = vmax.f32 %v1872, %v1873
      %v1875 = vrot.slane %v1874, 1
      %v1876 = vmax.f32 %v1874, %v1875
      %v1877 = vmax.f32 %v1743, %v1745
      %v1878 = vrot.slane %v1877, 4
      %v1879 = vmax.f32 %v1877, %v1878
      %v1880 = vrot.slane %v1879, 2
      %v1881 = vmax.f32 %v1879, %v1880
      %v1882 = vrot.slane %v1881, 1
      %v1883 = vmax.f32 %v1881, %v1882
      %v1884 = vmax.f32 %v1744, %v1746
      %v1885 = vrot.slane %v1884, 4
      %v1886 = vmax.f32 %v1884, %v1885
      %v1887 = vrot.slane %v1886, 2
      %v1888 = vmax.f32 %v1886, %v1887
      %v1889 = vrot.slane %v1888, 1
      %v1890 = vmax.f32 %v1888, %v1889
      %v1891 = vmax.f32 %v1747, %v1749
      %v1892 = vrot.slane %v1891, 4
      %v1893 = vmax.f32 %v1891, %v1892
      %v1894 = vrot.slane %v1893, 2
      %v1895 = vmax.f32 %v1893, %v1894
      %v1896 = vrot.slane %v1895, 1
      %v1897 = vmax.f32 %v1895, %v1896
      %v1898 = vmax.f32 %v1748, %v1750
      %v1899 = vrot.slane %v1898, 4
      %v1900 = vmax.f32 %v1898, %v1899
      %v1901 = vrot.slane %v1900, 2
      %v1902 = vmax.f32 %v1900, %v1901
      %v1903 = vrot.slane %v1902, 1
      %v1904 = vmax.f32 %v1902, %v1903
      %v1905 = vmax.f32 %v1751, %v1753
      %v1906 = vrot.slane %v1905, 4
      %v1907 = vmax.f32 %v1905, %v1906
      %v1908 = vrot.slane %v1907, 2
      %v1909 = vmax.f32 %v1907, %v1908
      %v1910 = vrot.slane %v1909, 1
      %v1911 = vmax.f32 %v1909, %v1910
      %v1912 = vmax.f32 %v1752, %v1754
      %v1913 = vrot.slane %v1912, 4
      %v1914 = vmax.f32 %v1912, %v1913
      %v1915 = vrot.slane %v1914, 2
      %v1916 = vmax.f32 %v1914, %v1915
      %v1917 = vrot.slane %v1916, 1
      %v1918 = vmax.f32 %v1916, %v1917
      %v1919 = vmax.f32 %v1755, %v1757
      %v1920 = vrot.slane %v1919, 4
      %v1921 = vmax.f32 %v1919, %v1920
      %v1922 = vrot.slane %v1921, 2
      %v1923 = vmax.f32 %v1921, %v1922
      %v1924 = vrot.slane %v1923, 1
      %v1925 = vmax.f32 %v1923, %v1924
      %v1926 = vmax.f32 %v1756, %v1758
      %v1927 = vrot.slane %v1926, 4
      %v1928 = vmax.f32 %v1926, %v1927
      %v1929 = vrot.slane %v1928, 2
      %v1930 = vmax.f32 %v1928, %v1929
      %v1931 = vrot.slane %v1930, 1
      %v1932 = vmax.f32 %v1930, %v1931
      %v1933 = vmax.f32 %v1759, %v1761
      %v1934 = vrot.slane %v1933, 4
      %v1935 = vmax.f32 %v1933, %v1934
      %v1936 = vrot.slane %v1935, 2
      %v1937 = vmax.f32 %v1935, %v1936
      %v1938 = vrot.slane %v1937, 1
      %v1939 = vmax.f32 %v1937, %v1938
      %v1940 = vmax.f32 %v1760, %v1762
      %v1941 = vrot.slane %v1940, 4
      %v1942 = vmax.f32 %v1940, %v1941
      %v1943 = vrot.slane %v1942, 2
      %v1944 = vmax.f32 %v1942, %v1943
      %v1945 = vrot.slane %v1944, 1
      %v1946 = vmax.f32 %v1944, %v1945
      %v1947 = vmax.f32 %v1763, %v1765
      %v1948 = vrot.slane %v1947, 4
      %v1949 = vmax.f32 %v1947, %v1948
      %v1950 = vrot.slane %v1949, 2
      %v1951 = vmax.f32 %v1949, %v1950
      %v1952 = vrot.slane %v1951, 1
      %v1953 = vmax.f32 %v1951, %v1952
      %v1954 = vmax.f32 %v1764, %v1766
      %v1955 = vrot.slane %v1954, 4
      %v1956 = vmax.f32 %v1954, %v1955
      %v1957 = vrot.slane %v1956, 2
      %v1958 = vmax.f32 %v1956, %v1957
      %v1959 = vrot.slane %v1958, 1
      %v1960 = vmax.f32 %v1958, %v1959
      %v1961 = vmax.f32 %v1767, %v1769
      %v1962 = vrot.slane %v1961, 4
      %v1963 = vmax.f32 %v1961, %v1962
      %v1964 = vrot.slane %v1963, 2
      %v1965 = vmax.f32 %v1963, %v1964
      %v1966 = vrot.slane %v1965, 1
      %v1967 = vmax.f32 %v1965, %v1966
      %v1968 = vmax.f32 %v1768, %v1770
      %v1969 = vrot.slane %v1968, 4
      %v1970 = vmax.f32 %v1968, %v1969
      %v1971 = vrot.slane %v1970, 2
      %v1972 = vmax.f32 %v1970, %v1971
      %v1973 = vrot.slane %v1972, 1
      %v1974 = vmax.f32 %v1972, %v1973
      %v1975 = vmax.f32 %v1771, %v1773
      %v1976 = vrot.slane %v1975, 4
      %v1977 = vmax.f32 %v1975, %v1976
      %v1978 = vrot.slane %v1977, 2
      %v1979 = vmax.f32 %v1977, %v1978
      %v1980 = vrot.slane %v1979, 1
      %v1981 = vmax.f32 %v1979, %v1980
      %v1982 = vmax.f32 %v1772, %v1774
      %v1983 = vrot.slane %v1982, 4
      %v1984 = vmax.f32 %v1982, %v1983
      %v1985 = vrot.slane %v1984, 2
      %v1986 = vmax.f32 %v1984, %v1985
      %v1987 = vrot.slane %v1986, 1
      %v1988 = vmax.f32 %v1986, %v1987
      %v1989 = vmax.f32 %v1775, %v1777
      %v1990 = vrot.slane %v1989, 4
      %v1991 = vmax.f32 %v1989, %v1990
      %v1992 = vrot.slane %v1991, 2
      %v1993 = vmax.f32 %v1991, %v1992
      %v1994 = vrot.slane %v1993, 1
      %v1995 = vmax.f32 %v1993, %v1994
      %v1996 = vmax.f32 %v1776, %v1778
      %v1997 = vrot.slane %v1996, 4
      %v1998 = vmax.f32 %v1996, %v1997
      %v1999 = vrot.slane %v1998, 2
      %v2000 = vmax.f32 %v1998, %v1999
      %v2001 = vrot.slane %v2000, 1
      %v2002 = vmax.f32 %v2000, %v2001
      %v2003 = vpack.c.bf16 %v1785, %v1785
      %v2004 = vpack.c.bf16 %v1792, %v1792
      %v2005 = vpack.c.bf16 %v1799, %v1799
      %v2006 = vpack.c.bf16 %v1806, %v1806
      %v2007 = vpack.c.bf16 %v1813, %v1813
      %v2008 = vpack.c.bf16 %v1820, %v1820
      %v2009 = vpack.c.bf16 %v1827, %v1827
      %v2010 = vpack.c.bf16 %v1834, %v1834
      %v2011 = vpack.c.bf16 %v1841, %v1841
      %v2012 = vpack.c.bf16 %v1848, %v1848
      %v2013 = vpack.c.bf16 %v1855, %v1855
      %v2014 = vpack.c.bf16 %v1862, %v1862
      %v2015 = vpack.c.bf16 %v1869, %v1869
      %v2016 = vpack.c.bf16 %v1876, %v1876
      %v2017 = vpack.c.bf16 %v1883, %v1883
      %v2018 = vpack.c.bf16 %v1890, %v1890
      %v2019 = vpack.c.bf16 %v1897, %v1897
      %v2020 = vpack.c.bf16 %v1904, %v1904
      %v2021 = vpack.c.bf16 %v1911, %v1911
      %v2022 = vpack.c.bf16 %v1918, %v1918
      %v2023 = vpack.c.bf16 %v1925, %v1925
      %v2024 = vpack.c.bf16 %v1932, %v1932
      %v2025 = vpack.c.bf16 %v1939, %v1939
      %v2026 = vpack.c.bf16 %v1946, %v1946
      %v2027 = vpack.c.bf16 %v1953, %v1953
      %v2028 = vpack.c.bf16 %v1960, %v1960
      %v2029 = vpack.c.bf16 %v1967, %v1967
      %v2030 = vpack.c.bf16 %v1974, %v1974
      %v2031 = vpack.c.bf16 %v1981, %v1981
      %v2032 = vpack.c.bf16 %v1988, %v1988
      %v2033 = vpack.c.bf16 %v1995, %v1995
      %v2034 = vpack.c.bf16 %v2002, %v2002
      %v2067 = vunpack.c.l.b16 %v2003
      %v2068 = vunpack.c.l.b16 %v2004
      %v2069 = vunpack.c.l.b16 %v2005
      %v2070 = vunpack.c.l.b16 %v2006
      %v2071 = vunpack.c.l.b16 %v2007
      %v2072 = vunpack.c.l.b16 %v2008
      %v2073 = vunpack.c.l.b16 %v2009
      %v2074 = vunpack.c.l.b16 %v2010
      %v2075 = vunpack.c.l.b16 %v2011
      %v2076 = vunpack.c.l.b16 %v2012
      %v2077 = vunpack.c.l.b16 %v2013
      %v2078 = vunpack.c.l.b16 %v2014
      %v2079 = vunpack.c.l.b16 %v2015
      %v2080 = vunpack.c.l.b16 %v2016
      %v2081 = vunpack.c.l.b16 %v2017
      %v2082 = vunpack.c.l.b16 %v2018
      %v2083 = vunpack.c.l.b16 %v2019
      %v2084 = vunpack.c.l.b16 %v2020
      %v2085 = vunpack.c.l.b16 %v2021
      %v2086 = vunpack.c.l.b16 %v2022
      %v2087 = vunpack.c.l.b16 %v2023
      %v2088 = vunpack.c.l.b16 %v2024
      %v2089 = vunpack.c.l.b16 %v2025
      %v2090 = vunpack.c.l.b16 %v2026
      %v2091 = vunpack.c.l.b16 %v2027
      %v2092 = vunpack.c.l.b16 %v2028
      %v2093 = vunpack.c.l.b16 %v2029
      %v2094 = vunpack.c.l.b16 %v2030
      %v2095 = vunpack.c.l.b16 %v2031
      %v2096 = vunpack.c.l.b16 %v2032
      %v2097 = vunpack.c.l.b16 %v2033
      %v2098 = vunpack.c.l.b16 %v2034
      %v2099 = vpack.c.b16 %v2068, %v2067
      %v2100 = vpack.c.b16 %v2070, %v2069
      %v2101 = vpack.c.b16 %v2072, %v2071
      %v2102 = vpack.c.b16 %v2074, %v2073
      %v2103 = vpack.c.b16 %v2076, %v2075
      %v2104 = vpack.c.b16 %v2078, %v2077
      %v2105 = vpack.c.b16 %v2080, %v2079
      %v2106 = vpack.c.b16 %v2082, %v2081
      %v2107 = vpack.c.b16 %v2084, %v2083
      %v2108 = vpack.c.b16 %v2086, %v2085
      %v2109 = vpack.c.b16 %v2088, %v2087
      %v2110 = vpack.c.b16 %v2090, %v2089
      %v2111 = vpack.c.b16 %v2092, %v2091
      %v2112 = vpack.c.b16 %v2094, %v2093
      %v2113 = vpack.c.b16 %v2096, %v2095
      %v2114 = vpack.c.b16 %v2098, %v2097
      %v2115 = vunpack.c.l.b16 %v2099
      %v2116 = vunpack.c.h.b16 %v2099
      %v2117 = vunpack.c.l.b16 %v2100
      %v2118 = vunpack.c.h.b16 %v2100
      %v2119 = vunpack.c.l.b16 %v2101
      %v2120 = vunpack.c.h.b16 %v2101
      %v2121 = vunpack.c.l.b16 %v2102
      %v2122 = vunpack.c.h.b16 %v2102
      %v2123 = vunpack.c.l.b16 %v2103
      %v2124 = vunpack.c.h.b16 %v2103
      %v2125 = vunpack.c.l.b16 %v2104
      %v2126 = vunpack.c.h.b16 %v2104
      %v2127 = vunpack.c.l.b16 %v2105
      %v2128 = vunpack.c.h.b16 %v2105
      %v2129 = vunpack.c.l.b16 %v2106
      %v2130 = vunpack.c.h.b16 %v2106
      %v2131 = vunpack.c.l.b16 %v2107
      %v2132 = vunpack.c.h.b16 %v2107
      %v2133 = vunpack.c.l.b16 %v2108
      %v2134 = vunpack.c.h.b16 %v2108
      %v2135 = vunpack.c.l.b16 %v2109
      %v2136 = vunpack.c.h.b16 %v2109
      %v2137 = vunpack.c.l.b16 %v2110
      %v2138 = vunpack.c.h.b16 %v2110
      %v2139 = vunpack.c.l.b16 %v2111
      %v2140 = vunpack.c.h.b16 %v2111
      %v2141 = vunpack.c.l.b16 %v2112
      %v2142 = vunpack.c.h.b16 %v2112
      %v2143 = vunpack.c.l.b16 %v2113
      %v2144 = vunpack.c.h.b16 %v2113
      %v2145 = vunpack.c.l.b16 %v2114
      %v2146 = vunpack.c.h.b16 %v2114
      %vm2147 = vcmask 1041409
      %v2148 = vsel %vm2147, %v2117, %v2115
      %vm2149 = vcmask 1042434
      %v2150 = vsel %vm2149, %v2119, %v2148
      %vm2151 = vcmask 1043459
      %v2152 = vsel %vm2151, %v2121, %v2150
      %vm2153 = vcmask 1044484
      %v2154 = vsel %vm2153, %v2123, %v2152
      %vm2155 = vcmask 1045509
      %v2156 = vsel %vm2155, %v2125, %v2154
      %vm2157 = vcmask 1046534
      %v2158 = vsel %vm2157, %v2127, %v2156
      %vm2159 = vcmask 1047559
      %v2160 = vsel %vm2159, %v2129, %v2158
      %v2161 = vsel %vm2147, %v2118, %v2116
      %v2162 = vsel %vm2149, %v2120, %v2161
      %v2163 = vsel %vm2151, %v2122, %v2162
      %v2164 = vsel %vm2153, %v2124, %v2163
      %v2165 = vsel %vm2155, %v2126, %v2164
      %v2166 = vsel %vm2157, %v2128, %v2165
      %v2167 = vsel %vm2159, %v2130, %v2166
      %v2168 = vsel %vm2147, %v2133, %v2131
      %v2169 = vsel %vm2149, %v2135, %v2168
      %v2170 = vsel %vm2151, %v2137, %v2169
      %v2171 = vsel %vm2153, %v2139, %v2170
      %v2172 = vsel %vm2155, %v2141, %v2171
      %v2173 = vsel %vm2157, %v2143, %v2172
      %v2174 = vsel %vm2159, %v2145, %v2173
      %v2175 = vsel %vm2147, %v2134, %v2132
      %v2176 = vsel %vm2149, %v2136, %v2175
      %v2177 = vsel %vm2151, %v2138, %v2176
      %v2178 = vsel %vm2153, %v2140, %v2177
      %v2179 = vsel %vm2155, %v2142, %v2178
      %v2180 = vsel %vm2157, %v2144, %v2179
      %v2181 = vsel %vm2159, %v2146, %v2180
      %v2182 = vpack.c.b16 %v2167, %v2160
      %v2183 = vpack.c.b16 %v2181, %v2174
      %2186 = vst [vmem:[%s358] sm:$0xff] %v2182
      %2187 = vst [vmem:[%s358 + $0x8] sm:$0xff] %v2183
      %s2188 = smul.u32 2, %s20
      %p2189 = scmp.lt.s32.totalorder %s2188, 3
      %s2190 = scalar_select %p2189, %s2188, 3
      %s2191 = smul.addr %s2190, 2
      %s2192 = smul.addr %s2191, 4
      %s2193 = scalar_lea.vmem %s9, %s2192
      // Predicated region
      $region57: #{_lambda_.5} parent=55 // pred_check
        %p2194 = pneg %p237
      $region58: #{_lambda_.5} parent=55 // pred_check_branch
        %2196 = sbr.rel (%p2194) target = $region60
      $region59: #{_lambda_.5} parent=55 // pred_region
        %s2197 = smul.u32 2, %s20
      $region60: #{_lambda_.5} parent=55 // pred_fallthru
        _
    $region56: #{_lambda_.5} parent=5 // pred_fallthru
      _
    %p2198 = scmp.le.s32.totalorder 2, %s15
    // Predicated region
    $region61: #{_lambda_.5} parent=5 // pred_check
      %p2199 = pneg %p2198
    $region62: #{_lambda_.5} parent=5 // pred_check_branch
      %2201 = sbr.rel (%p2199) target = $region64
    $region63: #{_lambda_.5} parent=5 // pred_region
      %s2202 = ssub.s32 %s15, 2
      // Predicated region
      $region65: #{_lambda_.5} parent=63 // pred_check
        %p2203 = pneg %p243
      $region66: #{_lambda_.5} parent=63 // pred_check_branch
        %2205 = sbr.rel (%p2203) target = $region68
      $region67: #{_lambda_.5} parent=63 // pred_region
        %s2206 = smul.u32 2, %s21
        %p2207 = scmp.lt.s32.totalorder %s2206, 3
        %s2208 = scalar_select %p2207, %s2206, 3
        %s2209 = smul.addr %s2208, 2
        %s2210 = smul.addr %s2209, 4
        %s2211 = scalar_lea.vmem %s9, %s2210
      $region68: #{_lambda_.5} parent=63 // pred_fallthru
        _
    $region64: #{_lambda_.5} parent=5 // pred_fallthru
      _
  $region6: #{_lambda_.5} parent=0 // loop_footer
    %s19 = sadd.s32 1, %s15
  $region7: #{_lambda_.5} parent=0 // loop_footer_branch
    %14 = sbr.rel target = $region3
  $region8: #{_lambda_.5} parent=0 // loop_exit
    _

// kernel: _lambda_.6
$region0: #{_lambda_.6}
  #allocation0 [shape = 'u32[]', space=smem, size = 0x4, offset = 0x4, fixed_abs, tag = 'smem constant byte address 0x4 - core index']
  #allocation1 [shape = 'u32[144,128]{1,0:T(1,128)}', space=vmem, size = 0x12000, scoped, tag = 'internal scratch']
  %s0 = inlined_call_operand.vmem [shape: bf16[32,10], index: 0, kind: input, shape index: {}]
  %s1 = inlined_call_operand.vmem [shape: bf16[32,256], index: 1, kind: input, shape index: {}]
  %s2 = inlined_call_operand.vmem [shape: bf16[10,256], index: 2, kind: input, shape index: {}]
  %s3 = inlined_call_operand.vmem [shape: bf16[256,256], index: 3, kind: input, shape index: {}]
  %s4 = inlined_call_operand.vmem [shape: f32[1,256], index: 4, kind: input, shape index: {}]
  %s5 = inlined_call_operand.vmem [shape: bf16[256,512], index: 5, kind: input, shape index: {}]
  %s6 = inlined_call_operand.vmem [shape: f32[1,512], index: 6, kind: input, shape index: {}]
  %s7 = inlined_call_operand.vmem [shape: bf16[512,1024], index: 7, kind: input, shape index: {}]
  %s8 = inlined_call_operand.vmem [shape: f32[1,1024], index: 8, kind: input, shape index: {}]
  %s9 = inlined_call_operand.vmem [shape: bf16[2,1024], index: 9, kind: output, shape index: {}]
  %s10 = sld [smem:[#allocation0]]
  $region46: #{_lambda_.6} parent=0
    _
  %s12 = ssub.s32 1, %s10
  %s13 = scalar_select 0, %s12, %s10
  // Predicated region
  $region2: #{_lambda_.6} parent=0 // pred_check
    _
  $region3: #{_lambda_.6} parent=0 // pred_check_branch
    %15 = sbr.rel (0) target = $region5
  $region4: #{_lambda_.6} parent=0 // pred_region
    _
  $region5: #{_lambda_.6} parent=0 // pred_fallthru
    _
  // Predicated region
  $region6: #{_lambda_.6} parent=0 // pred_check
    _
  $region7: #{_lambda_.6} parent=0 // pred_check_branch
    %17 = sbr.rel (0) target = $region9
  $region8: #{_lambda_.6} parent=0 // pred_region
    _
  $region9: #{_lambda_.6} parent=0 // pred_fallthru
    _
  // Predicated region
  $region10: #{_lambda_.6} parent=0 // pred_check
    _
  $region11: #{_lambda_.6} parent=0 // pred_check_branch
    %19 = sbr.rel (0) target = $region13
  $region12: #{_lambda_.6} parent=0 // pred_region
    _
  $region13: #{_lambda_.6} parent=0 // pred_fallthru
    _
  // Predicated region
  $region14: #{_lambda_.6} parent=0 // pred_check
    _
  $region15: #{_lambda_.6} parent=0 // pred_check_branch
    %21 = sbr.rel (0) target = $region17
  $region16: #{_lambda_.6} parent=0 // pred_region
    _
  $region17: #{_lambda_.6} parent=0 // pred_fallthru
    _
  // Predicated region
  $region18: #{_lambda_.6} parent=0 // pred_check
    _
  $region19: #{_lambda_.6} parent=0 // pred_check_branch
    %23 = sbr.rel (0) target = $region21
  $region20: #{_lambda_.6} parent=0 // pred_region
    _
  $region21: #{_lambda_.6} parent=0 // pred_fallthru
    _
  // Predicated region
  $region22: #{_lambda_.6} parent=0 // pred_check
    _
  $region23: #{_lambda_.6} parent=0 // pred_check_branch
    %25 = sbr.rel (0) target = $region25
  $region24: #{_lambda_.6} parent=0 // pred_region
    _
  $region25: #{_lambda_.6} parent=0 // pred_fallthru
    _
  // Predicated region
  $region26: #{_lambda_.6} parent=0 // pred_check
    _
  $region27: #{_lambda_.6} parent=0 // pred_check_branch
    %27 = sbr.rel (0) target = $region29
  $region28: #{_lambda_.6} parent=0 // pred_region
    _
  $region29: #{_lambda_.6} parent=0 // pred_fallthru
    _
  // Predicated region
  $region30: #{_lambda_.6} parent=0 // pred_check
    _
  $region31: #{_lambda_.6} parent=0 // pred_check_branch
    %29 = sbr.rel (0) target = $region33
  $region32: #{_lambda_.6} parent=0 // pred_region
    _
  $region33: #{_lambda_.6} parent=0 // pred_fallthru
    _
  // Predicated region
  $region34: #{_lambda_.6} parent=0 // pred_check
    _
  $region35: #{_lambda_.6} parent=0 // pred_check_branch
    %31 = sbr.rel (0) target = $region37
  $region36: #{_lambda_.6} parent=0 // pred_region
    _
  $region37: #{_lambda_.6} parent=0 // pred_fallthru
    _
  %v33 = vld [vmem:[%s0] sm:$0xf]
  %v34 = vld [vmem:[%s0 + $0x4] sm:$0xf]
  %v35 = vld [vmem:[%s0 + $0x8] sm:$0xf]
  %v36 = vld [vmem:[%s0 + $0xc] sm:$0xf]
  %v37 = vld [vmem:[%s2] sm:$0xff]
  %v38 = vld [vmem:[%s2 + $0x8] sm:$0x11]
  %v39 = vld [vmem:[%s1] sm:$0xff]
  %v40 = vld [vmem:[%s1 + $0x8] sm:$0xff]
  %v41 = vld [vmem:[%s1 + $0x10] sm:$0xff]
  %v42 = vld [vmem:[%s1 + $0x18] sm:$0xff]
  %v43 = vld [vmem:[%s3] sm:$0xff]
  %v44 = vld [vmem:[%s3 + $0x8] sm:$0xff]
  %v45 = vld [vmem:[%s3 + $0x10] sm:$0xff]
  %v46 = vld [vmem:[%s3 + $0x18] sm:$0xff]
  %v47 = vld [vmem:[%s3 + $0x20] sm:$0xff]
  %v48 = vld [vmem:[%s3 + $0x28] sm:$0xff]
  %v49 = vld [vmem:[%s3 + $0x30] sm:$0xff]
  %v50 = vld [vmem:[%s3 + $0x38] sm:$0xff]
  %v51 = vld [vmem:[%s3 + $0x40] sm:$0xff]
  %v52 = vld [vmem:[%s3 + $0x48] sm:$0xff]
  %v53 = vld [vmem:[%s3 + $0x50] sm:$0xff]
  %v54 = vld [vmem:[%s3 + $0x58] sm:$0xff]
  %v55 = vld [vmem:[%s3 + $0x60] sm:$0xff]
  %v56 = vld [vmem:[%s3 + $0x68] sm:$0xff]
  %v57 = vld [vmem:[%s3 + $0x70] sm:$0xff]
  %v58 = vld [vmem:[%s3 + $0x78] sm:$0xff]
  %v59 = vld [vmem:[%s3 + $0x80] sm:$0xff]
  %v60 = vld [vmem:[%s3 + $0x88] sm:$0xff]
  %v61 = vld [vmem:[%s3 + $0x90] sm:$0xff]
  %v62 = vld [vmem:[%s3 + $0x98] sm:$0xff]
  %v63 = vld [vmem:[%s3 + $0xa0] sm:$0xff]
  %v64 = vld [vmem:[%s3 + $0xa8] sm:$0xff]
  %v65 = vld [vmem:[%s3 + $0xb0] sm:$0xff]
  %v66 = vld [vmem:[%s3 + $0xb8] sm:$0xff]
  %v67 = vld [vmem:[%s3 + $0xc0] sm:$0xff]
  %v68 = vld [vmem:[%s3 + $0xc8] sm:$0xff]
  %v69 = vld [vmem:[%s3 + $0xd0] sm:$0xff]
  %v70 = vld [vmem:[%s3 + $0xd8] sm:$0xff]
  %v71 = vld [vmem:[%s3 + $0xe0] sm:$0xff]
  %v72 = vld [vmem:[%s3 + $0xe8] sm:$0xff]
  %v73 = vld [vmem:[%s3 + $0xf0] sm:$0xff]
  %v74 = vld [vmem:[%s3 + $0xf8] sm:$0xff]
  %v79 = vunpack.c.l.b16 %v39
  %v80 = vunpack.c.h.b16 %v39
  %v81 = vunpack.c.l.b16 %v40
  %v82 = vunpack.c.h.b16 %v40
  %v83 = vunpack.c.l.b16 %v41
  %v84 = vunpack.c.h.b16 %v41
  %v85 = vunpack.c.l.b16 %v42
  %v86 = vunpack.c.h.b16 %v42
  %v87 = vpack.c.b16 %v81, %v79
  %v88 = vpack.c.b16 %v82, %v80
  %v89 = vpack.c.b16 %v85, %v83
  %v90 = vpack.c.b16 %v86, %v84
  %v127 = vunpack.c.l.b16 %v43
  %v128 = vunpack.c.h.b16 %v43
  %v129 = vunpack.c.l.b16 %v44
  %v130 = vunpack.c.h.b16 %v44
  %v131 = vunpack.c.l.b16 %v45
  %v132 = vunpack.c.h.b16 %v45
  %v133 = vunpack.c.l.b16 %v46
  %v134 = vunpack.c.h.b16 %v46
  %v135 = vunpack.c.l.b16 %v47
  %v136 = vunpack.c.h.b16 %v47
  %v137 = vunpack.c.l.b16 %v48
  %v138 = vunpack.c.h.b16 %v48
  %v139 = vunpack.c.l.b16 %v49
  %v140 = vunpack.c.h.b16 %v49
  %v141 = vunpack.c.l.b16 %v50
  %v142 = vunpack.c.h.b16 %v50
  %v143 = vunpack.c.l.b16 %v51
  %v144 = vunpack.c.h.b16 %v51
  %v145 = vunpack.c.l.b16 %v52
  %v146 = vunpack.c.h.b16 %v52
  %v147 = vunpack.c.l.b16 %v53
  %v148 = vunpack.c.h.b16 %v53
  %v149 = vunpack.c.l.b16 %v54
  %v150 = vunpack.c.h.b16 %v54
  %v151 = vunpack.c.l.b16 %v55
  %v152 = vunpack.c.h.b16 %v55
  %v153 = vunpack.c.l.b16 %v56
  %v154 = vunpack.c.h.b16 %v56
  %v155 = vunpack.c.l.b16 %v57
  %v156 = vunpack.c.h.b16 %v57
  %v157 = vunpack.c.l.b16 %v58
  %v158 = vunpack.c.h.b16 %v58
  %v159 = vunpack.c.l.b16 %v59
  %v160 = vunpack.c.h.b16 %v59
  %v161 = vunpack.c.l.b16 %v60
  %v162 = vunpack.c.h.b16 %v60
  %v163 = vunpack.c.l.b16 %v61
  %v164 = vunpack.c.h.b16 %v61
  %v165 = vunpack.c.l.b16 %v62
  %v166 = vunpack.c.h.b16 %v62
  %v167 = vunpack.c.l.b16 %v63
  %v168 = vunpack.c.h.b16 %v63
  %v169 = vunpack.c.l.b16 %v64
  %v170 = vunpack.c.h.b16 %v64
  %v171 = vunpack.c.l.b16 %v65
  %v172 = vunpack.c.h.b16 %v65
  %v173 = vunpack.c.l.b16 %v66
  %v174 = vunpack.c.h.b16 %v66
  %v175 = vunpack.c.l.b16 %v67
  %v176 = vunpack.c.h.b16 %v67
  %v177 = vunpack.c.l.b16 %v68
  %v178 = vunpack.c.h.b16 %v68
  %v179 = vunpack.c.l.b16 %v69
  %v180 = vunpack.c.h.b16 %v69
  %v181 = vunpack.c.l.b16 %v70
  %v182 = vunpack.c.h.b16 %v70
  %v183 = vunpack.c.l.b16 %v71
  %v184 = vunpack.c.h.b16 %v71
  %v185 = vunpack.c.l.b16 %v72
  %v186 = vunpack.c.h.b16 %v72
  %v187 = vunpack.c.l.b16 %v73
  %v188 = vunpack.c.h.b16 %v73
  %v189 = vunpack.c.l.b16 %v74
  %v190 = vunpack.c.h.b16 %v74
  %v191 = vpack.c.b16 %v129, %v127
  %v192 = vpack.c.b16 %v130, %v128
  %v193 = vpack.c.b16 %v133, %v131
  %v194 = vpack.c.b16 %v134, %v132
  %v195 = vpack.c.b16 %v137, %v135
  %v196 = vpack.c.b16 %v138, %v136
  %v197 = vpack.c.b16 %v141, %v139
  %v198 = vpack.c.b16 %v142, %v140
  %v199 = vpack.c.b16 %v145, %v143
  %v200 = vpack.c.b16 %v146, %v144
  %v201 = vpack.c.b16 %v149, %v147
  %v202 = vpack.c.b16 %v150, %v148
  %v203 = vpack.c.b16 %v153, %v151
  %v204 = vpack.c.b16 %v154, %v152
  %v205 = vpack.c.b16 %v157, %v155
  %v206 = vpack.c.b16 %v158, %v156
  %v207 = vpack.c.b16 %v161, %v159
  %v208 = vpack.c.b16 %v162, %v160
  %v209 = vpack.c.b16 %v165, %v163
  %v210 = vpack.c.b16 %v166, %v164
  %v211 = vpack.c.b16 %v169, %v167
  %v212 = vpack.c.b16 %v170, %v168
  %v213 = vpack.c.b16 %v173, %v171
  %v214 = vpack.c.b16 %v174, %v172
  %v215 = vpack.c.b16 %v177, %v175
  %v216 = vpack.c.b16 %v178, %v176
  %v217 = vpack.c.b16 %v181, %v179
  %v218 = vpack.c.b16 %v182, %v180
  %v219 = vpack.c.b16 %v185, %v183
  %v220 = vpack.c.b16 %v186, %v184
  %v221 = vpack.c.b16 %v189, %v187
  %v222 = vpack.c.b16 %v190, %v188
  %255 = vmatprep.subr.bf16.mxu0 %v192
  %256 = vmatpush1.bf16.msra.mxu0 %v191
  %257 = vmatprep.subr.bf16.mxu0 %v194
  %258 = vmatpush1.bf16.msra.mxu0 %v193
  %259 = vmatprep.subr.bf16.mxu0 %v196
  %260 = vmatpush1.bf16.msra.mxu0 %v195
  %261 = vmatprep.subr.bf16.mxu0 %v198
  %262 = vmatpush1.bf16.msra.mxu0 %v197
  %263 = vmatprep.subr.bf16.mxu0 %v200
  %264 = vmatpush1.bf16.msra.mxu0 %v199
  %265 = vmatprep.subr.bf16.mxu0 %v202
  %266 = vmatpush1.bf16.msra.mxu0 %v201
  %267 = vmatprep.subr.bf16.mxu0 %v204
  %268 = vmatpush1.bf16.msra.mxu0 %v203
  %269 = vmatprep.subr.bf16.mxu0 %v206
  %270 = vmatpush1.bf16.msra.mxu0 %v205
  %271 = vmatprep.subr.bf16.mxu0 %v208
  %272 = vmatpush1.bf16.msra.mxu0 %v207
  %273 = vmatprep.subr.bf16.mxu0 %v210
  %274 = vmatpush1.bf16.msra.mxu0 %v209
  %275 = vmatprep.subr.bf16.mxu0 %v212
  %276 = vmatpush1.bf16.msra.mxu0 %v211
  %277 = vmatprep.subr.bf16.mxu0 %v214
  %278 = vmatpush1.bf16.msra.mxu0 %v213
  %279 = vmatprep.subr.bf16.mxu0 %v216
  %280 = vmatpush1.bf16.msra.mxu0 %v215
  %281 = vmatprep.subr.bf16.mxu0 %v218
  %282 = vmatpush1.bf16.msra.mxu0 %v217
  %283 = vmatprep.subr.bf16.mxu0 %v220
  %284 = vmatpush1.bf16.msra.mxu0 %v219
  %285 = vmatprep.subr.bf16.mxu0 %v222
  %286 = vmatpush1.bf16.msra.mxu0 %v221
  %287 = vmatprep.mubr.bf16.mxu0 %v88
  %288 = vmatmul.mubr.bf16.gmra.mrb[0].mxu0 %v87
  %v289 = vpop.f32.mrb[0].mxu0
  %v290 = vadd.f32 0.0, %v289
  %v291 = vpop.f32.mrb[0].mxu0
  %v292 = vadd.f32 0.0, %v291
  %v293 = vpop.f32.mrb[0].mxu0
  %v294 = vadd.f32 0.0, %v293
  %v295 = vpop.f32.mrb[0].mxu0
  %v296 = vadd.f32 0.0, %v295
  %297 = vmatprep.mubr.bf16.mxu0 %v90
  %298 = vmatmul.mubr.bf16.gmra.mrb[0].mxu0 %v89
  %v299 = vpop.f32.mrb[0].mxu0
  %v300 = vadd.f32 0.0, %v299
  %v301 = vpop.f32.mrb[0].mxu0
  %v302 = vadd.f32 0.0, %v301
  %v303 = vpop.f32.mrb[0].mxu0
  %v304 = vadd.f32 0.0, %v303
  %v305 = vpop.f32.mrb[0].mxu0
  %v306 = vadd.f32 0.0, %v305
  %307 = vdwg.mxu0
  %v312 = vunpack.c.l.b16 %v33
  %v313 = vunpack.c.l.b16 %v34
  %v314 = vunpack.c.l.b16 %v35
  %v315 = vunpack.c.l.b16 %v36
  %v316 = vpack.c.b16 %v313, %v312
  %v317 = vpack.c.b16 %v315, %v314
  %v320 = vunpack.c.l.b16 %v37
  %v321 = vunpack.c.h.b16 %v37
  %v322 = vunpack.c.l.b16 %v38
  %v323 = vunpack.c.h.b16 %v38
  %v324 = vpack.c.b16 %v322, %v320
  %v325 = vpack.c.b16 %v323, %v321
  %vm326 = vcmask 80896
  %v328 = vsel %vm326, %v316, 0
  %v331 = vsel %vm326, %v317, 0
  %vm333 = vcmask 1044480
  %v335 = vsel %vm333, %v324, 0
  %v338 = vsel %vm333, %v325, 0
  %340 = vmatprep.subr.bf16.mxu0 %v338
  %341 = vmatpush1.bf16.msra.mxu0 %v335
  %342 = vmatprep.subr.bf16.mxu0 0
  %343 = vmatpush1.bf16.msra.mxu0 0
  %344 = vmatprep.subr.bf16.mxu0 0
  %345 = vmatpush1.bf16.msra.mxu0 0
  %346 = vmatprep.subr.bf16.mxu0 0
  %347 = vmatpush1.bf16.msra.mxu0 0
  %348 = vmatprep.subr.bf16.mxu0 0
  %349 = vmatpush1.bf16.msra.mxu0 0
  %350 = vmatprep.subr.bf16.mxu0 0
  %351 = vmatpush1.bf16.msra.mxu0 0
  %352 = vmatprep.subr.bf16.mxu0 0
  %353 = vmatpush1.bf16.msra.mxu0 0
  %354 = vmatprep.subr.bf16.mxu0 0
  %355 = vmatpush1.bf16.msra.mxu0 0
  %356 = vmatprep.subr.bf16.mxu0 0
  %357 = vmatpush1.bf16.msra.mxu0 0
  %358 = vmatprep.subr.bf16.mxu0 0
  %359 = vmatpush1.bf16.msra.mxu0 0
  %360 = vmatprep.subr.bf16.mxu0 0
  %361 = vmatpush1.bf16.msra.mxu0 0
  %362 = vmatprep.subr.bf16.mxu0 0
  %363 = vmatpush1.bf16.msra.mxu0 0
  %364 = vmatprep.subr.bf16.mxu0 0
  %365 = vmatpush1.bf16.msra.mxu0 0
  %366 = vmatprep.subr.bf16.mxu0 0
  %367 = vmatpush1.bf16.msra.mxu0 0
  %368 = vmatprep.subr.bf16.mxu0 0
  %369 = vmatpush1.bf16.msra.mxu0 0
  %370 = vmatprep.subr.bf16.mxu0 0
  %371 = vmatpush1.bf16.msra.mxu0 0
  %372 = vmatprep.mubr.bf16.mxu0 0
  %373 = vmatmul.mubr.bf16.gmra.mrb[0].mxu0 %v328
  %v374 = vpop.f32.mrb[0].mxu0
  %v375 = vadd.f32 %v290, %v374
  %v376 = vpop.f32.mrb[0].mxu0
  %v377 = vadd.f32 %v292, %v376
  %v378 = vpop.f32.mrb[0].mxu0
  %v379 = vadd.f32 %v294, %v378
  %v380 = vpop.f32.mrb[0].mxu0
  %v381 = vadd.f32 %v296, %v380
  %382 = vmatprep.mubr.bf16.mxu0 0
  %383 = vmatmul.mubr.bf16.gmra.mrb[0].mxu0 %v331
  %v384 = vpop.f32.mrb[0].mxu0
  %v385 = vadd.f32 %v300, %v384
  %v386 = vpop.f32.mrb[0].mxu0
  %v387 = vadd.f32 %v302, %v386
  %v388 = vpop.f32.mrb[0].mxu0
  %v389 = vadd.f32 %v304, %v388
  %v390 = vpop.f32.mrb[0].mxu0
  %v391 = vadd.f32 %v306, %v390
  %392 = vdwg.mxu0
  %v393 = vld [vmem:[%s4] sm:$0x3]
  %v395 = vlaneseq
  %v396 = vshrl.u32 %v395, 7
  %v397 = vsub.s32 0, %v396
  %v398 = vrot.slane %v393, %v397
  %v399 = vlaneseq
  %v400 = vshrl.u32 %v399, 7
  %v401 = vsub.s32 1, %v400
  %v402 = vrot.slane %v393, %v401
  %v405 = vadd.f32 %v375, %v398
  %v406 = vadd.f32 %v377, %v402
  %v407 = vadd.f32 %v379, %v398
  %v408 = vadd.f32 %v381, %v402
  %v409 = vadd.f32 %v385, %v398
  %v410 = vadd.f32 %v387, %v402
  %v411 = vadd.f32 %v389, %v398
  %v412 = vadd.f32 %v391, %v402
  %v413 = vmax.f32 %v405, 0.0
  %v414 = vmax.f32 %v406, 0.0
  %v415 = vmax.f32 %v407, 0.0
  %v416 = vmax.f32 %v408, 0.0
  %v417 = vmax.f32 %v409, 0.0
  %v418 = vmax.f32 %v410, 0.0
  %v419 = vmax.f32 %v411, 0.0
  %v420 = vmax.f32 %v412, 0.0
  %v421 = vpack.c.bf16 %v415, %v413
  %v422 = vpack.c.bf16 %v416, %v414
  %v423 = vpack.c.bf16 %v419, %v417
  %v424 = vpack.c.bf16 %v420, %v418
  %v425 = vld [vmem:[%s5] sm:$0xff]
  %v426 = vld [vmem:[%s5 + $0x8] sm:$0xff]
  %v427 = vld [vmem:[%s5 + $0x10] sm:$0xff]
  %v428 = vld [vmem:[%s5 + $0x18] sm:$0xff]
  %v429 = vld [vmem:[%s5 + $0x20] sm:$0xff]
  %v430 = vld [vmem:[%s5 + $0x28] sm:$0xff]
  %v431 = vld [vmem:[%s5 + $0x30] sm:$0xff]
  %v432 = vld [vmem:[%s5 + $0x38] sm:$0xff]
  %v433 = vld [vmem:[%s5 + $0x40] sm:$0xff]
  %v434 = vld [vmem:[%s5 + $0x48] sm:$0xff]
  %v435 = vld [vmem:[%s5 + $0x50] sm:$0xff]
  %v436 = vld [vmem:[%s5 + $0x58] sm:$0xff]
  %v437 = vld [vmem:[%s5 + $0x60] sm:$0xff]
  %v438 = vld [vmem:[%s5 + $0x68] sm:$0xff]
  %v439 = vld [vmem:[%s5 + $0x70] sm:$0xff]
  %v440 = vld [vmem:[%s5 + $0x78] sm:$0xff]
  %v441 = vld [vmem:[%s5 + $0x80] sm:$0xff]
  %v442 = vld [vmem:[%s5 + $0x88] sm:$0xff]
  %v443 = vld [vmem:[%s5 + $0x90] sm:$0xff]
  %v444 = vld [vmem:[%s5 + $0x98] sm:$0xff]
  %v445 = vld [vmem:[%s5 + $0xa0] sm:$0xff]
  %v446 = vld [vmem:[%s5 + $0xa8] sm:$0xff]
  %v447 = vld [vmem:[%s5 + $0xb0] sm:$0xff]
  %v448 = vld [vmem:[%s5 + $0xb8] sm:$0xff]
  %v449 = vld [vmem:[%s5 + $0xc0] sm:$0xff]
  %v450 = vld [vmem:[%s5 + $0xc8] sm:$0xff]
  %v451 = vld [vmem:[%s5 + $0xd0] sm:$0xff]
  %v452 = vld [vmem:[%s5 + $0xd8] sm:$0xff]
  %v453 = vld [vmem:[%s5 + $0xe0] sm:$0xff]
  %v454 = vld [vmem:[%s5 + $0xe8] sm:$0xff]
  %v455 = vld [vmem:[%s5 + $0xf0] sm:$0xff]
  %v456 = vld [vmem:[%s5 + $0xf8] sm:$0xff]
  %v457 = vld [vmem:[%s5 + $0x100] sm:$0xff]
  %v458 = vld [vmem:[%s5 + $0x108] sm:$0xff]
  %v459 = vld [vmem:[%s5 + $0x110] sm:$0xff]
  %v460 = vld [vmem:[%s5 + $0x118] sm:$0xff]
  %v461 = vld [vmem:[%s5 + $0x120] sm:$0xff]
  %v462 = vld [vmem:[%s5 + $0x128] sm:$0xff]
  %v463 = vld [vmem:[%s5 + $0x130] sm:$0xff]
  %v464 = vld [vmem:[%s5 + $0x138] sm:$0xff]
  %v465 = vld [vmem:[%s5 + $0x140] sm:$0xff]
  %v466 = vld [vmem:[%s5 + $0x148] sm:$0xff]
  %v467 = vld [vmem:[%s5 + $0x150] sm:$0xff]
  %v468 = vld [vmem:[%s5 + $0x158] sm:$0xff]
  %v469 = vld [vmem:[%s5 + $0x160] sm:$0xff]
  %v470 = vld [vmem:[%s5 + $0x168] sm:$0xff]
  %v471 = vld [vmem:[%s5 + $0x170] sm:$0xff]
  %v472 = vld [vmem:[%s5 + $0x178] sm:$0xff]
  %v473 = vld [vmem:[%s5 + $0x180] sm:$0xff]
  %v474 = vld [vmem:[%s5 + $0x188] sm:$0xff]
  %v475 = vld [vmem:[%s5 + $0x190] sm:$0xff]
  %v476 = vld [vmem:[%s5 + $0x198] sm:$0xff]
  %v477 = vld [vmem:[%s5 + $0x1a0] sm:$0xff]
  %v478 = vld [vmem:[%s5 + $0x1a8] sm:$0xff]
  %v479 = vld [vmem:[%s5 + $0x1b0] sm:$0xff]
  %v480 = vld [vmem:[%s5 + $0x1b8] sm:$0xff]
  %v481 = vld [vmem:[%s5 + $0x1c0] sm:$0xff]
  %v482 = vld [vmem:[%s5 + $0x1c8] sm:$0xff]
  %v483 = vld [vmem:[%s5 + $0x1d0] sm:$0xff]
  %v484 = vld [vmem:[%s5 + $0x1d8] sm:$0xff]
  %v485 = vld [vmem:[%s5 + $0x1e0] sm:$0xff]
  %v486 = vld [vmem:[%s5 + $0x1e8] sm:$0xff]
  %v487 = vld [vmem:[%s5 + $0x1f0] sm:$0xff]
  %v488 = vld [vmem:[%s5 + $0x1f8] sm:$0xff]
  %v489 = vld [vmem:[%s6] sm:$0xf]
  %v491 = vlaneseq
  %v492 = vshrl.u32 %v491, 7
  %v493 = vsub.s32 0, %v492
  %v494 = vrot.slane %v489, %v493
  %v495 = vlaneseq
  %v496 = vshrl.u32 %v495, 7
  %v497 = vsub.s32 1, %v496
  %v498 = vrot.slane %v489, %v497
  %v499 = vlaneseq
  %v500 = vshrl.u32 %v499, 7
  %v501 = vsub.s32 2, %v500
  %v502 = vrot.slane %v489, %v501
  %v503 = vlaneseq
  %v504 = vshrl.u32 %v503, 7
  %v505 = vsub.s32 3, %v504
  %v506 = vrot.slane %v489, %v505
  %v575 = vunpack.c.l.b16 %v425
  %v576 = vunpack.c.h.b16 %v425
  %v577 = vunpack.c.l.b16 %v426
  %v578 = vunpack.c.h.b16 %v426
  %v579 = vunpack.c.l.b16 %v427
  %v580 = vunpack.c.h.b16 %v427
  %v581 = vunpack.c.l.b16 %v428
  %v582 = vunpack.c.h.b16 %v428
  %v583 = vunpack.c.l.b16 %v429
  %v584 = vunpack.c.h.b16 %v429
  %v585 = vunpack.c.l.b16 %v430
  %v586 = vunpack.c.h.b16 %v430
  %v587 = vunpack.c.l.b16 %v431
  %v588 = vunpack.c.h.b16 %v431
  %v589 = vunpack.c.l.b16 %v432
  %v590 = vunpack.c.h.b16 %v432
  %v591 = vunpack.c.l.b16 %v433
  %v592 = vunpack.c.h.b16 %v433
  %v593 = vunpack.c.l.b16 %v434
  %v594 = vunpack.c.h.b16 %v434
  %v595 = vunpack.c.l.b16 %v435
  %v596 = vunpack.c.h.b16 %v435
  %v597 = vunpack.c.l.b16 %v436
  %v598 = vunpack.c.h.b16 %v436
  %v599 = vunpack.c.l.b16 %v437
  %v600 = vunpack.c.h.b16 %v437
  %v601 = vunpack.c.l.b16 %v438
  %v602 = vunpack.c.h.b16 %v438
  %v603 = vunpack.c.l.b16 %v439
  %v604 = vunpack.c.h.b16 %v439
  %v605 = vunpack.c.l.b16 %v440
  %v606 = vunpack.c.h.b16 %v440
  %v607 = vunpack.c.l.b16 %v441
  %v608 = vunpack.c.h.b16 %v441
  %v609 = vunpack.c.l.b16 %v442
  %v610 = vunpack.c.h.b16 %v442
  %v611 = vunpack.c.l.b16 %v443
  %v612 = vunpack.c.h.b16 %v443
  %v613 = vunpack.c.l.b16 %v444
  %v614 = vunpack.c.h.b16 %v444
  %v615 = vunpack.c.l.b16 %v445
  %v616 = vunpack.c.h.b16 %v445
  %v617 = vunpack.c.l.b16 %v446
  %v618 = vunpack.c.h.b16 %v446
  %v619 = vunpack.c.l.b16 %v447
  %v620 = vunpack.c.h.b16 %v447
  %v621 = vunpack.c.l.b16 %v448
  %v622 = vunpack.c.h.b16 %v448
  %v623 = vunpack.c.l.b16 %v449
  %v624 = vunpack.c.h.b16 %v449
  %v625 = vunpack.c.l.b16 %v450
  %v626 = vunpack.c.h.b16 %v450
  %v627 = vunpack.c.l.b16 %v451
  %v628 = vunpack.c.h.b16 %v451
  %v629 = vunpack.c.l.b16 %v452
  %v630 = vunpack.c.h.b16 %v452
  %v631 = vunpack.c.l.b16 %v453
  %v632 = vunpack.c.h.b16 %v453
  %v633 = vunpack.c.l.b16 %v454
  %v634 = vunpack.c.h.b16 %v454
  %v635 = vunpack.c.l.b16 %v455
  %v636 = vunpack.c.h.b16 %v455
  %v637 = vunpack.c.l.b16 %v456
  %v638 = vunpack.c.h.b16 %v456
  %v639 = vunpack.c.l.b16 %v457
  %v640 = vunpack.c.h.b16 %v457
  %v641 = vunpack.c.l.b16 %v458
  %v642 = vunpack.c.h.b16 %v458
  %v643 = vunpack.c.l.b16 %v459
  %v644 = vunpack.c.h.b16 %v459
  %v645 = vunpack.c.l.b16 %v460
  %v646 = vunpack.c.h.b16 %v460
  %v647 = vunpack.c.l.b16 %v461
  %v648 = vunpack.c.h.b16 %v461
  %v649 = vunpack.c.l.b16 %v462
  %v650 = vunpack.c.h.b16 %v462
  %v651 = vunpack.c.l.b16 %v463
  %v652 = vunpack.c.h.b16 %v463
  %v653 = vunpack.c.l.b16 %v464
  %v654 = vunpack.c.h.b16 %v464
  %v655 = vunpack.c.l.b16 %v465
  %v656 = vunpack.c.h.b16 %v465
  %v657 = vunpack.c.l.b16 %v466
  %v658 = vunpack.c.h.b16 %v466
  %v659 = vunpack.c.l.b16 %v467
  %v660 = vunpack.c.h.b16 %v467
  %v661 = vunpack.c.l.b16 %v468
  %v662 = vunpack.c.h.b16 %v468
  %v663 = vunpack.c.l.b16 %v469
  %v664 = vunpack.c.h.b16 %v469
  %v665 = vunpack.c.l.b16 %v470
  %v666 = vunpack.c.h.b16 %v470
  %v667 = vunpack.c.l.b16 %v471
  %v668 = vunpack.c.h.b16 %v471
  %v669 = vunpack.c.l.b16 %v472
  %v670 = vunpack.c.h.b16 %v472
  %v671 = vunpack.c.l.b16 %v473
  %v672 = vunpack.c.h.b16 %v473
  %v673 = vunpack.c.l.b16 %v474
  %v674 = vunpack.c.h.b16 %v474
  %v675 = vunpack.c.l.b16 %v475
  %v676 = vunpack.c.h.b16 %v475
  %v677 = vunpack.c.l.b16 %v476
  %v678 = vunpack.c.h.b16 %v476
  %v679 = vunpack.c.l.b16 %v477
  %v680 = vunpack.c.h.b16 %v477
  %v681 = vunpack.c.l.b16 %v478
  %v682 = vunpack.c.h.b16 %v478
  %v683 = vunpack.c.l.b16 %v479
  %v684 = vunpack.c.h.b16 %v479
  %v685 = vunpack.c.l.b16 %v480
  %v686 = vunpack.c.h.b16 %v480
  %v687 = vunpack.c.l.b16 %v481
  %v688 = vunpack.c.h.b16 %v481
  %v689 = vunpack.c.l.b16 %v482
  %v690 = vunpack.c.h.b16 %v482
  %v691 = vunpack.c.l.b16 %v483
  %v692 = vunpack.c.h.b16 %v483
  %v693 = vunpack.c.l.b16 %v484
  %v694 = vunpack.c.h.b16 %v484
  %v695 = vunpack.c.l.b16 %v485
  %v696 = vunpack.c.h.b16 %v485
  %v697 = vunpack.c.l.b16 %v486
  %v698 = vunpack.c.h.b16 %v486
  %v699 = vunpack.c.l.b16 %v487
  %v700 = vunpack.c.h.b16 %v487
  %v701 = vunpack.c.l.b16 %v488
  %v702 = vunpack.c.h.b16 %v488
  %v703 = vpack.c.b16 %v579, %v575
  %v704 = vpack.c.b16 %v580, %v576
  %v705 = vpack.c.b16 %v581, %v577
  %v706 = vpack.c.b16 %v582, %v578
  %v707 = vpack.c.b16 %v587, %v583
  %v708 = vpack.c.b16 %v588, %v584
  %v709 = vpack.c.b16 %v589, %v585
  %v710 = vpack.c.b16 %v590, %v586
  %v711 = vpack.c.b16 %v595, %v591
  %v712 = vpack.c.b16 %v596, %v592
  %v713 = vpack.c.b16 %v597, %v593
  %v714 = vpack.c.b16 %v598, %v594
  %v715 = vpack.c.b16 %v603, %v599
  %v716 = vpack.c.b16 %v604, %v600
  %v717 = vpack.c.b16 %v605, %v601
  %v718 = vpack.c.b16 %v606, %v602
  %v719 = vpack.c.b16 %v611, %v607
  %v720 = vpack.c.b16 %v612, %v608
  %v721 = vpack.c.b16 %v613, %v609
  %v722 = vpack.c.b16 %v614, %v610
  %v723 = vpack.c.b16 %v619, %v615
  %v724 = vpack.c.b16 %v620, %v616
  %v725 = vpack.c.b16 %v621, %v617
  %v726 = vpack.c.b16 %v622, %v618
  %v727 = vpack.c.b16 %v627, %v623
  %v728 = vpack.c.b16 %v628, %v624
  %v729 = vpack.c.b16 %v629, %v625
  %v730 = vpack.c.b16 %v630, %v626
  %v731 = vpack.c.b16 %v635, %v631
  %v732 = vpack.c.b16 %v636, %v632
  %v733 = vpack.c.b16 %v637, %v633
  %v734 = vpack.c.b16 %v638, %v634
  %v735 = vpack.c.b16 %v643, %v639
  %v736 = vpack.c.b16 %v644, %v640
  %v737 = vpack.c.b16 %v645, %v641
  %v738 = vpack.c.b16 %v646, %v642
  %v739 = vpack.c.b16 %v651, %v647
  %v740 = vpack.c.b16 %v652, %v648
  %v741 = vpack.c.b16 %v653, %v649
  %v742 = vpack.c.b16 %v654, %v650
  %v743 = vpack.c.b16 %v659, %v655
  %v744 = vpack.c.b16 %v660, %v656
  %v745 = vpack.c.b16 %v661, %v657
  %v746 = vpack.c.b16 %v662, %v658
  %v747 = vpack.c.b16 %v667, %v663
  %v748 = vpack.c.b16 %v668, %v664
  %v749 = vpack.c.b16 %v669, %v665
  %v750 = vpack.c.b16 %v670, %v666
  %v751 = vpack.c.b16 %v675, %v671
  %v752 = vpack.c.b16 %v676, %v672
  %v753 = vpack.c.b16 %v677, %v673
  %v754 = vpack.c.b16 %v678, %v674
  %v755 = vpack.c.b16 %v683, %v679
  %v756 = vpack.c.b16 %v684, %v680
  %v757 = vpack.c.b16 %v685, %v681
  %v758 = vpack.c.b16 %v686, %v682
  %v759 = vpack.c.b16 %v691, %v687
  %v760 = vpack.c.b16 %v692, %v688
  %v761 = vpack.c.b16 %v693, %v689
  %v762 = vpack.c.b16 %v694, %v690
  %v763 = vpack.c.b16 %v699, %v695
  %v764 = vpack.c.b16 %v700, %v696
  %v765 = vpack.c.b16 %v701, %v697
  %v766 = vpack.c.b16 %v702, %v698
  %831 = vmatprep.subr.bf16.mxu0 %v704
  %832 = vmatpush1.bf16.msra.mxu0 %v703
  %833 = vmatprep.subr.bf16.mxu0 %v708
  %834 = vmatpush1.bf16.msra.mxu0 %v707
  %835 = vmatprep.subr.bf16.mxu0 %v712
  %836 = vmatpush1.bf16.msra.mxu0 %v711
  %837 = vmatprep.subr.bf16.mxu0 %v716
  %838 = vmatpush1.bf16.msra.mxu0 %v715
  %839 = vmatprep.subr.bf16.mxu0 %v720
  %840 = vmatpush1.bf16.msra.mxu0 %v719
  %841 = vmatprep.subr.bf16.mxu0 %v724
  %842 = vmatpush1.bf16.msra.mxu0 %v723
  %843 = vmatprep.subr.bf16.mxu0 %v728
  %844 = vmatpush1.bf16.msra.mxu0 %v727
  %845 = vmatprep.subr.bf16.mxu0 %v732
  %846 = vmatpush1.bf16.msra.mxu0 %v731
  %847 = vmatprep.subr.bf16.mxu0 %v736
  %848 = vmatpush1.bf16.msra.mxu0 %v735
  %849 = vmatprep.subr.bf16.mxu0 %v740
  %850 = vmatpush1.bf16.msra.mxu0 %v739
  %851 = vmatprep.subr.bf16.mxu0 %v744
  %852 = vmatpush1.bf16.msra.mxu0 %v743
  %853 = vmatprep.subr.bf16.mxu0 %v748
  %854 = vmatpush1.bf16.msra.mxu0 %v747
  %855 = vmatprep.subr.bf16.mxu0 %v752
  %856 = vmatpush1.bf16.msra.mxu0 %v751
  %857 = vmatprep.subr.bf16.mxu0 %v756
  %858 = vmatpush1.bf16.msra.mxu0 %v755
  %859 = vmatprep.subr.bf16.mxu0 %v760
  %860 = vmatpush1.bf16.msra.mxu0 %v759
  %861 = vmatprep.subr.bf16.mxu0 %v764
  %862 = vmatpush1.bf16.msra.mxu0 %v763
  %863 = vmatprep.mubr.bf16.mxu0 %v422
  %864 = vmatmul.mubr.bf16.gmra.mrb[0].mxu0 %v421
  %v865 = vpop.f32.mrb[0].mxu0
  %v866 = vadd.f32 %v494, %v865
  %v867 = vpop.f32.mrb[0].mxu0
  %v868 = vadd.f32 %v498, %v867
  %v869 = vpop.f32.mrb[0].mxu0
  %v870 = vadd.f32 %v494, %v869
  %v871 = vpop.f32.mrb[0].mxu0
  %v872 = vadd.f32 %v498, %v871
  %873 = vmatprep.mubr.bf16.mxu0 %v424
  %874 = vmatmul.mubr.bf16.gmra.mrb[0].mxu0 %v423
  %v875 = vpop.f32.mrb[0].mxu0
  %v876 = vadd.f32 %v494, %v875
  %v877 = vpop.f32.mrb[0].mxu0
  %v878 = vadd.f32 %v498, %v877
  %v879 = vpop.f32.mrb[0].mxu0
  %v880 = vadd.f32 %v494, %v879
  %v881 = vpop.f32.mrb[0].mxu0
  %v882 = vadd.f32 %v498, %v881
  %883 = vdwg.mxu0
  %884 = vmatprep.subr.bf16.mxu0 %v706
  %885 = vmatpush1.bf16.msra.mxu0 %v705
  %886 = vmatprep.subr.bf16.mxu0 %v710
  %887 = vmatpush1.bf16.msra.mxu0 %v709
  %888 = vmatprep.subr.bf16.mxu0 %v714
  %889 = vmatpush1.bf16.msra.mxu0 %v713
  %890 = vmatprep.subr.bf16.mxu0 %v718
  %891 = vmatpush1.bf16.msra.mxu0 %v717
  %892 = vmatprep.subr.bf16.mxu0 %v722
  %893 = vmatpush1.bf16.msra.mxu0 %v721
  %894 = vmatprep.subr.bf16.mxu0 %v726
  %895 = vmatpush1.bf16.msra.mxu0 %v725
  %896 = vmatprep.subr.bf16.mxu0 %v730
  %897 = vmatpush1.bf16.msra.mxu0 %v729
  %898 = vmatprep.subr.bf16.mxu0 %v734
  %899 = vmatpush1.bf16.msra.mxu0 %v733
  %900 = vmatprep.subr.bf16.mxu0 %v738
  %901 = vmatpush1.bf16.msra.mxu0 %v737
  %902 = vmatprep.subr.bf16.mxu0 %v742
  %903 = vmatpush1.bf16.msra.mxu0 %v741
  %904 = vmatprep.subr.bf16.mxu0 %v746
  %905 = vmatpush1.bf16.msra.mxu0 %v745
  %906 = vmatprep.subr.bf16.mxu0 %v750
  %907 = vmatpush1.bf16.msra.mxu0 %v749
  %908 = vmatprep.subr.bf16.mxu0 %v754
  %909 = vmatpush1.bf16.msra.mxu0 %v753
  %910 = vmatprep.subr.bf16.mxu0 %v758
  %911 = vmatpush1.bf16.msra.mxu0 %v757
  %912 = vmatprep.subr.bf16.mxu0 %v762
  %913 = vmatpush1.bf16.msra.mxu0 %v761
  %914 = vmatprep.subr.bf16.mxu0 %v766
  %915 = vmatpush1.bf16.msra.mxu0 %v765
  %916 = vmatprep.mubr.bf16.mxu0 %v422
  %917 = vmatmul.mubr.bf16.gmra.mrb[0].mxu0 %v421
  %v918 = vpop.f32.mrb[0].mxu0
  %v919 = vadd.f32 %v502, %v918
  %v920 = vpop.f32.mrb[0].mxu0
  %v921 = vadd.f32 %v506, %v920
  %v922 = vpop.f32.mrb[0].mxu0
  %v923 = vadd.f32 %v502, %v922
  %v924 = vpop.f32.mrb[0].mxu0
  %v925 = vadd.f32 %v506, %v924
  %926 = vmatprep.mubr.bf16.mxu0 %v424
  %927 = vmatmul.mubr.bf16.gmra.mrb[0].mxu0 %v423
  %v928 = vpop.f32.mrb[0].mxu0
  %v929 = vadd.f32 %v502, %v928
  %v930 = vpop.f32.mrb[0].mxu0
  %v931 = vadd.f32 %v506, %v930
  %v932 = vpop.f32.mrb[0].mxu0
  %v933 = vadd.f32 %v502, %v932
  %v934 = vpop.f32.mrb[0].mxu0
  %v935 = vadd.f32 %v506, %v934
  %936 = vdwg.mxu0
  %v937 = vmax.f32 %v866, 0.0
  %v938 = vmax.f32 %v868, 0.0
  %v939 = vmax.f32 %v919, 0.0
  %v940 = vmax.f32 %v921, 0.0
  %v941 = vmax.f32 %v870, 0.0
  %v942 = vmax.f32 %v872, 0.0
  %v943 = vmax.f32 %v923, 0.0
  %v944 = vmax.f32 %v925, 0.0
  %v945 = vmax.f32 %v876, 0.0
  %v946 = vmax.f32 %v878, 0.0
  %v947 = vmax.f32 %v929, 0.0
  %v948 = vmax.f32 %v931, 0.0
  %v949 = vmax.f32 %v880, 0.0
  %v950 = vmax.f32 %v882, 0.0
  %v951 = vmax.f32 %v933, 0.0
  %v952 = vmax.f32 %v935, 0.0
  %v953 = vpack.c.bf16 %v941, %v937
  %v954 = vpack.c.bf16 %v942, %v938
  %v955 = vpack.c.bf16 %v943, %v939
  %v956 = vpack.c.bf16 %v944, %v940
  %v957 = vpack.c.bf16 %v949, %v945
  %v958 = vpack.c.bf16 %v950, %v946
  %v959 = vpack.c.bf16 %v951, %v947
  %v960 = vpack.c.bf16 %v952, %v948
  %v961 = vld [vmem:[%s7] sm:$0xff]
  %v962 = vld [vmem:[%s7 + $0x8] sm:$0xff]
  %v963 = vld [vmem:[%s7 + $0x10] sm:$0xff]
  %v964 = vld [vmem:[%s7 + $0x18] sm:$0xff]
  %v965 = vld [vmem:[%s7 + $0x20] sm:$0xff]
  %v966 = vld [vmem:[%s7 + $0x28] sm:$0xff]
  %v967 = vld [vmem:[%s7 + $0x30] sm:$0xff]
  %v968 = vld [vmem:[%s7 + $0x38] sm:$0xff]
  %v969 = vld [vmem:[%s7 + $0x40] sm:$0xff]
  %v970 = vld [vmem:[%s7 + $0x48] sm:$0xff]
  %v971 = vld [vmem:[%s7 + $0x50] sm:$0xff]
  %v972 = vld [vmem:[%s7 + $0x58] sm:$0xff]
  %v973 = vld [vmem:[%s7 + $0x60] sm:$0xff]
  %v974 = vld [vmem:[%s7 + $0x68] sm:$0xff]
  %v975 = vld [vmem:[%s7 + $0x70] sm:$0xff]
  %v976 = vld [vmem:[%s7 + $0x78] sm:$0xff]
  %v977 = vld [vmem:[%s7 + $0x80] sm:$0xff]
  %v978 = vld [vmem:[%s7 + $0x88] sm:$0xff]
  %v979 = vld [vmem:[%s7 + $0x90] sm:$0xff]
  %v980 = vld [vmem:[%s7 + $0x98] sm:$0xff]
  %v981 = vld [vmem:[%s7 + $0xa0] sm:$0xff]
  %v982 = vld [vmem:[%s7 + $0xa8] sm:$0xff]
  %v983 = vld [vmem:[%s7 + $0xb0] sm:$0xff]
  %v984 = vld [vmem:[%s7 + $0xb8] sm:$0xff]
  %v985 = vld [vmem:[%s7 + $0xc0] sm:$0xff]
  %v986 = vld [vmem:[%s7 + $0xc8] sm:$0xff]
  %v987 = vld [vmem:[%s7 + $0xd0] sm:$0xff]
  %v988 = vld [vmem:[%s7 + $0xd8] sm:$0xff]
  %v989 = vld [vmem:[%s7 + $0xe0] sm:$0xff]
  %v990 = vld [vmem:[%s7 + $0xe8] sm:$0xff]
  %v991 = vld [vmem:[%s7 + $0xf0] sm:$0xff]
  %v992 = vld [vmem:[%s7 + $0xf8] sm:$0xff]
  %v993 = vld [vmem:[%s7 + $0x100] sm:$0xff]
  %v994 = vld [vmem:[%s7 + $0x108] sm:$0xff]
  %v995 = vld [vmem:[%s7 + $0x110] sm:$0xff]
  %v996 = vld [vmem:[%s7 + $0x118] sm:$0xff]
  %v997 = vld [vmem:[%s7 + $0x120] sm:$0xff]
  %v998 = vld [vmem:[%s7 + $0x128] sm:$0xff]
  %v999 = vld [vmem:[%s7 + $0x130] sm:$0xff]
  %v1000 = vld [vmem:[%s7 + $0x138] sm:$0xff]
  %v1001 = vld [vmem:[%s7 + $0x140] sm:$0xff]
  %v1002 = vld [vmem:[%s7 + $0x148] sm:$0xff]
  %v1003 = vld [vmem:[%s7 + $0x150] sm:$0xff]
  %v1004 = vld [vmem:[%s7 + $0x158] sm:$0xff]
  %v1005 = vld [vmem:[%s7 + $0x160] sm:$0xff]
  %v1006 = vld [vmem:[%s7 + $0x168] sm:$0xff]
  %v1007 = vld [vmem:[%s7 + $0x170] sm:$0xff]
  %v1008 = vld [vmem:[%s7 + $0x178] sm:$0xff]
  %v1009 = vld [vmem:[%s7 + $0x180] sm:$0xff]
  %v1010 = vld [vmem:[%s7 + $0x188] sm:$0xff]
  %v1011 = vld [vmem:[%s7 + $0x190] sm:$0xff]
  %v1012 = vld [vmem:[%s7 + $0x198] sm:$0xff]
  %v1013 = vld [vmem:[%s7 + $0x1a0] sm:$0xff]
  %v1014 = vld [vmem:[%s7 + $0x1a8] sm:$0xff]
  %v1015 = vld [vmem:[%s7 + $0x1b0] sm:$0xff]
  %v1016 = vld [vmem:[%s7 + $0x1b8] sm:$0xff]
  %v1017 = vld [vmem:[%s7 + $0x1c0] sm:$0xff]
  %v1018 = vld [vmem:[%s7 + $0x1c8] sm:$0xff]
  %v1019 = vld [vmem:[%s7 + $0x1d0] sm:$0xff]
  %v1020 = vld [vmem:[%s7 + $0x1d8] sm:$0xff]
  %v1021 = vld [vmem:[%s7 + $0x1e0] sm:$0xff]
  %v1022 = vld [vmem:[%s7 + $0x1e8] sm:$0xff]
  %v1023 = vld [vmem:[%s7 + $0x1f0] sm:$0xff]
  %v1024 = vld [vmem:[%s7 + $0x1f8] sm:$0xff]
  %v1025 = vld [vmem:[%s7 + $0x200] sm:$0xff]
  %v1026 = vld [vmem:[%s7 + $0x208] sm:$0xff]
  %v1027 = vld [vmem:[%s7 + $0x210] sm:$0xff]
  %v1028 = vld [vmem:[%s7 + $0x218] sm:$0xff]
  %v1029 = vld [vmem:[%s7 + $0x220] sm:$0xff]
  %v1030 = vld [vmem:[%s7 + $0x228] sm:$0xff]
  %v1031 = vld [vmem:[%s7 + $0x230] sm:$0xff]
  %v1032 = vld [vmem:[%s7 + $0x238] sm:$0xff]
  %v1033 = vld [vmem:[%s7 + $0x240] sm:$0xff]
  %v1034 = vld [vmem:[%s7 + $0x248] sm:$0xff]
  %v1035 = vld [vmem:[%s7 + $0x250] sm:$0xff]
  %v1036 = vld [vmem:[%s7 + $0x258] sm:$0xff]
  %v1037 = vld [vmem:[%s7 + $0x260] sm:$0xff]
  %v1038 = vld [vmem:[%s7 + $0x268] sm:$0xff]
  %v1039 = vld [vmem:[%s7 + $0x270] sm:$0xff]
  %v1040 = vld [vmem:[%s7 + $0x278] sm:$0xff]
  %v1041 = vld [vmem:[%s7 + $0x280] sm:$0xff]
  %v1042 = vld [vmem:[%s7 + $0x288] sm:$0xff]
  %v1043 = vld [vmem:[%s7 + $0x290] sm:$0xff]
  %v1044 = vld [vmem:[%s7 + $0x298] sm:$0xff]
  %v1045 = vld [vmem:[%s7 + $0x2a0] sm:$0xff]
  %v1046 = vld [vmem:[%s7 + $0x2a8] sm:$0xff]
  %v1047 = vld [vmem:[%s7 + $0x2b0] sm:$0xff]
  %v1048 = vld [vmem:[%s7 + $0x2b8] sm:$0xff]
  %v1049 = vld [vmem:[%s7 + $0x2c0] sm:$0xff]
  %v1050 = vld [vmem:[%s7 + $0x2c8] sm:$0xff]
  %v1051 = vld [vmem:[%s7 + $0x2d0] sm:$0xff]
  %v1052 = vld [vmem:[%s7 + $0x2d8] sm:$0xff]
  %v1053 = vld [vmem:[%s7 + $0x2e0] sm:$0xff]
  %v1054 = vld [vmem:[%s7 + $0x2e8] sm:$0xff]
  %v1055 = vld [vmem:[%s7 + $0x2f0] sm:$0xff]
  %v1056 = vld [vmem:[%s7 + $0x2f8] sm:$0xff]
  %v1057 = vld [vmem:[%s7 + $0x300] sm:$0xff]
  %v1058 = vld [vmem:[%s7 + $0x308] sm:$0xff]
  %v1059 = vld [vmem:[%s7 + $0x310] sm:$0xff]
  %v1060 = vld [vmem:[%s7 + $0x318] sm:$0xff]
  %v1061 = vld [vmem:[%s7 + $0x320] sm:$0xff]
  %v1062 = vld [vmem:[%s7 + $0x328] sm:$0xff]
  %v1063 = vld [vmem:[%s7 + $0x330] sm:$0xff]
  %v1064 = vld [vmem:[%s7 + $0x338] sm:$0xff]
  %v1065 = vld [vmem:[%s7 + $0x340] sm:$0xff]
  %v1066 = vld [vmem:[%s7 + $0x348] sm:$0xff]
  %v1067 = vld [vmem:[%s7 + $0x350] sm:$0xff]
  %v1068 = vld [vmem:[%s7 + $0x358] sm:$0xff]
  %v1069 = vld [vmem:[%s7 + $0x360] sm:$0xff]
  %v1070 = vld [vmem:[%s7 + $0x368] sm:$0xff]
  %v1071 = vld [vmem:[%s7 + $0x370] sm:$0xff]
  %v1072 = vld [vmem:[%s7 + $0x378] sm:$0xff]
  %v1073 = vld [vmem:[%s7 + $0x380] sm:$0xff]
  %v1074 = vld [vmem:[%s7 + $0x388] sm:$0xff]
  %v1075 = vld [vmem:[%s7 + $0x390] sm:$0xff]
  %v1076 = vld [vmem:[%s7 + $0x398] sm:$0xff]
  %v1077 = vld [vmem:[%s7 + $0x3a0] sm:$0xff]
  %v1078 = vld [vmem:[%s7 + $0x3a8] sm:$0xff]
  %v1079 = vld [vmem:[%s7 + $0x3b0] sm:$0xff]
  %v1080 = vld [vmem:[%s7 + $0x3b8] sm:$0xff]
  %v1081 = vld [vmem:[%s7 + $0x3c0] sm:$0xff]
  %v1082 = vld [vmem:[%s7 + $0x3c8] sm:$0xff]
  %v1083 = vld [vmem:[%s7 + $0x3d0] sm:$0xff]
  %v1084 = vld [vmem:[%s7 + $0x3d8] sm:$0xff]
  %v1085 = vld [vmem:[%s7 + $0x3e0] sm:$0xff]
  %v1086 = vld [vmem:[%s7 + $0x3e8] sm:$0xff]
  %v1087 = vld [vmem:[%s7 + $0x3f0] sm:$0xff]
  %v1088 = vld [vmem:[%s7 + $0x3f8] sm:$0xff]
  %v1089 = vld [vmem:[%s7 + $0x400] sm:$0xff]
  %v1090 = vld [vmem:[%s7 + $0x408] sm:$0xff]
  %v1091 = vld [vmem:[%s7 + $0x410] sm:$0xff]
  %v1092 = vld [vmem:[%s7 + $0x418] sm:$0xff]
  %v1093 = vld [vmem:[%s7 + $0x420] sm:$0xff]
  %v1094 = vld [vmem:[%s7 + $0x428] sm:$0xff]
  %v1095 = vld [vmem:[%s7 + $0x430] sm:$0xff]
  %v1096 = vld [vmem:[%s7 + $0x438] sm:$0xff]
  %v1097 = vld [vmem:[%s7 + $0x440] sm:$0xff]
  %v1098 = vld [vmem:[%s7 + $0x448] sm:$0xff]
  %v1099 = vld [vmem:[%s7 + $0x450] sm:$0xff]
  %v1100 = vld [vmem:[%s7 + $0x458] sm:$0xff]
  %v1101 = vld [vmem:[%s7 + $0x460] sm:$0xff]
  %v1102 = vld [vmem:[%s7 + $0x468] sm:$0xff]
  %v1103 = vld [vmem:[%s7 + $0x470] sm:$0xff]
  %v1104 = vld [vmem:[%s7 + $0x478] sm:$0xff]
  %v1105 = vld [vmem:[%s7 + $0x480] sm:$0xff]
  %v1106 = vld [vmem:[%s7 + $0x488] sm:$0xff]
  %v1107 = vld [vmem:[%s7 + $0x490] sm:$0xff]
  %v1108 = vld [vmem:[%s7 + $0x498] sm:$0xff]
  %v1109 = vld [vmem:[%s7 + $0x4a0] sm:$0xff]
  %v1110 = vld [vmem:[%s7 + $0x4a8] sm:$0xff]
  %v1111 = vld [vmem:[%s7 + $0x4b0] sm:$0xff]
  %v1112 = vld [vmem:[%s7 + $0x4b8] sm:$0xff]
  %v1113 = vld [vmem:[%s7 + $0x4c0] sm:$0xff]
  %v1114 = vld [vmem:[%s7 + $0x4c8] sm:$0xff]
  %v1115 = vld [vmem:[%s7 + $0x4d0] sm:$0xff]
  %v1116 = vld [vmem:[%s7 + $0x4d8] sm:$0xff]
  %v1117 = vld [vmem:[%s7 + $0x4e0] sm:$0xff]
  %v1118 = vld [vmem:[%s7 + $0x4e8] sm:$0xff]
  %v1119 = vld [vmem:[%s7 + $0x4f0] sm:$0xff]
  %v1120 = vld [vmem:[%s7 + $0x4f8] sm:$0xff]
  %v1121 = vld [vmem:[%s7 + $0x500] sm:$0xff]
  %v1122 = vld [vmem:[%s7 + $0x508] sm:$0xff]
  %v1123 = vld [vmem:[%s7 + $0x510] sm:$0xff]
  %v1124 = vld [vmem:[%s7 + $0x518] sm:$0xff]
  %v1125 = vld [vmem:[%s7 + $0x520] sm:$0xff]
  %v1126 = vld [vmem:[%s7 + $0x528] sm:$0xff]
  %v1127 = vld [vmem:[%s7 + $0x530] sm:$0xff]
  %v1128 = vld [vmem:[%s7 + $0x538] sm:$0xff]
  %v1129 = vld [vmem:[%s7 + $0x540] sm:$0xff]
  %v1130 = vld [vmem:[%s7 + $0x548] sm:$0xff]
  %v1131 = vld [vmem:[%s7 + $0x550] sm:$0xff]
  %v1132 = vld [vmem:[%s7 + $0x558] sm:$0xff]
  %v1133 = vld [vmem:[%s7 + $0x560] sm:$0xff]
  %v1134 = vld [vmem:[%s7 + $0x568] sm:$0xff]
  %v1135 = vld [vmem:[%s7 + $0x570] sm:$0xff]
  %v1136 = vld [vmem:[%s7 + $0x578] sm:$0xff]
  %v1137 = vld [vmem:[%s7 + $0x580] sm:$0xff]
  %v1138 = vld [vmem:[%s7 + $0x588] sm:$0xff]
  %v1139 = vld [vmem:[%s7 + $0x590] sm:$0xff]
  %v1140 = vld [vmem:[%s7 + $0x598] sm:$0xff]
  %v1141 = vld [vmem:[%s7 + $0x5a0] sm:$0xff]
  %v1142 = vld [vmem:[%s7 + $0x5a8] sm:$0xff]
  %v1143 = vld [vmem:[%s7 + $0x5b0] sm:$0xff]
  %v1144 = vld [vmem:[%s7 + $0x5b8] sm:$0xff]
  %v1145 = vld [vmem:[%s7 + $0x5c0] sm:$0xff]
  %v1146 = vld [vmem:[%s7 + $0x5c8] sm:$0xff]
  %v1147 = vld [vmem:[%s7 + $0x5d0] sm:$0xff]
  %v1148 = vld [vmem:[%s7 + $0x5d8] sm:$0xff]
  %v1149 = vld [vmem:[%s7 + $0x5e0] sm:$0xff]
  %v1150 = vld [vmem:[%s7 + $0x5e8] sm:$0xff]
  %v1151 = vld [vmem:[%s7 + $0x5f0] sm:$0xff]
  %v1152 = vld [vmem:[%s7 + $0x5f8] sm:$0xff]
  %v1153 = vld [vmem:[%s7 + $0x600] sm:$0xff]
  %v1154 = vld [vmem:[%s7 + $0x608] sm:$0xff]
  %v1155 = vld [vmem:[%s7 + $0x610] sm:$0xff]
  %v1156 = vld [vmem:[%s7 + $0x618] sm:$0xff]
  %v1157 = vld [vmem:[%s7 + $0x620] sm:$0xff]
  %v1158 = vld [vmem:[%s7 + $0x628] sm:$0xff]
  %v1159 = vld [vmem:[%s7 + $0x630] sm:$0xff]
  %v1160 = vld [vmem:[%s7 + $0x638] sm:$0xff]
  %v1161 = vld [vmem:[%s7 + $0x640] sm:$0xff]
  %v1162 = vld [vmem:[%s7 + $0x648] sm:$0xff]
  %v1163 = vld [vmem:[%s7 + $0x650] sm:$0xff]
  %v1164 = vld [vmem:[%s7 + $0x658] sm:$0xff]
  %v1165 = vld [vmem:[%s7 + $0x660] sm:$0xff]
  %v1166 = vld [vmem:[%s7 + $0x668] sm:$0xff]
  %v1167 = vld [vmem:[%s7 + $0x670] sm:$0xff]
  %v1168 = vld [vmem:[%s7 + $0x678] sm:$0xff]
  %v1169 = vld [vmem:[%s7 + $0x680] sm:$0xff]
  %v1170 = vld [vmem:[%s7 + $0x688] sm:$0xff]
  %v1171 = vld [vmem:[%s7 + $0x690] sm:$0xff]
  %v1172 = vld [vmem:[%s7 + $0x698] sm:$0xff]
  %v1173 = vld [vmem:[%s7 + $0x6a0] sm:$0xff]
  %v1174 = vld [vmem:[%s7 + $0x6a8] sm:$0xff]
  %v1175 = vld [vmem:[%s7 + $0x6b0] sm:$0xff]
  %v1176 = vld [vmem:[%s7 + $0x6b8] sm:$0xff]
  %v1177 = vld [vmem:[%s7 + $0x6c0] sm:$0xff]
  %v1178 = vld [vmem:[%s7 + $0x6c8] sm:$0xff]
  %v1179 = vld [vmem:[%s7 + $0x6d0] sm:$0xff]
  %v1180 = vld [vmem:[%s7 + $0x6d8] sm:$0xff]
  %v1181 = vld [vmem:[%s7 + $0x6e0] sm:$0xff]
  %v1182 = vld [vmem:[%s7 + $0x6e8] sm:$0xff]
  %v1183 = vld [vmem:[%s7 + $0x6f0] sm:$0xff]
  %v1184 = vld [vmem:[%s7 + $0x6f8] sm:$0xff]
  %v1185 = vld [vmem:[%s7 + $0x700] sm:$0xff]
  %v1186 = vld [vmem:[%s7 + $0x708] sm:$0xff]
  %v1187 = vld [vmem:[%s7 + $0x710] sm:$0xff]
  %v1188 = vld [vmem:[%s7 + $0x718] sm:$0xff]
  %v1189 = vld [vmem:[%s7 + $0x720] sm:$0xff]
  %v1190 = vld [vmem:[%s7 + $0x728] sm:$0xff]
  %v1191 = vld [vmem:[%s7 + $0x730] sm:$0xff]
  %v1192 = vld [vmem:[%s7 + $0x738] sm:$0xff]
  %v1193 = vld [vmem:[%s7 + $0x740] sm:$0xff]
  %v1194 = vld [vmem:[%s7 + $0x748] sm:$0xff]
  %v1195 = vld [vmem:[%s7 + $0x750] sm:$0xff]
  %v1196 = vld [vmem:[%s7 + $0x758] sm:$0xff]
  %v1197 = vld [vmem:[%s7 + $0x760] sm:$0xff]
  %v1198 = vld [vmem:[%s7 + $0x768] sm:$0xff]
  %v1199 = vld [vmem:[%s7 + $0x770] sm:$0xff]
  %v1200 = vld [vmem:[%s7 + $0x778] sm:$0xff]
  %v1201 = vld [vmem:[%s7 + $0x780] sm:$0xff]
  %v1202 = vld [vmem:[%s7 + $0x788] sm:$0xff]
  %v1203 = vld [vmem:[%s7 + $0x790] sm:$0xff]
  %v1204 = vld [vmem:[%s7 + $0x798] sm:$0xff]
  %v1205 = vld [vmem:[%s7 + $0x7a0] sm:$0xff]
  %v1206 = vld [vmem:[%s7 + $0x7a8] sm:$0xff]
  %v1207 = vld [vmem:[%s7 + $0x7b0] sm:$0xff]
  %v1208 = vld [vmem:[%s7 + $0x7b8] sm:$0xff]
  %v1209 = vld [vmem:[%s7 + $0x7c0] sm:$0xff]
  %v1210 = vld [vmem:[%s7 + $0x7c8] sm:$0xff]
  %v1211 = vld [vmem:[%s7 + $0x7d0] sm:$0xff]
  %v1212 = vld [vmem:[%s7 + $0x7d8] sm:$0xff]
  %v1213 = vld [vmem:[%s7 + $0x7e0] sm:$0xff]
  %v1214 = vld [vmem:[%s7 + $0x7e8] sm:$0xff]
  %v1215 = vld [vmem:[%s7 + $0x7f0] sm:$0xff]
  %v1216 = vld [vmem:[%s7 + $0x7f8] sm:$0xff]
  %v1217 = vld [vmem:[%s8] sm:$0xff]
  %v1219 = vlaneseq
  %v1220 = vshrl.u32 %v1219, 7
  %v1221 = vsub.s32 0, %v1220
  %v1222 = vrot.slane %v1217, %v1221
  %v1223 = vlaneseq
  %v1224 = vshrl.u32 %v1223, 7
  %v1225 = vsub.s32 1, %v1224
  %v1226 = vrot.slane %v1217, %v1225
  %v1227 = vlaneseq
  %v1228 = vshrl.u32 %v1227, 7
  %v1229 = vsub.s32 2, %v1228
  %v1230 = vrot.slane %v1217, %v1229
  %v1231 = vlaneseq
  %v1232 = vshrl.u32 %v1231, 7
  %v1233 = vsub.s32 3, %v1232
  %v1234 = vrot.slane %v1217, %v1233
  %v1235 = vlaneseq
  %v1236 = vshrl.u32 %v1235, 7
  %v1237 = vsub.s32 4, %v1236
  %v1238 = vrot.slane %v1217, %v1237
  %v1239 = vlaneseq
  %v1240 = vshrl.u32 %v1239, 7
  %v1241 = vsub.s32 5, %v1240
  %v1242 = vrot.slane %v1217, %v1241
  %v1243 = vlaneseq
  %v1244 = vshrl.u32 %v1243, 7
  %v1245 = vsub.s32 6, %v1244
  %v1246 = vrot.slane %v1217, %v1245
  %v1247 = vlaneseq
  %v1248 = vshrl.u32 %v1247, 7
  %v1249 = vsub.s32 7, %v1248
  %v1250 = vrot.slane %v1217, %v1249
  %v1515 = vunpack.c.l.b16 %v961
  %v1516 = vunpack.c.h.b16 %v961
  %v1517 = vunpack.c.l.b16 %v962
  %v1518 = vunpack.c.h.b16 %v962
  %v1519 = vunpack.c.l.b16 %v963
  %v1520 = vunpack.c.h.b16 %v963
  %v1521 = vunpack.c.l.b16 %v964
  %v1522 = vunpack.c.h.b16 %v964
  %v1523 = vunpack.c.l.b16 %v965
  %v1524 = vunpack.c.h.b16 %v965
  %v1525 = vunpack.c.l.b16 %v966
  %v1526 = vunpack.c.h.b16 %v966
  %v1527 = vunpack.c.l.b16 %v967
  %v1528 = vunpack.c.h.b16 %v967
  %v1529 = vunpack.c.l.b16 %v968
  %v1530 = vunpack.c.h.b16 %v968
  %v1531 = vunpack.c.l.b16 %v969
  %v1532 = vunpack.c.h.b16 %v969
  %v1533 = vunpack.c.l.b16 %v970
  %v1534 = vunpack.c.h.b16 %v970
  %v1535 = vunpack.c.l.b16 %v971
  %v1536 = vunpack.c.h.b16 %v971
  %v1537 = vunpack.c.l.b16 %v972
  %v1538 = vunpack.c.h.b16 %v972
  %v1539 = vunpack.c.l.b16 %v973
  %v1540 = vunpack.c.h.b16 %v973
  %v1541 = vunpack.c.l.b16 %v974
  %v1542 = vunpack.c.h.b16 %v974
  %v1543 = vunpack.c.l.b16 %v975
  %v1544 = vunpack.c.h.b16 %v975
  %v1545 = vunpack.c.l.b16 %v976
  %v1546 = vunpack.c.h.b16 %v976
  %v1547 = vunpack.c.l.b16 %v977
  %v1548 = vunpack.c.h.b16 %v977
  %v1549 = vunpack.c.l.b16 %v978
  %v1550 = vunpack.c.h.b16 %v978
  %v1551 = vunpack.c.l.b16 %v979
  %v1552 = vunpack.c.h.b16 %v979
  %v1553 = vunpack.c.l.b16 %v980
  %v1554 = vunpack.c.h.b16 %v980
  %v1555 = vunpack.c.l.b16 %v981
  %v1556 = vunpack.c.h.b16 %v981
  %v1557 = vunpack.c.l.b16 %v982
  %v1558 = vunpack.c.h.b16 %v982
  %v1559 = vunpack.c.l.b16 %v983
  %v1560 = vunpack.c.h.b16 %v983
  %v1561 = vunpack.c.l.b16 %v984
  %v1562 = vunpack.c.h.b16 %v984
  %v1563 = vunpack.c.l.b16 %v985
  %v1564 = vunpack.c.h.b16 %v985
  %v1565 = vunpack.c.l.b16 %v986
  %v1566 = vunpack.c.h.b16 %v986
  %v1567 = vunpack.c.l.b16 %v987
  %v1568 = vunpack.c.h.b16 %v987
  %v1569 = vunpack.c.l.b16 %v988
  %v1570 = vunpack.c.h.b16 %v988
  %v1571 = vunpack.c.l.b16 %v989
  %v1572 = vunpack.c.h.b16 %v989
  %v1573 = vunpack.c.l.b16 %v990
  %v1574 = vunpack.c.h.b16 %v990
  %v1575 = vunpack.c.l.b16 %v991
  %v1576 = vunpack.c.h.b16 %v991
  %v1577 = vunpack.c.l.b16 %v992
  %v1578 = vunpack.c.h.b16 %v992
  %v1579 = vunpack.c.l.b16 %v993
  %v1580 = vunpack.c.h.b16 %v993
  %v1581 = vunpack.c.l.b16 %v994
  %v1582 = vunpack.c.h.b16 %v994
  %v1583 = vunpack.c.l.b16 %v995
  %v1584 = vunpack.c.h.b16 %v995
  %v1585 = vunpack.c.l.b16 %v996
  %v1586 = vunpack.c.h.b16 %v996
  %v1587 = vunpack.c.l.b16 %v997
  %v1588 = vunpack.c.h.b16 %v997
  %v1589 = vunpack.c.l.b16 %v998
  %v1590 = vunpack.c.h.b16 %v998
  %v1591 = vunpack.c.l.b16 %v999
  %v1592 = vunpack.c.h.b16 %v999
  %v1593 = vunpack.c.l.b16 %v1000
  %v1594 = vunpack.c.h.b16 %v1000
  %v1595 = vunpack.c.l.b16 %v1001
  %v1596 = vunpack.c.h.b16 %v1001
  %v1597 = vunpack.c.l.b16 %v1002
  %v1598 = vunpack.c.h.b16 %v1002
  %v1599 = vunpack.c.l.b16 %v1003
  %v1600 = vunpack.c.h.b16 %v1003
  %v1601 = vunpack.c.l.b16 %v1004
  %v1602 = vunpack.c.h.b16 %v1004
  %v1603 = vunpack.c.l.b16 %v1005
  %v1604 = vunpack.c.h.b16 %v1005
  %v1605 = vunpack.c.l.b16 %v1006
  %v1606 = vunpack.c.h.b16 %v1006
  %v1607 = vunpack.c.l.b16 %v1007
  %v1608 = vunpack.c.h.b16 %v1007
  %v1609 = vunpack.c.l.b16 %v1008
  %v1610 = vunpack.c.h.b16 %v1008
  %v1611 = vunpack.c.l.b16 %v1009
  %v1612 = vunpack.c.h.b16 %v1009
  %v1613 = vunpack.c.l.b16 %v1010
  %v1614 = vunpack.c.h.b16 %v1010
  %v1615 = vunpack.c.l.b16 %v1011
  %v1616 = vunpack.c.h.b16 %v1011
  %v1617 = vunpack.c.l.b16 %v1012
  %v1618 = vunpack.c.h.b16 %v1012
  %v1619 = vunpack.c.l.b16 %v1013
  %v1620 = vunpack.c.h.b16 %v1013
  %v1621 = vunpack.c.l.b16 %v1014
  %v1622 = vunpack.c.h.b16 %v1014
  %v1623 = vunpack.c.l.b16 %v1015
  %v1624 = vunpack.c.h.b16 %v1015
  %v1625 = vunpack.c.l.b16 %v1016
  %v1626 = vunpack.c.h.b16 %v1016
  %v1627 = vunpack.c.l.b16 %v1017
  %v1628 = vunpack.c.h.b16 %v1017
  %v1629 = vunpack.c.l.b16 %v1018
  %v1630 = vunpack.c.h.b16 %v1018
  %v1631 = vunpack.c.l.b16 %v1019
  %v1632 = vunpack.c.h.b16 %v1019
  %v1633 = vunpack.c.l.b16 %v1020
  %v1634 = vunpack.c.h.b16 %v1020
  %v1635 = vunpack.c.l.b16 %v1021
  %v1636 = vunpack.c.h.b16 %v1021
  %v1637 = vunpack.c.l.b16 %v1022
  %v1638 = vunpack.c.h.b16 %v1022
  %v1639 = vunpack.c.l.b16 %v1023
  %v1640 = vunpack.c.h.b16 %v1023
  %v1641 = vunpack.c.l.b16 %v1024
  %v1642 = vunpack.c.h.b16 %v1024
  %v1643 = vunpack.c.l.b16 %v1025
  %v1644 = vunpack.c.h.b16 %v1025
  %v1645 = vunpack.c.l.b16 %v1026
  %v1646 = vunpack.c.h.b16 %v1026
  %v1647 = vunpack.c.l.b16 %v1027
  %v1648 = vunpack.c.h.b16 %v1027
  %v1649 = vunpack.c.l.b16 %v1028
  %v1650 = vunpack.c.h.b16 %v1028
  %v1651 = vunpack.c.l.b16 %v1029
  %v1652 = vunpack.c.h.b16 %v1029
  %v1653 = vunpack.c.l.b16 %v1030
  %v1654 = vunpack.c.h.b16 %v1030
  %v1655 = vunpack.c.l.b16 %v1031
  %v1656 = vunpack.c.h.b16 %v1031
  %v1657 = vunpack.c.l.b16 %v1032
  %v1658 = vunpack.c.h.b16 %v1032
  %v1659 = vunpack.c.l.b16 %v1033
  %v1660 = vunpack.c.h.b16 %v1033
  %v1661 = vunpack.c.l.b16 %v1034
  %v1662 = vunpack.c.h.b16 %v1034
  %v1663 = vunpack.c.l.b16 %v1035
  %v1664 = vunpack.c.h.b16 %v1035
  %v1665 = vunpack.c.l.b16 %v1036
  %v1666 = vunpack.c.h.b16 %v1036
  %v1667 = vunpack.c.l.b16 %v1037
  %v1668 = vunpack.c.h.b16 %v1037
  %v1669 = vunpack.c.l.b16 %v1038
  %v1670 = vunpack.c.h.b16 %v1038
  %v1671 = vunpack.c.l.b16 %v1039
  %v1672 = vunpack.c.h.b16 %v1039
  %v1673 = vunpack.c.l.b16 %v1040
  %v1674 = vunpack.c.h.b16 %v1040
  %v1675 = vunpack.c.l.b16 %v1041
  %v1676 = vunpack.c.h.b16 %v1041
  %v1677 = vunpack.c.l.b16 %v1042
  %v1678 = vunpack.c.h.b16 %v1042
  %v1679 = vunpack.c.l.b16 %v1043
  %v1680 = vunpack.c.h.b16 %v1043
  %v1681 = vunpack.c.l.b16 %v1044
  %v1682 = vunpack.c.h.b16 %v1044
  %v1683 = vunpack.c.l.b16 %v1045
  %v1684 = vunpack.c.h.b16 %v1045
  %v1685 = vunpack.c.l.b16 %v1046
  %v1686 = vunpack.c.h.b16 %v1046
  %v1687 = vunpack.c.l.b16 %v1047
  %v1688 = vunpack.c.h.b16 %v1047
  %v1689 = vunpack.c.l.b16 %v1048
  %v1690 = vunpack.c.h.b16 %v1048
  %v1691 = vunpack.c.l.b16 %v1049
  %v1692 = vunpack.c.h.b16 %v1049
  %v1693 = vunpack.c.l.b16 %v1050
  %v1694 = vunpack.c.h.b16 %v1050
  %v1695 = vunpack.c.l.b16 %v1051
  %v1696 = vunpack.c.h.b16 %v1051
  %v1697 = vunpack.c.l.b16 %v1052
  %v1698 = vunpack.c.h.b16 %v1052
  %v1699 = vunpack.c.l.b16 %v1053
  %v1700 = vunpack.c.h.b16 %v1053
  %v1701 = vunpack.c.l.b16 %v1054
  %v1702 = vunpack.c.h.b16 %v1054
  %v1703 = vunpack.c.l.b16 %v1055
  %v1704 = vunpack.c.h.b16 %v1055
  %v1705 = vunpack.c.l.b16 %v1056
  %v1706 = vunpack.c.h.b16 %v1056
  %v1707 = vunpack.c.l.b16 %v1057
  %v1708 = vunpack.c.h.b16 %v1057
  %v1709 = vunpack.c.l.b16 %v1058
  %v1710 = vunpack.c.h.b16 %v1058
  %v1711 = vunpack.c.l.b16 %v1059
  %v1712 = vunpack.c.h.b16 %v1059
  %v1713 = vunpack.c.l.b16 %v1060
  %v1714 = vunpack.c.h.b16 %v1060
  %v1715 = vunpack.c.l.b16 %v1061
  %v1716 = vunpack.c.h.b16 %v1061
  %v1717 = vunpack.c.l.b16 %v1062
  %v1718 = vunpack.c.h.b16 %v1062
  %v1719 = vunpack.c.l.b16 %v1063
  %v1720 = vunpack.c.h.b16 %v1063
  %v1721 = vunpack.c.l.b16 %v1064
  %v1722 = vunpack.c.h.b16 %v1064
  %v1723 = vunpack.c.l.b16 %v1065
  %v1724 = vunpack.c.h.b16 %v1065
  %v1725 = vunpack.c.l.b16 %v1066
  %v1726 = vunpack.c.h.b16 %v1066
  %v1727 = vunpack.c.l.b16 %v1067
  %v1728 = vunpack.c.h.b16 %v1067
  %v1729 = vunpack.c.l.b16 %v1068
  %v1730 = vunpack.c.h.b16 %v1068
  %v1731 = vunpack.c.l.b16 %v1069
  %v1732 = vunpack.c.h.b16 %v1069
  %v1733 = vunpack.c.l.b16 %v1070
  %v1734 = vunpack.c.h.b16 %v1070
  %v1735 = vunpack.c.l.b16 %v1071
  %v1736 = vunpack.c.h.b16 %v1071
  %v1737 = vunpack.c.l.b16 %v1072
  %v1738 = vunpack.c.h.b16 %v1072
  %v1739 = vunpack.c.l.b16 %v1073
  %v1740 = vunpack.c.h.b16 %v1073
  %v1741 = vunpack.c.l.b16 %v1074
  %v1742 = vunpack.c.h.b16 %v1074
  %v1743 = vunpack.c.l.b16 %v1075
  %v1744 = vunpack.c.h.b16 %v1075
  %v1745 = vunpack.c.l.b16 %v1076
  %v1746 = vunpack.c.h.b16 %v1076
  %v1747 = vunpack.c.l.b16 %v1077
  %v1748 = vunpack.c.h.b16 %v1077
  %v1749 = vunpack.c.l.b16 %v1078
  %v1750 = vunpack.c.h.b16 %v1078
  %v1751 = vunpack.c.l.b16 %v1079
  %v1752 = vunpack.c.h.b16 %v1079
  %v1753 = vunpack.c.l.b16 %v1080
  %v1754 = vunpack.c.h.b16 %v1080
  %v1755 = vunpack.c.l.b16 %v1081
  %v1756 = vunpack.c.h.b16 %v1081
  %v1757 = vunpack.c.l.b16 %v1082
  %v1758 = vunpack.c.h.b16 %v1082
  %v1759 = vunpack.c.l.b16 %v1083
  %v1760 = vunpack.c.h.b16 %v1083
  %v1761 = vunpack.c.l.b16 %v1084
  %v1762 = vunpack.c.h.b16 %v1084
  %v1763 = vunpack.c.l.b16 %v1085
  %v1764 = vunpack.c.h.b16 %v1085
  %v1765 = vunpack.c.l.b16 %v1086
  %v1766 = vunpack.c.h.b16 %v1086
  %v1767 = vunpack.c.l.b16 %v1087
  %v1768 = vunpack.c.h.b16 %v1087
  %v1769 = vunpack.c.l.b16 %v1088
  %v1770 = vunpack.c.h.b16 %v1088
  %v1771 = vunpack.c.l.b16 %v1089
  %v1772 = vunpack.c.h.b16 %v1089
  %v1773 = vunpack.c.l.b16 %v1090
  %v1774 = vunpack.c.h.b16 %v1090
  %v1775 = vunpack.c.l.b16 %v1091
  %v1776 = vunpack.c.h.b16 %v1091
  %v1777 = vunpack.c.l.b16 %v1092
  %v1778 = vunpack.c.h.b16 %v1092
  %v1779 = vunpack.c.l.b16 %v1093
  %v1780 = vunpack.c.h.b16 %v1093
  %v1781 = vunpack.c.l.b16 %v1094
  %v1782 = vunpack.c.h.b16 %v1094
  %v1783 = vunpack.c.l.b16 %v1095
  %v1784 = vunpack.c.h.b16 %v1095
  %v1785 = vunpack.c.l.b16 %v1096
  %v1786 = vunpack.c.h.b16 %v1096
  %v1787 = vunpack.c.l.b16 %v1097
  %v1788 = vunpack.c.h.b16 %v1097
  %v1789 = vunpack.c.l.b16 %v1098
  %v1790 = vunpack.c.h.b16 %v1098
  %v1791 = vunpack.c.l.b16 %v1099
  %v1792 = vunpack.c.h.b16 %v1099
  %v1793 = vunpack.c.l.b16 %v1100
  %v1794 = vunpack.c.h.b16 %v1100
  %v1795 = vunpack.c.l.b16 %v1101
  %v1796 = vunpack.c.h.b16 %v1101
  %v1797 = vunpack.c.l.b16 %v1102
  %v1798 = vunpack.c.h.b16 %v1102
  %v1799 = vunpack.c.l.b16 %v1103
  %v1800 = vunpack.c.h.b16 %v1103
  %v1801 = vunpack.c.l.b16 %v1104
  %v1802 = vunpack.c.h.b16 %v1104
  %v1803 = vunpack.c.l.b16 %v1105
  %v1804 = vunpack.c.h.b16 %v1105
  %v1805 = vunpack.c.l.b16 %v1106
  %v1806 = vunpack.c.h.b16 %v1106
  %v1807 = vunpack.c.l.b16 %v1107
  %v1808 = vunpack.c.h.b16 %v1107
  %v1809 = vunpack.c.l.b16 %v1108
  %v1810 = vunpack.c.h.b16 %v1108
  %v1811 = vunpack.c.l.b16 %v1109
  %v1812 = vunpack.c.h.b16 %v1109
  %v1813 = vunpack.c.l.b16 %v1110
  %v1814 = vunpack.c.h.b16 %v1110
  %v1815 = vunpack.c.l.b16 %v1111
  %v1816 = vunpack.c.h.b16 %v1111
  %v1817 = vunpack.c.l.b16 %v1112
  %v1818 = vunpack.c.h.b16 %v1112
  %v1819 = vunpack.c.l.b16 %v1113
  %v1820 = vunpack.c.h.b16 %v1113
  %v1821 = vunpack.c.l.b16 %v1114
  %v1822 = vunpack.c.h.b16 %v1114
  %v1823 = vunpack.c.l.b16 %v1115
  %v1824 = vunpack.c.h.b16 %v1115
  %v1825 = vunpack.c.l.b16 %v1116
  %v1826 = vunpack.c.h.b16 %v1116
  %v1827 = vunpack.c.l.b16 %v1117
  %v1828 = vunpack.c.h.b16 %v1117
  %v1829 = vunpack.c.l.b16 %v1118
  %v1830 = vunpack.c.h.b16 %v1118
  %v1831 = vunpack.c.l.b16 %v1119
  %v1832 = vunpack.c.h.b16 %v1119
  %v1833 = vunpack.c.l.b16 %v1120
  %v1834 = vunpack.c.h.b16 %v1120
  %v1835 = vunpack.c.l.b16 %v1121
  %v1836 = vunpack.c.h.b16 %v1121
  %v1837 = vunpack.c.l.b16 %v1122
  %v1838 = vunpack.c.h.b16 %v1122
  %v1839 = vunpack.c.l.b16 %v1123
  %v1840 = vunpack.c.h.b16 %v1123
  %v1841 = vunpack.c.l.b16 %v1124
  %v1842 = vunpack.c.h.b16 %v1124
  %v1843 = vunpack.c.l.b16 %v1125
  %v1844 = vunpack.c.h.b16 %v1125
  %v1845 = vunpack.c.l.b16 %v1126
  %v1846 = vunpack.c.h.b16 %v1126
  %v1847 = vunpack.c.l.b16 %v1127
  %v1848 = vunpack.c.h.b16 %v1127
  %v1849 = vunpack.c.l.b16 %v1128
  %v1850 = vunpack.c.h.b16 %v1128
  %v1851 = vunpack.c.l.b16 %v1129
  %v1852 = vunpack.c.h.b16 %v1129
  %v1853 = vunpack.c.l.b16 %v1130
  %v1854 = vunpack.c.h.b16 %v1130
  %v1855 = vunpack.c.l.b16 %v1131
  %v1856 = vunpack.c.h.b16 %v1131
  %v1857 = vunpack.c.l.b16 %v1132
  %v1858 = vunpack.c.h.b16 %v1132
  %v1859 = vunpack.c.l.b16 %v1133
  %v1860 = vunpack.c.h.b16 %v1133
  %v1861 = vunpack.c.l.b16 %v1134
  %v1862 = vunpack.c.h.b16 %v1134
  %v1863 = vunpack.c.l.b16 %v1135
  %v1864 = vunpack.c.h.b16 %v1135
  %v1865 = vunpack.c.l.b16 %v1136
  %v1866 = vunpack.c.h.b16 %v1136
  %v1867 = vunpack.c.l.b16 %v1137
  %v1868 = vunpack.c.h.b16 %v1137
  %v1869 = vunpack.c.l.b16 %v1138
  %v1870 = vunpack.c.h.b16 %v1138
  %v1871 = vunpack.c.l.b16 %v1139
  %v1872 = vunpack.c.h.b16 %v1139
  %v1873 = vunpack.c.l.b16 %v1140
  %v1874 = vunpack.c.h.b16 %v1140
  %v1875 = vunpack.c.l.b16 %v1141
  %v1876 = vunpack.c.h.b16 %v1141
  %v1877 = vunpack.c.l.b16 %v1142
  %v1878 = vunpack.c.h.b16 %v1142
  %v1879 = vunpack.c.l.b16 %v1143
  %v1880 = vunpack.c.h.b16 %v1143
  %v1881 = vunpack.c.l.b16 %v1144
  %v1882 = vunpack.c.h.b16 %v1144
  %v1883 = vunpack.c.l.b16 %v1145
  %v1884 = vunpack.c.h.b16 %v1145
  %v1885 = vunpack.c.l.b16 %v1146
  %v1886 = vunpack.c.h.b16 %v1146
  %v1887 = vunpack.c.l.b16 %v1147
  %v1888 = vunpack.c.h.b16 %v1147
  %v1889 = vunpack.c.l.b16 %v1148
  %v1890 = vunpack.c.h.b16 %v1148
  %v1891 = vunpack.c.l.b16 %v1149
  %v1892 = vunpack.c.h.b16 %v1149
  %v1893 = vunpack.c.l.b16 %v1150
  %v1894 = vunpack.c.h.b16 %v1150
  %v1895 = vunpack.c.l.b16 %v1151
  %v1896 = vunpack.c.h.b16 %v1151
  %v1897 = vunpack.c.l.b16 %v1152
  %v1898 = vunpack.c.h.b16 %v1152
  %v1899 = vunpack.c.l.b16 %v1153
  %v1900 = vunpack.c.h.b16 %v1153
  %v1901 = vunpack.c.l.b16 %v1154
  %v1902 = vunpack.c.h.b16 %v1154
  %v1903 = vunpack.c.l.b16 %v1155
  %v1904 = vunpack.c.h.b16 %v1155
  %v1905 = vunpack.c.l.b16 %v1156
  %v1906 = vunpack.c.h.b16 %v1156
  %v1907 = vunpack.c.l.b16 %v1157
  %v1908 = vunpack.c.h.b16 %v1157
  %v1909 = vunpack.c.l.b16 %v1158
  %v1910 = vunpack.c.h.b16 %v1158
  %v1911 = vunpack.c.l.b16 %v1159
  %v1912 = vunpack.c.h.b16 %v1159
  %v1913 = vunpack.c.l.b16 %v1160
  %v1914 = vunpack.c.h.b16 %v1160
  %v1915 = vunpack.c.l.b16 %v1161
  %v1916 = vunpack.c.h.b16 %v1161
  %v1917 = vunpack.c.l.b16 %v1162
  %v1918 = vunpack.c.h.b16 %v1162
  %v1919 = vunpack.c.l.b16 %v1163
  %v1920 = vunpack.c.h.b16 %v1163
  %v1921 = vunpack.c.l.b16 %v1164
  %v1922 = vunpack.c.h.b16 %v1164
  %v1923 = vunpack.c.l.b16 %v1165
  %v1924 = vunpack.c.h.b16 %v1165
  %v1925 = vunpack.c.l.b16 %v1166
  %v1926 = vunpack.c.h.b16 %v1166
  %v1927 = vunpack.c.l.b16 %v1167
  %v1928 = vunpack.c.h.b16 %v1167
  %v1929 = vunpack.c.l.b16 %v1168
  %v1930 = vunpack.c.h.b16 %v1168
  %v1931 = vunpack.c.l.b16 %v1169
  %v1932 = vunpack.c.h.b16 %v1169
  %v1933 = vunpack.c.l.b16 %v1170
  %v1934 = vunpack.c.h.b16 %v1170
  %v1935 = vunpack.c.l.b16 %v1171
  %v1936 = vunpack.c.h.b16 %v1171
  %v1937 = vunpack.c.l.b16 %v1172
  %v1938 = vunpack.c.h.b16 %v1172
  %v1939 = vunpack.c.l.b16 %v1173
  %v1940 = vunpack.c.h.b16 %v1173
  %v1941 = vunpack.c.l.b16 %v1174
  %v1942 = vunpack.c.h.b16 %v1174
  %v1943 = vunpack.c.l.b16 %v1175
  %v1944 = vunpack.c.h.b16 %v1175
  %v1945 = vunpack.c.l.b16 %v1176
  %v1946 = vunpack.c.h.b16 %v1176
  %v1947 = vunpack.c.l.b16 %v1177
  %v1948 = vunpack.c.h.b16 %v1177
  %v1949 = vunpack.c.l.b16 %v1178
  %v1950 = vunpack.c.h.b16 %v1178
  %v1951 = vunpack.c.l.b16 %v1179
  %v1952 = vunpack.c.h.b16 %v1179
  %v1953 = vunpack.c.l.b16 %v1180
  %v1954 = vunpack.c.h.b16 %v1180
  %v1955 = vunpack.c.l.b16 %v1181
  %v1956 = vunpack.c.h.b16 %v1181
  %v1957 = vunpack.c.l.b16 %v1182
  %v1958 = vunpack.c.h.b16 %v1182
  %v1959 = vunpack.c.l.b16 %v1183
  %v1960 = vunpack.c.h.b16 %v1183
  %v1961 = vunpack.c.l.b16 %v1184
  %v1962 = vunpack.c.h.b16 %v1184
  %v1963 = vunpack.c.l.b16 %v1185
  %v1964 = vunpack.c.h.b16 %v1185
  %v1965 = vunpack.c.l.b16 %v1186
  %v1966 = vunpack.c.h.b16 %v1186
  %v1967 = vunpack.c.l.b16 %v1187
  %v1968 = vunpack.c.h.b16 %v1187
  %v1969 = vunpack.c.l.b16 %v1188
  %v1970 = vunpack.c.h.b16 %v1188
  %v1971 = vunpack.c.l.b16 %v1189
  %v1972 = vunpack.c.h.b16 %v1189
  %v1973 = vunpack.c.l.b16 %v1190
  %v1974 = vunpack.c.h.b16 %v1190
  %v1975 = vunpack.c.l.b16 %v1191
  %v1976 = vunpack.c.h.b16 %v1191
  %v1977 = vunpack.c.l.b16 %v1192
  %v1978 = vunpack.c.h.b16 %v1192
  %v1979 = vunpack.c.l.b16 %v1193
  %v1980 = vunpack.c.h.b16 %v1193
  %v1981 = vunpack.c.l.b16 %v1194
  %v1982 = vunpack.c.h.b16 %v1194
  %v1983 = vunpack.c.l.b16 %v1195
  %v1984 = vunpack.c.h.b16 %v1195
  %v1985 = vunpack.c.l.b16 %v1196
  %v1986 = vunpack.c.h.b16 %v1196
  %v1987 = vunpack.c.l.b16 %v1197
  %v1988 = vunpack.c.h.b16 %v1197
  %v1989 = vunpack.c.l.b16 %v1198
  %v1990 = vunpack.c.h.b16 %v1198
  %v1991 = vunpack.c.l.b16 %v1199
  %v1992 = vunpack.c.h.b16 %v1199
  %v1993 = vunpack.c.l.b16 %v1200
  %v1994 = vunpack.c.h.b16 %v1200
  %v1995 = vunpack.c.l.b16 %v1201
  %v1996 = vunpack.c.h.b16 %v1201
  %v1997 = vunpack.c.l.b16 %v1202
  %v1998 = vunpack.c.h.b16 %v1202
  %v1999 = vunpack.c.l.b16 %v1203
  %v2000 = vunpack.c.h.b16 %v1203
  %v2001 = vunpack.c.l.b16 %v1204
  %v2002 = vunpack.c.h.b16 %v1204
  %v2003 = vunpack.c.l.b16 %v1205
  %v2004 = vunpack.c.h.b16 %v1205
  %v2005 = vunpack.c.l.b16 %v1206
  %v2006 = vunpack.c.h.b16 %v1206
  %v2007 = vunpack.c.l.b16 %v1207
  %v2008 = vunpack.c.h.b16 %v1207
  %v2009 = vunpack.c.l.b16 %v1208
  %v2010 = vunpack.c.h.b16 %v1208
  %v2011 = vunpack.c.l.b16 %v1209
  %v2012 = vunpack.c.h.b16 %v1209
  %v2013 = vunpack.c.l.b16 %v1210
  %v2014 = vunpack.c.h.b16 %v1210
  %v2015 = vunpack.c.l.b16 %v1211
  %v2016 = vunpack.c.h.b16 %v1211
  %v2017 = vunpack.c.l.b16 %v1212
  %v2018 = vunpack.c.h.b16 %v1212
  %v2019 = vunpack.c.l.b16 %v1213
  %v2020 = vunpack.c.h.b16 %v1213
  %v2021 = vunpack.c.l.b16 %v1214
  %v2022 = vunpack.c.h.b16 %v1214
  %v2023 = vunpack.c.l.b16 %v1215
  %v2024 = vunpack.c.h.b16 %v1215
  %v2025 = vunpack.c.l.b16 %v1216
  %v2026 = vunpack.c.h.b16 %v1216
  %v2027 = vpack.c.b16 %v1523, %v1515
  %v2028 = vpack.c.b16 %v1524, %v1516
  %v2029 = vpack.c.b16 %v1525, %v1517
  %v2030 = vpack.c.b16 %v1526, %v1518
  %v2031 = vpack.c.b16 %v1527, %v1519
  %v2032 = vpack.c.b16 %v1528, %v1520
  %v2033 = vpack.c.b16 %v1529, %v1521
  %v2034 = vpack.c.b16 %v1530, %v1522
  %v2035 = vpack.c.b16 %v1539, %v1531
  %v2036 = vpack.c.b16 %v1540, %v1532
  %v2037 = vpack.c.b16 %v1541, %v1533
  %v2038 = vpack.c.b16 %v1542, %v1534
  %v2039 = vpack.c.b16 %v1543, %v1535
  %v2040 = vpack.c.b16 %v1544, %v1536
  %v2041 = vpack.c.b16 %v1545, %v1537
  %v2042 = vpack.c.b16 %v1546, %v1538
  %v2043 = vpack.c.b16 %v1555, %v1547
  %v2044 = vpack.c.b16 %v1556, %v1548
  %v2045 = vpack.c.b16 %v1557, %v1549
  %v2046 = vpack.c.b16 %v1558, %v1550
  %v2047 = vpack.c.b16 %v1559, %v1551
  %v2048 = vpack.c.b16 %v1560, %v1552
  %v2049 = vpack.c.b16 %v1561, %v1553
  %v2050 = vpack.c.b16 %v1562, %v1554
  %v2051 = vpack.c.b16 %v1571, %v1563
  %v2052 = vpack.c.b16 %v1572, %v1564
  %v2053 = vpack.c.b16 %v1573, %v1565
  %v2054 = vpack.c.b16 %v1574, %v1566
  %v2055 = vpack.c.b16 %v1575, %v1567
  %v2056 = vpack.c.b16 %v1576, %v1568
  %v2057 = vpack.c.b16 %v1577, %v1569
  %v2058 = vpack.c.b16 %v1578, %v1570
  %v2059 = vpack.c.b16 %v1587, %v1579
  %v2060 = vpack.c.b16 %v1588, %v1580
  %v2061 = vpack.c.b16 %v1589, %v1581
  %v2062 = vpack.c.b16 %v1590, %v1582
  %v2063 = vpack.c.b16 %v1591, %v1583
  %v2064 = vpack.c.b16 %v1592, %v1584
  %v2065 = vpack.c.b16 %v1593, %v1585
  %v2066 = vpack.c.b16 %v1594, %v1586
  %v2067 = vpack.c.b16 %v1603, %v1595
  %v2068 = vpack.c.b16 %v1604, %v1596
  %v2069 = vpack.c.b16 %v1605, %v1597
  %v2070 = vpack.c.b16 %v1606, %v1598
  %v2071 = vpack.c.b16 %v1607, %v1599
  %v2072 = vpack.c.b16 %v1608, %v1600
  %v2073 = vpack.c.b16 %v1609, %v1601
  %v2074 = vpack.c.b16 %v1610, %v1602
  %v2075 = vpack.c.b16 %v1619, %v1611
  %v2076 = vpack.c.b16 %v1620, %v1612
  %v2077 = vpack.c.b16 %v1621, %v1613
  %v2078 = vpack.c.b16 %v1622, %v1614
  %v2079 = vpack.c.b16 %v1623, %v1615
  %v2080 = vpack.c.b16 %v1624, %v1616
  %v2081 = vpack.c.b16 %v1625, %v1617
  %v2082 = vpack.c.b16 %v1626, %v1618
  %v2083 = vpack.c.b16 %v1635, %v1627
  %v2084 = vpack.c.b16 %v1636, %v1628
  %v2085 = vpack.c.b16 %v1637, %v1629
  %v2086 = vpack.c.b16 %v1638, %v1630
  %v2087 = vpack.c.b16 %v1639, %v1631
  %v2088 = vpack.c.b16 %v1640, %v1632
  %v2089 = vpack.c.b16 %v1641, %v1633
  %v2090 = vpack.c.b16 %v1642, %v1634
  %v2091 = vpack.c.b16 %v1651, %v1643
  %v2092 = vpack.c.b16 %v1652, %v1644
  %v2093 = vpack.c.b16 %v1653, %v1645
  %v2094 = vpack.c.b16 %v1654, %v1646
  %v2095 = vpack.c.b16 %v1655, %v1647
  %v2096 = vpack.c.b16 %v1656, %v1648
  %v2097 = vpack.c.b16 %v1657, %v1649
  %v2098 = vpack.c.b16 %v1658, %v1650
  %v2099 = vpack.c.b16 %v1667, %v1659
  %v2100 = vpack.c.b16 %v1668, %v1660
  %v2101 = vpack.c.b16 %v1669, %v1661
  %v2102 = vpack.c.b16 %v1670, %v1662
  %v2103 = vpack.c.b16 %v1671, %v1663
  %v2104 = vpack.c.b16 %v1672, %v1664
  %v2105 = vpack.c.b16 %v1673, %v1665
  %v2106 = vpack.c.b16 %v1674, %v1666
  %v2107 = vpack.c.b16 %v1683, %v1675
  %v2108 = vpack.c.b16 %v1684, %v1676
  %v2109 = vpack.c.b16 %v1685, %v1677
  %v2110 = vpack.c.b16 %v1686, %v1678
  %v2111 = vpack.c.b16 %v1687, %v1679
  %v2112 = vpack.c.b16 %v1688, %v1680
  %v2113 = vpack.c.b16 %v1689, %v1681
  %v2114 = vpack.c.b16 %v1690, %v1682
  %v2115 = vpack.c.b16 %v1699, %v1691
  %v2116 = vpack.c.b16 %v1700, %v1692
  %v2117 = vpack.c.b16 %v1701, %v1693
  %v2118 = vpack.c.b16 %v1702, %v1694
  %v2119 = vpack.c.b16 %v1703, %v1695
  %v2120 = vpack.c.b16 %v1704, %v1696
  %v2121 = vpack.c.b16 %v1705, %v1697
  %v2122 = vpack.c.b16 %v1706, %v1698
  %v2123 = vpack.c.b16 %v1715, %v1707
  %v2124 = vpack.c.b16 %v1716, %v1708
  %v2125 = vpack.c.b16 %v1717, %v1709
  %v2126 = vpack.c.b16 %v1718, %v1710
  %v2127 = vpack.c.b16 %v1719, %v1711
  %v2128 = vpack.c.b16 %v1720, %v1712
  %v2129 = vpack.c.b16 %v1721, %v1713
  %v2130 = vpack.c.b16 %v1722, %v1714
  %v2131 = vpack.c.b16 %v1731, %v1723
  %v2132 = vpack.c.b16 %v1732, %v1724
  %v2133 = vpack.c.b16 %v1733, %v1725
  %v2134 = vpack.c.b16 %v1734, %v1726
  %v2135 = vpack.c.b16 %v1735, %v1727
  %v2136 = vpack.c.b16 %v1736, %v1728
  %v2137 = vpack.c.b16 %v1737, %v1729
  %v2138 = vpack.c.b16 %v1738, %v1730
  %v2139 = vpack.c.b16 %v1747, %v1739
  %v2140 = vpack.c.b16 %v1748, %v1740
  %v2141 = vpack.c.b16 %v1749, %v1741
  %v2142 = vpack.c.b16 %v1750, %v1742
  %v2143 = vpack.c.b16 %v1751, %v1743
  %v2144 = vpack.c.b16 %v1752, %v1744
  %v2145 = vpack.c.b16 %v1753, %v1745
  %v2146 = vpack.c.b16 %v1754, %v1746
  %v2147 = vpack.c.b16 %v1763, %v1755
  %v2148 = vpack.c.b16 %v1764, %v1756
  %v2149 = vpack.c.b16 %v1765, %v1757
  %v2150 = vpack.c.b16 %v1766, %v1758
  %v2151 = vpack.c.b16 %v1767, %v1759
  %v2152 = vpack.c.b16 %v1768, %v1760
  %v2153 = vpack.c.b16 %v1769, %v1761
  %v2154 = vpack.c.b16 %v1770, %v1762
  %v2155 = vpack.c.b16 %v1779, %v1771
  %v2156 = vpack.c.b16 %v1780, %v1772
  %v2157 = vpack.c.b16 %v1781, %v1773
  %v2158 = vpack.c.b16 %v1782, %v1774
  %v2159 = vpack.c.b16 %v1783, %v1775
  %v2160 = vpack.c.b16 %v1784, %v1776
  %v2161 = vpack.c.b16 %v1785, %v1777
  %v2162 = vpack.c.b16 %v1786, %v1778
  %v2163 = vpack.c.b16 %v1795, %v1787
  %v2164 = vpack.c.b16 %v1796, %v1788
  %v2165 = vpack.c.b16 %v1797, %v1789
  %v2166 = vpack.c.b16 %v1798, %v1790
  %v2167 = vpack.c.b16 %v1799, %v1791
  %v2168 = vpack.c.b16 %v1800, %v1792
  %v2169 = vpack.c.b16 %v1801, %v1793
  %v2170 = vpack.c.b16 %v1802, %v1794
  %v2171 = vpack.c.b16 %v1811, %v1803
  %v2172 = vpack.c.b16 %v1812, %v1804
  %v2173 = vpack.c.b16 %v1813, %v1805
  %v2174 = vpack.c.b16 %v1814, %v1806
  %v2175 = vpack.c.b16 %v1815, %v1807
  %v2176 = vpack.c.b16 %v1816, %v1808
  %v2177 = vpack.c.b16 %v1817, %v1809
  %v2178 = vpack.c.b16 %v1818, %v1810
  %v2179 = vpack.c.b16 %v1827, %v1819
  %v2180 = vpack.c.b16 %v1828, %v1820
  %v2181 = vpack.c.b16 %v1829, %v1821
  %v2182 = vpack.c.b16 %v1830, %v1822
  %v2183 = vpack.c.b16 %v1831, %v1823
  %v2184 = vpack.c.b16 %v1832, %v1824
  %v2185 = vpack.c.b16 %v1833, %v1825
  %v2186 = vpack.c.b16 %v1834, %v1826
  %v2187 = vpack.c.b16 %v1843, %v1835
  %v2188 = vpack.c.b16 %v1844, %v1836
  %v2189 = vpack.c.b16 %v1845, %v1837
  %v2190 = vpack.c.b16 %v1846, %v1838
  %v2191 = vpack.c.b16 %v1847, %v1839
  %v2192 = vpack.c.b16 %v1848, %v1840
  %v2193 = vpack.c.b16 %v1849, %v1841
  %v2194 = vpack.c.b16 %v1850, %v1842
  %v2195 = vpack.c.b16 %v1859, %v1851
  %v2196 = vpack.c.b16 %v1860, %v1852
  %v2197 = vpack.c.b16 %v1861, %v1853
  %v2198 = vpack.c.b16 %v1862, %v1854
  %v2199 = vpack.c.b16 %v1863, %v1855
  %v2200 = vpack.c.b16 %v1864, %v1856
  %v2201 = vpack.c.b16 %v1865, %v1857
  %v2202 = vpack.c.b16 %v1866, %v1858
  %v2203 = vpack.c.b16 %v1875, %v1867
  %v2204 = vpack.c.b16 %v1876, %v1868
  %v2205 = vpack.c.b16 %v1877, %v1869
  %v2206 = vpack.c.b16 %v1878, %v1870
  %v2207 = vpack.c.b16 %v1879, %v1871
  %v2208 = vpack.c.b16 %v1880, %v1872
  %v2209 = vpack.c.b16 %v1881, %v1873
  %v2210 = vpack.c.b16 %v1882, %v1874
  %v2211 = vpack.c.b16 %v1891, %v1883
  %v2212 = vpack.c.b16 %v1892, %v1884
  %v2213 = vpack.c.b16 %v1893, %v1885
  %v2214 = vpack.c.b16 %v1894, %v1886
  %v2215 = vpack.c.b16 %v1895, %v1887
  %v2216 = vpack.c.b16 %v1896, %v1888
  %v2217 = vpack.c.b16 %v1897, %v1889
  %v2218 = vpack.c.b16 %v1898, %v1890
  %v2219 = vpack.c.b16 %v1907, %v1899
  %v2220 = vpack.c.b16 %v1908, %v1900
  %v2221 = vpack.c.b16 %v1909, %v1901
  %v2222 = vpack.c.b16 %v1910, %v1902
  %v2223 = vpack.c.b16 %v1911, %v1903
  %v2224 = vpack.c.b16 %v1912, %v1904
  %v2225 = vpack.c.b16 %v1913, %v1905
  %v2226 = vpack.c.b16 %v1914, %v1906
  %v2227 = vpack.c.b16 %v1923, %v1915
  %v2228 = vpack.c.b16 %v1924, %v1916
  %v2229 = vpack.c.b16 %v1925, %v1917
  %v2230 = vpack.c.b16 %v1926, %v1918
  %v2231 = vpack.c.b16 %v1927, %v1919
  %v2232 = vpack.c.b16 %v1928, %v1920
  %v2233 = vpack.c.b16 %v1929, %v1921
  %v2234 = vpack.c.b16 %v1930, %v1922
  %v2235 = vpack.c.b16 %v1939, %v1931
  %v2236 = vpack.c.b16 %v1940, %v1932
  %v2237 = vpack.c.b16 %v1941, %v1933
  %v2238 = vpack.c.b16 %v1942, %v1934
  %v2239 = vpack.c.b16 %v1943, %v1935
  %v2240 = vpack.c.b16 %v1944, %v1936
  %v2241 = vpack.c.b16 %v1945, %v1937
  %v2242 = vpack.c.b16 %v1946, %v1938
  %v2243 = vpack.c.b16 %v1955, %v1947
  %v2244 = vpack.c.b16 %v1956, %v1948
  %v2245 = vpack.c.b16 %v1957, %v1949
  %v2246 = vpack.c.b16 %v1958, %v1950
  %v2247 = vpack.c.b16 %v1959, %v1951
  %v2248 = vpack.c.b16 %v1960, %v1952
  %v2249 = vpack.c.b16 %v1961, %v1953
  %v2250 = vpack.c.b16 %v1962, %v1954
  %v2251 = vpack.c.b16 %v1971, %v1963
  %v2252 = vpack.c.b16 %v1972, %v1964
  %v2253 = vpack.c.b16 %v1973, %v1965
  %v2254 = vpack.c.b16 %v1974, %v1966
  %v2255 = vpack.c.b16 %v1975, %v1967
  %v2256 = vpack.c.b16 %v1976, %v1968
  %v2257 = vpack.c.b16 %v1977, %v1969
  %v2258 = vpack.c.b16 %v1978, %v1970
  %v2259 = vpack.c.b16 %v1987, %v1979
  %v2260 = vpack.c.b16 %v1988, %v1980
  %v2261 = vpack.c.b16 %v1989, %v1981
  %v2262 = vpack.c.b16 %v1990, %v1982
  %v2263 = vpack.c.b16 %v1991, %v1983
  %v2264 = vpack.c.b16 %v1992, %v1984
  %v2265 = vpack.c.b16 %v1993, %v1985
  %v2266 = vpack.c.b16 %v1994, %v1986
  %v2267 = vpack.c.b16 %v2003, %v1995
  %v2268 = vpack.c.b16 %v2004, %v1996
  %v2269 = vpack.c.b16 %v2005, %v1997
  %v2270 = vpack.c.b16 %v2006, %v1998
  %v2271 = vpack.c.b16 %v2007, %v1999
  %v2272 = vpack.c.b16 %v2008, %v2000
  %v2273 = vpack.c.b16 %v2009, %v2001
  %v2274 = vpack.c.b16 %v2010, %v2002
  %v2275 = vpack.c.b16 %v2019, %v2011
  %v2276 = vpack.c.b16 %v2020, %v2012
  %v2277 = vpack.c.b16 %v2021, %v2013
  %v2278 = vpack.c.b16 %v2022, %v2014
  %v2279 = vpack.c.b16 %v2023, %v2015
  %v2280 = vpack.c.b16 %v2024, %v2016
  %v2281 = vpack.c.b16 %v2025, %v2017
  %v2282 = vpack.c.b16 %v2026, %v2018
  %2539 = vmatprep.subr.bf16.mxu0 %v2028
  %2540 = vmatpush1.bf16.msra.mxu0 %v2027
  %2541 = vmatprep.subr.bf16.mxu0 %v2036
  %2542 = vmatpush1.bf16.msra.mxu0 %v2035
  %2543 = vmatprep.subr.bf16.mxu0 %v2044
  %2544 = vmatpush1.bf16.msra.mxu0 %v2043
  %2545 = vmatprep.subr.bf16.mxu0 %v2052
  %2546 = vmatpush1.bf16.msra.mxu0 %v2051
  %2547 = vmatprep.subr.bf16.mxu0 %v2060
  %2548 = vmatpush1.bf16.msra.mxu0 %v2059
  %2549 = vmatprep.subr.bf16.mxu0 %v2068
  %2550 = vmatpush1.bf16.msra.mxu0 %v2067
  %2551 = vmatprep.subr.bf16.mxu0 %v2076
  %2552 = vmatpush1.bf16.msra.mxu0 %v2075
  %2553 = vmatprep.subr.bf16.mxu0 %v2084
  %2554 = vmatpush1.bf16.msra.mxu0 %v2083
  %2555 = vmatprep.subr.bf16.mxu0 %v2092
  %2556 = vmatpush1.bf16.msra.mxu0 %v2091
  %2557 = vmatprep.subr.bf16.mxu0 %v2100
  %2558 = vmatpush1.bf16.msra.mxu0 %v2099
  %2559 = vmatprep.subr.bf16.mxu0 %v2108
  %2560 = vmatpush1.bf16.msra.mxu0 %v2107
  %2561 = vmatprep.subr.bf16.mxu0 %v2116
  %2562 = vmatpush1.bf16.msra.mxu0 %v2115
  %2563 = vmatprep.subr.bf16.mxu0 %v2124
  %2564 = vmatpush1.bf16.msra.mxu0 %v2123
  %2565 = vmatprep.subr.bf16.mxu0 %v2132
  %2566 = vmatpush1.bf16.msra.mxu0 %v2131
  %2567 = vmatprep.subr.bf16.mxu0 %v2140
  %2568 = vmatpush1.bf16.msra.mxu0 %v2139
  %2569 = vmatprep.subr.bf16.mxu0 %v2148
  %2570 = vmatpush1.bf16.msra.mxu0 %v2147
  %2571 = vmatprep.mubr.bf16.mxu0 %v954
  %2572 = vmatmul.mubr.bf16.gmra.mrb[0].mxu0 %v953
  %v2573 = vpop.f32.mrb[0].mxu0
  %v2574 = vadd.f32 %v1222, %v2573
  %v2575 = vpop.f32.mrb[0].mxu0
  %v2576 = vadd.f32 %v1226, %v2575
  %v2577 = vpop.f32.mrb[0].mxu0
  %v2578 = vadd.f32 %v1222, %v2577
  %v2579 = vpop.f32.mrb[0].mxu0
  %v2580 = vadd.f32 %v1226, %v2579
  %2581 = vmatprep.mubr.bf16.mxu0 %v958
  %2582 = vmatmul.mubr.bf16.gmra.mrb[0].mxu0 %v957
  %v2583 = vpop.f32.mrb[0].mxu0
  %v2584 = vadd.f32 %v1222, %v2583
  %v2585 = vpop.f32.mrb[0].mxu0
  %v2586 = vadd.f32 %v1226, %v2585
  %v2587 = vpop.f32.mrb[0].mxu0
  %v2588 = vadd.f32 %v1222, %v2587
  %v2589 = vpop.f32.mrb[0].mxu0
  %v2590 = vadd.f32 %v1226, %v2589
  %2591 = vdwg.mxu0
  %2592 = vmatprep.subr.bf16.mxu0 %v2156
  %2593 = vmatpush1.bf16.msra.mxu0 %v2155
  %2594 = vmatprep.subr.bf16.mxu0 %v2164
  %2595 = vmatpush1.bf16.msra.mxu0 %v2163
  %2596 = vmatprep.subr.bf16.mxu0 %v2172
  %2597 = vmatpush1.bf16.msra.mxu0 %v2171
  %2598 = vmatprep.subr.bf16.mxu0 %v2180
  %2599 = vmatpush1.bf16.msra.mxu0 %v2179
  %2600 = vmatprep.subr.bf16.mxu0 %v2188
  %2601 = vmatpush1.bf16.msra.mxu0 %v2187
  %2602 = vmatprep.subr.bf16.mxu0 %v2196
  %2603 = vmatpush1.bf16.msra.mxu0 %v2195
  %2604 = vmatprep.subr.bf16.mxu0 %v2204
  %2605 = vmatpush1.bf16.msra.mxu0 %v2203
  %2606 = vmatprep.subr.bf16.mxu0 %v2212
  %2607 = vmatpush1.bf16.msra.mxu0 %v2211
  %2608 = vmatprep.subr.bf16.mxu0 %v2220
  %2609 = vmatpush1.bf16.msra.mxu0 %v2219
  %2610 = vmatprep.subr.bf16.mxu0 %v2228
  %2611 = vmatpush1.bf16.msra.mxu0 %v2227
  %2612 = vmatprep.subr.bf16.mxu0 %v2236
  %2613 = vmatpush1.bf16.msra.mxu0 %v2235
  %2614 = vmatprep.subr.bf16.mxu0 %v2244
  %2615 = vmatpush1.bf16.msra.mxu0 %v2243
  %2616 = vmatprep.subr.bf16.mxu0 %v2252
  %2617 = vmatpush1.bf16.msra.mxu0 %v2251
  %2618 = vmatprep.subr.bf16.mxu0 %v2260
  %2619 = vmatpush1.bf16.msra.mxu0 %v2259
  %2620 = vmatprep.subr.bf16.mxu0 %v2268
  %2621 = vmatpush1.bf16.msra.mxu0 %v2267
  %2622 = vmatprep.subr.bf16.mxu0 %v2276
  %2623 = vmatpush1.bf16.msra.mxu0 %v2275
  %2624 = vmatprep.mubr.bf16.mxu0 %v956
  %2625 = vmatmul.mubr.bf16.gmra.mrb[0].mxu0 %v955
  %v2626 = vpop.f32.mrb[0].mxu0
  %v2627 = vadd.f32 %v2574, %v2626
  %v2628 = vpop.f32.mrb[0].mxu0
  %v2629 = vadd.f32 %v2576, %v2628
  %v2630 = vpop.f32.mrb[0].mxu0
  %v2631 = vadd.f32 %v2578, %v2630
  %v2632 = vpop.f32.mrb[0].mxu0
  %v2633 = vadd.f32 %v2580, %v2632
  %2634 = vmatprep.mubr.bf16.mxu0 %v960
  %2635 = vmatmul.mubr.bf16.gmra.mrb[0].mxu0 %v959
  %v2636 = vpop.f32.mrb[0].mxu0
  %v2637 = vadd.f32 %v2584, %v2636
  %v2638 = vpop.f32.mrb[0].mxu0
  %v2639 = vadd.f32 %v2586, %v2638
  %v2640 = vpop.f32.mrb[0].mxu0
  %v2641 = vadd.f32 %v2588, %v2640
  %v2642 = vpop.f32.mrb[0].mxu0
  %v2643 = vadd.f32 %v2590, %v2642
  %2644 = vdwg.mxu0
  %2645 = vmatprep.subr.bf16.mxu0 %v2030
  %2646 = vmatpush1.bf16.msra.mxu0 %v2029
  %2647 = vmatprep.subr.bf16.mxu0 %v2038
  %2648 = vmatpush1.bf16.msra.mxu0 %v2037
  %2649 = vmatprep.subr.bf16.mxu0 %v2046
  %2650 = vmatpush1.bf16.msra.mxu0 %v2045
  %2651 = vmatprep.subr.bf16.mxu0 %v2054
  %2652 = vmatpush1.bf16.msra.mxu0 %v2053
  %2653 = vmatprep.subr.bf16.mxu0 %v2062
  %2654 = vmatpush1.bf16.msra.mxu0 %v2061
  %2655 = vmatprep.subr.bf16.mxu0 %v2070
  %2656 = vmatpush1.bf16.msra.mxu0 %v2069
  %2657 = vmatprep.subr.bf16.mxu0 %v2078
  %2658 = vmatpush1.bf16.msra.mxu0 %v2077
  %2659 = vmatprep.subr.bf16.mxu0 %v2086
  %2660 = vmatpush1.bf16.msra.mxu0 %v2085
  %2661 = vmatprep.subr.bf16.mxu0 %v2094
  %2662 = vmatpush1.bf16.msra.mxu0 %v2093
  %2663 = vmatprep.subr.bf16.mxu0 %v2102
  %2664 = vmatpush1.bf16.msra.mxu0 %v2101
  %2665 = vmatprep.subr.bf16.mxu0 %v2110
  %2666 = vmatpush1.bf16.msra.mxu0 %v2109
  %2667 = vmatprep.subr.bf16.mxu0 %v2118
  %2668 = vmatpush1.bf16.msra.mxu0 %v2117
  %2669 = vmatprep.subr.bf16.mxu0 %v2126
  %2670 = vmatpush1.bf16.msra.mxu0 %v2125
  %2671 = vmatprep.subr.bf16.mxu0 %v2134
  %2672 = vmatpush1.bf16.msra.mxu0 %v2133
  %2673 = vmatprep.subr.bf16.mxu0 %v2142
  %2674 = vmatpush1.bf16.msra.mxu0 %v2141
  %2675 = vmatprep.subr.bf16.mxu0 %v2150
  %2676 = vmatpush1.bf16.msra.mxu0 %v2149
  %2677 = vmatprep.mubr.bf16.mxu0 %v954
  %2678 = vmatmul.mubr.bf16.gmra.mrb[0].mxu0 %v953
  %v2679 = vpop.f32.mrb[0].mxu0
  %v2680 = vadd.f32 %v1230, %v2679
  %v2681 = vpop.f32.mrb[0].mxu0
  %v2682 = vadd.f32 %v1234, %v2681
  %v2683 = vpop.f32.mrb[0].mxu0
  %v2684 = vadd.f32 %v1230, %v2683
  %v2685 = vpop.f32.mrb[0].mxu0
  %v2686 = vadd.f32 %v1234, %v2685
  %2687 = vmatprep.mubr.bf16.mxu0 %v958
  %2688 = vmatmul.mubr.bf16.gmra.mrb[0].mxu0 %v957
  %v2689 = vpop.f32.mrb[0].mxu0
  %v2690 = vadd.f32 %v1230, %v2689
  %v2691 = vpop.f32.mrb[0].mxu0
  %v2692 = vadd.f32 %v1234, %v2691
  %v2693 = vpop.f32.mrb[0].mxu0
  %v2694 = vadd.f32 %v1230, %v2693
  %v2695 = vpop.f32.mrb[0].mxu0
  %v2696 = vadd.f32 %v1234, %v2695
  %2697 = vdwg.mxu0
  %2698 = vmatprep.subr.bf16.mxu0 %v2158
  %2699 = vmatpush1.bf16.msra.mxu0 %v2157
  %2700 = vmatprep.subr.bf16.mxu0 %v2166
  %2701 = vmatpush1.bf16.msra.mxu0 %v2165
  %2702 = vmatprep.subr.bf16.mxu0 %v2174
  %2703 = vmatpush1.bf16.msra.mxu0 %v2173
  %2704 = vmatprep.subr.bf16.mxu0 %v2182
  %2705 = vmatpush1.bf16.msra.mxu0 %v2181
  %2706 = vmatprep.subr.bf16.mxu0 %v2190
  %2707 = vmatpush1.bf16.msra.mxu0 %v2189
  %2708 = vmatprep.subr.bf16.mxu0 %v2198
  %2709 = vmatpush1.bf16.msra.mxu0 %v2197
  %2710 = vmatprep.subr.bf16.mxu0 %v2206
  %2711 = vmatpush1.bf16.msra.mxu0 %v2205
  %2712 = vmatprep.subr.bf16.mxu0 %v2214
  %2713 = vmatpush1.bf16.msra.mxu0 %v2213
  %2714 = vmatprep.subr.bf16.mxu0 %v2222
  %2715 = vmatpush1.bf16.msra.mxu0 %v2221
  %2716 = vmatprep.subr.bf16.mxu0 %v2230
  %2717 = vmatpush1.bf16.msra.mxu0 %v2229
  %2718 = vmatprep.subr.bf16.mxu0 %v2238
  %2719 = vmatpush1.bf16.msra.mxu0 %v2237
  %2720 = vmatprep.subr.bf16.mxu0 %v2246
  %2721 = vmatpush1.bf16.msra.mxu0 %v2245
  %2722 = vmatprep.subr.bf16.mxu0 %v2254
  %2723 = vmatpush1.bf16.msra.mxu0 %v2253
  %2724 = vmatprep.subr.bf16.mxu0 %v2262
  %2725 = vmatpush1.bf16.msra.mxu0 %v2261
  %2726 = vmatprep.subr.bf16.mxu0 %v2270
  %2727 = vmatpush1.bf16.msra.mxu0 %v2269
  %2728 = vmatprep.subr.bf16.mxu0 %v2278
  %2729 = vmatpush1.bf16.msra.mxu0 %v2277
  %2730 = vmatprep.mubr.bf16.mxu0 %v956
  %2731 = vmatmul.mubr.bf16.gmra.mrb[0].mxu0 %v955
  %v2732 = vpop.f32.mrb[0].mxu0
  %v2733 = vadd.f32 %v2680, %v2732
  %v2734 = vpop.f32.mrb[0].mxu0
  %v2735 = vadd.f32 %v2682, %v2734
  %v2736 = vpop.f32.mrb[0].mxu0
  %v2737 = vadd.f32 %v2684, %v2736
  %v2738 = vpop.f32.mrb[0].mxu0
  %v2739 = vadd.f32 %v2686, %v2738
  %2740 = vmatprep.mubr.bf16.mxu0 %v960
  %2741 = vmatmul.mubr.bf16.gmra.mrb[0].mxu0 %v959
  %v2742 = vpop.f32.mrb[0].mxu0
  %v2743 = vadd.f32 %v2690, %v2742
  %v2744 = vpop.f32.mrb[0].mxu0
  %v2745 = vadd.f32 %v2692, %v2744
  %v2746 = vpop.f32.mrb[0].mxu0
  %v2747 = vadd.f32 %v2694, %v2746
  %v2748 = vpop.f32.mrb[0].mxu0
  %v2749 = vadd.f32 %v2696, %v2748
  %2750 = vdwg.mxu0
  %2751 = vmatprep.subr.bf16.mxu0 %v2032
  %2752 = vmatpush1.bf16.msra.mxu0 %v2031
  %2753 = vmatprep.subr.bf16.mxu0 %v2040
  %2754 = vmatpush1.bf16.msra.mxu0 %v2039
  %2755 = vmatprep.subr.bf16.mxu0 %v2048
  %2756 = vmatpush1.bf16.msra.mxu0 %v2047
  %2757 = vmatprep.subr.bf16.mxu0 %v2056
  %2758 = vmatpush1.bf16.msra.mxu0 %v2055
  %2759 = vmatprep.subr.bf16.mxu0 %v2064
  %2760 = vmatpush1.bf16.msra.mxu0 %v2063
  %2761 = vmatprep.subr.bf16.mxu0 %v2072
  %2762 = vmatpush1.bf16.msra.mxu0 %v2071
  %2763 = vmatprep.subr.bf16.mxu0 %v2080
  %2764 = vmatpush1.bf16.msra.mxu0 %v2079
  %2765 = vmatprep.subr.bf16.mxu0 %v2088
  %2766 = vmatpush1.bf16.msra.mxu0 %v2087
  %2767 = vmatprep.subr.bf16.mxu0 %v2096
  %2768 = vmatpush1.bf16.msra.mxu0 %v2095
  %2769 = vmatprep.subr.bf16.mxu0 %v2104
  %2770 = vmatpush1.bf16.msra.mxu0 %v2103
  %2771 = vmatprep.subr.bf16.mxu0 %v2112
  %2772 = vmatpush1.bf16.msra.mxu0 %v2111
  %2773 = vmatprep.subr.bf16.mxu0 %v2120
  %2774 = vmatpush1.bf16.msra.mxu0 %v2119
  %2775 = vmatprep.subr.bf16.mxu0 %v2128
  %2776 = vmatpush1.bf16.msra.mxu0 %v2127
  %2777 = vmatprep.subr.bf16.mxu0 %v2136
  %2778 = vmatpush1.bf16.msra.mxu0 %v2135
  %2779 = vmatprep.subr.bf16.mxu0 %v2144
  %2780 = vmatpush1.bf16.msra.mxu0 %v2143
  %2781 = vmatprep.subr.bf16.mxu0 %v2152
  %2782 = vmatpush1.bf16.msra.mxu0 %v2151
  %2783 = vmatprep.mubr.bf16.mxu0 %v954
  %2784 = vmatmul.mubr.bf16.gmra.mrb[0].mxu0 %v953
  %v2785 = vpop.f32.mrb[0].mxu0
  %v2786 = vadd.f32 %v1238, %v2785
  %v2787 = vpop.f32.mrb[0].mxu0
  %v2788 = vadd.f32 %v1242, %v2787
  %v2789 = vpop.f32.mrb[0].mxu0
  %v2790 = vadd.f32 %v1238, %v2789
  %v2791 = vpop.f32.mrb[0].mxu0
  %v2792 = vadd.f32 %v1242, %v2791
  %2793 = vmatprep.mubr.bf16.mxu0 %v958
  %2794 = vmatmul.mubr.bf16.gmra.mrb[0].mxu0 %v957
  %v2795 = vpop.f32.mrb[0].mxu0
  %v2796 = vadd.f32 %v1238, %v2795
  %v2797 = vpop.f32.mrb[0].mxu0
  %v2798 = vadd.f32 %v1242, %v2797
  %v2799 = vpop.f32.mrb[0].mxu0
  %v2800 = vadd.f32 %v1238, %v2799
  %v2801 = vpop.f32.mrb[0].mxu0
  %v2802 = vadd.f32 %v1242, %v2801
  %2803 = vdwg.mxu0
  %2804 = vmatprep.subr.bf16.mxu0 %v2160
  %2805 = vmatpush1.bf16.msra.mxu0 %v2159
  %2806 = vmatprep.subr.bf16.mxu0 %v2168
  %2807 = vmatpush1.bf16.msra.mxu0 %v2167
  %2808 = vmatprep.subr.bf16.mxu0 %v2176
  %2809 = vmatpush1.bf16.msra.mxu0 %v2175
  %2810 = vmatprep.subr.bf16.mxu0 %v2184
  %2811 = vmatpush1.bf16.msra.mxu0 %v2183
  %2812 = vmatprep.subr.bf16.mxu0 %v2192
  %2813 = vmatpush1.bf16.msra.mxu0 %v2191
  %2814 = vmatprep.subr.bf16.mxu0 %v2200
  %2815 = vmatpush1.bf16.msra.mxu0 %v2199
  %2816 = vmatprep.subr.bf16.mxu0 %v2208
  %2817 = vmatpush1.bf16.msra.mxu0 %v2207
  %2818 = vmatprep.subr.bf16.mxu0 %v2216
  %2819 = vmatpush1.bf16.msra.mxu0 %v2215
  %2820 = vmatprep.subr.bf16.mxu0 %v2224
  %2821 = vmatpush1.bf16.msra.mxu0 %v2223
  %2822 = vmatprep.subr.bf16.mxu0 %v2232
  %2823 = vmatpush1.bf16.msra.mxu0 %v2231
  %2824 = vmatprep.subr.bf16.mxu0 %v2240
  %2825 = vmatpush1.bf16.msra.mxu0 %v2239
  %2826 = vmatprep.subr.bf16.mxu0 %v2248
  %2827 = vmatpush1.bf16.msra.mxu0 %v2247
  %2828 = vmatprep.subr.bf16.mxu0 %v2256
  %2829 = vmatpush1.bf16.msra.mxu0 %v2255
  %2830 = vmatprep.subr.bf16.mxu0 %v2264
  %2831 = vmatpush1.bf16.msra.mxu0 %v2263
  %2832 = vmatprep.subr.bf16.mxu0 %v2272
  %2833 = vmatpush1.bf16.msra.mxu0 %v2271
  %2834 = vmatprep.subr.bf16.mxu0 %v2280
  %2835 = vmatpush1.bf16.msra.mxu0 %v2279
  %2836 = vmatprep.mubr.bf16.mxu0 %v956
  %2837 = vmatmul.mubr.bf16.gmra.mrb[0].mxu0 %v955
  %v2838 = vpop.f32.mrb[0].mxu0
  %v2839 = vadd.f32 %v2786, %v2838
  %v2840 = vpop.f32.mrb[0].mxu0
  %v2841 = vadd.f32 %v2788, %v2840
  %v2842 = vpop.f32.mrb[0].mxu0
  %v2843 = vadd.f32 %v2790, %v2842
  %v2844 = vpop.f32.mrb[0].mxu0
  %v2845 = vadd.f32 %v2792, %v2844
  %2846 = vmatprep.mubr.bf16.mxu0 %v960
  %2847 = vmatmul.mubr.bf16.gmra.mrb[0].mxu0 %v959
  %v2848 = vpop.f32.mrb[0].mxu0
  %v2849 = vadd.f32 %v2796, %v2848
  %v2850 = vpop.f32.mrb[0].mxu0
  %v2851 = vadd.f32 %v2798, %v2850
  %v2852 = vpop.f32.mrb[0].mxu0
  %v2853 = vadd.f32 %v2800, %v2852
  %v2854 = vpop.f32.mrb[0].mxu0
  %v2855 = vadd.f32 %v2802, %v2854
  %2856 = vdwg.mxu0
  %2857 = vmatprep.subr.bf16.mxu0 %v2034
  %2858 = vmatpush1.bf16.msra.mxu0 %v2033
  %2859 = vmatprep.subr.bf16.mxu0 %v2042
  %2860 = vmatpush1.bf16.msra.mxu0 %v2041
  %2861 = vmatprep.subr.bf16.mxu0 %v2050
  %2862 = vmatpush1.bf16.msra.mxu0 %v2049
  %2863 = vmatprep.subr.bf16.mxu0 %v2058
  %2864 = vmatpush1.bf16.msra.mxu0 %v2057
  %2865 = vmatprep.subr.bf16.mxu0 %v2066
  %2866 = vmatpush1.bf16.msra.mxu0 %v2065
  %2867 = vmatprep.subr.bf16.mxu0 %v2074
  %2868 = vmatpush1.bf16.msra.mxu0 %v2073
  %2869 = vmatprep.subr.bf16.mxu0 %v2082
  %2870 = vmatpush1.bf16.msra.mxu0 %v2081
  %2871 = vmatprep.subr.bf16.mxu0 %v2090
  %2872 = vmatpush1.bf16.msra.mxu0 %v2089
  %2873 = vmatprep.subr.bf16.mxu0 %v2098
  %2874 = vmatpush1.bf16.msra.mxu0 %v2097
  %2875 = vmatprep.subr.bf16.mxu0 %v2106
  %2876 = vmatpush1.bf16.msra.mxu0 %v2105
  %2877 = vmatprep.subr.bf16.mxu0 %v2114
  %2878 = vmatpush1.bf16.msra.mxu0 %v2113
  %2879 = vmatprep.subr.bf16.mxu0 %v2122
  %2880 = vmatpush1.bf16.msra.mxu0 %v2121
  %2881 = vmatprep.subr.bf16.mxu0 %v2130
  %2882 = vmatpush1.bf16.msra.mxu0 %v2129
  %2883 = vmatprep.subr.bf16.mxu0 %v2138
  %2884 = vmatpush1.bf16.msra.mxu0 %v2137
  %2885 = vmatprep.subr.bf16.mxu0 %v2146
  %2886 = vmatpush1.bf16.msra.mxu0 %v2145
  %2887 = vmatprep.subr.bf16.mxu0 %v2154
  %2888 = vmatpush1.bf16.msra.mxu0 %v2153
  %2889 = vmatprep.mubr.bf16.mxu0 %v954
  %2890 = vmatmul.mubr.bf16.gmra.mrb[0].mxu0 %v953
  %v2891 = vpop.f32.mrb[0].mxu0
  %v2892 = vadd.f32 %v1246, %v2891
  %v2893 = vpop.f32.mrb[0].mxu0
  %v2894 = vadd.f32 %v1250, %v2893
  %v2895 = vpop.f32.mrb[0].mxu0
  %v2896 = vadd.f32 %v1246, %v2895
  %v2897 = vpop.f32.mrb[0].mxu0
  %v2898 = vadd.f32 %v1250, %v2897
  %2899 = vmatprep.mubr.bf16.mxu0 %v958
  %2900 = vmatmul.mubr.bf16.gmra.mrb[0].mxu0 %v957
  %v2901 = vpop.f32.mrb[0].mxu0
  %v2902 = vadd.f32 %v1246, %v2901
  %v2903 = vpop.f32.mrb[0].mxu0
  %v2904 = vadd.f32 %v1250, %v2903
  %v2905 = vpop.f32.mrb[0].mxu0
  %v2906 = vadd.f32 %v1246, %v2905
  %v2907 = vpop.f32.mrb[0].mxu0
  %v2908 = vadd.f32 %v1250, %v2907
  %2909 = vdwg.mxu0
  %2910 = vmatprep.subr.bf16.mxu0 %v2162
  %2911 = vmatpush1.bf16.msra.mxu0 %v2161
  %2912 = vmatprep.subr.bf16.mxu0 %v2170
  %2913 = vmatpush1.bf16.msra.mxu0 %v2169
  %2914 = vmatprep.subr.bf16.mxu0 %v2178
  %2915 = vmatpush1.bf16.msra.mxu0 %v2177
  %2916 = vmatprep.subr.bf16.mxu0 %v2186
  %2917 = vmatpush1.bf16.msra.mxu0 %v2185
  %2918 = vmatprep.subr.bf16.mxu0 %v2194
  %2919 = vmatpush1.bf16.msra.mxu0 %v2193
  %2920 = vmatprep.subr.bf16.mxu0 %v2202
  %2921 = vmatpush1.bf16.msra.mxu0 %v2201
  %2922 = vmatprep.subr.bf16.mxu0 %v2210
  %2923 = vmatpush1.bf16.msra.mxu0 %v2209
  %2924 = vmatprep.subr.bf16.mxu0 %v2218
  %2925 = vmatpush1.bf16.msra.mxu0 %v2217
  %2926 = vmatprep.subr.bf16.mxu0 %v2226
  %2927 = vmatpush1.bf16.msra.mxu0 %v2225
  %2928 = vmatprep.subr.bf16.mxu0 %v2234
  %2929 = vmatpush1.bf16.msra.mxu0 %v2233
  %2930 = vmatprep.subr.bf16.mxu0 %v2242
  %2931 = vmatpush1.bf16.msra.mxu0 %v2241
  %2932 = vmatprep.subr.bf16.mxu0 %v2250
  %2933 = vmatpush1.bf16.msra.mxu0 %v2249
  %2934 = vmatprep.subr.bf16.mxu0 %v2258
  %2935 = vmatpush1.bf16.msra.mxu0 %v2257
  %2936 = vmatprep.subr.bf16.mxu0 %v2266
  %2937 = vmatpush1.bf16.msra.mxu0 %v2265
  %2938 = vmatprep.subr.bf16.mxu0 %v2274
  %2939 = vmatpush1.bf16.msra.mxu0 %v2273
  %2940 = vmatprep.subr.bf16.mxu0 %v2282
  %2941 = vmatpush1.bf16.msra.mxu0 %v2281
  %2942 = vmatprep.mubr.bf16.mxu0 %v956
  %2943 = vmatmul.mubr.bf16.gmra.mrb[0].mxu0 %v955
  %v2944 = vpop.f32.mrb[0].mxu0
  %v2945 = vadd.f32 %v2892, %v2944
  %v2946 = vpop.f32.mrb[0].mxu0
  %v2947 = vadd.f32 %v2894, %v2946
  %v2948 = vpop.f32.mrb[0].mxu0
  %v2949 = vadd.f32 %v2896, %v2948
  %v2950 = vpop.f32.mrb[0].mxu0
  %v2951 = vadd.f32 %v2898, %v2950
  %2952 = vmatprep.mubr.bf16.mxu0 %v960
  %2953 = vmatmul.mubr.bf16.gmra.mrb[0].mxu0 %v959
  %v2954 = vpop.f32.mrb[0].mxu0
  %v2955 = vadd.f32 %v2902, %v2954
  %v2956 = vpop.f32.mrb[0].mxu0
  %v2957 = vadd.f32 %v2904, %v2956
  %v2958 = vpop.f32.mrb[0].mxu0
  %v2959 = vadd.f32 %v2906, %v2958
  %v2960 = vpop.f32.mrb[0].mxu0
  %v2961 = vadd.f32 %v2908, %v2960
  %2962 = vdwg.mxu0
  %v2963 = vmax.f32 %v2627, 0.0
  %v2964 = vmax.f32 %v2629, 0.0
  %v2965 = vmax.f32 %v2733, 0.0
  %v2966 = vmax.f32 %v2735, 0.0
  %v2967 = vmax.f32 %v2839, 0.0
  %v2968 = vmax.f32 %v2841, 0.0
  %v2969 = vmax.f32 %v2945, 0.0
  %v2970 = vmax.f32 %v2947, 0.0
  %v2971 = vmax.f32 %v2631, 0.0
  %v2972 = vmax.f32 %v2633, 0.0
  %v2973 = vmax.f32 %v2737, 0.0
  %v2974 = vmax.f32 %v2739, 0.0
  %v2975 = vmax.f32 %v2843, 0.0
  %v2976 = vmax.f32 %v2845, 0.0
  %v2977 = vmax.f32 %v2949, 0.0
  %v2978 = vmax.f32 %v2951, 0.0
  %v2979 = vmax.f32 %v2637, 0.0
  %v2980 = vmax.f32 %v2639, 0.0
  %v2981 = vmax.f32 %v2743, 0.0
  %v2982 = vmax.f32 %v2745, 0.0
  %v2983 = vmax.f32 %v2849, 0.0
  %v2984 = vmax.f32 %v2851, 0.0
  %v2985 = vmax.f32 %v2955, 0.0
  %v2986 = vmax.f32 %v2957, 0.0
  %v2987 = vmax.f32 %v2641, 0.0
  %v2988 = vmax.f32 %v2643, 0.0
  %v2989 = vmax.f32 %v2747, 0.0
  %v2990 = vmax.f32 %v2749, 0.0
  %v2991 = vmax.f32 %v2853, 0.0
  %v2992 = vmax.f32 %v2855, 0.0
  %v2993 = vmax.f32 %v2959, 0.0
  %v2994 = vmax.f32 %v2961, 0.0
  %v2995 = vmax.f32 %v2963, %v2971
  %v2996 = vrot.slane %v2995, 4
  %v2997 = vmax.f32 %v2995, %v2996
  %v2998 = vrot.slane %v2997, 2
  %v2999 = vmax.f32 %v2997, %v2998
  %v3000 = vrot.slane %v2999, 1
  %v3001 = vmax.f32 %v2999, %v3000
  %v3002 = vmax.f32 %v2964, %v2972
  %v3003 = vrot.slane %v3002, 4
  %v3004 = vmax.f32 %v3002, %v3003
  %v3005 = vrot.slane %v3004, 2
  %v3006 = vmax.f32 %v3004, %v3005
  %v3007 = vrot.slane %v3006, 1
  %v3008 = vmax.f32 %v3006, %v3007
  %v3009 = vmax.f32 %v2965, %v2973
  %v3010 = vrot.slane %v3009, 4
  %v3011 = vmax.f32 %v3009, %v3010
  %v3012 = vrot.slane %v3011, 2
  %v3013 = vmax.f32 %v3011, %v3012
  %v3014 = vrot.slane %v3013, 1
  %v3015 = vmax.f32 %v3013, %v3014
  %v3016 = vmax.f32 %v2966, %v2974
  %v3017 = vrot.slane %v3016, 4
  %v3018 = vmax.f32 %v3016, %v3017
  %v3019 = vrot.slane %v3018, 2
  %v3020 = vmax.f32 %v3018, %v3019
  %v3021 = vrot.slane %v3020, 1
  %v3022 = vmax.f32 %v3020, %v3021
  %v3023 = vmax.f32 %v2967, %v2975
  %v3024 = vrot.slane %v3023, 4
  %v3025 = vmax.f32 %v3023, %v3024
  %v3026 = vrot.slane %v3025, 2
  %v3027 = vmax.f32 %v3025, %v3026
  %v3028 = vrot.slane %v3027, 1
  %v3029 = vmax.f32 %v3027, %v3028
  %v3030 = vmax.f32 %v2968, %v2976
  %v3031 = vrot.slane %v3030, 4
  %v3032 = vmax.f32 %v3030, %v3031
  %v3033 = vrot.slane %v3032, 2
  %v3034 = vmax.f32 %v3032, %v3033
  %v3035 = vrot.slane %v3034, 1
  %v3036 = vmax.f32 %v3034, %v3035
  %v3037 = vmax.f32 %v2969, %v2977
  %v3038 = vrot.slane %v3037, 4
  %v3039 = vmax.f32 %v3037, %v3038
  %v3040 = vrot.slane %v3039, 2
  %v3041 = vmax.f32 %v3039, %v3040
  %v3042 = vrot.slane %v3041, 1
  %v3043 = vmax.f32 %v3041, %v3042
  %v3044 = vmax.f32 %v2970, %v2978
  %v3045 = vrot.slane %v3044, 4
  %v3046 = vmax.f32 %v3044, %v3045
  %v3047 = vrot.slane %v3046, 2
  %v3048 = vmax.f32 %v3046, %v3047
  %v3049 = vrot.slane %v3048, 1
  %v3050 = vmax.f32 %v3048, %v3049
  %v3051 = vmax.f32 %v2979, %v2987
  %v3052 = vrot.slane %v3051, 4
  %v3053 = vmax.f32 %v3051, %v3052
  %v3054 = vrot.slane %v3053, 2
  %v3055 = vmax.f32 %v3053, %v3054
  %v3056 = vrot.slane %v3055, 1
  %v3057 = vmax.f32 %v3055, %v3056
  %v3058 = vmax.f32 %v2980, %v2988
  %v3059 = vrot.slane %v3058, 4
  %v3060 = vmax.f32 %v3058, %v3059
  %v3061 = vrot.slane %v3060, 2
  %v3062 = vmax.f32 %v3060, %v3061
  %v3063 = vrot.slane %v3062, 1
  %v3064 = vmax.f32 %v3062, %v3063
  %v3065 = vmax.f32 %v2981, %v2989
  %v3066 = vrot.slane %v3065, 4
  %v3067 = vmax.f32 %v3065, %v3066
  %v3068 = vrot.slane %v3067, 2
  %v3069 = vmax.f32 %v3067, %v3068
  %v3070 = vrot.slane %v3069, 1
  %v3071 = vmax.f32 %v3069, %v3070
  %v3072 = vmax.f32 %v2982, %v2990
  %v3073 = vrot.slane %v3072, 4
  %v3074 = vmax.f32 %v3072, %v3073
  %v3075 = vrot.slane %v3074, 2
  %v3076 = vmax.f32 %v3074, %v3075
  %v3077 = vrot.slane %v3076, 1
  %v3078 = vmax.f32 %v3076, %v3077
  %v3079 = vmax.f32 %v2983, %v2991
  %v3080 = vrot.slane %v3079, 4
  %v3081 = vmax.f32 %v3079, %v3080
  %v3082 = vrot.slane %v3081, 2
  %v3083 = vmax.f32 %v3081, %v3082
  %v3084 = vrot.slane %v3083, 1
  %v3085 = vmax.f32 %v3083, %v3084
  %v3086 = vmax.f32 %v2984, %v2992
  %v3087 = vrot.slane %v3086, 4
  %v3088 = vmax.f32 %v3086, %v3087
  %v3089 = vrot.slane %v3088, 2
  %v3090 = vmax.f32 %v3088, %v3089
  %v3091 = vrot.slane %v3090, 1
  %v3092 = vmax.f32 %v3090, %v3091
  %v3093 = vmax.f32 %v2985, %v2993
  %v3094 = vrot.slane %v3093, 4
  %v3095 = vmax.f32 %v3093, %v3094
  %v3096 = vrot.slane %v3095, 2
  %v3097 = vmax.f32 %v3095, %v3096
  %v3098 = vrot.slane %v3097, 1
  %v3099 = vmax.f32 %v3097, %v3098
  %v3100 = vmax.f32 %v2986, %v2994
  %v3101 = vrot.slane %v3100, 4
  %v3102 = vmax.f32 %v3100, %v3101
  %v3103 = vrot.slane %v3102, 2
  %v3104 = vmax.f32 %v3102, %v3103
  %v3105 = vrot.slane %v3104, 1
  %v3106 = vmax.f32 %v3104, %v3105
  %v3107 = vpack.c.bf16 %v3001, %v3001
  %v3108 = vpack.c.bf16 %v3008, %v3008
  %v3109 = vpack.c.bf16 %v3015, %v3015
  %v3110 = vpack.c.bf16 %v3022, %v3022
  %v3111 = vpack.c.bf16 %v3029, %v3029
  %v3112 = vpack.c.bf16 %v3036, %v3036
  %v3113 = vpack.c.bf16 %v3043, %v3043
  %v3114 = vpack.c.bf16 %v3050, %v3050
  %v3115 = vpack.c.bf16 %v3057, %v3057
  %v3116 = vpack.c.bf16 %v3064, %v3064
  %v3117 = vpack.c.bf16 %v3071, %v3071
  %v3118 = vpack.c.bf16 %v3078, %v3078
  %v3119 = vpack.c.bf16 %v3085, %v3085
  %v3120 = vpack.c.bf16 %v3092, %v3092
  %v3121 = vpack.c.bf16 %v3099, %v3099
  %v3122 = vpack.c.bf16 %v3106, %v3106
  %v3139 = vcombine.low %v3107, %v3108
  %v3140 = vcombine.low %v3109, %v3110
  %v3141 = vcombine.low %v3111, %v3112
  %v3142 = vcombine.low %v3113, %v3114
  %v3144 = vunpack.c.l.s4 1966171168
  %v3145 = vunpack.c.0.s8 %v3144
  %v3146 = vlaneseq
  %v3147 = vshrl.u32 %v3146, 7
  %v3148 = vsub.s32 %v3145, %v3147
  %v3149 = vrot.slane %v3139, %v3148
  %v3151 = vunpack.c.l.s4 1966171168
  %v3152 = vunpack.c.0.s8 %v3151
  %v3153 = vlaneseq
  %v3154 = vshrl.u32 %v3153, 7
  %v3155 = vsub.s32 %v3152, %v3154
  %v3156 = vrot.slane %v3140, %v3155
  %v3158 = vunpack.c.l.s4 1966171168
  %v3159 = vunpack.c.0.s8 %v3158
  %v3160 = vlaneseq
  %v3161 = vshrl.u32 %v3160, 7
  %v3162 = vsub.s32 %v3159, %v3161
  %v3163 = vrot.slane %v3141, %v3162
  %v3165 = vunpack.c.l.s4 1966171168
  %v3166 = vunpack.c.0.s8 %v3165
  %v3167 = vlaneseq
  %v3168 = vshrl.u32 %v3167, 7
  %v3169 = vsub.s32 %v3166, %v3168
  %v3170 = vrot.slane %v3142, %v3169
  %v3171 = vcombine.low %v3149, %v3156
  %v3172 = vcombine.low %v3163, %v3170
  %v3174 = vunpack.c.l.s4 1966171168
  %v3175 = vunpack.c.0.s8 %v3174
  %v3176 = vlaneseq
  %v3177 = vshrl.u32 %v3176, 7
  %v3178 = vsub.s32 %v3175, %v3177
  %v3179 = vrot.slane %v3171, %v3178
  %v3181 = vunpack.c.l.s4 1966171168
  %v3182 = vunpack.c.0.s8 %v3181
  %v3183 = vlaneseq
  %v3184 = vshrl.u32 %v3183, 7
  %v3185 = vsub.s32 %v3182, %v3184
  %v3186 = vrot.slane %v3172, %v3185
  %v3187 = vcombine.low %v3179, %v3186
  %v3188 = vcombine.low %v3115, %v3116
  %v3189 = vcombine.low %v3117, %v3118
  %v3190 = vcombine.low %v3119, %v3120
  %v3191 = vcombine.low %v3121, %v3122
  %v3193 = vunpack.c.l.s4 1966171168
  %v3194 = vunpack.c.0.s8 %v3193
  %v3195 = vlaneseq
  %v3196 = vshrl.u32 %v3195, 7
  %v3197 = vsub.s32 %v3194, %v3196
  %v3198 = vrot.slane %v3188, %v3197
  %v3200 = vunpack.c.l.s4 1966171168
  %v3201 = vunpack.c.0.s8 %v3200
  %v3202 = vlaneseq
  %v3203 = vshrl.u32 %v3202, 7
  %v3204 = vsub.s32 %v3201, %v3203
  %v3205 = vrot.slane %v3189, %v3204
  %v3207 = vunpack.c.l.s4 1966171168
  %v3208 = vunpack.c.0.s8 %v3207
  %v3209 = vlaneseq
  %v3210 = vshrl.u32 %v3209, 7
  %v3211 = vsub.s32 %v3208, %v3210
  %v3212 = vrot.slane %v3190, %v3211
  %v3214 = vunpack.c.l.s4 1966171168
  %v3215 = vunpack.c.0.s8 %v3214
  %v3216 = vlaneseq
  %v3217 = vshrl.u32 %v3216, 7
  %v3218 = vsub.s32 %v3215, %v3217
  %v3219 = vrot.slane %v3191, %v3218
  %v3220 = vcombine.low %v3198, %v3205
  %v3221 = vcombine.low %v3212, %v3219
  %v3223 = vunpack.c.l.s4 1966171168
  %v3224 = vunpack.c.0.s8 %v3223
  %v3225 = vlaneseq
  %v3226 = vshrl.u32 %v3225, 7
  %v3227 = vsub.s32 %v3224, %v3226
  %v3228 = vrot.slane %v3220, %v3227
  %v3230 = vunpack.c.l.s4 1966171168
  %v3231 = vunpack.c.0.s8 %v3230
  %v3232 = vlaneseq
  %v3233 = vshrl.u32 %v3232, 7
  %v3234 = vsub.s32 %v3231, %v3233
  %v3235 = vrot.slane %v3221, %v3234
  %v3236 = vcombine.low %v3228, %v3235
  %v3237 = vcombine.high %v3187, %v3187
  %v3239 = vunpack.c.l.s4 1935823168
  %v3240 = vunpack.c.0.s8 %v3239
  %v3241 = vlaneseq
  %v3242 = vshrl.u32 %v3241, 7
  %v3243 = vsub.s32 %v3240, %v3242
  %v3244 = vrot.slane %v3187, %v3243
  %v3246 = vunpack.c.l.s4 1935823168
  %v3247 = vunpack.c.0.s8 %v3246
  %v3248 = vlaneseq
  %v3249 = vshrl.u32 %v3248, 7
  %v3250 = vsub.s32 %v3247, %v3249
  %v3251 = vrot.slane %v3237, %v3250
  %v3252 = vcombine.high %v3244, %v3244
  %v3253 = vcombine.high %v3251, %v3251
  %v3255 = vunpack.c.l.s4 1935823168
  %v3256 = vunpack.c.0.s8 %v3255
  %v3257 = vlaneseq
  %v3258 = vshrl.u32 %v3257, 7
  %v3259 = vsub.s32 %v3256, %v3258
  %v3260 = vrot.slane %v3244, %v3259
  %v3262 = vunpack.c.l.s4 1935823168
  %v3263 = vunpack.c.0.s8 %v3262
  %v3264 = vlaneseq
  %v3265 = vshrl.u32 %v3264, 7
  %v3266 = vsub.s32 %v3263, %v3265
  %v3267 = vrot.slane %v3252, %v3266
  %v3269 = vunpack.c.l.s4 1935823168
  %v3270 = vunpack.c.0.s8 %v3269
  %v3271 = vlaneseq
  %v3272 = vshrl.u32 %v3271, 7
  %v3273 = vsub.s32 %v3270, %v3272
  %v3274 = vrot.slane %v3251, %v3273
  %v3276 = vunpack.c.l.s4 1935823168
  %v3277 = vunpack.c.0.s8 %v3276
  %v3278 = vlaneseq
  %v3279 = vshrl.u32 %v3278, 7
  %v3280 = vsub.s32 %v3277, %v3279
  %v3281 = vrot.slane %v3253, %v3280
  %v3282 = vcombine.high %v3236, %v3236
  %v3284 = vunpack.c.l.s4 1935823168
  %v3285 = vunpack.c.0.s8 %v3284
  %v3286 = vlaneseq
  %v3287 = vshrl.u32 %v3286, 7
  %v3288 = vsub.s32 %v3285, %v3287
  %v3289 = vrot.slane %v3236, %v3288
  %v3291 = vunpack.c.l.s4 1935823168
  %v3292 = vunpack.c.0.s8 %v3291
  %v3293 = vlaneseq
  %v3294 = vshrl.u32 %v3293, 7
  %v3295 = vsub.s32 %v3292, %v3294
  %v3296 = vrot.slane %v3282, %v3295
  %v3297 = vcombine.high %v3289, %v3289
  %v3298 = vcombine.high %v3296, %v3296
  %v3300 = vunpack.c.l.s4 1935823168
  %v3301 = vunpack.c.0.s8 %v3300
  %v3302 = vlaneseq
  %v3303 = vshrl.u32 %v3302, 7
  %v3304 = vsub.s32 %v3301, %v3303
  %v3305 = vrot.slane %v3289, %v3304
  %v3307 = vunpack.c.l.s4 1935823168
  %v3308 = vunpack.c.0.s8 %v3307
  %v3309 = vlaneseq
  %v3310 = vshrl.u32 %v3309, 7
  %v3311 = vsub.s32 %v3308, %v3310
  %v3312 = vrot.slane %v3297, %v3311
  %v3314 = vunpack.c.l.s4 1935823168
  %v3315 = vunpack.c.0.s8 %v3314
  %v3316 = vlaneseq
  %v3317 = vshrl.u32 %v3316, 7
  %v3318 = vsub.s32 %v3315, %v3317
  %v3319 = vrot.slane %v3296, %v3318
  %v3321 = vunpack.c.l.s4 1935823168
  %v3322 = vunpack.c.0.s8 %v3321
  %v3323 = vlaneseq
  %v3324 = vshrl.u32 %v3323, 7
  %v3325 = vsub.s32 %v3322, %v3324
  %v3326 = vrot.slane %v3298, %v3325
  %v3327 = vunpack.c.l.b16 %v3260
  %v3328 = vunpack.c.h.b16 %v3260
  %v3329 = vunpack.c.l.b16 %v3267
  %v3330 = vunpack.c.h.b16 %v3267
  %v3331 = vunpack.c.l.b16 %v3274
  %v3332 = vunpack.c.h.b16 %v3274
  %v3333 = vunpack.c.l.b16 %v3281
  %v3334 = vunpack.c.h.b16 %v3281
  %v3335 = vunpack.c.l.b16 %v3305
  %v3336 = vunpack.c.h.b16 %v3305
  %v3337 = vunpack.c.l.b16 %v3312
  %v3338 = vunpack.c.h.b16 %v3312
  %v3339 = vunpack.c.l.b16 %v3319
  %v3340 = vunpack.c.h.b16 %v3319
  %v3341 = vunpack.c.l.b16 %v3326
  %v3342 = vunpack.c.h.b16 %v3326
  %v3343 = vrot.slane %v3335, 7
  %vm3344 = vcmask 1041409
  %v3345 = vsel %vm3344, %v3343, %v3327
  %v3346 = vrot.slane %v3336, 7
  %v3347 = vsel %vm3344, %v3346, %v3328
  %v3348 = vrot.slane %v3337, 7
  %v3349 = vsel %vm3344, %v3348, %v3329
  %v3350 = vrot.slane %v3338, 7
  %v3351 = vsel %vm3344, %v3350, %v3330
  %v3352 = vrot.slane %v3339, 7
  %v3353 = vsel %vm3344, %v3352, %v3331
  %v3354 = vrot.slane %v3340, 7
  %v3355 = vsel %vm3344, %v3354, %v3332
  %v3356 = vrot.slane %v3341, 7
  %v3357 = vsel %vm3344, %v3356, %v3333
  %v3358 = vrot.slane %v3342, 7
  %v3359 = vsel %vm3344, %v3358, %v3334
  %v3360 = vpack.c.b16 %v3347, %v3345
  %v3361 = vpack.c.b16 %v3351, %v3349
  %v3362 = vpack.c.b16 %v3355, %v3353
  %v3363 = vpack.c.b16 %v3359, %v3357
  %v3365 = vunpack.c.l.s4 1966171168
  %v3366 = vunpack.c.0.s8 %v3365
  %v3367 = vlaneseq
  %v3368 = vshrl.u32 %v3367, 7
  %v3369 = vsub.s32 %v3366, %v3368
  %v3370 = vrot.slane %v3360, %v3369
  %v3372 = vunpack.c.l.s4 1966171168
  %v3373 = vunpack.c.0.s8 %v3372
  %v3374 = vlaneseq
  %v3375 = vshrl.u32 %v3374, 7
  %v3376 = vsub.s32 %v3373, %v3375
  %v3377 = vrot.slane %v3361, %v3376
  %v3379 = vunpack.c.l.s4 1966171168
  %v3380 = vunpack.c.0.s8 %v3379
  %v3381 = vlaneseq
  %v3382 = vshrl.u32 %v3381, 7
  %v3383 = vsub.s32 %v3380, %v3382
  %v3384 = vrot.slane %v3362, %v3383
  %v3386 = vunpack.c.l.s4 1966171168
  %v3387 = vunpack.c.0.s8 %v3386
  %v3388 = vlaneseq
  %v3389 = vshrl.u32 %v3388, 7
  %v3390 = vsub.s32 %v3387, %v3389
  %v3391 = vrot.slane %v3363, %v3390
  %v3392 = vcombine.low %v3370, %v3377
  %v3393 = vcombine.low %v3384, %v3391
  %v3395 = vunpack.c.l.s4 1966171168
  %v3396 = vunpack.c.0.s8 %v3395
  %v3397 = vlaneseq
  %v3398 = vshrl.u32 %v3397, 7
  %v3399 = vsub.s32 %v3396, %v3398
  %v3400 = vrot.slane %v3392, %v3399
  %v3402 = vunpack.c.l.s4 1966171168
  %v3403 = vunpack.c.0.s8 %v3402
  %v3404 = vlaneseq
  %v3405 = vshrl.u32 %v3404, 7
  %v3406 = vsub.s32 %v3403, %v3405
  %v3407 = vrot.slane %v3393, %v3406
  %v3408 = vcombine.low %v3400, %v3407
  %3410 = vst [vmem:[%s9] sm:$0xff] %v3408
  // Predicated region
  $region38: #{_lambda_.6} parent=0 // pred_check
    _
  $region39: #{_lambda_.6} parent=0 // pred_check_branch
    %3412 = sbr.rel (0) target = $region41
  $region40: #{_lambda_.6} parent=0 // pred_region
    _
  $region41: #{_lambda_.6} parent=0 // pred_fallthru
    _
  // Predicated region
  $region42: #{_lambda_.6} parent=0 // pred_check
    _
  $region43: #{_lambda_.6} parent=0 // pred_check_branch
    %3414 = sbr.rel (0) target = $region45
  $region44: #{_lambda_.6} parent=0 // pred_region
    _
  $region45: #{_lambda_.6} parent=0 // pred_fallthru
    _

// kernel: _lambda_.7
$region0: #{_lambda_.7}
  #allocation0 [shape = 'u32[]', space=smem, size = 0x4, offset = 0x4, fixed_abs, tag = 'smem constant byte address 0x4 - core index']
  #allocation1 [shape = 'u32[144,128]{1,0:T(1,128)}', space=vmem, size = 0x12000, scoped, tag = 'internal scratch']
  %s0 = inlined_call_operand.vmem [shape: bf16[2,1024], index: 0, kind: input, shape index: {}]
  %s1 = inlined_call_operand.vmem [shape: bf16[1024,512], index: 1, kind: input, shape index: {}]
  %s2 = inlined_call_operand.vmem [shape: f32[1,512], index: 2, kind: input, shape index: {}]
  %s3 = inlined_call_operand.vmem [shape: bf16[512,256], index: 3, kind: input, shape index: {}]
  %s4 = inlined_call_operand.vmem [shape: f32[1,256], index: 4, kind: input, shape index: {}]
  %s5 = inlined_call_operand.vmem [shape: bf16[256,128], index: 5, kind: input, shape index: {}]
  %s6 = inlined_call_operand.vmem [shape: f32[1,128], index: 6, kind: input, shape index: {}]
  %s7 = inlined_call_operand.hbm [shape: f32[2,128], index: 7, kind: output, shape index: {}]
  %s8 = sld [smem:[#allocation0]]
  $region38: #{_lambda_.7} parent=0
    _
  %s10 = ssub.s32 1, %s8
  %s11 = scalar_select 0, %s10, %s8
  $region1: #{_lambda_.7} parent=0
    #allocation2 [shape = 'u8[1024]{0}', space=vmem, size = 0x400, scoped, tag = 'output window, operand 0, single buffered']
    #allocation3 [shape = 's32[1]{0}', space=sflag, size = 0x4, scoped, tag = 'scoped memory for _lambda_.7']
    %12 = vsyncpa [#allocation3], 0
    // Predicated region
    $region2: #{_lambda_.7} parent=1 // pred_check
      _
    $region3: #{_lambda_.7} parent=1 // pred_check_branch
      %14 = sbr.rel (0) target = $region5
    $region4: #{_lambda_.7} parent=1 // pred_region
      _
    $region5: #{_lambda_.7} parent=1 // pred_fallthru
      _
    // Predicated region
    $region6: #{_lambda_.7} parent=1 // pred_check
      _
    $region7: #{_lambda_.7} parent=1 // pred_check_branch
      %16 = sbr.rel (0) target = $region9
    $region8: #{_lambda_.7} parent=1 // pred_region
      _
    $region9: #{_lambda_.7} parent=1 // pred_fallthru
      _
    // Predicated region
    $region10: #{_lambda_.7} parent=1 // pred_check
      _
    $region11: #{_lambda_.7} parent=1 // pred_check_branch
      %18 = sbr.rel (0) target = $region13
    $region12: #{_lambda_.7} parent=1 // pred_region
      _
    $region13: #{_lambda_.7} parent=1 // pred_fallthru
      _
    // Predicated region
    $region14: #{_lambda_.7} parent=1 // pred_check
      _
    $region15: #{_lambda_.7} parent=1 // pred_check_branch
      %20 = sbr.rel (0) target = $region17
    $region16: #{_lambda_.7} parent=1 // pred_region
      _
    $region17: #{_lambda_.7} parent=1 // pred_fallthru
      _
    // Predicated region
    $region18: #{_lambda_.7} parent=1 // pred_check
      _
    $region19: #{_lambda_.7} parent=1 // pred_check_branch
      %22 = sbr.rel (0) target = $region21
    $region20: #{_lambda_.7} parent=1 // pred_region
      _
    $region21: #{_lambda_.7} parent=1 // pred_fallthru
      _
    // Predicated region
    $region22: #{_lambda_.7} parent=1 // pred_check
      _
    $region23: #{_lambda_.7} parent=1 // pred_check_branch
      %24 = sbr.rel (0) target = $region25
    $region24: #{_lambda_.7} parent=1 // pred_region
      _
    $region25: #{_lambda_.7} parent=1 // pred_fallthru
      _
    // Predicated region
    $region26: #{_lambda_.7} parent=1 // pred_check
      _
    $region27: #{_lambda_.7} parent=1 // pred_check_branch
      %26 = sbr.rel (0) target = $region29
    $region28: #{_lambda_.7} parent=1 // pred_region
      _
    $region29: #{_lambda_.7} parent=1 // pred_fallthru
      _
    %v28 = vld [vmem:[%s0] sm:$0xff]
    %v29 = vld [vmem:[%s1] sm:$0xff]
    %v30 = vld [vmem:[%s1 + $0x8] sm:$0xff]
    %v31 = vld [vmem:[%s1 + $0x10] sm:$0xff]
    %v32 = vld [vmem:[%s1 + $0x18] sm:$0xff]
    %v33 = vld [vmem:[%s1 + $0x20] sm:$0xff]
    %v34 = vld [vmem:[%s1 + $0x28] sm:$0xff]
    %v35 = vld [vmem:[%s1 + $0x30] sm:$0xff]
    %v36 = vld [vmem:[%s1 + $0x38] sm:$0xff]
    %v37 = vld [vmem:[%s1 + $0x40] sm:$0xff]
    %v38 = vld [vmem:[%s1 + $0x48] sm:$0xff]
    %v39 = vld [vmem:[%s1 + $0x50] sm:$0xff]
    %v40 = vld [vmem:[%s1 + $0x58] sm:$0xff]
    %v41 = vld [vmem:[%s1 + $0x60] sm:$0xff]
    %v42 = vld [vmem:[%s1 + $0x68] sm:$0xff]
    %v43 = vld [vmem:[%s1 + $0x70] sm:$0xff]
    %v44 = vld [vmem:[%s1 + $0x78] sm:$0xff]
    %v45 = vld [vmem:[%s1 + $0x80] sm:$0xff]
    %v46 = vld [vmem:[%s1 + $0x88] sm:$0xff]
    %v47 = vld [vmem:[%s1 + $0x90] sm:$0xff]
    %v48 = vld [vmem:[%s1 + $0x98] sm:$0xff]
    %v49 = vld [vmem:[%s1 + $0xa0] sm:$0xff]
    %v50 = vld [vmem:[%s1 + $0xa8] sm:$0xff]
    %v51 = vld [vmem:[%s1 + $0xb0] sm:$0xff]
    %v52 = vld [vmem:[%s1 + $0xb8] sm:$0xff]
    %v53 = vld [vmem:[%s1 + $0xc0] sm:$0xff]
    %v54 = vld [vmem:[%s1 + $0xc8] sm:$0xff]
    %v55 = vld [vmem:[%s1 + $0xd0] sm:$0xff]
    %v56 = vld [vmem:[%s1 + $0xd8] sm:$0xff]
    %v57 = vld [vmem:[%s1 + $0xe0] sm:$0xff]
    %v58 = vld [vmem:[%s1 + $0xe8] sm:$0xff]
    %v59 = vld [vmem:[%s1 + $0xf0] sm:$0xff]
    %v60 = vld [vmem:[%s1 + $0xf8] sm:$0xff]
    %v61 = vld [vmem:[%s1 + $0x100] sm:$0xff]
    %v62 = vld [vmem:[%s1 + $0x108] sm:$0xff]
    %v63 = vld [vmem:[%s1 + $0x110] sm:$0xff]
    %v64 = vld [vmem:[%s1 + $0x118] sm:$0xff]
    %v65 = vld [vmem:[%s1 + $0x120] sm:$0xff]
    %v66 = vld [vmem:[%s1 + $0x128] sm:$0xff]
    %v67 = vld [vmem:[%s1 + $0x130] sm:$0xff]
    %v68 = vld [vmem:[%s1 + $0x138] sm:$0xff]
    %v69 = vld [vmem:[%s1 + $0x140] sm:$0xff]
    %v70 = vld [vmem:[%s1 + $0x148] sm:$0xff]
    %v71 = vld [vmem:[%s1 + $0x150] sm:$0xff]
    %v72 = vld [vmem:[%s1 + $0x158] sm:$0xff]
    %v73 = vld [vmem:[%s1 + $0x160] sm:$0xff]
    %v74 = vld [vmem:[%s1 + $0x168] sm:$0xff]
    %v75 = vld [vmem:[%s1 + $0x170] sm:$0xff]
    %v76 = vld [vmem:[%s1 + $0x178] sm:$0xff]
    %v77 = vld [vmem:[%s1 + $0x180] sm:$0xff]
    %v78 = vld [vmem:[%s1 + $0x188] sm:$0xff]
    %v79 = vld [vmem:[%s1 + $0x190] sm:$0xff]
    %v80 = vld [vmem:[%s1 + $0x198] sm:$0xff]
    %v81 = vld [vmem:[%s1 + $0x1a0] sm:$0xff]
    %v82 = vld [vmem:[%s1 + $0x1a8] sm:$0xff]
    %v83 = vld [vmem:[%s1 + $0x1b0] sm:$0xff]
    %v84 = vld [vmem:[%s1 + $0x1b8] sm:$0xff]
    %v85 = vld [vmem:[%s1 + $0x1c0] sm:$0xff]
    %v86 = vld [vmem:[%s1 + $0x1c8] sm:$0xff]
    %v87 = vld [vmem:[%s1 + $0x1d0] sm:$0xff]
    %v88 = vld [vmem:[%s1 + $0x1d8] sm:$0xff]
    %v89 = vld [vmem:[%s1 + $0x1e0] sm:$0xff]
    %v90 = vld [vmem:[%s1 + $0x1e8] sm:$0xff]
    %v91 = vld [vmem:[%s1 + $0x1f0] sm:$0xff]
    %v92 = vld [vmem:[%s1 + $0x1f8] sm:$0xff]
    %v93 = vld [vmem:[%s1 + $0x200] sm:$0xff]
    %v94 = vld [vmem:[%s1 + $0x208] sm:$0xff]
    %v95 = vld [vmem:[%s1 + $0x210] sm:$0xff]
    %v96 = vld [vmem:[%s1 + $0x218] sm:$0xff]
    %v97 = vld [vmem:[%s1 + $0x220] sm:$0xff]
    %v98 = vld [vmem:[%s1 + $0x228] sm:$0xff]
    %v99 = vld [vmem:[%s1 + $0x230] sm:$0xff]
    %v100 = vld [vmem:[%s1 + $0x238] sm:$0xff]
    %v101 = vld [vmem:[%s1 + $0x240] sm:$0xff]
    %v102 = vld [vmem:[%s1 + $0x248] sm:$0xff]
    %v103 = vld [vmem:[%s1 + $0x250] sm:$0xff]
    %v104 = vld [vmem:[%s1 + $0x258] sm:$0xff]
    %v105 = vld [vmem:[%s1 + $0x260] sm:$0xff]
    %v106 = vld [vmem:[%s1 + $0x268] sm:$0xff]
    %v107 = vld [vmem:[%s1 + $0x270] sm:$0xff]
    %v108 = vld [vmem:[%s1 + $0x278] sm:$0xff]
    %v109 = vld [vmem:[%s1 + $0x280] sm:$0xff]
    %v110 = vld [vmem:[%s1 + $0x288] sm:$0xff]
    %v111 = vld [vmem:[%s1 + $0x290] sm:$0xff]
    %v112 = vld [vmem:[%s1 + $0x298] sm:$0xff]
    %v113 = vld [vmem:[%s1 + $0x2a0] sm:$0xff]
    %v114 = vld [vmem:[%s1 + $0x2a8] sm:$0xff]
    %v115 = vld [vmem:[%s1 + $0x2b0] sm:$0xff]
    %v116 = vld [vmem:[%s1 + $0x2b8] sm:$0xff]
    %v117 = vld [vmem:[%s1 + $0x2c0] sm:$0xff]
    %v118 = vld [vmem:[%s1 + $0x2c8] sm:$0xff]
    %v119 = vld [vmem:[%s1 + $0x2d0] sm:$0xff]
    %v120 = vld [vmem:[%s1 + $0x2d8] sm:$0xff]
    %v121 = vld [vmem:[%s1 + $0x2e0] sm:$0xff]
    %v122 = vld [vmem:[%s1 + $0x2e8] sm:$0xff]
    %v123 = vld [vmem:[%s1 + $0x2f0] sm:$0xff]
    %v124 = vld [vmem:[%s1 + $0x2f8] sm:$0xff]
    %v125 = vld [vmem:[%s1 + $0x300] sm:$0xff]
    %v126 = vld [vmem:[%s1 + $0x308] sm:$0xff]
    %v127 = vld [vmem:[%s1 + $0x310] sm:$0xff]
    %v128 = vld [vmem:[%s1 + $0x318] sm:$0xff]
    %v129 = vld [vmem:[%s1 + $0x320] sm:$0xff]
    %v130 = vld [vmem:[%s1 + $0x328] sm:$0xff]
    %v131 = vld [vmem:[%s1 + $0x330] sm:$0xff]
    %v132 = vld [vmem:[%s1 + $0x338] sm:$0xff]
    %v133 = vld [vmem:[%s1 + $0x340] sm:$0xff]
    %v134 = vld [vmem:[%s1 + $0x348] sm:$0xff]
    %v135 = vld [vmem:[%s1 + $0x350] sm:$0xff]
    %v136 = vld [vmem:[%s1 + $0x358] sm:$0xff]
    %v137 = vld [vmem:[%s1 + $0x360] sm:$0xff]
    %v138 = vld [vmem:[%s1 + $0x368] sm:$0xff]
    %v139 = vld [vmem:[%s1 + $0x370] sm:$0xff]
    %v140 = vld [vmem:[%s1 + $0x378] sm:$0xff]
    %v141 = vld [vmem:[%s1 + $0x380] sm:$0xff]
    %v142 = vld [vmem:[%s1 + $0x388] sm:$0xff]
    %v143 = vld [vmem:[%s1 + $0x390] sm:$0xff]
    %v144 = vld [vmem:[%s1 + $0x398] sm:$0xff]
    %v145 = vld [vmem:[%s1 + $0x3a0] sm:$0xff]
    %v146 = vld [vmem:[%s1 + $0x3a8] sm:$0xff]
    %v147 = vld [vmem:[%s1 + $0x3b0] sm:$0xff]
    %v148 = vld [vmem:[%s1 + $0x3b8] sm:$0xff]
    %v149 = vld [vmem:[%s1 + $0x3c0] sm:$0xff]
    %v150 = vld [vmem:[%s1 + $0x3c8] sm:$0xff]
    %v151 = vld [vmem:[%s1 + $0x3d0] sm:$0xff]
    %v152 = vld [vmem:[%s1 + $0x3d8] sm:$0xff]
    %v153 = vld [vmem:[%s1 + $0x3e0] sm:$0xff]
    %v154 = vld [vmem:[%s1 + $0x3e8] sm:$0xff]
    %v155 = vld [vmem:[%s1 + $0x3f0] sm:$0xff]
    %v156 = vld [vmem:[%s1 + $0x3f8] sm:$0xff]
    %v157 = vld [vmem:[%s1 + $0x400] sm:$0xff]
    %v158 = vld [vmem:[%s1 + $0x408] sm:$0xff]
    %v159 = vld [vmem:[%s1 + $0x410] sm:$0xff]
    %v160 = vld [vmem:[%s1 + $0x418] sm:$0xff]
    %v161 = vld [vmem:[%s1 + $0x420] sm:$0xff]
    %v162 = vld [vmem:[%s1 + $0x428] sm:$0xff]
    %v163 = vld [vmem:[%s1 + $0x430] sm:$0xff]
    %v164 = vld [vmem:[%s1 + $0x438] sm:$0xff]
    %v165 = vld [vmem:[%s1 + $0x440] sm:$0xff]
    %v166 = vld [vmem:[%s1 + $0x448] sm:$0xff]
    %v167 = vld [vmem:[%s1 + $0x450] sm:$0xff]
    %v168 = vld [vmem:[%s1 + $0x458] sm:$0xff]
    %v169 = vld [vmem:[%s1 + $0x460] sm:$0xff]
    %v170 = vld [vmem:[%s1 + $0x468] sm:$0xff]
    %v171 = vld [vmem:[%s1 + $0x470] sm:$0xff]
    %v172 = vld [vmem:[%s1 + $0x478] sm:$0xff]
    %v173 = vld [vmem:[%s1 + $0x480] sm:$0xff]
    %v174 = vld [vmem:[%s1 + $0x488] sm:$0xff]
    %v175 = vld [vmem:[%s1 + $0x490] sm:$0xff]
    %v176 = vld [vmem:[%s1 + $0x498] sm:$0xff]
    %v177 = vld [vmem:[%s1 + $0x4a0] sm:$0xff]
    %v178 = vld [vmem:[%s1 + $0x4a8] sm:$0xff]
    %v179 = vld [vmem:[%s1 + $0x4b0] sm:$0xff]
    %v180 = vld [vmem:[%s1 + $0x4b8] sm:$0xff]
    %v181 = vld [vmem:[%s1 + $0x4c0] sm:$0xff]
    %v182 = vld [vmem:[%s1 + $0x4c8] sm:$0xff]
    %v183 = vld [vmem:[%s1 + $0x4d0] sm:$0xff]
    %v184 = vld [vmem:[%s1 + $0x4d8] sm:$0xff]
    %v185 = vld [vmem:[%s1 + $0x4e0] sm:$0xff]
    %v186 = vld [vmem:[%s1 + $0x4e8] sm:$0xff]
    %v187 = vld [vmem:[%s1 + $0x4f0] sm:$0xff]
    %v188 = vld [vmem:[%s1 + $0x4f8] sm:$0xff]
    %v189 = vld [vmem:[%s1 + $0x500] sm:$0xff]
    %v190 = vld [vmem:[%s1 + $0x508] sm:$0xff]
    %v191 = vld [vmem:[%s1 + $0x510] sm:$0xff]
    %v192 = vld [vmem:[%s1 + $0x518] sm:$0xff]
    %v193 = vld [vmem:[%s1 + $0x520] sm:$0xff]
    %v194 = vld [vmem:[%s1 + $0x528] sm:$0xff]
    %v195 = vld [vmem:[%s1 + $0x530] sm:$0xff]
    %v196 = vld [vmem:[%s1 + $0x538] sm:$0xff]
    %v197 = vld [vmem:[%s1 + $0x540] sm:$0xff]
    %v198 = vld [vmem:[%s1 + $0x548] sm:$0xff]
    %v199 = vld [vmem:[%s1 + $0x550] sm:$0xff]
    %v200 = vld [vmem:[%s1 + $0x558] sm:$0xff]
    %v201 = vld [vmem:[%s1 + $0x560] sm:$0xff]
    %v202 = vld [vmem:[%s1 + $0x568] sm:$0xff]
    %v203 = vld [vmem:[%s1 + $0x570] sm:$0xff]
    %v204 = vld [vmem:[%s1 + $0x578] sm:$0xff]
    %v205 = vld [vmem:[%s1 + $0x580] sm:$0xff]
    %v206 = vld [vmem:[%s1 + $0x588] sm:$0xff]
    %v207 = vld [vmem:[%s1 + $0x590] sm:$0xff]
    %v208 = vld [vmem:[%s1 + $0x598] sm:$0xff]
    %v209 = vld [vmem:[%s1 + $0x5a0] sm:$0xff]
    %v210 = vld [vmem:[%s1 + $0x5a8] sm:$0xff]
    %v211 = vld [vmem:[%s1 + $0x5b0] sm:$0xff]
    %v212 = vld [vmem:[%s1 + $0x5b8] sm:$0xff]
    %v213 = vld [vmem:[%s1 + $0x5c0] sm:$0xff]
    %v214 = vld [vmem:[%s1 + $0x5c8] sm:$0xff]
    %v215 = vld [vmem:[%s1 + $0x5d0] sm:$0xff]
    %v216 = vld [vmem:[%s1 + $0x5d8] sm:$0xff]
    %v217 = vld [vmem:[%s1 + $0x5e0] sm:$0xff]
    %v218 = vld [vmem:[%s1 + $0x5e8] sm:$0xff]
    %v219 = vld [vmem:[%s1 + $0x5f0] sm:$0xff]
    %v220 = vld [vmem:[%s1 + $0x5f8] sm:$0xff]
    %v221 = vld [vmem:[%s1 + $0x600] sm:$0xff]
    %v222 = vld [vmem:[%s1 + $0x608] sm:$0xff]
    %v223 = vld [vmem:[%s1 + $0x610] sm:$0xff]
    %v224 = vld [vmem:[%s1 + $0x618] sm:$0xff]
    %v225 = vld [vmem:[%s1 + $0x620] sm:$0xff]
    %v226 = vld [vmem:[%s1 + $0x628] sm:$0xff]
    %v227 = vld [vmem:[%s1 + $0x630] sm:$0xff]
    %v228 = vld [vmem:[%s1 + $0x638] sm:$0xff]
    %v229 = vld [vmem:[%s1 + $0x640] sm:$0xff]
    %v230 = vld [vmem:[%s1 + $0x648] sm:$0xff]
    %v231 = vld [vmem:[%s1 + $0x650] sm:$0xff]
    %v232 = vld [vmem:[%s1 + $0x658] sm:$0xff]
    %v233 = vld [vmem:[%s1 + $0x660] sm:$0xff]
    %v234 = vld [vmem:[%s1 + $0x668] sm:$0xff]
    %v235 = vld [vmem:[%s1 + $0x670] sm:$0xff]
    %v236 = vld [vmem:[%s1 + $0x678] sm:$0xff]
    %v237 = vld [vmem:[%s1 + $0x680] sm:$0xff]
    %v238 = vld [vmem:[%s1 + $0x688] sm:$0xff]
    %v239 = vld [vmem:[%s1 + $0x690] sm:$0xff]
    %v240 = vld [vmem:[%s1 + $0x698] sm:$0xff]
    %v241 = vld [vmem:[%s1 + $0x6a0] sm:$0xff]
    %v242 = vld [vmem:[%s1 + $0x6a8] sm:$0xff]
    %v243 = vld [vmem:[%s1 + $0x6b0] sm:$0xff]
    %v244 = vld [vmem:[%s1 + $0x6b8] sm:$0xff]
    %v245 = vld [vmem:[%s1 + $0x6c0] sm:$0xff]
    %v246 = vld [vmem:[%s1 + $0x6c8] sm:$0xff]
    %v247 = vld [vmem:[%s1 + $0x6d0] sm:$0xff]
    %v248 = vld [vmem:[%s1 + $0x6d8] sm:$0xff]
    %v249 = vld [vmem:[%s1 + $0x6e0] sm:$0xff]
    %v250 = vld [vmem:[%s1 + $0x6e8] sm:$0xff]
    %v251 = vld [vmem:[%s1 + $0x6f0] sm:$0xff]
    %v252 = vld [vmem:[%s1 + $0x6f8] sm:$0xff]
    %v253 = vld [vmem:[%s1 + $0x700] sm:$0xff]
    %v254 = vld [vmem:[%s1 + $0x708] sm:$0xff]
    %v255 = vld [vmem:[%s1 + $0x710] sm:$0xff]
    %v256 = vld [vmem:[%s1 + $0x718] sm:$0xff]
    %v257 = vld [vmem:[%s1 + $0x720] sm:$0xff]
    %v258 = vld [vmem:[%s1 + $0x728] sm:$0xff]
    %v259 = vld [vmem:[%s1 + $0x730] sm:$0xff]
    %v260 = vld [vmem:[%s1 + $0x738] sm:$0xff]
    %v261 = vld [vmem:[%s1 + $0x740] sm:$0xff]
    %v262 = vld [vmem:[%s1 + $0x748] sm:$0xff]
    %v263 = vld [vmem:[%s1 + $0x750] sm:$0xff]
    %v264 = vld [vmem:[%s1 + $0x758] sm:$0xff]
    %v265 = vld [vmem:[%s1 + $0x760] sm:$0xff]
    %v266 = vld [vmem:[%s1 + $0x768] sm:$0xff]
    %v267 = vld [vmem:[%s1 + $0x770] sm:$0xff]
    %v268 = vld [vmem:[%s1 + $0x778] sm:$0xff]
    %v269 = vld [vmem:[%s1 + $0x780] sm:$0xff]
    %v270 = vld [vmem:[%s1 + $0x788] sm:$0xff]
    %v271 = vld [vmem:[%s1 + $0x790] sm:$0xff]
    %v272 = vld [vmem:[%s1 + $0x798] sm:$0xff]
    %v273 = vld [vmem:[%s1 + $0x7a0] sm:$0xff]
    %v274 = vld [vmem:[%s1 + $0x7a8] sm:$0xff]
    %v275 = vld [vmem:[%s1 + $0x7b0] sm:$0xff]
    %v276 = vld [vmem:[%s1 + $0x7b8] sm:$0xff]
    %v277 = vld [vmem:[%s1 + $0x7c0] sm:$0xff]
    %v278 = vld [vmem:[%s1 + $0x7c8] sm:$0xff]
    %v279 = vld [vmem:[%s1 + $0x7d0] sm:$0xff]
    %v280 = vld [vmem:[%s1 + $0x7d8] sm:$0xff]
    %v281 = vld [vmem:[%s1 + $0x7e0] sm:$0xff]
    %v282 = vld [vmem:[%s1 + $0x7e8] sm:$0xff]
    %v283 = vld [vmem:[%s1 + $0x7f0] sm:$0xff]
    %v284 = vld [vmem:[%s1 + $0x7f8] sm:$0xff]
    %v285 = vld [vmem:[%s2] sm:$0xf]
    %v287 = vlaneseq
    %v288 = vshrl.u32 %v287, 7
    %v289 = vsub.s32 0, %v288
    %v290 = vrot.slane %v285, %v289
    %v291 = vlaneseq
    %v292 = vshrl.u32 %v291, 7
    %v293 = vsub.s32 1, %v292
    %v294 = vrot.slane %v285, %v293
    %v295 = vlaneseq
    %v296 = vshrl.u32 %v295, 7
    %v297 = vsub.s32 2, %v296
    %v298 = vrot.slane %v285, %v297
    %v299 = vlaneseq
    %v300 = vshrl.u32 %v299, 7
    %v301 = vsub.s32 3, %v300
    %v302 = vrot.slane %v285, %v301
    %v308 = vcombine.high %v28, %v28
    %v310 = vunpack.c.l.s4 1966171168
    %v311 = vunpack.c.0.s8 %v310
    %v312 = vlaneseq
    %v313 = vshrl.u32 %v312, 7
    %v314 = vsub.s32 %v311, %v313
    %v315 = vrot.slane %v28, %v314
    %v317 = vunpack.c.l.s4 1966171168
    %v318 = vunpack.c.0.s8 %v317
    %v319 = vlaneseq
    %v320 = vshrl.u32 %v319, 7
    %v321 = vsub.s32 %v318, %v320
    %v322 = vrot.slane %v308, %v321
    %v323 = vcombine.high %v315, %v315
    %v324 = vcombine.high %v322, %v322
    %v326 = vunpack.c.l.s4 1966171168
    %v327 = vunpack.c.0.s8 %v326
    %v328 = vlaneseq
    %v329 = vshrl.u32 %v328, 7
    %v330 = vsub.s32 %v327, %v329
    %v331 = vrot.slane %v315, %v330
    %v333 = vunpack.c.l.s4 1966171168
    %v334 = vunpack.c.0.s8 %v333
    %v335 = vlaneseq
    %v336 = vshrl.u32 %v335, 7
    %v337 = vsub.s32 %v334, %v336
    %v338 = vrot.slane %v322, %v337
    %v340 = vunpack.c.l.s4 1966171168
    %v341 = vunpack.c.0.s8 %v340
    %v342 = vlaneseq
    %v343 = vshrl.u32 %v342, 7
    %v344 = vsub.s32 %v341, %v343
    %v345 = vrot.slane %v323, %v344
    %v347 = vunpack.c.l.s4 1966171168
    %v348 = vunpack.c.0.s8 %v347
    %v349 = vlaneseq
    %v350 = vshrl.u32 %v349, 7
    %v351 = vsub.s32 %v348, %v350
    %v352 = vrot.slane %v324, %v351
    %v353 = vcombine.high %v331, %v331
    %v354 = vcombine.high %v338, %v338
    %v355 = vcombine.high %v345, %v345
    %v356 = vcombine.high %v352, %v352
    %v621 = vunpack.c.l.b16 %v29
    %v622 = vunpack.c.h.b16 %v29
    %v623 = vunpack.c.l.b16 %v30
    %v624 = vunpack.c.h.b16 %v30
    %v625 = vunpack.c.l.b16 %v31
    %v626 = vunpack.c.h.b16 %v31
    %v627 = vunpack.c.l.b16 %v32
    %v628 = vunpack.c.h.b16 %v32
    %v629 = vunpack.c.l.b16 %v33
    %v630 = vunpack.c.h.b16 %v33
    %v631 = vunpack.c.l.b16 %v34
    %v632 = vunpack.c.h.b16 %v34
    %v633 = vunpack.c.l.b16 %v35
    %v634 = vunpack.c.h.b16 %v35
    %v635 = vunpack.c.l.b16 %v36
    %v636 = vunpack.c.h.b16 %v36
    %v637 = vunpack.c.l.b16 %v37
    %v638 = vunpack.c.h.b16 %v37
    %v639 = vunpack.c.l.b16 %v38
    %v640 = vunpack.c.h.b16 %v38
    %v641 = vunpack.c.l.b16 %v39
    %v642 = vunpack.c.h.b16 %v39
    %v643 = vunpack.c.l.b16 %v40
    %v644 = vunpack.c.h.b16 %v40
    %v645 = vunpack.c.l.b16 %v41
    %v646 = vunpack.c.h.b16 %v41
    %v647 = vunpack.c.l.b16 %v42
    %v648 = vunpack.c.h.b16 %v42
    %v649 = vunpack.c.l.b16 %v43
    %v650 = vunpack.c.h.b16 %v43
    %v651 = vunpack.c.l.b16 %v44
    %v652 = vunpack.c.h.b16 %v44
    %v653 = vunpack.c.l.b16 %v45
    %v654 = vunpack.c.h.b16 %v45
    %v655 = vunpack.c.l.b16 %v46
    %v656 = vunpack.c.h.b16 %v46
    %v657 = vunpack.c.l.b16 %v47
    %v658 = vunpack.c.h.b16 %v47
    %v659 = vunpack.c.l.b16 %v48
    %v660 = vunpack.c.h.b16 %v48
    %v661 = vunpack.c.l.b16 %v49
    %v662 = vunpack.c.h.b16 %v49
    %v663 = vunpack.c.l.b16 %v50
    %v664 = vunpack.c.h.b16 %v50
    %v665 = vunpack.c.l.b16 %v51
    %v666 = vunpack.c.h.b16 %v51
    %v667 = vunpack.c.l.b16 %v52
    %v668 = vunpack.c.h.b16 %v52
    %v669 = vunpack.c.l.b16 %v53
    %v670 = vunpack.c.h.b16 %v53
    %v671 = vunpack.c.l.b16 %v54
    %v672 = vunpack.c.h.b16 %v54
    %v673 = vunpack.c.l.b16 %v55
    %v674 = vunpack.c.h.b16 %v55
    %v675 = vunpack.c.l.b16 %v56
    %v676 = vunpack.c.h.b16 %v56
    %v677 = vunpack.c.l.b16 %v57
    %v678 = vunpack.c.h.b16 %v57
    %v679 = vunpack.c.l.b16 %v58
    %v680 = vunpack.c.h.b16 %v58
    %v681 = vunpack.c.l.b16 %v59
    %v682 = vunpack.c.h.b16 %v59
    %v683 = vunpack.c.l.b16 %v60
    %v684 = vunpack.c.h.b16 %v60
    %v685 = vunpack.c.l.b16 %v61
    %v686 = vunpack.c.h.b16 %v61
    %v687 = vunpack.c.l.b16 %v62
    %v688 = vunpack.c.h.b16 %v62
    %v689 = vunpack.c.l.b16 %v63
    %v690 = vunpack.c.h.b16 %v63
    %v691 = vunpack.c.l.b16 %v64
    %v692 = vunpack.c.h.b16 %v64
    %v693 = vunpack.c.l.b16 %v65
    %v694 = vunpack.c.h.b16 %v65
    %v695 = vunpack.c.l.b16 %v66
    %v696 = vunpack.c.h.b16 %v66
    %v697 = vunpack.c.l.b16 %v67
    %v698 = vunpack.c.h.b16 %v67
    %v699 = vunpack.c.l.b16 %v68
    %v700 = vunpack.c.h.b16 %v68
    %v701 = vunpack.c.l.b16 %v69
    %v702 = vunpack.c.h.b16 %v69
    %v703 = vunpack.c.l.b16 %v70
    %v704 = vunpack.c.h.b16 %v70
    %v705 = vunpack.c.l.b16 %v71
    %v706 = vunpack.c.h.b16 %v71
    %v707 = vunpack.c.l.b16 %v72
    %v708 = vunpack.c.h.b16 %v72
    %v709 = vunpack.c.l.b16 %v73
    %v710 = vunpack.c.h.b16 %v73
    %v711 = vunpack.c.l.b16 %v74
    %v712 = vunpack.c.h.b16 %v74
    %v713 = vunpack.c.l.b16 %v75
    %v714 = vunpack.c.h.b16 %v75
    %v715 = vunpack.c.l.b16 %v76
    %v716 = vunpack.c.h.b16 %v76
    %v717 = vunpack.c.l.b16 %v77
    %v718 = vunpack.c.h.b16 %v77
    %v719 = vunpack.c.l.b16 %v78
    %v720 = vunpack.c.h.b16 %v78
    %v721 = vunpack.c.l.b16 %v79
    %v722 = vunpack.c.h.b16 %v79
    %v723 = vunpack.c.l.b16 %v80
    %v724 = vunpack.c.h.b16 %v80
    %v725 = vunpack.c.l.b16 %v81
    %v726 = vunpack.c.h.b16 %v81
    %v727 = vunpack.c.l.b16 %v82
    %v728 = vunpack.c.h.b16 %v82
    %v729 = vunpack.c.l.b16 %v83
    %v730 = vunpack.c.h.b16 %v83
    %v731 = vunpack.c.l.b16 %v84
    %v732 = vunpack.c.h.b16 %v84
    %v733 = vunpack.c.l.b16 %v85
    %v734 = vunpack.c.h.b16 %v85
    %v735 = vunpack.c.l.b16 %v86
    %v736 = vunpack.c.h.b16 %v86
    %v737 = vunpack.c.l.b16 %v87
    %v738 = vunpack.c.h.b16 %v87
    %v739 = vunpack.c.l.b16 %v88
    %v740 = vunpack.c.h.b16 %v88
    %v741 = vunpack.c.l.b16 %v89
    %v742 = vunpack.c.h.b16 %v89
    %v743 = vunpack.c.l.b16 %v90
    %v744 = vunpack.c.h.b16 %v90
    %v745 = vunpack.c.l.b16 %v91
    %v746 = vunpack.c.h.b16 %v91
    %v747 = vunpack.c.l.b16 %v92
    %v748 = vunpack.c.h.b16 %v92
    %v749 = vunpack.c.l.b16 %v93
    %v750 = vunpack.c.h.b16 %v93
    %v751 = vunpack.c.l.b16 %v94
    %v752 = vunpack.c.h.b16 %v94
    %v753 = vunpack.c.l.b16 %v95
    %v754 = vunpack.c.h.b16 %v95
    %v755 = vunpack.c.l.b16 %v96
    %v756 = vunpack.c.h.b16 %v96
    %v757 = vunpack.c.l.b16 %v97
    %v758 = vunpack.c.h.b16 %v97
    %v759 = vunpack.c.l.b16 %v98
    %v760 = vunpack.c.h.b16 %v98
    %v761 = vunpack.c.l.b16 %v99
    %v762 = vunpack.c.h.b16 %v99
    %v763 = vunpack.c.l.b16 %v100
    %v764 = vunpack.c.h.b16 %v100
    %v765 = vunpack.c.l.b16 %v101
    %v766 = vunpack.c.h.b16 %v101
    %v767 = vunpack.c.l.b16 %v102
    %v768 = vunpack.c.h.b16 %v102
    %v769 = vunpack.c.l.b16 %v103
    %v770 = vunpack.c.h.b16 %v103
    %v771 = vunpack.c.l.b16 %v104
    %v772 = vunpack.c.h.b16 %v104
    %v773 = vunpack.c.l.b16 %v105
    %v774 = vunpack.c.h.b16 %v105
    %v775 = vunpack.c.l.b16 %v106
    %v776 = vunpack.c.h.b16 %v106
    %v777 = vunpack.c.l.b16 %v107
    %v778 = vunpack.c.h.b16 %v107
    %v779 = vunpack.c.l.b16 %v108
    %v780 = vunpack.c.h.b16 %v108
    %v781 = vunpack.c.l.b16 %v109
    %v782 = vunpack.c.h.b16 %v109
    %v783 = vunpack.c.l.b16 %v110
    %v784 = vunpack.c.h.b16 %v110
    %v785 = vunpack.c.l.b16 %v111
    %v786 = vunpack.c.h.b16 %v111
    %v787 = vunpack.c.l.b16 %v112
    %v788 = vunpack.c.h.b16 %v112
    %v789 = vunpack.c.l.b16 %v113
    %v790 = vunpack.c.h.b16 %v113
    %v791 = vunpack.c.l.b16 %v114
    %v792 = vunpack.c.h.b16 %v114
    %v793 = vunpack.c.l.b16 %v115
    %v794 = vunpack.c.h.b16 %v115
    %v795 = vunpack.c.l.b16 %v116
    %v796 = vunpack.c.h.b16 %v116
    %v797 = vunpack.c.l.b16 %v117
    %v798 = vunpack.c.h.b16 %v117
    %v799 = vunpack.c.l.b16 %v118
    %v800 = vunpack.c.h.b16 %v118
    %v801 = vunpack.c.l.b16 %v119
    %v802 = vunpack.c.h.b16 %v119
    %v803 = vunpack.c.l.b16 %v120
    %v804 = vunpack.c.h.b16 %v120
    %v805 = vunpack.c.l.b16 %v121
    %v806 = vunpack.c.h.b16 %v121
    %v807 = vunpack.c.l.b16 %v122
    %v808 = vunpack.c.h.b16 %v122
    %v809 = vunpack.c.l.b16 %v123
    %v810 = vunpack.c.h.b16 %v123
    %v811 = vunpack.c.l.b16 %v124
    %v812 = vunpack.c.h.b16 %v124
    %v813 = vunpack.c.l.b16 %v125
    %v814 = vunpack.c.h.b16 %v125
    %v815 = vunpack.c.l.b16 %v126
    %v816 = vunpack.c.h.b16 %v126
    %v817 = vunpack.c.l.b16 %v127
    %v818 = vunpack.c.h.b16 %v127
    %v819 = vunpack.c.l.b16 %v128
    %v820 = vunpack.c.h.b16 %v128
    %v821 = vunpack.c.l.b16 %v129
    %v822 = vunpack.c.h.b16 %v129
    %v823 = vunpack.c.l.b16 %v130
    %v824 = vunpack.c.h.b16 %v130
    %v825 = vunpack.c.l.b16 %v131
    %v826 = vunpack.c.h.b16 %v131
    %v827 = vunpack.c.l.b16 %v132
    %v828 = vunpack.c.h.b16 %v132
    %v829 = vunpack.c.l.b16 %v133
    %v830 = vunpack.c.h.b16 %v133
    %v831 = vunpack.c.l.b16 %v134
    %v832 = vunpack.c.h.b16 %v134
    %v833 = vunpack.c.l.b16 %v135
    %v834 = vunpack.c.h.b16 %v135
    %v835 = vunpack.c.l.b16 %v136
    %v836 = vunpack.c.h.b16 %v136
    %v837 = vunpack.c.l.b16 %v137
    %v838 = vunpack.c.h.b16 %v137
    %v839 = vunpack.c.l.b16 %v138
    %v840 = vunpack.c.h.b16 %v138
    %v841 = vunpack.c.l.b16 %v139
    %v842 = vunpack.c.h.b16 %v139
    %v843 = vunpack.c.l.b16 %v140
    %v844 = vunpack.c.h.b16 %v140
    %v845 = vunpack.c.l.b16 %v141
    %v846 = vunpack.c.h.b16 %v141
    %v847 = vunpack.c.l.b16 %v142
    %v848 = vunpack.c.h.b16 %v142
    %v849 = vunpack.c.l.b16 %v143
    %v850 = vunpack.c.h.b16 %v143
    %v851 = vunpack.c.l.b16 %v144
    %v852 = vunpack.c.h.b16 %v144
    %v853 = vunpack.c.l.b16 %v145
    %v854 = vunpack.c.h.b16 %v145
    %v855 = vunpack.c.l.b16 %v146
    %v856 = vunpack.c.h.b16 %v146
    %v857 = vunpack.c.l.b16 %v147
    %v858 = vunpack.c.h.b16 %v147
    %v859 = vunpack.c.l.b16 %v148
    %v860 = vunpack.c.h.b16 %v148
    %v861 = vunpack.c.l.b16 %v149
    %v862 = vunpack.c.h.b16 %v149
    %v863 = vunpack.c.l.b16 %v150
    %v864 = vunpack.c.h.b16 %v150
    %v865 = vunpack.c.l.b16 %v151
    %v866 = vunpack.c.h.b16 %v151
    %v867 = vunpack.c.l.b16 %v152
    %v868 = vunpack.c.h.b16 %v152
    %v869 = vunpack.c.l.b16 %v153
    %v870 = vunpack.c.h.b16 %v153
    %v871 = vunpack.c.l.b16 %v154
    %v872 = vunpack.c.h.b16 %v154
    %v873 = vunpack.c.l.b16 %v155
    %v874 = vunpack.c.h.b16 %v155
    %v875 = vunpack.c.l.b16 %v156
    %v876 = vunpack.c.h.b16 %v156
    %v877 = vunpack.c.l.b16 %v157
    %v878 = vunpack.c.h.b16 %v157
    %v879 = vunpack.c.l.b16 %v158
    %v880 = vunpack.c.h.b16 %v158
    %v881 = vunpack.c.l.b16 %v159
    %v882 = vunpack.c.h.b16 %v159
    %v883 = vunpack.c.l.b16 %v160
    %v884 = vunpack.c.h.b16 %v160
    %v885 = vunpack.c.l.b16 %v161
    %v886 = vunpack.c.h.b16 %v161
    %v887 = vunpack.c.l.b16 %v162
    %v888 = vunpack.c.h.b16 %v162
    %v889 = vunpack.c.l.b16 %v163
    %v890 = vunpack.c.h.b16 %v163
    %v891 = vunpack.c.l.b16 %v164
    %v892 = vunpack.c.h.b16 %v164
    %v893 = vunpack.c.l.b16 %v165
    %v894 = vunpack.c.h.b16 %v165
    %v895 = vunpack.c.l.b16 %v166
    %v896 = vunpack.c.h.b16 %v166
    %v897 = vunpack.c.l.b16 %v167
    %v898 = vunpack.c.h.b16 %v167
    %v899 = vunpack.c.l.b16 %v168
    %v900 = vunpack.c.h.b16 %v168
    %v901 = vunpack.c.l.b16 %v169
    %v902 = vunpack.c.h.b16 %v169
    %v903 = vunpack.c.l.b16 %v170
    %v904 = vunpack.c.h.b16 %v170
    %v905 = vunpack.c.l.b16 %v171
    %v906 = vunpack.c.h.b16 %v171
    %v907 = vunpack.c.l.b16 %v172
    %v908 = vunpack.c.h.b16 %v172
    %v909 = vunpack.c.l.b16 %v173
    %v910 = vunpack.c.h.b16 %v173
    %v911 = vunpack.c.l.b16 %v174
    %v912 = vunpack.c.h.b16 %v174
    %v913 = vunpack.c.l.b16 %v175
    %v914 = vunpack.c.h.b16 %v175
    %v915 = vunpack.c.l.b16 %v176
    %v916 = vunpack.c.h.b16 %v176
    %v917 = vunpack.c.l.b16 %v177
    %v918 = vunpack.c.h.b16 %v177
    %v919 = vunpack.c.l.b16 %v178
    %v920 = vunpack.c.h.b16 %v178
    %v921 = vunpack.c.l.b16 %v179
    %v922 = vunpack.c.h.b16 %v179
    %v923 = vunpack.c.l.b16 %v180
    %v924 = vunpack.c.h.b16 %v180
    %v925 = vunpack.c.l.b16 %v181
    %v926 = vunpack.c.h.b16 %v181
    %v927 = vunpack.c.l.b16 %v182
    %v928 = vunpack.c.h.b16 %v182
    %v929 = vunpack.c.l.b16 %v183
    %v930 = vunpack.c.h.b16 %v183
    %v931 = vunpack.c.l.b16 %v184
    %v932 = vunpack.c.h.b16 %v184
    %v933 = vunpack.c.l.b16 %v185
    %v934 = vunpack.c.h.b16 %v185
    %v935 = vunpack.c.l.b16 %v186
    %v936 = vunpack.c.h.b16 %v186
    %v937 = vunpack.c.l.b16 %v187
    %v938 = vunpack.c.h.b16 %v187
    %v939 = vunpack.c.l.b16 %v188
    %v940 = vunpack.c.h.b16 %v188
    %v941 = vunpack.c.l.b16 %v189
    %v942 = vunpack.c.h.b16 %v189
    %v943 = vunpack.c.l.b16 %v190
    %v944 = vunpack.c.h.b16 %v190
    %v945 = vunpack.c.l.b16 %v191
    %v946 = vunpack.c.h.b16 %v191
    %v947 = vunpack.c.l.b16 %v192
    %v948 = vunpack.c.h.b16 %v192
    %v949 = vunpack.c.l.b16 %v193
    %v950 = vunpack.c.h.b16 %v193
    %v951 = vunpack.c.l.b16 %v194
    %v952 = vunpack.c.h.b16 %v194
    %v953 = vunpack.c.l.b16 %v195
    %v954 = vunpack.c.h.b16 %v195
    %v955 = vunpack.c.l.b16 %v196
    %v956 = vunpack.c.h.b16 %v196
    %v957 = vunpack.c.l.b16 %v197
    %v958 = vunpack.c.h.b16 %v197
    %v959 = vunpack.c.l.b16 %v198
    %v960 = vunpack.c.h.b16 %v198
    %v961 = vunpack.c.l.b16 %v199
    %v962 = vunpack.c.h.b16 %v199
    %v963 = vunpack.c.l.b16 %v200
    %v964 = vunpack.c.h.b16 %v200
    %v965 = vunpack.c.l.b16 %v201
    %v966 = vunpack.c.h.b16 %v201
    %v967 = vunpack.c.l.b16 %v202
    %v968 = vunpack.c.h.b16 %v202
    %v969 = vunpack.c.l.b16 %v203
    %v970 = vunpack.c.h.b16 %v203
    %v971 = vunpack.c.l.b16 %v204
    %v972 = vunpack.c.h.b16 %v204
    %v973 = vunpack.c.l.b16 %v205
    %v974 = vunpack.c.h.b16 %v205
    %v975 = vunpack.c.l.b16 %v206
    %v976 = vunpack.c.h.b16 %v206
    %v977 = vunpack.c.l.b16 %v207
    %v978 = vunpack.c.h.b16 %v207
    %v979 = vunpack.c.l.b16 %v208
    %v980 = vunpack.c.h.b16 %v208
    %v981 = vunpack.c.l.b16 %v209
    %v982 = vunpack.c.h.b16 %v209
    %v983 = vunpack.c.l.b16 %v210
    %v984 = vunpack.c.h.b16 %v210
    %v985 = vunpack.c.l.b16 %v211
    %v986 = vunpack.c.h.b16 %v211
    %v987 = vunpack.c.l.b16 %v212
    %v988 = vunpack.c.h.b16 %v212
    %v989 = vunpack.c.l.b16 %v213
    %v990 = vunpack.c.h.b16 %v213
    %v991 = vunpack.c.l.b16 %v214
    %v992 = vunpack.c.h.b16 %v214
    %v993 = vunpack.c.l.b16 %v215
    %v994 = vunpack.c.h.b16 %v215
    %v995 = vunpack.c.l.b16 %v216
    %v996 = vunpack.c.h.b16 %v216
    %v997 = vunpack.c.l.b16 %v217
    %v998 = vunpack.c.h.b16 %v217
    %v999 = vunpack.c.l.b16 %v218
    %v1000 = vunpack.c.h.b16 %v218
    %v1001 = vunpack.c.l.b16 %v219
    %v1002 = vunpack.c.h.b16 %v219
    %v1003 = vunpack.c.l.b16 %v220
    %v1004 = vunpack.c.h.b16 %v220
    %v1005 = vunpack.c.l.b16 %v221
    %v1006 = vunpack.c.h.b16 %v221
    %v1007 = vunpack.c.l.b16 %v222
    %v1008 = vunpack.c.h.b16 %v222
    %v1009 = vunpack.c.l.b16 %v223
    %v1010 = vunpack.c.h.b16 %v223
    %v1011 = vunpack.c.l.b16 %v224
    %v1012 = vunpack.c.h.b16 %v224
    %v1013 = vunpack.c.l.b16 %v225
    %v1014 = vunpack.c.h.b16 %v225
    %v1015 = vunpack.c.l.b16 %v226
    %v1016 = vunpack.c.h.b16 %v226
    %v1017 = vunpack.c.l.b16 %v227
    %v1018 = vunpack.c.h.b16 %v227
    %v1019 = vunpack.c.l.b16 %v228
    %v1020 = vunpack.c.h.b16 %v228
    %v1021 = vunpack.c.l.b16 %v229
    %v1022 = vunpack.c.h.b16 %v229
    %v1023 = vunpack.c.l.b16 %v230
    %v1024 = vunpack.c.h.b16 %v230
    %v1025 = vunpack.c.l.b16 %v231
    %v1026 = vunpack.c.h.b16 %v231
    %v1027 = vunpack.c.l.b16 %v232
    %v1028 = vunpack.c.h.b16 %v232
    %v1029 = vunpack.c.l.b16 %v233
    %v1030 = vunpack.c.h.b16 %v233
    %v1031 = vunpack.c.l.b16 %v234
    %v1032 = vunpack.c.h.b16 %v234
    %v1033 = vunpack.c.l.b16 %v235
    %v1034 = vunpack.c.h.b16 %v235
    %v1035 = vunpack.c.l.b16 %v236
    %v1036 = vunpack.c.h.b16 %v236
    %v1037 = vunpack.c.l.b16 %v237
    %v1038 = vunpack.c.h.b16 %v237
    %v1039 = vunpack.c.l.b16 %v238
    %v1040 = vunpack.c.h.b16 %v238
    %v1041 = vunpack.c.l.b16 %v239
    %v1042 = vunpack.c.h.b16 %v239
    %v1043 = vunpack.c.l.b16 %v240
    %v1044 = vunpack.c.h.b16 %v240
    %v1045 = vunpack.c.l.b16 %v241
    %v1046 = vunpack.c.h.b16 %v241
    %v1047 = vunpack.c.l.b16 %v242
    %v1048 = vunpack.c.h.b16 %v242
    %v1049 = vunpack.c.l.b16 %v243
    %v1050 = vunpack.c.h.b16 %v243
    %v1051 = vunpack.c.l.b16 %v244
    %v1052 = vunpack.c.h.b16 %v244
    %v1053 = vunpack.c.l.b16 %v245
    %v1054 = vunpack.c.h.b16 %v245
    %v1055 = vunpack.c.l.b16 %v246
    %v1056 = vunpack.c.h.b16 %v246
    %v1057 = vunpack.c.l.b16 %v247
    %v1058 = vunpack.c.h.b16 %v247
    %v1059 = vunpack.c.l.b16 %v248
    %v1060 = vunpack.c.h.b16 %v248
    %v1061 = vunpack.c.l.b16 %v249
    %v1062 = vunpack.c.h.b16 %v249
    %v1063 = vunpack.c.l.b16 %v250
    %v1064 = vunpack.c.h.b16 %v250
    %v1065 = vunpack.c.l.b16 %v251
    %v1066 = vunpack.c.h.b16 %v251
    %v1067 = vunpack.c.l.b16 %v252
    %v1068 = vunpack.c.h.b16 %v252
    %v1069 = vunpack.c.l.b16 %v253
    %v1070 = vunpack.c.h.b16 %v253
    %v1071 = vunpack.c.l.b16 %v254
    %v1072 = vunpack.c.h.b16 %v254
    %v1073 = vunpack.c.l.b16 %v255
    %v1074 = vunpack.c.h.b16 %v255
    %v1075 = vunpack.c.l.b16 %v256
    %v1076 = vunpack.c.h.b16 %v256
    %v1077 = vunpack.c.l.b16 %v257
    %v1078 = vunpack.c.h.b16 %v257
    %v1079 = vunpack.c.l.b16 %v258
    %v1080 = vunpack.c.h.b16 %v258
    %v1081 = vunpack.c.l.b16 %v259
    %v1082 = vunpack.c.h.b16 %v259
    %v1083 = vunpack.c.l.b16 %v260
    %v1084 = vunpack.c.h.b16 %v260
    %v1085 = vunpack.c.l.b16 %v261
    %v1086 = vunpack.c.h.b16 %v261
    %v1087 = vunpack.c.l.b16 %v262
    %v1088 = vunpack.c.h.b16 %v262
    %v1089 = vunpack.c.l.b16 %v263
    %v1090 = vunpack.c.h.b16 %v263
    %v1091 = vunpack.c.l.b16 %v264
    %v1092 = vunpack.c.h.b16 %v264
    %v1093 = vunpack.c.l.b16 %v265
    %v1094 = vunpack.c.h.b16 %v265
    %v1095 = vunpack.c.l.b16 %v266
    %v1096 = vunpack.c.h.b16 %v266
    %v1097 = vunpack.c.l.b16 %v267
    %v1098 = vunpack.c.h.b16 %v267
    %v1099 = vunpack.c.l.b16 %v268
    %v1100 = vunpack.c.h.b16 %v268
    %v1101 = vunpack.c.l.b16 %v269
    %v1102 = vunpack.c.h.b16 %v269
    %v1103 = vunpack.c.l.b16 %v270
    %v1104 = vunpack.c.h.b16 %v270
    %v1105 = vunpack.c.l.b16 %v271
    %v1106 = vunpack.c.h.b16 %v271
    %v1107 = vunpack.c.l.b16 %v272
    %v1108 = vunpack.c.h.b16 %v272
    %v1109 = vunpack.c.l.b16 %v273
    %v1110 = vunpack.c.h.b16 %v273
    %v1111 = vunpack.c.l.b16 %v274
    %v1112 = vunpack.c.h.b16 %v274
    %v1113 = vunpack.c.l.b16 %v275
    %v1114 = vunpack.c.h.b16 %v275
    %v1115 = vunpack.c.l.b16 %v276
    %v1116 = vunpack.c.h.b16 %v276
    %v1117 = vunpack.c.l.b16 %v277
    %v1118 = vunpack.c.h.b16 %v277
    %v1119 = vunpack.c.l.b16 %v278
    %v1120 = vunpack.c.h.b16 %v278
    %v1121 = vunpack.c.l.b16 %v279
    %v1122 = vunpack.c.h.b16 %v279
    %v1123 = vunpack.c.l.b16 %v280
    %v1124 = vunpack.c.h.b16 %v280
    %v1125 = vunpack.c.l.b16 %v281
    %v1126 = vunpack.c.h.b16 %v281
    %v1127 = vunpack.c.l.b16 %v282
    %v1128 = vunpack.c.h.b16 %v282
    %v1129 = vunpack.c.l.b16 %v283
    %v1130 = vunpack.c.h.b16 %v283
    %v1131 = vunpack.c.l.b16 %v284
    %v1132 = vunpack.c.h.b16 %v284
    %v1133 = vpack.c.b16 %v625, %v621
    %v1134 = vpack.c.b16 %v626, %v622
    %v1135 = vpack.c.b16 %v627, %v623
    %v1136 = vpack.c.b16 %v628, %v624
    %v1137 = vpack.c.b16 %v633, %v629
    %v1138 = vpack.c.b16 %v634, %v630
    %v1139 = vpack.c.b16 %v635, %v631
    %v1140 = vpack.c.b16 %v636, %v632
    %v1141 = vpack.c.b16 %v641, %v637
    %v1142 = vpack.c.b16 %v642, %v638
    %v1143 = vpack.c.b16 %v643, %v639
    %v1144 = vpack.c.b16 %v644, %v640
    %v1145 = vpack.c.b16 %v649, %v645
    %v1146 = vpack.c.b16 %v650, %v646
    %v1147 = vpack.c.b16 %v651, %v647
    %v1148 = vpack.c.b16 %v652, %v648
    %v1149 = vpack.c.b16 %v657, %v653
    %v1150 = vpack.c.b16 %v658, %v654
    %v1151 = vpack.c.b16 %v659, %v655
    %v1152 = vpack.c.b16 %v660, %v656
    %v1153 = vpack.c.b16 %v665, %v661
    %v1154 = vpack.c.b16 %v666, %v662
    %v1155 = vpack.c.b16 %v667, %v663
    %v1156 = vpack.c.b16 %v668, %v664
    %v1157 = vpack.c.b16 %v673, %v669
    %v1158 = vpack.c.b16 %v674, %v670
    %v1159 = vpack.c.b16 %v675, %v671
    %v1160 = vpack.c.b16 %v676, %v672
    %v1161 = vpack.c.b16 %v681, %v677
    %v1162 = vpack.c.b16 %v682, %v678
    %v1163 = vpack.c.b16 %v683, %v679
    %v1164 = vpack.c.b16 %v684, %v680
    %v1165 = vpack.c.b16 %v689, %v685
    %v1166 = vpack.c.b16 %v690, %v686
    %v1167 = vpack.c.b16 %v691, %v687
    %v1168 = vpack.c.b16 %v692, %v688
    %v1169 = vpack.c.b16 %v697, %v693
    %v1170 = vpack.c.b16 %v698, %v694
    %v1171 = vpack.c.b16 %v699, %v695
    %v1172 = vpack.c.b16 %v700, %v696
    %v1173 = vpack.c.b16 %v705, %v701
    %v1174 = vpack.c.b16 %v706, %v702
    %v1175 = vpack.c.b16 %v707, %v703
    %v1176 = vpack.c.b16 %v708, %v704
    %v1177 = vpack.c.b16 %v713, %v709
    %v1178 = vpack.c.b16 %v714, %v710
    %v1179 = vpack.c.b16 %v715, %v711
    %v1180 = vpack.c.b16 %v716, %v712
    %v1181 = vpack.c.b16 %v721, %v717
    %v1182 = vpack.c.b16 %v722, %v718
    %v1183 = vpack.c.b16 %v723, %v719
    %v1184 = vpack.c.b16 %v724, %v720
    %v1185 = vpack.c.b16 %v729, %v725
    %v1186 = vpack.c.b16 %v730, %v726
    %v1187 = vpack.c.b16 %v731, %v727
    %v1188 = vpack.c.b16 %v732, %v728
    %v1189 = vpack.c.b16 %v737, %v733
    %v1190 = vpack.c.b16 %v738, %v734
    %v1191 = vpack.c.b16 %v739, %v735
    %v1192 = vpack.c.b16 %v740, %v736
    %v1193 = vpack.c.b16 %v745, %v741
    %v1194 = vpack.c.b16 %v746, %v742
    %v1195 = vpack.c.b16 %v747, %v743
    %v1196 = vpack.c.b16 %v748, %v744
    %v1197 = vpack.c.b16 %v753, %v749
    %v1198 = vpack.c.b16 %v754, %v750
    %v1199 = vpack.c.b16 %v755, %v751
    %v1200 = vpack.c.b16 %v756, %v752
    %v1201 = vpack.c.b16 %v761, %v757
    %v1202 = vpack.c.b16 %v762, %v758
    %v1203 = vpack.c.b16 %v763, %v759
    %v1204 = vpack.c.b16 %v764, %v760
    %v1205 = vpack.c.b16 %v769, %v765
    %v1206 = vpack.c.b16 %v770, %v766
    %v1207 = vpack.c.b16 %v771, %v767
    %v1208 = vpack.c.b16 %v772, %v768
    %v1209 = vpack.c.b16 %v777, %v773
    %v1210 = vpack.c.b16 %v778, %v774
    %v1211 = vpack.c.b16 %v779, %v775
    %v1212 = vpack.c.b16 %v780, %v776
    %v1213 = vpack.c.b16 %v785, %v781
    %v1214 = vpack.c.b16 %v786, %v782
    %v1215 = vpack.c.b16 %v787, %v783
    %v1216 = vpack.c.b16 %v788, %v784
    %v1217 = vpack.c.b16 %v793, %v789
    %v1218 = vpack.c.b16 %v794, %v790
    %v1219 = vpack.c.b16 %v795, %v791
    %v1220 = vpack.c.b16 %v796, %v792
    %v1221 = vpack.c.b16 %v801, %v797
    %v1222 = vpack.c.b16 %v802, %v798
    %v1223 = vpack.c.b16 %v803, %v799
    %v1224 = vpack.c.b16 %v804, %v800
    %v1225 = vpack.c.b16 %v809, %v805
    %v1226 = vpack.c.b16 %v810, %v806
    %v1227 = vpack.c.b16 %v811, %v807
    %v1228 = vpack.c.b16 %v812, %v808
    %v1229 = vpack.c.b16 %v817, %v813
    %v1230 = vpack.c.b16 %v818, %v814
    %v1231 = vpack.c.b16 %v819, %v815
    %v1232 = vpack.c.b16 %v820, %v816
    %v1233 = vpack.c.b16 %v825, %v821
    %v1234 = vpack.c.b16 %v826, %v822
    %v1235 = vpack.c.b16 %v827, %v823
    %v1236 = vpack.c.b16 %v828, %v824
    %v1237 = vpack.c.b16 %v833, %v829
    %v1238 = vpack.c.b16 %v834, %v830
    %v1239 = vpack.c.b16 %v835, %v831
    %v1240 = vpack.c.b16 %v836, %v832
    %v1241 = vpack.c.b16 %v841, %v837
    %v1242 = vpack.c.b16 %v842, %v838
    %v1243 = vpack.c.b16 %v843, %v839
    %v1244 = vpack.c.b16 %v844, %v840
    %v1245 = vpack.c.b16 %v849, %v845
    %v1246 = vpack.c.b16 %v850, %v846
    %v1247 = vpack.c.b16 %v851, %v847
    %v1248 = vpack.c.b16 %v852, %v848
    %v1249 = vpack.c.b16 %v857, %v853
    %v1250 = vpack.c.b16 %v858, %v854
    %v1251 = vpack.c.b16 %v859, %v855
    %v1252 = vpack.c.b16 %v860, %v856
    %v1253 = vpack.c.b16 %v865, %v861
    %v1254 = vpack.c.b16 %v866, %v862
    %v1255 = vpack.c.b16 %v867, %v863
    %v1256 = vpack.c.b16 %v868, %v864
    %v1257 = vpack.c.b16 %v873, %v869
    %v1258 = vpack.c.b16 %v874, %v870
    %v1259 = vpack.c.b16 %v875, %v871
    %v1260 = vpack.c.b16 %v876, %v872
    %v1261 = vpack.c.b16 %v881, %v877
    %v1262 = vpack.c.b16 %v882, %v878
    %v1263 = vpack.c.b16 %v883, %v879
    %v1264 = vpack.c.b16 %v884, %v880
    %v1265 = vpack.c.b16 %v889, %v885
    %v1266 = vpack.c.b16 %v890, %v886
    %v1267 = vpack.c.b16 %v891, %v887
    %v1268 = vpack.c.b16 %v892, %v888
    %v1269 = vpack.c.b16 %v897, %v893
    %v1270 = vpack.c.b16 %v898, %v894
    %v1271 = vpack.c.b16 %v899, %v895
    %v1272 = vpack.c.b16 %v900, %v896
    %v1273 = vpack.c.b16 %v905, %v901
    %v1274 = vpack.c.b16 %v906, %v902
    %v1275 = vpack.c.b16 %v907, %v903
    %v1276 = vpack.c.b16 %v908, %v904
    %v1277 = vpack.c.b16 %v913, %v909
    %v1278 = vpack.c.b16 %v914, %v910
    %v1279 = vpack.c.b16 %v915, %v911
    %v1280 = vpack.c.b16 %v916, %v912
    %v1281 = vpack.c.b16 %v921, %v917
    %v1282 = vpack.c.b16 %v922, %v918
    %v1283 = vpack.c.b16 %v923, %v919
    %v1284 = vpack.c.b16 %v924, %v920
    %v1285 = vpack.c.b16 %v929, %v925
    %v1286 = vpack.c.b16 %v930, %v926
    %v1287 = vpack.c.b16 %v931, %v927
    %v1288 = vpack.c.b16 %v932, %v928
    %v1289 = vpack.c.b16 %v937, %v933
    %v1290 = vpack.c.b16 %v938, %v934
    %v1291 = vpack.c.b16 %v939, %v935
    %v1292 = vpack.c.b16 %v940, %v936
    %v1293 = vpack.c.b16 %v945, %v941
    %v1294 = vpack.c.b16 %v946, %v942
    %v1295 = vpack.c.b16 %v947, %v943
    %v1296 = vpack.c.b16 %v948, %v944
    %v1297 = vpack.c.b16 %v953, %v949
    %v1298 = vpack.c.b16 %v954, %v950
    %v1299 = vpack.c.b16 %v955, %v951
    %v1300 = vpack.c.b16 %v956, %v952
    %v1301 = vpack.c.b16 %v961, %v957
    %v1302 = vpack.c.b16 %v962, %v958
    %v1303 = vpack.c.b16 %v963, %v959
    %v1304 = vpack.c.b16 %v964, %v960
    %v1305 = vpack.c.b16 %v969, %v965
    %v1306 = vpack.c.b16 %v970, %v966
    %v1307 = vpack.c.b16 %v971, %v967
    %v1308 = vpack.c.b16 %v972, %v968
    %v1309 = vpack.c.b16 %v977, %v973
    %v1310 = vpack.c.b16 %v978, %v974
    %v1311 = vpack.c.b16 %v979, %v975
    %v1312 = vpack.c.b16 %v980, %v976
    %v1313 = vpack.c.b16 %v985, %v981
    %v1314 = vpack.c.b16 %v986, %v982
    %v1315 = vpack.c.b16 %v987, %v983
    %v1316 = vpack.c.b16 %v988, %v984
    %v1317 = vpack.c.b16 %v993, %v989
    %v1318 = vpack.c.b16 %v994, %v990
    %v1319 = vpack.c.b16 %v995, %v991
    %v1320 = vpack.c.b16 %v996, %v992
    %v1321 = vpack.c.b16 %v1001, %v997
    %v1322 = vpack.c.b16 %v1002, %v998
    %v1323 = vpack.c.b16 %v1003, %v999
    %v1324 = vpack.c.b16 %v1004, %v1000
    %v1325 = vpack.c.b16 %v1009, %v1005
    %v1326 = vpack.c.b16 %v1010, %v1006
    %v1327 = vpack.c.b16 %v1011, %v1007
    %v1328 = vpack.c.b16 %v1012, %v1008
    %v1329 = vpack.c.b16 %v1017, %v1013
    %v1330 = vpack.c.b16 %v1018, %v1014
    %v1331 = vpack.c.b16 %v1019, %v1015
    %v1332 = vpack.c.b16 %v1020, %v1016
    %v1333 = vpack.c.b16 %v1025, %v1021
    %v1334 = vpack.c.b16 %v1026, %v1022
    %v1335 = vpack.c.b16 %v1027, %v1023
    %v1336 = vpack.c.b16 %v1028, %v1024
    %v1337 = vpack.c.b16 %v1033, %v1029
    %v1338 = vpack.c.b16 %v1034, %v1030
    %v1339 = vpack.c.b16 %v1035, %v1031
    %v1340 = vpack.c.b16 %v1036, %v1032
    %v1341 = vpack.c.b16 %v1041, %v1037
    %v1342 = vpack.c.b16 %v1042, %v1038
    %v1343 = vpack.c.b16 %v1043, %v1039
    %v1344 = vpack.c.b16 %v1044, %v1040
    %v1345 = vpack.c.b16 %v1049, %v1045
    %v1346 = vpack.c.b16 %v1050, %v1046
    %v1347 = vpack.c.b16 %v1051, %v1047
    %v1348 = vpack.c.b16 %v1052, %v1048
    %v1349 = vpack.c.b16 %v1057, %v1053
    %v1350 = vpack.c.b16 %v1058, %v1054
    %v1351 = vpack.c.b16 %v1059, %v1055
    %v1352 = vpack.c.b16 %v1060, %v1056
    %v1353 = vpack.c.b16 %v1065, %v1061
    %v1354 = vpack.c.b16 %v1066, %v1062
    %v1355 = vpack.c.b16 %v1067, %v1063
    %v1356 = vpack.c.b16 %v1068, %v1064
    %v1357 = vpack.c.b16 %v1073, %v1069
    %v1358 = vpack.c.b16 %v1074, %v1070
    %v1359 = vpack.c.b16 %v1075, %v1071
    %v1360 = vpack.c.b16 %v1076, %v1072
    %v1361 = vpack.c.b16 %v1081, %v1077
    %v1362 = vpack.c.b16 %v1082, %v1078
    %v1363 = vpack.c.b16 %v1083, %v1079
    %v1364 = vpack.c.b16 %v1084, %v1080
    %v1365 = vpack.c.b16 %v1089, %v1085
    %v1366 = vpack.c.b16 %v1090, %v1086
    %v1367 = vpack.c.b16 %v1091, %v1087
    %v1368 = vpack.c.b16 %v1092, %v1088
    %v1369 = vpack.c.b16 %v1097, %v1093
    %v1370 = vpack.c.b16 %v1098, %v1094
    %v1371 = vpack.c.b16 %v1099, %v1095
    %v1372 = vpack.c.b16 %v1100, %v1096
    %v1373 = vpack.c.b16 %v1105, %v1101
    %v1374 = vpack.c.b16 %v1106, %v1102
    %v1375 = vpack.c.b16 %v1107, %v1103
    %v1376 = vpack.c.b16 %v1108, %v1104
    %v1377 = vpack.c.b16 %v1113, %v1109
    %v1378 = vpack.c.b16 %v1114, %v1110
    %v1379 = vpack.c.b16 %v1115, %v1111
    %v1380 = vpack.c.b16 %v1116, %v1112
    %v1381 = vpack.c.b16 %v1121, %v1117
    %v1382 = vpack.c.b16 %v1122, %v1118
    %v1383 = vpack.c.b16 %v1123, %v1119
    %v1384 = vpack.c.b16 %v1124, %v1120
    %v1385 = vpack.c.b16 %v1129, %v1125
    %v1386 = vpack.c.b16 %v1130, %v1126
    %v1387 = vpack.c.b16 %v1131, %v1127
    %v1388 = vpack.c.b16 %v1132, %v1128
    %1645 = vmatprep.subr.bf16.mxu0 %v1134
    %1646 = vmatpush1.bf16.msra.mxu0 %v1133
    %1647 = vmatprep.subr.bf16.mxu0 %v1138
    %1648 = vmatpush1.bf16.msra.mxu0 %v1137
    %1649 = vmatprep.subr.bf16.mxu0 %v1142
    %1650 = vmatpush1.bf16.msra.mxu0 %v1141
    %1651 = vmatprep.subr.bf16.mxu0 %v1146
    %1652 = vmatpush1.bf16.msra.mxu0 %v1145
    %1653 = vmatprep.subr.bf16.mxu0 %v1150
    %1654 = vmatpush1.bf16.msra.mxu0 %v1149
    %1655 = vmatprep.subr.bf16.mxu0 %v1154
    %1656 = vmatpush1.bf16.msra.mxu0 %v1153
    %1657 = vmatprep.subr.bf16.mxu0 %v1158
    %1658 = vmatpush1.bf16.msra.mxu0 %v1157
    %1659 = vmatprep.subr.bf16.mxu0 %v1162
    %1660 = vmatpush1.bf16.msra.mxu0 %v1161
    %1661 = vmatprep.subr.bf16.mxu0 %v1166
    %1662 = vmatpush1.bf16.msra.mxu0 %v1165
    %1663 = vmatprep.subr.bf16.mxu0 %v1170
    %1664 = vmatpush1.bf16.msra.mxu0 %v1169
    %1665 = vmatprep.subr.bf16.mxu0 %v1174
    %1666 = vmatpush1.bf16.msra.mxu0 %v1173
    %1667 = vmatprep.subr.bf16.mxu0 %v1178
    %1668 = vmatpush1.bf16.msra.mxu0 %v1177
    %1669 = vmatprep.subr.bf16.mxu0 %v1182
    %1670 = vmatpush1.bf16.msra.mxu0 %v1181
    %1671 = vmatprep.subr.bf16.mxu0 %v1186
    %1672 = vmatpush1.bf16.msra.mxu0 %v1185
    %1673 = vmatprep.subr.bf16.mxu0 %v1190
    %1674 = vmatpush1.bf16.msra.mxu0 %v1189
    %1675 = vmatprep.subr.bf16.mxu0 %v1194
    %1676 = vmatpush1.bf16.msra.mxu0 %v1193
    %1677 = vmatprep.mubr.bf16.mxu0 %v345
    %1678 = vmatmul.mubr.bf16.gmra.mrb[0].mxu0 %v331
    %v1679 = vpop.f32.mrb[0].mxu0
    %v1680 = vadd.f32 %v290, %v1679
    %v1681 = vpop.f32.mrb[0].mxu0
    %v1682 = vadd.f32 %v294, %v1681
    %v1683 = vpop.f32.mrb[0].mxu0
    %v1684 = vpop.f32.mrb[0].mxu0
    %1685 = vdwg.mxu0
    %1686 = vmatprep.subr.bf16.mxu0 %v1198
    %1687 = vmatpush1.bf16.msra.mxu0 %v1197
    %1688 = vmatprep.subr.bf16.mxu0 %v1202
    %1689 = vmatpush1.bf16.msra.mxu0 %v1201
    %1690 = vmatprep.subr.bf16.mxu0 %v1206
    %1691 = vmatpush1.bf16.msra.mxu0 %v1205
    %1692 = vmatprep.subr.bf16.mxu0 %v1210
    %1693 = vmatpush1.bf16.msra.mxu0 %v1209
    %1694 = vmatprep.subr.bf16.mxu0 %v1214
    %1695 = vmatpush1.bf16.msra.mxu0 %v1213
    %1696 = vmatprep.subr.bf16.mxu0 %v1218
    %1697 = vmatpush1.bf16.msra.mxu0 %v1217
    %1698 = vmatprep.subr.bf16.mxu0 %v1222
    %1699 = vmatpush1.bf16.msra.mxu0 %v1221
    %1700 = vmatprep.subr.bf16.mxu0 %v1226
    %1701 = vmatpush1.bf16.msra.mxu0 %v1225
    %1702 = vmatprep.subr.bf16.mxu0 %v1230
    %1703 = vmatpush1.bf16.msra.mxu0 %v1229
    %1704 = vmatprep.subr.bf16.mxu0 %v1234
    %1705 = vmatpush1.bf16.msra.mxu0 %v1233
    %1706 = vmatprep.subr.bf16.mxu0 %v1238
    %1707 = vmatpush1.bf16.msra.mxu0 %v1237
    %1708 = vmatprep.subr.bf16.mxu0 %v1242
    %1709 = vmatpush1.bf16.msra.mxu0 %v1241
    %1710 = vmatprep.subr.bf16.mxu0 %v1246
    %1711 = vmatpush1.bf16.msra.mxu0 %v1245
    %1712 = vmatprep.subr.bf16.mxu0 %v1250
    %1713 = vmatpush1.bf16.msra.mxu0 %v1249
    %1714 = vmatprep.subr.bf16.mxu0 %v1254
    %1715 = vmatpush1.bf16.msra.mxu0 %v1253
    %1716 = vmatprep.subr.bf16.mxu0 %v1258
    %1717 = vmatpush1.bf16.msra.mxu0 %v1257
    %1718 = vmatprep.mubr.bf16.mxu0 %v355
    %1719 = vmatmul.mubr.bf16.gmra.mrb[0].mxu0 %v353
    %v1720 = vpop.f32.mrb[0].mxu0
    %v1721 = vadd.f32 %v1680, %v1720
    %v1722 = vpop.f32.mrb[0].mxu0
    %v1723 = vadd.f32 %v1682, %v1722
    %v1724 = vpop.f32.mrb[0].mxu0
    %v1725 = vpop.f32.mrb[0].mxu0
    %1726 = vdwg.mxu0
    %1727 = vmatprep.subr.bf16.mxu0 %v1262
    %1728 = vmatpush1.bf16.msra.mxu0 %v1261
    %1729 = vmatprep.subr.bf16.mxu0 %v1266
    %1730 = vmatpush1.bf16.msra.mxu0 %v1265
    %1731 = vmatprep.subr.bf16.mxu0 %v1270
    %1732 = vmatpush1.bf16.msra.mxu0 %v1269
    %1733 = vmatprep.subr.bf16.mxu0 %v1274
    %1734 = vmatpush1.bf16.msra.mxu0 %v1273
    %1735 = vmatprep.subr.bf16.mxu0 %v1278
    %1736 = vmatpush1.bf16.msra.mxu0 %v1277
    %1737 = vmatprep.subr.bf16.mxu0 %v1282
    %1738 = vmatpush1.bf16.msra.mxu0 %v1281
    %1739 = vmatprep.subr.bf16.mxu0 %v1286
    %1740 = vmatpush1.bf16.msra.mxu0 %v1285
    %1741 = vmatprep.subr.bf16.mxu0 %v1290
    %1742 = vmatpush1.bf16.msra.mxu0 %v1289
    %1743 = vmatprep.subr.bf16.mxu0 %v1294
    %1744 = vmatpush1.bf16.msra.mxu0 %v1293
    %1745 = vmatprep.subr.bf16.mxu0 %v1298
    %1746 = vmatpush1.bf16.msra.mxu0 %v1297
    %1747 = vmatprep.subr.bf16.mxu0 %v1302
    %1748 = vmatpush1.bf16.msra.mxu0 %v1301
    %1749 = vmatprep.subr.bf16.mxu0 %v1306
    %1750 = vmatpush1.bf16.msra.mxu0 %v1305
    %1751 = vmatprep.subr.bf16.mxu0 %v1310
    %1752 = vmatpush1.bf16.msra.mxu0 %v1309
    %1753 = vmatprep.subr.bf16.mxu0 %v1314
    %1754 = vmatpush1.bf16.msra.mxu0 %v1313
    %1755 = vmatprep.subr.bf16.mxu0 %v1318
    %1756 = vmatpush1.bf16.msra.mxu0 %v1317
    %1757 = vmatprep.subr.bf16.mxu0 %v1322
    %1758 = vmatpush1.bf16.msra.mxu0 %v1321
    %1759 = vmatprep.mubr.bf16.mxu0 %v352
    %1760 = vmatmul.mubr.bf16.gmra.mrb[0].mxu0 %v338
    %v1761 = vpop.f32.mrb[0].mxu0
    %v1762 = vadd.f32 %v1721, %v1761
    %v1763 = vpop.f32.mrb[0].mxu0
    %v1764 = vadd.f32 %v1723, %v1763
    %v1765 = vpop.f32.mrb[0].mxu0
    %v1766 = vpop.f32.mrb[0].mxu0
    %1767 = vdwg.mxu0
    %1768 = vmatprep.subr.bf16.mxu0 %v1326
    %1769 = vmatpush1.bf16.msra.mxu0 %v1325
    %1770 = vmatprep.subr.bf16.mxu0 %v1330
    %1771 = vmatpush1.bf16.msra.mxu0 %v1329
    %1772 = vmatprep.subr.bf16.mxu0 %v1334
    %1773 = vmatpush1.bf16.msra.mxu0 %v1333
    %1774 = vmatprep.subr.bf16.mxu0 %v1338
    %1775 = vmatpush1.bf16.msra.mxu0 %v1337
    %1776 = vmatprep.subr.bf16.mxu0 %v1342
    %1777 = vmatpush1.bf16.msra.mxu0 %v1341
    %1778 = vmatprep.subr.bf16.mxu0 %v1346
    %1779 = vmatpush1.bf16.msra.mxu0 %v1345
    %1780 = vmatprep.subr.bf16.mxu0 %v1350
    %1781 = vmatpush1.bf16.msra.mxu0 %v1349
    %1782 = vmatprep.subr.bf16.mxu0 %v1354
    %1783 = vmatpush1.bf16.msra.mxu0 %v1353
    %1784 = vmatprep.subr.bf16.mxu0 %v1358
    %1785 = vmatpush1.bf16.msra.mxu0 %v1357
    %1786 = vmatprep.subr.bf16.mxu0 %v1362
    %1787 = vmatpush1.bf16.msra.mxu0 %v1361
    %1788 = vmatprep.subr.bf16.mxu0 %v1366
    %1789 = vmatpush1.bf16.msra.mxu0 %v1365
    %1790 = vmatprep.subr.bf16.mxu0 %v1370
    %1791 = vmatpush1.bf16.msra.mxu0 %v1369
    %1792 = vmatprep.subr.bf16.mxu0 %v1374
    %1793 = vmatpush1.bf16.msra.mxu0 %v1373
    %1794 = vmatprep.subr.bf16.mxu0 %v1378
    %1795 = vmatpush1.bf16.msra.mxu0 %v1377
    %1796 = vmatprep.subr.bf16.mxu0 %v1382
    %1797 = vmatpush1.bf16.msra.mxu0 %v1381
    %1798 = vmatprep.subr.bf16.mxu0 %v1386
    %1799 = vmatpush1.bf16.msra.mxu0 %v1385
    %1800 = vmatprep.mubr.bf16.mxu0 %v356
    %1801 = vmatmul.mubr.bf16.gmra.mrb[0].mxu0 %v354
    %v1802 = vpop.f32.mrb[0].mxu0
    %v1803 = vadd.f32 %v1762, %v1802
    %v1804 = vpop.f32.mrb[0].mxu0
    %v1805 = vadd.f32 %v1764, %v1804
    %v1806 = vpop.f32.mrb[0].mxu0
    %v1807 = vpop.f32.mrb[0].mxu0
    %1808 = vdwg.mxu0
    %1809 = vmatprep.subr.bf16.mxu0 %v1136
    %1810 = vmatpush1.bf16.msra.mxu0 %v1135
    %1811 = vmatprep.subr.bf16.mxu0 %v1140
    %1812 = vmatpush1.bf16.msra.mxu0 %v1139
    %1813 = vmatprep.subr.bf16.mxu0 %v1144
    %1814 = vmatpush1.bf16.msra.mxu0 %v1143
    %1815 = vmatprep.subr.bf16.mxu0 %v1148
    %1816 = vmatpush1.bf16.msra.mxu0 %v1147
    %1817 = vmatprep.subr.bf16.mxu0 %v1152
    %1818 = vmatpush1.bf16.msra.mxu0 %v1151
    %1819 = vmatprep.subr.bf16.mxu0 %v1156
    %1820 = vmatpush1.bf16.msra.mxu0 %v1155
    %1821 = vmatprep.subr.bf16.mxu0 %v1160
    %1822 = vmatpush1.bf16.msra.mxu0 %v1159
    %1823 = vmatprep.subr.bf16.mxu0 %v1164
    %1824 = vmatpush1.bf16.msra.mxu0 %v1163
    %1825 = vmatprep.subr.bf16.mxu0 %v1168
    %1826 = vmatpush1.bf16.msra.mxu0 %v1167
    %1827 = vmatprep.subr.bf16.mxu0 %v1172
    %1828 = vmatpush1.bf16.msra.mxu0 %v1171
    %1829 = vmatprep.subr.bf16.mxu0 %v1176
    %1830 = vmatpush1.bf16.msra.mxu0 %v1175
    %1831 = vmatprep.subr.bf16.mxu0 %v1180
    %1832 = vmatpush1.bf16.msra.mxu0 %v1179
    %1833 = vmatprep.subr.bf16.mxu0 %v1184
    %1834 = vmatpush1.bf16.msra.mxu0 %v1183
    %1835 = vmatprep.subr.bf16.mxu0 %v1188
    %1836 = vmatpush1.bf16.msra.mxu0 %v1187
    %1837 = vmatprep.subr.bf16.mxu0 %v1192
    %1838 = vmatpush1.bf16.msra.mxu0 %v1191
    %1839 = vmatprep.subr.bf16.mxu0 %v1196
    %1840 = vmatpush1.bf16.msra.mxu0 %v1195
    %1841 = vmatprep.mubr.bf16.mxu0 %v345
    %1842 = vmatmul.mubr.bf16.gmra.mrb[0].mxu0 %v331
    %v1843 = vpop.f32.mrb[0].mxu0
    %v1844 = vadd.f32 %v298, %v1843
    %v1845 = vpop.f32.mrb[0].mxu0
    %v1846 = vadd.f32 %v302, %v1845
    %v1847 = vpop.f32.mrb[0].mxu0
    %v1848 = vpop.f32.mrb[0].mxu0
    %1849 = vdwg.mxu0
    %1850 = vmatprep.subr.bf16.mxu0 %v1200
    %1851 = vmatpush1.bf16.msra.mxu0 %v1199
    %1852 = vmatprep.subr.bf16.mxu0 %v1204
    %1853 = vmatpush1.bf16.msra.mxu0 %v1203
    %1854 = vmatprep.subr.bf16.mxu0 %v1208
    %1855 = vmatpush1.bf16.msra.mxu0 %v1207
    %1856 = vmatprep.subr.bf16.mxu0 %v1212
    %1857 = vmatpush1.bf16.msra.mxu0 %v1211
    %1858 = vmatprep.subr.bf16.mxu0 %v1216
    %1859 = vmatpush1.bf16.msra.mxu0 %v1215
    %1860 = vmatprep.subr.bf16.mxu0 %v1220
    %1861 = vmatpush1.bf16.msra.mxu0 %v1219
    %1862 = vmatprep.subr.bf16.mxu0 %v1224
    %1863 = vmatpush1.bf16.msra.mxu0 %v1223
    %1864 = vmatprep.subr.bf16.mxu0 %v1228
    %1865 = vmatpush1.bf16.msra.mxu0 %v1227
    %1866 = vmatprep.subr.bf16.mxu0 %v1232
    %1867 = vmatpush1.bf16.msra.mxu0 %v1231
    %1868 = vmatprep.subr.bf16.mxu0 %v1236
    %1869 = vmatpush1.bf16.msra.mxu0 %v1235
    %1870 = vmatprep.subr.bf16.mxu0 %v1240
    %1871 = vmatpush1.bf16.msra.mxu0 %v1239
    %1872 = vmatprep.subr.bf16.mxu0 %v1244
    %1873 = vmatpush1.bf16.msra.mxu0 %v1243
    %1874 = vmatprep.subr.bf16.mxu0 %v1248
    %1875 = vmatpush1.bf16.msra.mxu0 %v1247
    %1876 = vmatprep.subr.bf16.mxu0 %v1252
    %1877 = vmatpush1.bf16.msra.mxu0 %v1251
    %1878 = vmatprep.subr.bf16.mxu0 %v1256
    %1879 = vmatpush1.bf16.msra.mxu0 %v1255
    %1880 = vmatprep.subr.bf16.mxu0 %v1260
    %1881 = vmatpush1.bf16.msra.mxu0 %v1259
    %1882 = vmatprep.mubr.bf16.mxu0 %v355
    %1883 = vmatmul.mubr.bf16.gmra.mrb[0].mxu0 %v353
    %v1884 = vpop.f32.mrb[0].mxu0
    %v1885 = vadd.f32 %v1844, %v1884
    %v1886 = vpop.f32.mrb[0].mxu0
    %v1887 = vadd.f32 %v1846, %v1886
    %v1888 = vpop.f32.mrb[0].mxu0
    %v1889 = vpop.f32.mrb[0].mxu0
    %1890 = vdwg.mxu0
    %1891 = vmatprep.subr.bf16.mxu0 %v1264
    %1892 = vmatpush1.bf16.msra.mxu0 %v1263
    %1893 = vmatprep.subr.bf16.mxu0 %v1268
    %1894 = vmatpush1.bf16.msra.mxu0 %v1267
    %1895 = vmatprep.subr.bf16.mxu0 %v1272
    %1896 = vmatpush1.bf16.msra.mxu0 %v1271
    %1897 = vmatprep.subr.bf16.mxu0 %v1276
    %1898 = vmatpush1.bf16.msra.mxu0 %v1275
    %1899 = vmatprep.subr.bf16.mxu0 %v1280
    %1900 = vmatpush1.bf16.msra.mxu0 %v1279
    %1901 = vmatprep.subr.bf16.mxu0 %v1284
    %1902 = vmatpush1.bf16.msra.mxu0 %v1283
    %1903 = vmatprep.subr.bf16.mxu0 %v1288
    %1904 = vmatpush1.bf16.msra.mxu0 %v1287
    %1905 = vmatprep.subr.bf16.mxu0 %v1292
    %1906 = vmatpush1.bf16.msra.mxu0 %v1291
    %1907 = vmatprep.subr.bf16.mxu0 %v1296
    %1908 = vmatpush1.bf16.msra.mxu0 %v1295
    %1909 = vmatprep.subr.bf16.mxu0 %v1300
    %1910 = vmatpush1.bf16.msra.mxu0 %v1299
    %1911 = vmatprep.subr.bf16.mxu0 %v1304
    %1912 = vmatpush1.bf16.msra.mxu0 %v1303
    %1913 = vmatprep.subr.bf16.mxu0 %v1308
    %1914 = vmatpush1.bf16.msra.mxu0 %v1307
    %1915 = vmatprep.subr.bf16.mxu0 %v1312
    %1916 = vmatpush1.bf16.msra.mxu0 %v1311
    %1917 = vmatprep.subr.bf16.mxu0 %v1316
    %1918 = vmatpush1.bf16.msra.mxu0 %v1315
    %1919 = vmatprep.subr.bf16.mxu0 %v1320
    %1920 = vmatpush1.bf16.msra.mxu0 %v1319
    %1921 = vmatprep.subr.bf16.mxu0 %v1324
    %1922 = vmatpush1.bf16.msra.mxu0 %v1323
    %1923 = vmatprep.mubr.bf16.mxu0 %v352
    %1924 = vmatmul.mubr.bf16.gmra.mrb[0].mxu0 %v338
    %v1925 = vpop.f32.mrb[0].mxu0
    %v1926 = vadd.f32 %v1885, %v1925
    %v1927 = vpop.f32.mrb[0].mxu0
    %v1928 = vadd.f32 %v1887, %v1927
    %v1929 = vpop.f32.mrb[0].mxu0
    %v1930 = vpop.f32.mrb[0].mxu0
    %1931 = vdwg.mxu0
    %1932 = vmatprep.subr.bf16.mxu0 %v1328
    %1933 = vmatpush1.bf16.msra.mxu0 %v1327
    %1934 = vmatprep.subr.bf16.mxu0 %v1332
    %1935 = vmatpush1.bf16.msra.mxu0 %v1331
    %1936 = vmatprep.subr.bf16.mxu0 %v1336
    %1937 = vmatpush1.bf16.msra.mxu0 %v1335
    %1938 = vmatprep.subr.bf16.mxu0 %v1340
    %1939 = vmatpush1.bf16.msra.mxu0 %v1339
    %1940 = vmatprep.subr.bf16.mxu0 %v1344
    %1941 = vmatpush1.bf16.msra.mxu0 %v1343
    %1942 = vmatprep.subr.bf16.mxu0 %v1348
    %1943 = vmatpush1.bf16.msra.mxu0 %v1347
    %1944 = vmatprep.subr.bf16.mxu0 %v1352
    %1945 = vmatpush1.bf16.msra.mxu0 %v1351
    %1946 = vmatprep.subr.bf16.mxu0 %v1356
    %1947 = vmatpush1.bf16.msra.mxu0 %v1355
    %1948 = vmatprep.subr.bf16.mxu0 %v1360
    %1949 = vmatpush1.bf16.msra.mxu0 %v1359
    %1950 = vmatprep.subr.bf16.mxu0 %v1364
    %1951 = vmatpush1.bf16.msra.mxu0 %v1363
    %1952 = vmatprep.subr.bf16.mxu0 %v1368
    %1953 = vmatpush1.bf16.msra.mxu0 %v1367
    %1954 = vmatprep.subr.bf16.mxu0 %v1372
    %1955 = vmatpush1.bf16.msra.mxu0 %v1371
    %1956 = vmatprep.subr.bf16.mxu0 %v1376
    %1957 = vmatpush1.bf16.msra.mxu0 %v1375
    %1958 = vmatprep.subr.bf16.mxu0 %v1380
    %1959 = vmatpush1.bf16.msra.mxu0 %v1379
    %1960 = vmatprep.subr.bf16.mxu0 %v1384
    %1961 = vmatpush1.bf16.msra.mxu0 %v1383
    %1962 = vmatprep.subr.bf16.mxu0 %v1388
    %1963 = vmatpush1.bf16.msra.mxu0 %v1387
    %1964 = vmatprep.mubr.bf16.mxu0 %v356
    %1965 = vmatmul.mubr.bf16.gmra.mrb[0].mxu0 %v354
    %v1966 = vpop.f32.mrb[0].mxu0
    %v1967 = vadd.f32 %v1926, %v1966
    %v1968 = vpop.f32.mrb[0].mxu0
    %v1969 = vadd.f32 %v1928, %v1968
    %v1970 = vpop.f32.mrb[0].mxu0
    %v1971 = vpop.f32.mrb[0].mxu0
    %1972 = vdwg.mxu0
    %v1973 = vmax.f32 %v1803, 0.0
    %v1974 = vmax.f32 %v1805, 0.0
    %v1975 = vmax.f32 %v1967, 0.0
    %v1976 = vmax.f32 %v1969, 0.0
    %v1977 = vpack.c.bf16 %v1973, %v1973
    %v1978 = vpack.c.bf16 %v1974, %v1974
    %v1979 = vpack.c.bf16 %v1975, %v1975
    %v1980 = vpack.c.bf16 %v1976, %v1976
    %v1981 = vld [vmem:[%s3] sm:$0xff]
    %v1982 = vld [vmem:[%s3 + $0x8] sm:$0xff]
    %v1983 = vld [vmem:[%s3 + $0x10] sm:$0xff]
    %v1984 = vld [vmem:[%s3 + $0x18] sm:$0xff]
    %v1985 = vld [vmem:[%s3 + $0x20] sm:$0xff]
    %v1986 = vld [vmem:[%s3 + $0x28] sm:$0xff]
    %v1987 = vld [vmem:[%s3 + $0x30] sm:$0xff]
    %v1988 = vld [vmem:[%s3 + $0x38] sm:$0xff]
    %v1989 = vld [vmem:[%s3 + $0x40] sm:$0xff]
    %v1990 = vld [vmem:[%s3 + $0x48] sm:$0xff]
    %v1991 = vld [vmem:[%s3 + $0x50] sm:$0xff]
    %v1992 = vld [vmem:[%s3 + $0x58] sm:$0xff]
    %v1993 = vld [vmem:[%s3 + $0x60] sm:$0xff]
    %v1994 = vld [vmem:[%s3 + $0x68] sm:$0xff]
    %v1995 = vld [vmem:[%s3 + $0x70] sm:$0xff]
    %v1996 = vld [vmem:[%s3 + $0x78] sm:$0xff]
    %v1997 = vld [vmem:[%s3 + $0x80] sm:$0xff]
    %v1998 = vld [vmem:[%s3 + $0x88] sm:$0xff]
    %v1999 = vld [vmem:[%s3 + $0x90] sm:$0xff]
    %v2000 = vld [vmem:[%s3 + $0x98] sm:$0xff]
    %v2001 = vld [vmem:[%s3 + $0xa0] sm:$0xff]
    %v2002 = vld [vmem:[%s3 + $0xa8] sm:$0xff]
    %v2003 = vld [vmem:[%s3 + $0xb0] sm:$0xff]
    %v2004 = vld [vmem:[%s3 + $0xb8] sm:$0xff]
    %v2005 = vld [vmem:[%s3 + $0xc0] sm:$0xff]
    %v2006 = vld [vmem:[%s3 + $0xc8] sm:$0xff]
    %v2007 = vld [vmem:[%s3 + $0xd0] sm:$0xff]
    %v2008 = vld [vmem:[%s3 + $0xd8] sm:$0xff]
    %v2009 = vld [vmem:[%s3 + $0xe0] sm:$0xff]
    %v2010 = vld [vmem:[%s3 + $0xe8] sm:$0xff]
    %v2011 = vld [vmem:[%s3 + $0xf0] sm:$0xff]
    %v2012 = vld [vmem:[%s3 + $0xf8] sm:$0xff]
    %v2013 = vld [vmem:[%s3 + $0x100] sm:$0xff]
    %v2014 = vld [vmem:[%s3 + $0x108] sm:$0xff]
    %v2015 = vld [vmem:[%s3 + $0x110] sm:$0xff]
    %v2016 = vld [vmem:[%s3 + $0x118] sm:$0xff]
    %v2017 = vld [vmem:[%s3 + $0x120] sm:$0xff]
    %v2018 = vld [vmem:[%s3 + $0x128] sm:$0xff]
    %v2019 = vld [vmem:[%s3 + $0x130] sm:$0xff]
    %v2020 = vld [vmem:[%s3 + $0x138] sm:$0xff]
    %v2021 = vld [vmem:[%s3 + $0x140] sm:$0xff]
    %v2022 = vld [vmem:[%s3 + $0x148] sm:$0xff]
    %v2023 = vld [vmem:[%s3 + $0x150] sm:$0xff]
    %v2024 = vld [vmem:[%s3 + $0x158] sm:$0xff]
    %v2025 = vld [vmem:[%s3 + $0x160] sm:$0xff]
    %v2026 = vld [vmem:[%s3 + $0x168] sm:$0xff]
    %v2027 = vld [vmem:[%s3 + $0x170] sm:$0xff]
    %v2028 = vld [vmem:[%s3 + $0x178] sm:$0xff]
    %v2029 = vld [vmem:[%s3 + $0x180] sm:$0xff]
    %v2030 = vld [vmem:[%s3 + $0x188] sm:$0xff]
    %v2031 = vld [vmem:[%s3 + $0x190] sm:$0xff]
    %v2032 = vld [vmem:[%s3 + $0x198] sm:$0xff]
    %v2033 = vld [vmem:[%s3 + $0x1a0] sm:$0xff]
    %v2034 = vld [vmem:[%s3 + $0x1a8] sm:$0xff]
    %v2035 = vld [vmem:[%s3 + $0x1b0] sm:$0xff]
    %v2036 = vld [vmem:[%s3 + $0x1b8] sm:$0xff]
    %v2037 = vld [vmem:[%s3 + $0x1c0] sm:$0xff]
    %v2038 = vld [vmem:[%s3 + $0x1c8] sm:$0xff]
    %v2039 = vld [vmem:[%s3 + $0x1d0] sm:$0xff]
    %v2040 = vld [vmem:[%s3 + $0x1d8] sm:$0xff]
    %v2041 = vld [vmem:[%s3 + $0x1e0] sm:$0xff]
    %v2042 = vld [vmem:[%s3 + $0x1e8] sm:$0xff]
    %v2043 = vld [vmem:[%s3 + $0x1f0] sm:$0xff]
    %v2044 = vld [vmem:[%s3 + $0x1f8] sm:$0xff]
    %v2045 = vld [vmem:[%s4] sm:$0x3]
    %v2047 = vlaneseq
    %v2048 = vshrl.u32 %v2047, 7
    %v2049 = vsub.s32 0, %v2048
    %v2050 = vrot.slane %v2045, %v2049
    %v2051 = vlaneseq
    %v2052 = vshrl.u32 %v2051, 7
    %v2053 = vsub.s32 1, %v2052
    %v2054 = vrot.slane %v2045, %v2053
    %v2121 = vunpack.c.l.b16 %v1981
    %v2122 = vunpack.c.h.b16 %v1981
    %v2123 = vunpack.c.l.b16 %v1982
    %v2124 = vunpack.c.h.b16 %v1982
    %v2125 = vunpack.c.l.b16 %v1983
    %v2126 = vunpack.c.h.b16 %v1983
    %v2127 = vunpack.c.l.b16 %v1984
    %v2128 = vunpack.c.h.b16 %v1984
    %v2129 = vunpack.c.l.b16 %v1985
    %v2130 = vunpack.c.h.b16 %v1985
    %v2131 = vunpack.c.l.b16 %v1986
    %v2132 = vunpack.c.h.b16 %v1986
    %v2133 = vunpack.c.l.b16 %v1987
    %v2134 = vunpack.c.h.b16 %v1987
    %v2135 = vunpack.c.l.b16 %v1988
    %v2136 = vunpack.c.h.b16 %v1988
    %v2137 = vunpack.c.l.b16 %v1989
    %v2138 = vunpack.c.h.b16 %v1989
    %v2139 = vunpack.c.l.b16 %v1990
    %v2140 = vunpack.c.h.b16 %v1990
    %v2141 = vunpack.c.l.b16 %v1991
    %v2142 = vunpack.c.h.b16 %v1991
    %v2143 = vunpack.c.l.b16 %v1992
    %v2144 = vunpack.c.h.b16 %v1992
    %v2145 = vunpack.c.l.b16 %v1993
    %v2146 = vunpack.c.h.b16 %v1993
    %v2147 = vunpack.c.l.b16 %v1994
    %v2148 = vunpack.c.h.b16 %v1994
    %v2149 = vunpack.c.l.b16 %v1995
    %v2150 = vunpack.c.h.b16 %v1995
    %v2151 = vunpack.c.l.b16 %v1996
    %v2152 = vunpack.c.h.b16 %v1996
    %v2153 = vunpack.c.l.b16 %v1997
    %v2154 = vunpack.c.h.b16 %v1997
    %v2155 = vunpack.c.l.b16 %v1998
    %v2156 = vunpack.c.h.b16 %v1998
    %v2157 = vunpack.c.l.b16 %v1999
    %v2158 = vunpack.c.h.b16 %v1999
    %v2159 = vunpack.c.l.b16 %v2000
    %v2160 = vunpack.c.h.b16 %v2000
    %v2161 = vunpack.c.l.b16 %v2001
    %v2162 = vunpack.c.h.b16 %v2001
    %v2163 = vunpack.c.l.b16 %v2002
    %v2164 = vunpack.c.h.b16 %v2002
    %v2165 = vunpack.c.l.b16 %v2003
    %v2166 = vunpack.c.h.b16 %v2003
    %v2167 = vunpack.c.l.b16 %v2004
    %v2168 = vunpack.c.h.b16 %v2004
    %v2169 = vunpack.c.l.b16 %v2005
    %v2170 = vunpack.c.h.b16 %v2005
    %v2171 = vunpack.c.l.b16 %v2006
    %v2172 = vunpack.c.h.b16 %v2006
    %v2173 = vunpack.c.l.b16 %v2007
    %v2174 = vunpack.c.h.b16 %v2007
    %v2175 = vunpack.c.l.b16 %v2008
    %v2176 = vunpack.c.h.b16 %v2008
    %v2177 = vunpack.c.l.b16 %v2009
    %v2178 = vunpack.c.h.b16 %v2009
    %v2179 = vunpack.c.l.b16 %v2010
    %v2180 = vunpack.c.h.b16 %v2010
    %v2181 = vunpack.c.l.b16 %v2011
    %v2182 = vunpack.c.h.b16 %v2011
    %v2183 = vunpack.c.l.b16 %v2012
    %v2184 = vunpack.c.h.b16 %v2012
    %v2185 = vunpack.c.l.b16 %v2013
    %v2186 = vunpack.c.h.b16 %v2013
    %v2187 = vunpack.c.l.b16 %v2014
    %v2188 = vunpack.c.h.b16 %v2014
    %v2189 = vunpack.c.l.b16 %v2015
    %v2190 = vunpack.c.h.b16 %v2015
    %v2191 = vunpack.c.l.b16 %v2016
    %v2192 = vunpack.c.h.b16 %v2016
    %v2193 = vunpack.c.l.b16 %v2017
    %v2194 = vunpack.c.h.b16 %v2017
    %v2195 = vunpack.c.l.b16 %v2018
    %v2196 = vunpack.c.h.b16 %v2018
    %v2197 = vunpack.c.l.b16 %v2019
    %v2198 = vunpack.c.h.b16 %v2019
    %v2199 = vunpack.c.l.b16 %v2020
    %v2200 = vunpack.c.h.b16 %v2020
    %v2201 = vunpack.c.l.b16 %v2021
    %v2202 = vunpack.c.h.b16 %v2021
    %v2203 = vunpack.c.l.b16 %v2022
    %v2204 = vunpack.c.h.b16 %v2022
    %v2205 = vunpack.c.l.b16 %v2023
    %v2206 = vunpack.c.h.b16 %v2023
    %v2207 = vunpack.c.l.b16 %v2024
    %v2208 = vunpack.c.h.b16 %v2024
    %v2209 = vunpack.c.l.b16 %v2025
    %v2210 = vunpack.c.h.b16 %v2025
    %v2211 = vunpack.c.l.b16 %v2026
    %v2212 = vunpack.c.h.b16 %v2026
    %v2213 = vunpack.c.l.b16 %v2027
    %v2214 = vunpack.c.h.b16 %v2027
    %v2215 = vunpack.c.l.b16 %v2028
    %v2216 = vunpack.c.h.b16 %v2028
    %v2217 = vunpack.c.l.b16 %v2029
    %v2218 = vunpack.c.h.b16 %v2029
    %v2219 = vunpack.c.l.b16 %v2030
    %v2220 = vunpack.c.h.b16 %v2030
    %v2221 = vunpack.c.l.b16 %v2031
    %v2222 = vunpack.c.h.b16 %v2031
    %v2223 = vunpack.c.l.b16 %v2032
    %v2224 = vunpack.c.h.b16 %v2032
    %v2225 = vunpack.c.l.b16 %v2033
    %v2226 = vunpack.c.h.b16 %v2033
    %v2227 = vunpack.c.l.b16 %v2034
    %v2228 = vunpack.c.h.b16 %v2034
    %v2229 = vunpack.c.l.b16 %v2035
    %v2230 = vunpack.c.h.b16 %v2035
    %v2231 = vunpack.c.l.b16 %v2036
    %v2232 = vunpack.c.h.b16 %v2036
    %v2233 = vunpack.c.l.b16 %v2037
    %v2234 = vunpack.c.h.b16 %v2037
    %v2235 = vunpack.c.l.b16 %v2038
    %v2236 = vunpack.c.h.b16 %v2038
    %v2237 = vunpack.c.l.b16 %v2039
    %v2238 = vunpack.c.h.b16 %v2039
    %v2239 = vunpack.c.l.b16 %v2040
    %v2240 = vunpack.c.h.b16 %v2040
    %v2241 = vunpack.c.l.b16 %v2041
    %v2242 = vunpack.c.h.b16 %v2041
    %v2243 = vunpack.c.l.b16 %v2042
    %v2244 = vunpack.c.h.b16 %v2042
    %v2245 = vunpack.c.l.b16 %v2043
    %v2246 = vunpack.c.h.b16 %v2043
    %v2247 = vunpack.c.l.b16 %v2044
    %v2248 = vunpack.c.h.b16 %v2044
    %v2249 = vpack.c.b16 %v2123, %v2121
    %v2250 = vpack.c.b16 %v2124, %v2122
    %v2251 = vpack.c.b16 %v2127, %v2125
    %v2252 = vpack.c.b16 %v2128, %v2126
    %v2253 = vpack.c.b16 %v2131, %v2129
    %v2254 = vpack.c.b16 %v2132, %v2130
    %v2255 = vpack.c.b16 %v2135, %v2133
    %v2256 = vpack.c.b16 %v2136, %v2134
    %v2257 = vpack.c.b16 %v2139, %v2137
    %v2258 = vpack.c.b16 %v2140, %v2138
    %v2259 = vpack.c.b16 %v2143, %v2141
    %v2260 = vpack.c.b16 %v2144, %v2142
    %v2261 = vpack.c.b16 %v2147, %v2145
    %v2262 = vpack.c.b16 %v2148, %v2146
    %v2263 = vpack.c.b16 %v2151, %v2149
    %v2264 = vpack.c.b16 %v2152, %v2150
    %v2265 = vpack.c.b16 %v2155, %v2153
    %v2266 = vpack.c.b16 %v2156, %v2154
    %v2267 = vpack.c.b16 %v2159, %v2157
    %v2268 = vpack.c.b16 %v2160, %v2158
    %v2269 = vpack.c.b16 %v2163, %v2161
    %v2270 = vpack.c.b16 %v2164, %v2162
    %v2271 = vpack.c.b16 %v2167, %v2165
    %v2272 = vpack.c.b16 %v2168, %v2166
    %v2273 = vpack.c.b16 %v2171, %v2169
    %v2274 = vpack.c.b16 %v2172, %v2170
    %v2275 = vpack.c.b16 %v2175, %v2173
    %v2276 = vpack.c.b16 %v2176, %v2174
    %v2277 = vpack.c.b16 %v2179, %v2177
    %v2278 = vpack.c.b16 %v2180, %v2178
    %v2279 = vpack.c.b16 %v2183, %v2181
    %v2280 = vpack.c.b16 %v2184, %v2182
    %v2281 = vpack.c.b16 %v2187, %v2185
    %v2282 = vpack.c.b16 %v2188, %v2186
    %v2283 = vpack.c.b16 %v2191, %v2189
    %v2284 = vpack.c.b16 %v2192, %v2190
    %v2285 = vpack.c.b16 %v2195, %v2193
    %v2286 = vpack.c.b16 %v2196, %v2194
    %v2287 = vpack.c.b16 %v2199, %v2197
    %v2288 = vpack.c.b16 %v2200, %v2198
    %v2289 = vpack.c.b16 %v2203, %v2201
    %v2290 = vpack.c.b16 %v2204, %v2202
    %v2291 = vpack.c.b16 %v2207, %v2205
    %v2292 = vpack.c.b16 %v2208, %v2206
    %v2293 = vpack.c.b16 %v2211, %v2209
    %v2294 = vpack.c.b16 %v2212, %v2210
    %v2295 = vpack.c.b16 %v2215, %v2213
    %v2296 = vpack.c.b16 %v2216, %v2214
    %v2297 = vpack.c.b16 %v2219, %v2217
    %v2298 = vpack.c.b16 %v2220, %v2218
    %v2299 = vpack.c.b16 %v2223, %v2221
    %v2300 = vpack.c.b16 %v2224, %v2222
    %v2301 = vpack.c.b16 %v2227, %v2225
    %v2302 = vpack.c.b16 %v2228, %v2226
    %v2303 = vpack.c.b16 %v2231, %v2229
    %v2304 = vpack.c.b16 %v2232, %v2230
    %v2305 = vpack.c.b16 %v2235, %v2233
    %v2306 = vpack.c.b16 %v2236, %v2234
    %v2307 = vpack.c.b16 %v2239, %v2237
    %v2308 = vpack.c.b16 %v2240, %v2238
    %v2309 = vpack.c.b16 %v2243, %v2241
    %v2310 = vpack.c.b16 %v2244, %v2242
    %v2311 = vpack.c.b16 %v2247, %v2245
    %v2312 = vpack.c.b16 %v2248, %v2246
    %2377 = vmatprep.subr.bf16.mxu0 %v2250
    %2378 = vmatpush1.bf16.msra.mxu0 %v2249
    %2379 = vmatprep.subr.bf16.mxu0 %v2252
    %2380 = vmatpush1.bf16.msra.mxu0 %v2251
    %2381 = vmatprep.subr.bf16.mxu0 %v2254
    %2382 = vmatpush1.bf16.msra.mxu0 %v2253
    %2383 = vmatprep.subr.bf16.mxu0 %v2256
    %2384 = vmatpush1.bf16.msra.mxu0 %v2255
    %2385 = vmatprep.subr.bf16.mxu0 %v2258
    %2386 = vmatpush1.bf16.msra.mxu0 %v2257
    %2387 = vmatprep.subr.bf16.mxu0 %v2260
    %2388 = vmatpush1.bf16.msra.mxu0 %v2259
    %2389 = vmatprep.subr.bf16.mxu0 %v2262
    %2390 = vmatpush1.bf16.msra.mxu0 %v2261
    %2391 = vmatprep.subr.bf16.mxu0 %v2264
    %2392 = vmatpush1.bf16.msra.mxu0 %v2263
    %2393 = vmatprep.subr.bf16.mxu0 %v2266
    %2394 = vmatpush1.bf16.msra.mxu0 %v2265
    %2395 = vmatprep.subr.bf16.mxu0 %v2268
    %2396 = vmatpush1.bf16.msra.mxu0 %v2267
    %2397 = vmatprep.subr.bf16.mxu0 %v2270
    %2398 = vmatpush1.bf16.msra.mxu0 %v2269
    %2399 = vmatprep.subr.bf16.mxu0 %v2272
    %2400 = vmatpush1.bf16.msra.mxu0 %v2271
    %2401 = vmatprep.subr.bf16.mxu0 %v2274
    %2402 = vmatpush1.bf16.msra.mxu0 %v2273
    %2403 = vmatprep.subr.bf16.mxu0 %v2276
    %2404 = vmatpush1.bf16.msra.mxu0 %v2275
    %2405 = vmatprep.subr.bf16.mxu0 %v2278
    %2406 = vmatpush1.bf16.msra.mxu0 %v2277
    %2407 = vmatprep.subr.bf16.mxu0 %v2280
    %2408 = vmatpush1.bf16.msra.mxu0 %v2279
    %2409 = vmatprep.mubr.bf16.mxu0 %v1978
    %2410 = vmatmul.mubr.bf16.gmra.mrb[0].mxu0 %v1977
    %v2411 = vpop.f32.mrb[0].mxu0
    %v2412 = vadd.f32 %v2050, %v2411
    %v2413 = vpop.f32.mrb[0].mxu0
    %v2414 = vadd.f32 %v2054, %v2413
    %v2415 = vpop.f32.mrb[0].mxu0
    %v2416 = vpop.f32.mrb[0].mxu0
    %2417 = vdwg.mxu0
    %2418 = vmatprep.subr.bf16.mxu0 %v2282
    %2419 = vmatpush1.bf16.msra.mxu0 %v2281
    %2420 = vmatprep.subr.bf16.mxu0 %v2284
    %2421 = vmatpush1.bf16.msra.mxu0 %v2283
    %2422 = vmatprep.subr.bf16.mxu0 %v2286
    %2423 = vmatpush1.bf16.msra.mxu0 %v2285
    %2424 = vmatprep.subr.bf16.mxu0 %v2288
    %2425 = vmatpush1.bf16.msra.mxu0 %v2287
    %2426 = vmatprep.subr.bf16.mxu0 %v2290
    %2427 = vmatpush1.bf16.msra.mxu0 %v2289
    %2428 = vmatprep.subr.bf16.mxu0 %v2292
    %2429 = vmatpush1.bf16.msra.mxu0 %v2291
    %2430 = vmatprep.subr.bf16.mxu0 %v2294
    %2431 = vmatpush1.bf16.msra.mxu0 %v2293
    %2432 = vmatprep.subr.bf16.mxu0 %v2296
    %2433 = vmatpush1.bf16.msra.mxu0 %v2295
    %2434 = vmatprep.subr.bf16.mxu0 %v2298
    %2435 = vmatpush1.bf16.msra.mxu0 %v2297
    %2436 = vmatprep.subr.bf16.mxu0 %v2300
    %2437 = vmatpush1.bf16.msra.mxu0 %v2299
    %2438 = vmatprep.subr.bf16.mxu0 %v2302
    %2439 = vmatpush1.bf16.msra.mxu0 %v2301
    %2440 = vmatprep.subr.bf16.mxu0 %v2304
    %2441 = vmatpush1.bf16.msra.mxu0 %v2303
    %2442 = vmatprep.subr.bf16.mxu0 %v2306
    %2443 = vmatpush1.bf16.msra.mxu0 %v2305
    %2444 = vmatprep.subr.bf16.mxu0 %v2308
    %2445 = vmatpush1.bf16.msra.mxu0 %v2307
    %2446 = vmatprep.subr.bf16.mxu0 %v2310
    %2447 = vmatpush1.bf16.msra.mxu0 %v2309
    %2448 = vmatprep.subr.bf16.mxu0 %v2312
    %2449 = vmatpush1.bf16.msra.mxu0 %v2311
    %2450 = vmatprep.mubr.bf16.mxu0 %v1980
    %2451 = vmatmul.mubr.bf16.gmra.mrb[0].mxu0 %v1979
    %v2452 = vpop.f32.mrb[0].mxu0
    %v2453 = vadd.f32 %v2412, %v2452
    %v2454 = vpop.f32.mrb[0].mxu0
    %v2455 = vadd.f32 %v2414, %v2454
    %v2456 = vpop.f32.mrb[0].mxu0
    %v2457 = vpop.f32.mrb[0].mxu0
    %2458 = vdwg.mxu0
    %v2459 = vmax.f32 %v2453, 0.0
    %v2460 = vmax.f32 %v2455, 0.0
    %v2461 = vpack.c.bf16 %v2459, %v2459
    %v2462 = vpack.c.bf16 %v2460, %v2460
    %v2463 = vld [vmem:[%s5] sm:$0xf]
    %v2464 = vld [vmem:[%s5 + $0x4] sm:$0xf]
    %v2465 = vld [vmem:[%s5 + $0x8] sm:$0xf]
    %v2466 = vld [vmem:[%s5 + $0xc] sm:$0xf]
    %v2467 = vld [vmem:[%s5 + $0x10] sm:$0xf]
    %v2468 = vld [vmem:[%s5 + $0x14] sm:$0xf]
    %v2469 = vld [vmem:[%s5 + $0x18] sm:$0xf]
    %v2470 = vld [vmem:[%s5 + $0x1c] sm:$0xf]
    %v2471 = vld [vmem:[%s5 + $0x20] sm:$0xf]
    %v2472 = vld [vmem:[%s5 + $0x24] sm:$0xf]
    %v2473 = vld [vmem:[%s5 + $0x28] sm:$0xf]
    %v2474 = vld [vmem:[%s5 + $0x2c] sm:$0xf]
    %v2475 = vld [vmem:[%s5 + $0x30] sm:$0xf]
    %v2476 = vld [vmem:[%s5 + $0x34] sm:$0xf]
    %v2477 = vld [vmem:[%s5 + $0x38] sm:$0xf]
    %v2478 = vld [vmem:[%s5 + $0x3c] sm:$0xf]
    %v2479 = vld [vmem:[%s5 + $0x40] sm:$0xf]
    %v2480 = vld [vmem:[%s5 + $0x44] sm:$0xf]
    %v2481 = vld [vmem:[%s5 + $0x48] sm:$0xf]
    %v2482 = vld [vmem:[%s5 + $0x4c] sm:$0xf]
    %v2483 = vld [vmem:[%s5 + $0x50] sm:$0xf]
    %v2484 = vld [vmem:[%s5 + $0x54] sm:$0xf]
    %v2485 = vld [vmem:[%s5 + $0x58] sm:$0xf]
    %v2486 = vld [vmem:[%s5 + $0x5c] sm:$0xf]
    %v2487 = vld [vmem:[%s5 + $0x60] sm:$0xf]
    %v2488 = vld [vmem:[%s5 + $0x64] sm:$0xf]
    %v2489 = vld [vmem:[%s5 + $0x68] sm:$0xf]
    %v2490 = vld [vmem:[%s5 + $0x6c] sm:$0xf]
    %v2491 = vld [vmem:[%s5 + $0x70] sm:$0xf]
    %v2492 = vld [vmem:[%s5 + $0x74] sm:$0xf]
    %v2493 = vld [vmem:[%s5 + $0x78] sm:$0xf]
    %v2494 = vld [vmem:[%s5 + $0x7c] sm:$0xf]
    %v2495 = vld [vmem:[%s6] sm:$0x1]
    %v2497 = vlaneseq
    %v2498 = vshrl.u32 %v2497, 7
    %v2499 = vsub.s32 0, %v2498
    %v2500 = vrot.slane %v2495, %v2499
    %v2534 = vunpack.c.l.b16 %v2463
    %v2535 = vunpack.c.l.b16 %v2464
    %v2536 = vunpack.c.l.b16 %v2465
    %v2537 = vunpack.c.l.b16 %v2466
    %v2538 = vunpack.c.l.b16 %v2467
    %v2539 = vunpack.c.l.b16 %v2468
    %v2540 = vunpack.c.l.b16 %v2469
    %v2541 = vunpack.c.l.b16 %v2470
    %v2542 = vunpack.c.l.b16 %v2471
    %v2543 = vunpack.c.l.b16 %v2472
    %v2544 = vunpack.c.l.b16 %v2473
    %v2545 = vunpack.c.l.b16 %v2474
    %v2546 = vunpack.c.l.b16 %v2475
    %v2547 = vunpack.c.l.b16 %v2476
    %v2548 = vunpack.c.l.b16 %v2477
    %v2549 = vunpack.c.l.b16 %v2478
    %v2550 = vunpack.c.l.b16 %v2479
    %v2551 = vunpack.c.l.b16 %v2480
    %v2552 = vunpack.c.l.b16 %v2481
    %v2553 = vunpack.c.l.b16 %v2482
    %v2554 = vunpack.c.l.b16 %v2483
    %v2555 = vunpack.c.l.b16 %v2484
    %v2556 = vunpack.c.l.b16 %v2485
    %v2557 = vunpack.c.l.b16 %v2486
    %v2558 = vunpack.c.l.b16 %v2487
    %v2559 = vunpack.c.l.b16 %v2488
    %v2560 = vunpack.c.l.b16 %v2489
    %v2561 = vunpack.c.l.b16 %v2490
    %v2562 = vunpack.c.l.b16 %v2491
    %v2563 = vunpack.c.l.b16 %v2492
    %v2564 = vunpack.c.l.b16 %v2493
    %v2565 = vunpack.c.l.b16 %v2494
    %v2566 = vpack.c.b16 %v2535, %v2534
    %v2567 = vpack.c.b16 %v2537, %v2536
    %v2568 = vpack.c.b16 %v2539, %v2538
    %v2569 = vpack.c.b16 %v2541, %v2540
    %v2570 = vpack.c.b16 %v2543, %v2542
    %v2571 = vpack.c.b16 %v2545, %v2544
    %v2572 = vpack.c.b16 %v2547, %v2546
    %v2573 = vpack.c.b16 %v2549, %v2548
    %v2574 = vpack.c.b16 %v2551, %v2550
    %v2575 = vpack.c.b16 %v2553, %v2552
    %v2576 = vpack.c.b16 %v2555, %v2554
    %v2577 = vpack.c.b16 %v2557, %v2556
    %v2578 = vpack.c.b16 %v2559, %v2558
    %v2579 = vpack.c.b16 %v2561, %v2560
    %v2580 = vpack.c.b16 %v2563, %v2562
    %v2581 = vpack.c.b16 %v2565, %v2564
    %2598 = vmatprep.subr.bf16.mxu0 0
    %2599 = vmatpush1.bf16.msra.mxu0 %v2566
    %2600 = vmatprep.subr.bf16.mxu0 0
    %2601 = vmatpush1.bf16.msra.mxu0 %v2567
    %2602 = vmatprep.subr.bf16.mxu0 0
    %2603 = vmatpush1.bf16.msra.mxu0 %v2568
    %2604 = vmatprep.subr.bf16.mxu0 0
    %2605 = vmatpush1.bf16.msra.mxu0 %v2569
    %2606 = vmatprep.subr.bf16.mxu0 0
    %2607 = vmatpush1.bf16.msra.mxu0 %v2570
    %2608 = vmatprep.subr.bf16.mxu0 0
    %2609 = vmatpush1.bf16.msra.mxu0 %v2571
    %2610 = vmatprep.subr.bf16.mxu0 0
    %2611 = vmatpush1.bf16.msra.mxu0 %v2572
    %2612 = vmatprep.subr.bf16.mxu0 0
    %2613 = vmatpush1.bf16.msra.mxu0 %v2573
    %2614 = vmatprep.subr.bf16.mxu0 0
    %2615 = vmatpush1.bf16.msra.mxu0 %v2574
    %2616 = vmatprep.subr.bf16.mxu0 0
    %2617 = vmatpush1.bf16.msra.mxu0 %v2575
    %2618 = vmatprep.subr.bf16.mxu0 0
    %2619 = vmatpush1.bf16.msra.mxu0 %v2576
    %2620 = vmatprep.subr.bf16.mxu0 0
    %2621 = vmatpush1.bf16.msra.mxu0 %v2577
    %2622 = vmatprep.subr.bf16.mxu0 0
    %2623 = vmatpush1.bf16.msra.mxu0 %v2578
    %2624 = vmatprep.subr.bf16.mxu0 0
    %2625 = vmatpush1.bf16.msra.mxu0 %v2579
    %2626 = vmatprep.subr.bf16.mxu0 0
    %2627 = vmatpush1.bf16.msra.mxu0 %v2580
    %2628 = vmatprep.subr.bf16.mxu0 0
    %2629 = vmatpush1.bf16.msra.mxu0 %v2581
    %2630 = vmatprep.mubr.bf16.mxu0 %v2462
    %2631 = vmatmul.mubr.bf16.gmra.mrb[0].mxu0 %v2461
    %v2632 = vpop.f32.mrb[0].mxu0
    %v2633 = vadd.f32 %v2500, %v2632
    %v2634 = vpop.f32.mrb[0].mxu0
    %v2635 = vpop.f32.mrb[0].mxu0
    %v2636 = vpop.f32.mrb[0].mxu0
    %2637 = vdwg.mxu0
    %vm2638 = vcmask 1041408
    %v2639 = vsel %vm2638, %v2633, -inf
    %2640 = vmax.xlane.f32.xlu0 %v2639
    %v2641 = vpop.xlane.xlu0 %2640
    %v2642 = vsub.f32 %v2633, %v2641
    %v2643 = vmul.f32 %v2642, 1.442695
    %v2644 = vpow.pop %v2643
    %v2645 = vsel %vm2638, %v2644, 0.0
    %2646 = vadd.xlane.f32.xlu0 %v2645
    %v2647 = vpop.xlane.xlu0 %2646
    %v2648 = vlog2.pop %v2647
    %v2649 = vmul.f32 %v2648, 0.6931472
    %v2650 = vadd.f32 %v2649, %v2641
    %v2651 = vsub.f32 %v2633, %v2650
    %2652 = vst [vmem:[#allocation2] sm:$0x3] %v2651
    // Predicated region
    $region30: #{_lambda_.7} parent=1 // pred_check
      _
    $region31: #{_lambda_.7} parent=1 // pred_check_branch
      %2654 = sbr.rel (0) target = $region33
    $region32: #{_lambda_.7} parent=1 // pred_region
      %s2656 = ssub.s32 32, 32
      %2657 = vsyncadd [#allocation3], %s2656
      %s2659 = sshll.u32 [#allocation2], 4
      %s2660 = int_to_ptr.vmem [resolvable:$true] %s2659
      %2662 = dma.vmem_to_hbm [thread:$0]  %s2660, 32, %s7, [#allocation3]
    $region33: #{_lambda_.7} parent=1 // pred_fallthru
      _
    // Predicated region
    $region34: #{_lambda_.7} parent=1 // pred_check
      _
    $region35: #{_lambda_.7} parent=1 // pred_check_branch
      %2664 = sbr.rel (0) target = $region37
    $region36: #{_lambda_.7} parent=1 // pred_region
      %2665 = dma.done [#allocation3], 32
    $region37: #{_lambda_.7} parent=1 // pred_fallthru
      _
    %2666 = vsyncpa [#allocation3], 1

</llo_original>
